<compile_context>
chip_gen: v7x
topology: tpu7x:2x2x1
jax: 0.10.0
libtpu: 0.0.40
codegen_flags: <defaults>
</compile_context>

<pallas_src>
import numpy as np
import jax
import jax.numpy as jnp
from jax.experimental import pallas as pl
from jax.experimental.pallas import tpu as pltpu

# Shapes implied by the PyTorch module (32*5*5 flatten => 14x14 spatial input).
C_IN, H_IN, W_IN = 3, 14, 14
K = 5
OC = 32
OH, OW = H_IN - K + 1, W_IN - K + 1          # 10, 10
PH, PW = OH // 2, OW // 2                    # 5, 5
HID = 64
NCLS = 10
LANE = 128                                   # lane-dense logits width

CONTR = C_IN * H_IN * W_IN                   # 588  (c, h, w) contraction dim
CONTR_PAD = 640                              # pad to 5*128 lanes
QPAD = 896                                   # 7*128: one pool-quadrant slab (800 real + 96 pad)
CONV_COLS = 4 * QPAD                         # 3584 lanes = (quad, ph, pw, oc) + pad
POOL_REAL = PH * PW * OC                     # 800


# ------------------------------ Pallas kernel ------------------------------ #

def _fused_cnn_kernel(x_ref, wc_ref, bc_ref, w1_ref, b1_ref, w2_ref, b2_ref,
                      o_ref):
    """One batch tile per grid step: conv5x5+ReLU -> maxpool2x2 -> fc1+ReLU -> fc2.

    x_ref : (BN, 640)   bf16  flattened images, lanes = (c, h, w) + zero pad
    wc_ref: (640, 3584) bf16  dense-ified im2col conv weight,
                              lanes = (quad, ph, pw, oc), 896-lane quadrants
    bc_ref: (1, 3584)   f32   conv bias tiled over (ph, pw), zero on pad lanes
    w1_ref: (896, 64)   bf16  fc1 weight, flatten permutation + pool pad baked in
    b1_ref: (1, 64)     f32
    w2_ref: (64, 128)   bf16  fc2 weight zero-padded to 128 output lanes
    b2_ref: (1, 128)    f32
    o_ref : (BN, 128)   f32   padded logits
    """
    # Whole conv for the tile as a single MXU dot (bf16 operands, f32 accum):
    #   g[b, quad*896 + ph*160 + pw*32 + oc] = conv(x)[b, oc, 2*ph+qh, 2*pw+qw]
    g = jnp.dot(x_ref[...], wc_ref[...], preferred_element_type=jnp.float32)
    conv = jnp.maximum(g + bc_ref[...], 0.0)                    # (BN, 3584) f32

    # 2x2 maxpool = elementwise max over the four 128-aligned quadrant slabs.
    p = jnp.maximum(jnp.maximum(conv[:, 0 * QPAD:1 * QPAD],
                                conv[:, 1 * QPAD:2 * QPAD]),
                    jnp.maximum(conv[:, 2 * QPAD:3 * QPAD],
                                conv[:, 3 * QPAD:4 * QPAD]))    # (BN, 896) f32

    # fc1: one (BN, 896) x (896, 64) dot (flatten permutation baked into w1).
    h = jnp.dot(p.astype(jnp.bfloat16), w1_ref[...],
                preferred_element_type=jnp.float32)
    h = jnp.maximum(h + b1_ref[...], 0.0)                       # (BN, 64) f32

    # fc2: (BN, 64) x (64, 128) -> dense (BN, 128) store of padded logits.
    o_ref[...] = jnp.dot(h.astype(jnp.bfloat16), w2_ref[...],
                         preferred_element_type=jnp.float32) + b2_ref[...]


# ------------------- One-time host-side parameter packing ------------------ #

def prepare_params(params):
    """Repack PyTorch-layout params once (im2col + pooling layout + flatten
    permutation baked into bf16 weights)."""
    w_conv, b_conv, w_fc1, b_fc1, w_fc2, b_fc2 = (
        np.asarray(p, np.float32) for p in params)

    # Dense-ified im2col conv weight: row = c*196 + h*14 + w (matching the
    # wrapper's x.reshape(n, 588)), col = quad*896 + (ph*5 + pw)*32 + oc,
    # quad = 2*qh + qw, oh = 2*ph + qh, ow = 2*pw + qw.
    wc = np.zeros((CONTR_PAD, CONV_COLS), np.float32)
    for qh in range(2):
        for qw in range(2):
            quad = 2 * qh + qw
            for ph in range(PH):
                for pw in range(PW):
                    oh = 2 * ph + qh
                    ow = 2 * pw + qw
                    col = quad * QPAD + (ph * PW + pw) * OC
                    for kh in range(K):
                        for kw in range(K):
                            h = oh + kh
                            w = ow + kw
                            for c in range(C_IN):
                                row = (c * H_IN + h) * W_IN + w
                                wc[row, col:col + OC] = w_conv[:, c, kh, kw]

    # Conv bias broadcast over (ph, pw) within each quadrant; pad lanes stay 0.
    bc = np.zeros((1, CONV_COLS), np.float32)
    for quad in range(4):
        bc[0, quad * QPAD:quad * QPAD + POOL_REAL] = np.tile(b_conv, PH * PW)

    # fc1 with the NCHW flatten permutation baked in: rows ordered (ph, pw, oc),
    # zero rows for the 96 pool-pad lanes.
    w1 = np.zeros((QPAD, HID), np.float32)
    w1[:POOL_REAL] = (w_fc1.reshape(HID, OC, PH, PW)
                      .transpose(2, 3, 1, 0).reshape(POOL_REAL, HID))
    b1 = b_fc1.reshape(1, HID)

    # fc2 zero-padded to 128 output lanes for a dense store.
    w2 = np.zeros((HID, LANE), np.float32)
    w2[:, :NCLS] = w_fc2.T
    b2 = np.zeros((1, LANE), np.float32)
    b2[0, :NCLS] = b_fc2

    return (jnp.asarray(wc, jnp.bfloat16), jnp.asarray(bc, jnp.float32),
            jnp.asarray(w1, jnp.bfloat16), jnp.asarray(b1, jnp.float32),
            jnp.asarray(w2, jnp.bfloat16), jnp.asarray(b2, jnp.float32))


# --------------------------------- Forward --------------------------------- #

def _round_up(a, b):
    return (a + b - 1) // b * b


def simple_cnn_forward(x, packed, *, batch_block=64):
    """x: (N, 3, 14, 14) float32 NCHW. Returns logits (N, 10) float32."""
    wc, bc, w1, b1, w2, b2 = packed
    n = x.shape[0]

    # Batch tile: multiple of 8 (sublane-dense stores), capped by the batch.
    bn = _round_up(min(batch_block, _round_up(n, 8)), 8)
    n_pad = _round_up(n, bn)
    steps = n_pad // bn

    # Wrapper-side layout plumbing: flatten (c,h,w) into the contraction dim,
    # zero-pad to 640 lanes / n_pad rows, cast the matmul operand to bf16.
    x_flat = x.reshape(n, CONTR)
    x_flat = jnp.pad(x_flat, ((0, n_pad - n), (0, CONTR_PAD - CONTR)))
    x_flat = x_flat.astype(jnp.bfloat16)

    flops = 2 * n_pad * (CONTR_PAD * CONV_COLS + QPAD * HID + HID * LANE)
    bytes_accessed = (x_flat.size * 2 + wc.size * 2 + bc.size * 4
                      + w1.size * 2 + b1.size * 4 + w2.size * 2 + b2.size * 4
                      + n_pad * LANE * 4)

    out = pl.pallas_call(
        _fused_cnn_kernel,
        out_shape=jax.ShapeDtypeStruct((n_pad, LANE), jnp.float32),
        grid=(steps,),
        in_specs=[
            pl.BlockSpec((bn, CONTR_PAD), lambda i: (i, 0)),
            pl.BlockSpec((CONTR_PAD, CONV_COLS), lambda i: (0, 0)),
            pl.BlockSpec((1, CONV_COLS), lambda i: (0, 0)),
            pl.BlockSpec((QPAD, HID), lambda i: (0, 0)),
            pl.BlockSpec((1, HID), lambda i: (0, 0)),
            pl.BlockSpec((HID, LANE), lambda i: (0, 0)),
            pl.BlockSpec((1, LANE), lambda i: (0, 0)),
        ],
        out_specs=pl.BlockSpec((bn, LANE), lambda i: (i, 0)),
        compiler_params=pltpu.CompilerParams(
            dimension_semantics=("parallel",),
            vmem_limit_bytes=32 * 1024 * 1024),
        cost_estimate=pl.CostEstimate(flops=flops, transcendentals=0,
                                      bytes_accessed=bytes_accessed),
    )(x_flat, wc, bc, w1, b1, w2, b2)
    return out[:n, :NCLS]


# --------------------------- Parameter construction ------------------------ #

def init_params(key):
    """Deterministic init mimicking PyTorch's default U(-1/sqrt(fan_in), +...)."""
    ks = jax.random.split(key, 6)

    def u(k, shape, fan_in):
        bound = 1.0 / jnp.sqrt(float(fan_in))
        return jax.random.uniform(k, shape, jnp.float32, -bound, bound)

    w_conv = u(ks[0], (OC, C_IN, K, K), C_IN * K * K)
    b_conv = u(ks[1], (OC,), C_IN * K * K)
    w_fc1 = u(ks[2], (HID, OC * PH * PW), OC * PH * PW)
    b_fc1 = u(ks[3], (HID,), OC * PH * PW)
    w_fc2 = u(ks[4], (NCLS, HID), HID)
    b_fc2 = u(ks[5], (NCLS,), HID)
    return (w_conv, b_conv, w_fc1, b_fc1, w_fc2, b_fc2)


# ---------------------------- Reference (pure JAX) -------------------------- #

def reference_forward(x, params):
    w_conv, b_conv, w_fc1, b_fc1, w_fc2, b_fc2 = params
    conv = jax.lax.conv_general_dilated(
        x, w_conv, window_strides=(1, 1), padding="VALID",
        dimension_numbers=("NCHW", "OIHW", "NCHW"))
    conv = jax.nn.relu(conv + b_conv.reshape(1, -1, 1, 1))   # (N, 32, 10, 10)
    n, c, hh, ww = conv.shape
    pooled = conv.reshape(n, c, hh // 2, 2, ww // 2, 2).max(axis=(3, 5))
    flat = pooled.reshape(n, c * (hh // 2) * (ww // 2))
    h = jax.nn.relu(flat @ w_fc1.T + b_fc1)
    return h @ w_fc2.T + b_fc2


# ----------------------------------- Main ----------------------------------- #

if __name__ == "__main__":
    key = jax.random.PRNGKey(0)
    k_x, k_p = jax.random.split(key)

    n = 32                                    # small demo batch
    x = jax.random.normal(k_x, (n, C_IN, H_IN, W_IN), jnp.float32)
    params = init_params(k_p)
    packed = prepare_params(params)           # one-time host-side repacking

    fwd = jax.jit(simple_cnn_forward, static_argnames=("batch_block",))
    # batch_block=16 -> 2 parallel grid steps at this small demo batch
    # (use the default 64 at realistic batch sizes).
    out = jax.block_until_ready(fwd(x, packed, batch_block=16))
    assert out.shape == (n, NCLS) and out.dtype == jnp.float32

    ref = reference_forward(x, params)
    # bf16 matmul operands (f32 accumulation) -> loosened tolerance vs the
    # f32 reference, per the performance review.
    assert jnp.allclose(out, ref, atol=5e-2, rtol=5e-2), "mismatch vs reference"

    print("KERNEL_OK")
</pallas_src>

<mosaic_0001>
module attributes {stable_mosaic.version = 11 : i64} {
  func.func @_fused_cnn_kernel(%arg0: i32, %arg1: memref<16x640xbf16, #tpu.memory_space<vmem>>, %arg2: memref<640x3584xbf16, #tpu.memory_space<vmem>>, %arg3: memref<1x3584xf32, #tpu.memory_space<vmem>>, %arg4: memref<896x64xbf16, #tpu.memory_space<vmem>>, %arg5: memref<1x64xf32, #tpu.memory_space<vmem>>, %arg6: memref<64x128xbf16, #tpu.memory_space<vmem>>, %arg7: memref<1x128xf32, #tpu.memory_space<vmem>>, %arg8: memref<16x128xf32, #tpu.memory_space<vmem>>) attributes {dimension_semantics = [#tpu.dimension_semantics<parallel>], iteration_bounds = array<i64: 2>, scalar_prefetch = 0 : i64, scratch_operands = 0 : i64, tpu.core_type = #tpu.core_type<tc>, window_params = [{transform_indices = @transform_0, window_bounds = array<i64: 16, 640>}, {pipeline_mode = #tpu.pipeline_mode<synchronous>, transform_indices = @transform_1, window_bounds = array<i64: 640, 3584>}, {pipeline_mode = #tpu.pipeline_mode<synchronous>, transform_indices = @transform_2, window_bounds = array<i64: 1, 3584>}, {pipeline_mode = #tpu.pipeline_mode<synchronous>, transform_indices = @transform_3, window_bounds = array<i64: 896, 64>}, {pipeline_mode = #tpu.pipeline_mode<synchronous>, transform_indices = @transform_4, window_bounds = array<i64: 1, 64>}, {pipeline_mode = #tpu.pipeline_mode<synchronous>, transform_indices = @transform_5, window_bounds = array<i64: 64, 128>}, {pipeline_mode = #tpu.pipeline_mode<synchronous>, transform_indices = @transform_6, window_bounds = array<i64: 1, 128>}, {transform_indices = @transform_7, window_bounds = array<i64: 16, 128>}]} {
    %c0 = arith.constant 0 : index
    %c0_0 = arith.constant 0 : index
    %0 = vector.load %arg1[%c0, %c0_0] : memref<16x640xbf16, #tpu.memory_space<vmem>>, vector<16x640xbf16>
    %c0_1 = arith.constant 0 : index
    %c0_2 = arith.constant 0 : index
    %1 = vector.load %arg2[%c0_1, %c0_2] : memref<640x3584xbf16, #tpu.memory_space<vmem>>, vector<640x3584xbf16>
    %cst = arith.constant dense<0.000000e+00> : vector<16x3584xf32>
    %2 = tpu.matmul %0, %1, %cst {dimension_numbers = #tpu.dot_dimension_numbers<[1], [0], [0], [1], [0, 0, 1, 1], [], []>} : vector<16x640xbf16>, vector<640x3584xbf16>, vector<16x3584xf32> -> vector<16x3584xf32>
    %c0_3 = arith.constant 0 : index
    %c0_4 = arith.constant 0 : index
    %3 = vector.load %arg3[%c0_3, %c0_4] : memref<1x3584xf32, #tpu.memory_space<vmem>>, vector<1x3584xf32>
    %4 = vector.broadcast %3 : vector<1x3584xf32> to vector<16x3584xf32>
    %5 = arith.addf %2, %4 : vector<16x3584xf32>
    %cst_5 = arith.constant 0.000000e+00 : f32
    %6 = vector.broadcast %cst_5 : f32 to vector<16x3584xf32>
    %7 = arith.maximumf %5, %6 : vector<16x3584xf32>
    %8 = vector.extract_strided_slice %7 {offsets = [0, 0], sizes = [16, 896], strides = [1, 1]} : vector<16x3584xf32> to vector<16x896xf32>
    %9 = vector.extract_strided_slice %7 {offsets = [0, 896], sizes = [16, 896], strides = [1, 1]} : vector<16x3584xf32> to vector<16x896xf32>
    %10 = arith.maximumf %8, %9 : vector<16x896xf32>
    %11 = vector.extract_strided_slice %7 {offsets = [0, 1792], sizes = [16, 896], strides = [1, 1]} : vector<16x3584xf32> to vector<16x896xf32>
    %12 = vector.extract_strided_slice %7 {offsets = [0, 2688], sizes = [16, 896], strides = [1, 1]} : vector<16x3584xf32> to vector<16x896xf32>
    %13 = arith.maximumf %11, %12 : vector<16x896xf32>
    %14 = arith.maximumf %10, %13 : vector<16x896xf32>
    %15 = arith.truncf %14 : vector<16x896xf32> to vector<16x896xbf16>
    %c0_6 = arith.constant 0 : index
    %c0_7 = arith.constant 0 : index
    %16 = vector.load %arg4[%c0_6, %c0_7] : memref<896x64xbf16, #tpu.memory_space<vmem>>, vector<896x64xbf16>
    %cst_8 = arith.constant dense<0.000000e+00> : vector<16x64xf32>
    %17 = tpu.matmul %15, %16, %cst_8 {dimension_numbers = #tpu.dot_dimension_numbers<[1], [0], [0], [1], [0, 0, 1, 1], [], []>} : vector<16x896xbf16>, vector<896x64xbf16>, vector<16x64xf32> -> vector<16x64xf32>
    %c0_9 = arith.constant 0 : index
    %c0_10 = arith.constant 0 : index
    %18 = vector.load %arg5[%c0_9, %c0_10] : memref<1x64xf32, #tpu.memory_space<vmem>>, vector<1x64xf32>
    %19 = vector.broadcast %18 : vector<1x64xf32> to vector<16x64xf32>
    %20 = arith.addf %17, %19 : vector<16x64xf32>
    %cst_11 = arith.constant 0.000000e+00 : f32
    %21 = vector.broadcast %cst_11 : f32 to vector<16x64xf32>
    %22 = arith.maximumf %20, %21 : vector<16x64xf32>
    %23 = arith.truncf %22 : vector<16x64xf32> to vector<16x64xbf16>
    %c0_12 = arith.constant 0 : index
    %c0_13 = arith.constant 0 : index
    %24 = vector.load %arg6[%c0_12, %c0_13] : memref<64x128xbf16, #tpu.memory_space<vmem>>, vector<64x128xbf16>
    %cst_14 = arith.constant dense<0.000000e+00> : vector<16x128xf32>
    %25 = tpu.matmul %23, %24, %cst_14 {dimension_numbers = #tpu.dot_dimension_numbers<[1], [0], [0], [1], [0, 0, 1, 1], [], []>} : vector<16x64xbf16>, vector<64x128xbf16>, vector<16x128xf32> -> vector<16x128xf32>
    %c0_15 = arith.constant 0 : index
    %c0_16 = arith.constant 0 : index
    %26 = vector.load %arg7[%c0_15, %c0_16] : memref<1x128xf32, #tpu.memory_space<vmem>>, vector<1x128xf32>
    %27 = vector.broadcast %26 : vector<1x128xf32> to vector<16x128xf32>
    %28 = arith.addf %25, %27 : vector<16x128xf32>
    %c0_17 = arith.constant 0 : index
    %c0_18 = arith.constant 0 : index
    %29 = vector.load %arg8[%c0_17, %c0_18] : memref<16x128xf32, #tpu.memory_space<vmem>>, vector<16x128xf32>
    tpu.vector_store %arg8[%c0_17, %c0_18], %28 {strides = array<i32>} : memref<16x128xf32, #tpu.memory_space<vmem>>, vector<16x128xf32>,
    return
  }
  func.func @transform_0(%arg0: i32) -> (i32, i32) {
    %c0_i32 = arith.constant 0 : i32
    %c0_i32_0 = arith.constant 0 : i32
    return %arg0, %c0_i32 : i32, i32
  }
  func.func @transform_1(%arg0: i32) -> (i32, i32) {
    %c0_i32 = arith.constant 0 : i32
    %c0_i32_0 = arith.constant 0 : i32
    %c0_i32_1 = arith.constant 0 : i32
    return %c0_i32, %c0_i32_0 : i32, i32
  }
  func.func @transform_2(%arg0: i32) -> (i32, i32) {
    %c0_i32 = arith.constant 0 : i32
    %c0_i32_0 = arith.constant 0 : i32
    %c0_i32_1 = arith.constant 0 : i32
    return %c0_i32, %c0_i32_0 : i32, i32
  }
  func.func @transform_3(%arg0: i32) -> (i32, i32) {
    %c0_i32 = arith.constant 0 : i32
    %c0_i32_0 = arith.constant 0 : i32
    %c0_i32_1 = arith.constant 0 : i32
    return %c0_i32, %c0_i32_0 : i32, i32
  }
  func.func @transform_4(%arg0: i32) -> (i32, i32) {
    %c0_i32 = arith.constant 0 : i32
    %c0_i32_0 = arith.constant 0 : i32
    %c0_i32_1 = arith.constant 0 : i32
    return %c0_i32, %c0_i32_0 : i32, i32
  }
  func.func @transform_5(%arg0: i32) -> (i32, i32) {
    %c0_i32 = arith.constant 0 : i32
    %c0_i32_0 = arith.constant 0 : i32
    %c0_i32_1 = arith.constant 0 : i32
    return %c0_i32, %c0_i32_0 : i32, i32
  }
  func.func @transform_6(%arg0: i32) -> (i32, i32) {
    %c0_i32 = arith.constant 0 : i32
    %c0_i32_0 = arith.constant 0 : i32
    %c0_i32_1 = arith.constant 0 : i32
    return %c0_i32, %c0_i32_0 : i32, i32
  }
  func.func @transform_7(%arg0: i32) -> (i32, i32) {
    %c0_i32 = arith.constant 0 : i32
    %c0_i32_0 = arith.constant 0 : i32
    return %arg0, %c0_i32 : i32, i32
  }
}

</mosaic_0001>

<llo_original>
// kernel: simple_cnn_forward.1
$region0: #{simple_cnn_forward.1}
  #allocation0 [shape = 'u32[]', space=smem, size = 0x4, offset = 0x4, fixed_abs, tag = 'smem constant byte address 0x4 - core index']
  #allocation1 [shape = 'u32[144,128]{1,0:T(1,128)}', space=vmem, size = 0x12000, scoped, tag = 'internal scratch']
  %s0 = inlined_call_operand.vmem [shape: bf16[32,640], index: 0, kind: input, shape index: {}]
  %s1 = inlined_call_operand.hbm [shape: bf16[640,3584], index: 1, kind: input, shape index: {}]
  %s2 = inlined_call_operand.hbm [shape: f32[1,3584], index: 2, kind: input, shape index: {}]
  %s3 = inlined_call_operand.vmem [shape: bf16[896,64], index: 3, kind: input, shape index: {}]
  %s4 = inlined_call_operand.hbm [shape: f32[1,64], index: 4, kind: input, shape index: {}]
  %s5 = inlined_call_operand.hbm [shape: bf16[64,128], index: 5, kind: input, shape index: {}]
  %s6 = inlined_call_operand.hbm [shape: f32[1,128], index: 6, kind: input, shape index: {}]
  %s7 = inlined_call_operand.vmem [shape: f32[32,128], index: 7, kind: output, shape index: {}]
  %s8 = sld [smem:[#allocation0]]
  $region81: #{simple_cnn_forward.1} parent=0
    _
  %s10 = ssub.s32 1, %s8
  %s11 = scalar_select 0, %s10, %s8
  $region1: #{simple_cnn_forward.1} parent=0
    #allocation2 [shape = 'u8[4587520]{0}', space=vmem, size = 0x460000, scoped, tag = 'input window, operand 1, single buffered']
    #allocation3 [shape = 's32[2]{0}', space=sflag, size = 0x8, scoped, tag = 'scoped memory for simple_cnn_forward.1']
    #allocation4 [shape = 'u8[14336]{0}', space=vmem, size = 0x3800, scoped, tag = 'input window, operand 2, single buffered']
    #allocation5 [shape = 's32[1]{0}', space=sflag, size = 0x4, scoped, tag = 'scoped memory for simple_cnn_forward.1']
    #allocation6 [shape = 'u8[512]{0}', space=vmem, size = 0x400, scoped, tag = 'input window, operand 4, single buffered']
    #allocation7 [shape = 'u8[16384]{0}', space=vmem, size = 0x4000, scoped, tag = 'input window, operand 5, single buffered']
    #allocation8 [shape = 's32[1]{0}', space=sflag, size = 0x4, scoped, tag = 'scoped memory for simple_cnn_forward.1']
    #allocation9 [shape = 'u8[512]{0}', space=vmem, size = 0x400, scoped, tag = 'input window, operand 6, single buffered']
    %12 = vsyncpa [#allocation3], 0
    %13 = vsyncpa [#allocation5], 0
    %14 = vsyncpa [#allocation8], 0
    loop: start=0, step=1, limit=4
    $region2: #{simple_cnn_forward.1} parent=1 // loop_pre_header
      _
    $region3: #{simple_cnn_forward.1} parent=1 // loop_header
      %s16 = sphi 0, %s20
      %p17 = scmp.ge.s32.totalorder %s16, 4
      %s26 = sphi 0, %s28
      %s29 = sphi 0, %s26
      %s30 = sphi 0, %s29
      %s46 = sphi 0, %s30
      %s50 = sphi 0, %s50
      %s52 = sphi 0, %s50
      %s53 = sphi 0, %s52
      %s67 = sphi 0, %s53
      %s71 = sphi 0, %s71
      %s73 = sphi 0, %s71
      %s74 = sphi 0, %s73
      %s88 = sphi 0, %s74
      %s92 = sphi 0, %s92
      %s94 = sphi 0, %s92
      %s95 = sphi 0, %s94
      %s109 = sphi 0, %s95
      %s113 = sphi 0, %s113
      %s115 = sphi 0, %s113
      %s116 = sphi 0, %s115
      %s130 = sphi 0, %s116
      %s134 = sphi 0, %s134
      %s136 = sphi 0, %s134
      %s137 = sphi 0, %s136
      %s151 = sphi 0, %s137
      %s155 = sphi 0, %s155
      %s157 = sphi 0, %s155
      %s158 = sphi 0, %s157
      %s172 = sphi 0, %s158
      %s178 = sphi 0, %s180
      %s181 = sphi 0, %s178
      %s182 = sphi 0, %s181
      %s198 = sphi 0, %s182
    $region4: #{simple_cnn_forward.1} parent=1 // loop_header_branch
      %19 = sbr.rel (%p17) target = $region8
    $region5: #{simple_cnn_forward.1} parent=1 // loop_body
      %s21 = ssub.s32 %s16, 1
      %s22 = ssub.s32 %s16, 2
      %s23 = sadd.s32 %s16, 1
      %s24 = ssub.s32 %s16, %s23
      %p25 = scmp.eq.s32.totalorder %s24, 0
      %s27 = sadd.s32 %s26, 1
      %s28 = scalar_select %p25, %s26, %s27
      %p31 = pneg %p25
      %p32 = scmp.eq.s32.totalorder %s16, 1
      %p33 = por %p31, %p32
      %p34 = scmp.ne.s32.totalorder %s26, %s29
      %p35 = scmp.eq.s32.totalorder %s16, 0
      %p36 = por %p34, %p35
      %p37 = scmp.ne.s32.totalorder %s26, %s29
      %p38 = scmp.eq.s32.totalorder %s21, 1
      %p39 = por %p37, %p38
      %p40 = scmp.ne.s32.totalorder %s29, %s30
      %p41 = scmp.eq.s32.totalorder %s21, 0
      %p42 = por %p40, %p41
      %p43 = scmp.ne.s32.totalorder %s29, %s30
      %p44 = scmp.eq.s32.totalorder %s22, 1
      %p45 = por %p43, %p44
      %p47 = scmp.ne.s32.totalorder %s30, %s46
      %p48 = scmp.eq.s32.totalorder %s22, 0
      %p49 = por %p47, %p48
      %s51 = sadd.s32 %s50, 1
      %p54 = scmp.eq.s32.totalorder %s16, 1
      %p55 = scmp.ne.s32.totalorder %s50, %s52
      %p56 = scmp.eq.s32.totalorder %s16, 0
      %p57 = por %p55, %p56
      %p58 = scmp.ne.s32.totalorder %s50, %s52
      %p59 = scmp.eq.s32.totalorder %s21, 1
      %p60 = por %p58, %p59
      %p61 = scmp.ne.s32.totalorder %s52, %s53
      %p62 = scmp.eq.s32.totalorder %s21, 0
      %p63 = por %p61, %p62
      %p64 = scmp.ne.s32.totalorder %s52, %s53
      %p65 = scmp.eq.s32.totalorder %s22, 1
      %p66 = por %p64, %p65
      %p68 = scmp.ne.s32.totalorder %s53, %s67
      %p69 = scmp.eq.s32.totalorder %s22, 0
      %p70 = por %p68, %p69
      %s72 = sadd.s32 %s71, 1
      %p75 = scmp.eq.s32.totalorder %s16, 1
      %p76 = scmp.ne.s32.totalorder %s71, %s73
      %p77 = scmp.eq.s32.totalorder %s16, 0
      %p78 = por %p76, %p77
      %p79 = scmp.ne.s32.totalorder %s71, %s73
      %p80 = scmp.eq.s32.totalorder %s21, 1
      %p81 = por %p79, %p80
      %p82 = scmp.ne.s32.totalorder %s73, %s74
      %p83 = scmp.eq.s32.totalorder %s21, 0
      %p84 = por %p82, %p83
      %p85 = scmp.ne.s32.totalorder %s73, %s74
      %p86 = scmp.eq.s32.totalorder %s22, 1
      %p87 = por %p85, %p86
      %p89 = scmp.ne.s32.totalorder %s74, %s88
      %p90 = scmp.eq.s32.totalorder %s22, 0
      %p91 = por %p89, %p90
      %s93 = sadd.s32 %s92, 1
      %p96 = scmp.eq.s32.totalorder %s16, 1
      %p97 = scmp.ne.s32.totalorder %s92, %s94
      %p98 = scmp.eq.s32.totalorder %s16, 0
      %p99 = por %p97, %p98
      %p100 = scmp.ne.s32.totalorder %s92, %s94
      %p101 = scmp.eq.s32.totalorder %s21, 1
      %p102 = por %p100, %p101
      %p103 = scmp.ne.s32.totalorder %s94, %s95
      %p104 = scmp.eq.s32.totalorder %s21, 0
      %p105 = por %p103, %p104
      %p106 = scmp.ne.s32.totalorder %s94, %s95
      %p107 = scmp.eq.s32.totalorder %s22, 1
      %p108 = por %p106, %p107
      %p110 = scmp.ne.s32.totalorder %s95, %s109
      %p111 = scmp.eq.s32.totalorder %s22, 0
      %p112 = por %p110, %p111
      %s114 = sadd.s32 %s113, 1
      %p117 = scmp.eq.s32.totalorder %s16, 1
      %p118 = scmp.ne.s32.totalorder %s113, %s115
      %p119 = scmp.eq.s32.totalorder %s16, 0
      %p120 = por %p118, %p119
      %p121 = scmp.ne.s32.totalorder %s113, %s115
      %p122 = scmp.eq.s32.totalorder %s21, 1
      %p123 = por %p121, %p122
      %p124 = scmp.ne.s32.totalorder %s115, %s116
      %p125 = scmp.eq.s32.totalorder %s21, 0
      %p126 = por %p124, %p125
      %p127 = scmp.ne.s32.totalorder %s115, %s116
      %p128 = scmp.eq.s32.totalorder %s22, 1
      %p129 = por %p127, %p128
      %p131 = scmp.ne.s32.totalorder %s116, %s130
      %p132 = scmp.eq.s32.totalorder %s22, 0
      %p133 = por %p131, %p132
      %s135 = sadd.s32 %s134, 1
      %p138 = scmp.eq.s32.totalorder %s16, 1
      %p139 = scmp.ne.s32.totalorder %s134, %s136
      %p140 = scmp.eq.s32.totalorder %s16, 0
      %p141 = por %p139, %p140
      %p142 = scmp.ne.s32.totalorder %s134, %s136
      %p143 = scmp.eq.s32.totalorder %s21, 1
      %p144 = por %p142, %p143
      %p145 = scmp.ne.s32.totalorder %s136, %s137
      %p146 = scmp.eq.s32.totalorder %s21, 0
      %p147 = por %p145, %p146
      %p148 = scmp.ne.s32.totalorder %s136, %s137
      %p149 = scmp.eq.s32.totalorder %s22, 1
      %p150 = por %p148, %p149
      %p152 = scmp.ne.s32.totalorder %s137, %s151
      %p153 = scmp.eq.s32.totalorder %s22, 0
      %p154 = por %p152, %p153
      %s156 = sadd.s32 %s155, 1
      %p159 = scmp.eq.s32.totalorder %s16, 1
      %p160 = scmp.ne.s32.totalorder %s155, %s157
      %p161 = scmp.eq.s32.totalorder %s16, 0
      %p162 = por %p160, %p161
      %p163 = scmp.ne.s32.totalorder %s155, %s157
      %p164 = scmp.eq.s32.totalorder %s21, 1
      %p165 = por %p163, %p164
      %p166 = scmp.ne.s32.totalorder %s157, %s158
      %p167 = scmp.eq.s32.totalorder %s21, 0
      %p168 = por %p166, %p167
      %p169 = scmp.ne.s32.totalorder %s157, %s158
      %p170 = scmp.eq.s32.totalorder %s22, 1
      %p171 = por %p169, %p170
      %p173 = scmp.ne.s32.totalorder %s158, %s172
      %p174 = scmp.eq.s32.totalorder %s22, 0
      %p175 = por %p173, %p174
      %s176 = ssub.s32 %s16, %s23
      %p177 = scmp.eq.s32.totalorder %s176, 0
      %s179 = sadd.s32 %s178, 1
      %s180 = scalar_select %p177, %s178, %s179
      %p183 = pneg %p177
      %p184 = scmp.eq.s32.totalorder %s16, 1
      %p185 = por %p183, %p184
      %p186 = scmp.ne.s32.totalorder %s178, %s181
      %p187 = scmp.eq.s32.totalorder %s16, 0
      %p188 = por %p186, %p187
      %p189 = scmp.ne.s32.totalorder %s178, %s181
      %p190 = scmp.eq.s32.totalorder %s21, 1
      %p191 = por %p189, %p190
      %p192 = scmp.ne.s32.totalorder %s181, %s182
      %p193 = scmp.eq.s32.totalorder %s21, 0
      %p194 = por %p192, %p193
      %p195 = scmp.ne.s32.totalorder %s181, %s182
      %p196 = scmp.eq.s32.totalorder %s22, 1
      %p197 = por %p195, %p196
      %p199 = scmp.ne.s32.totalorder %s182, %s198
      %p200 = scmp.eq.s32.totalorder %s22, 0
      %p201 = por %p199, %p200
      %p202 = scmp.le.s32.totalorder 1, %s16
      %p203 = scmp.lt.s32.totalorder %s16, 3
      %p204 = pnand %p202, %p203
      %p205 = pneg %p204
      // Predicated region
      $region9: #{simple_cnn_forward.1} parent=5 // pred_check
        _
      $region10: #{simple_cnn_forward.1} parent=5 // pred_check_branch
        %207 = sbr.rel (%p204) target = $region12
      $region11: #{simple_cnn_forward.1} parent=5 // pred_region
        %s208 = ssub.s32 %s16, 1
        // Predicated region
        $region13: #{simple_cnn_forward.1} parent=11 // pred_check
          %p209 = pneg %p63
        $region14: #{simple_cnn_forward.1} parent=11 // pred_check_branch
          %211 = sbr.rel (%p209) target = $region16
        $region15: #{simple_cnn_forward.1} parent=11 // pred_region
          %s213 = ssub.s32 143360, 143360
          %214 = vsyncadd [#allocation3], %s213
          %s215 = sshll.u32 [#allocation2], 4
          %s216 = int_to_ptr.vmem [resolvable:$true] %s215
          %221 = dma.hbm_to_vmem [thread:$0]  %s1, 143360, %s216, [#allocation3], 1792, 1792, 112
        $region16: #{simple_cnn_forward.1} parent=11 // pred_fallthru
          _
        // Predicated region
        $region17: #{simple_cnn_forward.1} parent=11 // pred_check
          %p222 = pneg %p84
        $region18: #{simple_cnn_forward.1} parent=11 // pred_check_branch
          %224 = sbr.rel (%p222) target = $region20
        $region19: #{simple_cnn_forward.1} parent=11 // pred_region
          %s226 = ssub.s32 448, 448
          %227 = vsyncadd [#allocation5], %s226
          %s229 = sshll.u32 [#allocation4], 4
          %s230 = int_to_ptr.vmem [resolvable:$true] %s229
          %232 = dma.hbm_to_vmem [thread:$0]  %s2, 448, %s230, [#allocation5]
        $region20: #{simple_cnn_forward.1} parent=11 // pred_fallthru
          _
        // Predicated region
        $region21: #{simple_cnn_forward.1} parent=11 // pred_check
          %p233 = pneg %p105
        $region22: #{simple_cnn_forward.1} parent=11 // pred_check_branch
          %235 = sbr.rel (%p233) target = $region24
        $region23: #{simple_cnn_forward.1} parent=11 // pred_region
          _
        $region24: #{simple_cnn_forward.1} parent=11 // pred_fallthru
          _
        // Predicated region
        $region25: #{simple_cnn_forward.1} parent=11 // pred_check
          %p236 = pneg %p126
        $region26: #{simple_cnn_forward.1} parent=11 // pred_check_branch
          %238 = sbr.rel (%p236) target = $region28
        $region27: #{simple_cnn_forward.1} parent=11 // pred_region
          %s240 = ssub.s32 16, 16
          %241 = vsyncadd [#allocation5], %s240
          %s243 = sshll.u32 [#allocation6], 4
          %s244 = int_to_ptr.vmem [resolvable:$true] %s243
          %246 = dma.hbm_to_vmem [thread:$0]  %s4, 16, %s244, [#allocation5]
        $region28: #{simple_cnn_forward.1} parent=11 // pred_fallthru
          _
        // Predicated region
        $region29: #{simple_cnn_forward.1} parent=11 // pred_check
          %p247 = pneg %p147
        $region30: #{simple_cnn_forward.1} parent=11 // pred_check_branch
          %249 = sbr.rel (%p247) target = $region32
        $region31: #{simple_cnn_forward.1} parent=11 // pred_region
          %s251 = ssub.s32 512, 512
          %252 = vsyncadd [#allocation8], %s251
          %s253 = sshll.u32 [#allocation7], 4
          %s254 = int_to_ptr.vmem [resolvable:$true] %s253
          %259 = dma.hbm_to_vmem [thread:$0]  %s5, 512, %s254, [#allocation8], 64, 64, 4
        $region32: #{simple_cnn_forward.1} parent=11 // pred_fallthru
          _
        // Predicated region
        $region33: #{simple_cnn_forward.1} parent=11 // pred_check
          %p260 = pneg %p168
        $region34: #{simple_cnn_forward.1} parent=11 // pred_check_branch
          %262 = sbr.rel (%p260) target = $region36
        $region35: #{simple_cnn_forward.1} parent=11 // pred_region
          %s264 = ssub.s32 16, 16
          %265 = vsyncadd [#allocation8], %s264
          %s267 = sshll.u32 [#allocation9], 4
          %s268 = int_to_ptr.vmem [resolvable:$true] %s267
          %270 = dma.hbm_to_vmem [thread:$0]  %s6, 16, %s268, [#allocation8]
        $region36: #{simple_cnn_forward.1} parent=11 // pred_fallthru
          _
      $region12: #{simple_cnn_forward.1} parent=5 // pred_fallthru
        _
      %p271 = scmp.lt.s32.totalorder %s16, 2
      // Predicated region
      $region37: #{simple_cnn_forward.1} parent=5 // pred_check
        %p272 = pneg %p271
      $region38: #{simple_cnn_forward.1} parent=5 // pred_check_branch
        %274 = sbr.rel (%p272) target = $region40
      $region39: #{simple_cnn_forward.1} parent=5 // pred_region
        // Predicated region
        $region41: #{simple_cnn_forward.1} parent=39 // pred_check
          %p275 = pneg %p36
        $region42: #{simple_cnn_forward.1} parent=39 // pred_check_branch
          %277 = sbr.rel (%p275) target = $region44
        $region43: #{simple_cnn_forward.1} parent=39 // pred_region
          %s278 = smul.u32 2, %s16
          %p279 = scmp.lt.s32.totalorder %s278, 3
          %s280 = scalar_select %p279, %s278, 3
          %s281 = smul.addr %s280, 5
          %s282 = smul.addr %s281, 4
          %s283 = scalar_lea.vmem %s0, %s282
          %s284 = smul.u32 2, %s16
        $region44: #{simple_cnn_forward.1} parent=39 // pred_fallthru
          _
      $region40: #{simple_cnn_forward.1} parent=5 // pred_fallthru
        _
      %p285 = scmp.le.s32.totalorder 1, %s16
      %p286 = scmp.lt.s32.totalorder %s16, 3
      %p287 = pnand %p285, %p286
      %p288 = pneg %p287
      // Predicated region
      $region45: #{simple_cnn_forward.1} parent=5 // pred_check
        _
      $region46: #{simple_cnn_forward.1} parent=5 // pred_check_branch
        %290 = sbr.rel (%p287) target = $region48
      $region47: #{simple_cnn_forward.1} parent=5 // pred_region
        %s291 = ssub.s32 %s16, 1
        // Predicated region
        $region49: #{simple_cnn_forward.1} parent=47 // pred_check
          %p292 = pneg %p63
        $region50: #{simple_cnn_forward.1} parent=47 // pred_check_branch
          %294 = sbr.rel (%p292) target = $region52
        $region51: #{simple_cnn_forward.1} parent=47 // pred_region
          %295 = dma.done [#allocation3], 143360
        $region52: #{simple_cnn_forward.1} parent=47 // pred_fallthru
          _
        // Predicated region
        $region53: #{simple_cnn_forward.1} parent=47 // pred_check
          %p296 = pneg %p84
        $region54: #{simple_cnn_forward.1} parent=47 // pred_check_branch
          %298 = sbr.rel (%p296) target = $region56
        $region55: #{simple_cnn_forward.1} parent=47 // pred_region
          %299 = dma.done [#allocation5], 448
        $region56: #{simple_cnn_forward.1} parent=47 // pred_fallthru
          _
        // Predicated region
        $region57: #{simple_cnn_forward.1} parent=47 // pred_check
          %p300 = pneg %p126
        $region58: #{simple_cnn_forward.1} parent=47 // pred_check_branch
          %302 = sbr.rel (%p300) target = $region60
        $region59: #{simple_cnn_forward.1} parent=47 // pred_region
          %303 = dma.done [#allocation5], 16
        $region60: #{simple_cnn_forward.1} parent=47 // pred_fallthru
          _
        // Predicated region
        $region61: #{simple_cnn_forward.1} parent=47 // pred_check
          %p304 = pneg %p147
        $region62: #{simple_cnn_forward.1} parent=47 // pred_check_branch
          %306 = sbr.rel (%p304) target = $region64
        $region63: #{simple_cnn_forward.1} parent=47 // pred_region
          %307 = dma.done [#allocation8], 512
        $region64: #{simple_cnn_forward.1} parent=47 // pred_fallthru
          _
        // Predicated region
        $region65: #{simple_cnn_forward.1} parent=47 // pred_check
          %p308 = pneg %p168
        $region66: #{simple_cnn_forward.1} parent=47 // pred_check_branch
          %310 = sbr.rel (%p308) target = $region68
        $region67: #{simple_cnn_forward.1} parent=47 // pred_region
          %311 = dma.done [#allocation8], 16
        $region68: #{simple_cnn_forward.1} parent=47 // pred_fallthru
          _
        %s312 = smul.u32 2, %s21
        %p313 = scmp.lt.s32.totalorder %s312, 3
        %s314 = scalar_select %p313, %s312, 3
        %s315 = smul.addr %s314, 5
        %s316 = smul.addr %s315, 4
        %s317 = scalar_lea.vmem %s0, %s316
        %p318 = pneg %p42
        %p319 = pneg %p39
        %p320 = pneg %p63
        %p321 = pneg %p60
        %p322 = pneg %p84
        %p323 = pneg %p81
        %p324 = pneg %p105
        %p325 = pneg %p102
        %p326 = pneg %p126
        %p327 = pneg %p123
        %p328 = pneg %p147
        %p329 = pneg %p144
        %p330 = pneg %p168
        %p331 = pneg %p165
        %p332 = pneg %p194
        %p333 = pneg %p191
        %s334 = smul.u32 2, %s21
        %p335 = scmp.lt.s32.totalorder %s334, 3
        %s336 = scalar_select %p335, %s334, 3
        %s337 = smul.addr %s336, 8
        %s338 = scalar_lea.vmem %s7, %s337
        %s339 = smul.u32 2, %s21
        %p340 = scmp.lt.s32.totalorder %s339, 3
        %s341 = scalar_select %p340, %s339, 3
        %s342 = smul.addr %s341, 5
        %s343 = smul.addr %s342, 4
        %s344 = scalar_lea.vmem %s0, %s343
        %s345 = smul.u32 2, %s21
        %s346 = smul.u32 2, %s21
        %p347 = scmp.lt.s32.totalorder %s346, 3
        %s348 = scalar_select %p347, %s346, 3
        %s349 = smul.addr %s348, 8
        %s350 = scalar_lea.vmem %s7, %s349
        %s351 = smul.u32 2, %s21
        %v353 = vld [vmem:[%s344] sm:$0xff]
        %v354 = vld [vmem:[%s344 + $0x8] sm:$0xff]
        %v355 = vld [vmem:[%s344 + $0x10] sm:$0xf]
        %v356 = vld [vmem:[%s344 + $0x14] sm:$0xff]
        %v357 = vld [vmem:[%s344 + $0x1c] sm:$0xff]
        %v358 = vld [vmem:[%s344 + $0x24] sm:$0xf]
        %v359 = vld [vmem:[#allocation2] sm:$0xff]
        %v360 = vld [vmem:[#allocation2 + $0x8] sm:$0xff]
        %v361 = vld [vmem:[#allocation2 + $0x10] sm:$0xff]
        %v362 = vld [vmem:[#allocation2 + $0x18] sm:$0xff]
        %v363 = vld [vmem:[#allocation2 + $0x20] sm:$0xff]
        %v364 = vld [vmem:[#allocation2 + $0x28] sm:$0xff]
        %v365 = vld [vmem:[#allocation2 + $0x30] sm:$0xff]
        %v366 = vld [vmem:[#allocation2 + $0x38] sm:$0xff]
        %v367 = vld [vmem:[#allocation2 + $0x40] sm:$0xff]
        %v368 = vld [vmem:[#allocation2 + $0x48] sm:$0xff]
        %v369 = vld [vmem:[#allocation2 + $0x50] sm:$0xff]
        %v370 = vld [vmem:[#allocation2 + $0x58] sm:$0xff]
        %v371 = vld [vmem:[#allocation2 + $0x60] sm:$0xff]
        %v372 = vld [vmem:[#allocation2 + $0x68] sm:$0xff]
        %v373 = vld [vmem:[#allocation2 + $0x70] sm:$0xff]
        %v374 = vld [vmem:[#allocation2 + $0x78] sm:$0xff]
        %v375 = vld [vmem:[#allocation2 + $0x80] sm:$0xff]
        %v376 = vld [vmem:[#allocation2 + $0x88] sm:$0xff]
        %v377 = vld [vmem:[#allocation2 + $0x90] sm:$0xff]
        %v378 = vld [vmem:[#allocation2 + $0x98] sm:$0xff]
        %v379 = vld [vmem:[#allocation2 + $0xa0] sm:$0xff]
        %v380 = vld [vmem:[#allocation2 + $0xa8] sm:$0xff]
        %v381 = vld [vmem:[#allocation2 + $0xb0] sm:$0xff]
        %v382 = vld [vmem:[#allocation2 + $0xb8] sm:$0xff]
        %v383 = vld [vmem:[#allocation2 + $0xc0] sm:$0xff]
        %v384 = vld [vmem:[#allocation2 + $0xc8] sm:$0xff]
        %v385 = vld [vmem:[#allocation2 + $0xd0] sm:$0xff]
        %v386 = vld [vmem:[#allocation2 + $0xd8] sm:$0xff]
        %v387 = vld [vmem:[#allocation2 + $0xe0] sm:$0xff]
        %v388 = vld [vmem:[#allocation2 + $0xe8] sm:$0xff]
        %v389 = vld [vmem:[#allocation2 + $0xf0] sm:$0xff]
        %v390 = vld [vmem:[#allocation2 + $0xf8] sm:$0xff]
        %v391 = vld [vmem:[#allocation2 + $0x100] sm:$0xff]
        %v392 = vld [vmem:[#allocation2 + $0x108] sm:$0xff]
        %v393 = vld [vmem:[#allocation2 + $0x110] sm:$0xff]
        %v394 = vld [vmem:[#allocation2 + $0x118] sm:$0xff]
        %v395 = vld [vmem:[#allocation2 + $0x120] sm:$0xff]
        %v396 = vld [vmem:[#allocation2 + $0x128] sm:$0xff]
        %v397 = vld [vmem:[#allocation2 + $0x130] sm:$0xff]
        %v398 = vld [vmem:[#allocation2 + $0x138] sm:$0xff]
        %v399 = vld [vmem:[#allocation2 + $0x140] sm:$0xff]
        %v400 = vld [vmem:[#allocation2 + $0x148] sm:$0xff]
        %v401 = vld [vmem:[#allocation2 + $0x150] sm:$0xff]
        %v402 = vld [vmem:[#allocation2 + $0x158] sm:$0xff]
        %v403 = vld [vmem:[#allocation2 + $0x160] sm:$0xff]
        %v404 = vld [vmem:[#allocation2 + $0x168] sm:$0xff]
        %v405 = vld [vmem:[#allocation2 + $0x170] sm:$0xff]
        %v406 = vld [vmem:[#allocation2 + $0x178] sm:$0xff]
        %v407 = vld [vmem:[#allocation2 + $0x180] sm:$0xff]
        %v408 = vld [vmem:[#allocation2 + $0x188] sm:$0xff]
        %v409 = vld [vmem:[#allocation2 + $0x190] sm:$0xff]
        %v410 = vld [vmem:[#allocation2 + $0x198] sm:$0xff]
        %v411 = vld [vmem:[#allocation2 + $0x1a0] sm:$0xff]
        %v412 = vld [vmem:[#allocation2 + $0x1a8] sm:$0xff]
        %v413 = vld [vmem:[#allocation2 + $0x1b0] sm:$0xff]
        %v414 = vld [vmem:[#allocation2 + $0x1b8] sm:$0xff]
        %v415 = vld [vmem:[#allocation2 + $0x1c0] sm:$0xff]
        %v416 = vld [vmem:[#allocation2 + $0x1c8] sm:$0xff]
        %v417 = vld [vmem:[#allocation2 + $0x1d0] sm:$0xff]
        %v418 = vld [vmem:[#allocation2 + $0x1d8] sm:$0xff]
        %v419 = vld [vmem:[#allocation2 + $0x1e0] sm:$0xff]
        %v420 = vld [vmem:[#allocation2 + $0x1e8] sm:$0xff]
        %v421 = vld [vmem:[#allocation2 + $0x1f0] sm:$0xff]
        %v422 = vld [vmem:[#allocation2 + $0x1f8] sm:$0xff]
        %v423 = vld [vmem:[#allocation2 + $0x200] sm:$0xff]
        %v424 = vld [vmem:[#allocation2 + $0x208] sm:$0xff]
        %v425 = vld [vmem:[#allocation2 + $0x210] sm:$0xff]
        %v426 = vld [vmem:[#allocation2 + $0x218] sm:$0xff]
        %v427 = vld [vmem:[#allocation2 + $0x220] sm:$0xff]
        %v428 = vld [vmem:[#allocation2 + $0x228] sm:$0xff]
        %v429 = vld [vmem:[#allocation2 + $0x230] sm:$0xff]
        %v430 = vld [vmem:[#allocation2 + $0x238] sm:$0xff]
        %v431 = vld [vmem:[#allocation2 + $0x240] sm:$0xff]
        %v432 = vld [vmem:[#allocation2 + $0x248] sm:$0xff]
        %v433 = vld [vmem:[#allocation2 + $0x250] sm:$0xff]
        %v434 = vld [vmem:[#allocation2 + $0x258] sm:$0xff]
        %v435 = vld [vmem:[#allocation2 + $0x260] sm:$0xff]
        %v436 = vld [vmem:[#allocation2 + $0x268] sm:$0xff]
        %v437 = vld [vmem:[#allocation2 + $0x270] sm:$0xff]
        %v438 = vld [vmem:[#allocation2 + $0x278] sm:$0xff]
        %v439 = vld [vmem:[#allocation2 + $0x280] sm:$0xff]
        %v440 = vld [vmem:[#allocation2 + $0x288] sm:$0xff]
        %v441 = vld [vmem:[#allocation2 + $0x290] sm:$0xff]
        %v442 = vld [vmem:[#allocation2 + $0x298] sm:$0xff]
        %v443 = vld [vmem:[#allocation2 + $0x2a0] sm:$0xff]
        %v444 = vld [vmem:[#allocation2 + $0x2a8] sm:$0xff]
        %v445 = vld [vmem:[#allocation2 + $0x2b0] sm:$0xff]
        %v446 = vld [vmem:[#allocation2 + $0x2b8] sm:$0xff]
        %v447 = vld [vmem:[#allocation2 + $0x2c0] sm:$0xff]
        %v448 = vld [vmem:[#allocation2 + $0x2c8] sm:$0xff]
        %v449 = vld [vmem:[#allocation2 + $0x2d0] sm:$0xff]
        %v450 = vld [vmem:[#allocation2 + $0x2d8] sm:$0xff]
        %v451 = vld [vmem:[#allocation2 + $0x2e0] sm:$0xff]
        %v452 = vld [vmem:[#allocation2 + $0x2e8] sm:$0xff]
        %v453 = vld [vmem:[#allocation2 + $0x2f0] sm:$0xff]
        %v454 = vld [vmem:[#allocation2 + $0x2f8] sm:$0xff]
        %v455 = vld [vmem:[#allocation2 + $0x300] sm:$0xff]
        %v456 = vld [vmem:[#allocation2 + $0x308] sm:$0xff]
        %v457 = vld [vmem:[#allocation2 + $0x310] sm:$0xff]
        %v458 = vld [vmem:[#allocation2 + $0x318] sm:$0xff]
        %v459 = vld [vmem:[#allocation2 + $0x320] sm:$0xff]
        %v460 = vld [vmem:[#allocation2 + $0x328] sm:$0xff]
        %v461 = vld [vmem:[#allocation2 + $0x330] sm:$0xff]
        %v462 = vld [vmem:[#allocation2 + $0x338] sm:$0xff]
        %v463 = vld [vmem:[#allocation2 + $0x340] sm:$0xff]
        %v464 = vld [vmem:[#allocation2 + $0x348] sm:$0xff]
        %v465 = vld [vmem:[#allocation2 + $0x350] sm:$0xff]
        %v466 = vld [vmem:[#allocation2 + $0x358] sm:$0xff]
        %v467 = vld [vmem:[#allocation2 + $0x360] sm:$0xff]
        %v468 = vld [vmem:[#allocation2 + $0x368] sm:$0xff]
        %v469 = vld [vmem:[#allocation2 + $0x370] sm:$0xff]
        %v470 = vld [vmem:[#allocation2 + $0x378] sm:$0xff]
        %v471 = vld [vmem:[#allocation2 + $0x380] sm:$0xff]
        %v472 = vld [vmem:[#allocation2 + $0x388] sm:$0xff]
        %v473 = vld [vmem:[#allocation2 + $0x390] sm:$0xff]
        %v474 = vld [vmem:[#allocation2 + $0x398] sm:$0xff]
        %v475 = vld [vmem:[#allocation2 + $0x3a0] sm:$0xff]
        %v476 = vld [vmem:[#allocation2 + $0x3a8] sm:$0xff]
        %v477 = vld [vmem:[#allocation2 + $0x3b0] sm:$0xff]
        %v478 = vld [vmem:[#allocation2 + $0x3b8] sm:$0xff]
        %v479 = vld [vmem:[#allocation2 + $0x3c0] sm:$0xff]
        %v480 = vld [vmem:[#allocation2 + $0x3c8] sm:$0xff]
        %v481 = vld [vmem:[#allocation2 + $0x3d0] sm:$0xff]
        %v482 = vld [vmem:[#allocation2 + $0x3d8] sm:$0xff]
        %v483 = vld [vmem:[#allocation2 + $0x3e0] sm:$0xff]
        %v484 = vld [vmem:[#allocation2 + $0x3e8] sm:$0xff]
        %v485 = vld [vmem:[#allocation2 + $0x3f0] sm:$0xff]
        %v486 = vld [vmem:[#allocation2 + $0x3f8] sm:$0xff]
        %v487 = vld [vmem:[#allocation2 + $0x400] sm:$0xff]
        %v488 = vld [vmem:[#allocation2 + $0x408] sm:$0xff]
        %v489 = vld [vmem:[#allocation2 + $0x410] sm:$0xff]
        %v490 = vld [vmem:[#allocation2 + $0x418] sm:$0xff]
        %v491 = vld [vmem:[#allocation2 + $0x420] sm:$0xff]
        %v492 = vld [vmem:[#allocation2 + $0x428] sm:$0xff]
        %v493 = vld [vmem:[#allocation2 + $0x430] sm:$0xff]
        %v494 = vld [vmem:[#allocation2 + $0x438] sm:$0xff]
        %v495 = vld [vmem:[#allocation2 + $0x440] sm:$0xff]
        %v496 = vld [vmem:[#allocation2 + $0x448] sm:$0xff]
        %v497 = vld [vmem:[#allocation2 + $0x450] sm:$0xff]
        %v498 = vld [vmem:[#allocation2 + $0x458] sm:$0xff]
        %v499 = vld [vmem:[#allocation2 + $0x460] sm:$0xff]
        %v500 = vld [vmem:[#allocation2 + $0x468] sm:$0xff]
        %v501 = vld [vmem:[#allocation2 + $0x470] sm:$0xff]
        %v502 = vld [vmem:[#allocation2 + $0x478] sm:$0xff]
        %v503 = vld [vmem:[#allocation2 + $0x480] sm:$0xff]
        %v504 = vld [vmem:[#allocation2 + $0x488] sm:$0xff]
        %v505 = vld [vmem:[#allocation2 + $0x490] sm:$0xff]
        %v506 = vld [vmem:[#allocation2 + $0x498] sm:$0xff]
        %v507 = vld [vmem:[#allocation2 + $0x4a0] sm:$0xff]
        %v508 = vld [vmem:[#allocation2 + $0x4a8] sm:$0xff]
        %v509 = vld [vmem:[#allocation2 + $0x4b0] sm:$0xff]
        %v510 = vld [vmem:[#allocation2 + $0x4b8] sm:$0xff]
        %v511 = vld [vmem:[#allocation2 + $0x4c0] sm:$0xff]
        %v512 = vld [vmem:[#allocation2 + $0x4c8] sm:$0xff]
        %v513 = vld [vmem:[#allocation2 + $0x4d0] sm:$0xff]
        %v514 = vld [vmem:[#allocation2 + $0x4d8] sm:$0xff]
        %v515 = vld [vmem:[#allocation2 + $0x4e0] sm:$0xff]
        %v516 = vld [vmem:[#allocation2 + $0x4e8] sm:$0xff]
        %v517 = vld [vmem:[#allocation2 + $0x4f0] sm:$0xff]
        %v518 = vld [vmem:[#allocation2 + $0x4f8] sm:$0xff]
        %v519 = vld [vmem:[#allocation2 + $0x500] sm:$0xff]
        %v520 = vld [vmem:[#allocation2 + $0x508] sm:$0xff]
        %v521 = vld [vmem:[#allocation2 + $0x510] sm:$0xff]
        %v522 = vld [vmem:[#allocation2 + $0x518] sm:$0xff]
        %v523 = vld [vmem:[#allocation2 + $0x520] sm:$0xff]
        %v524 = vld [vmem:[#allocation2 + $0x528] sm:$0xff]
        %v525 = vld [vmem:[#allocation2 + $0x530] sm:$0xff]
        %v526 = vld [vmem:[#allocation2 + $0x538] sm:$0xff]
        %v527 = vld [vmem:[#allocation2 + $0x540] sm:$0xff]
        %v528 = vld [vmem:[#allocation2 + $0x548] sm:$0xff]
        %v529 = vld [vmem:[#allocation2 + $0x550] sm:$0xff]
        %v530 = vld [vmem:[#allocation2 + $0x558] sm:$0xff]
        %v531 = vld [vmem:[#allocation2 + $0x560] sm:$0xff]
        %v532 = vld [vmem:[#allocation2 + $0x568] sm:$0xff]
        %v533 = vld [vmem:[#allocation2 + $0x570] sm:$0xff]
        %v534 = vld [vmem:[#allocation2 + $0x578] sm:$0xff]
        %v535 = vld [vmem:[#allocation2 + $0x580] sm:$0xff]
        %v536 = vld [vmem:[#allocation2 + $0x588] sm:$0xff]
        %v537 = vld [vmem:[#allocation2 + $0x590] sm:$0xff]
        %v538 = vld [vmem:[#allocation2 + $0x598] sm:$0xff]
        %v539 = vld [vmem:[#allocation2 + $0x5a0] sm:$0xff]
        %v540 = vld [vmem:[#allocation2 + $0x5a8] sm:$0xff]
        %v541 = vld [vmem:[#allocation2 + $0x5b0] sm:$0xff]
        %v542 = vld [vmem:[#allocation2 + $0x5b8] sm:$0xff]
        %v543 = vld [vmem:[#allocation2 + $0x5c0] sm:$0xff]
        %v544 = vld [vmem:[#allocation2 + $0x5c8] sm:$0xff]
        %v545 = vld [vmem:[#allocation2 + $0x5d0] sm:$0xff]
        %v546 = vld [vmem:[#allocation2 + $0x5d8] sm:$0xff]
        %v547 = vld [vmem:[#allocation2 + $0x5e0] sm:$0xff]
        %v548 = vld [vmem:[#allocation2 + $0x5e8] sm:$0xff]
        %v549 = vld [vmem:[#allocation2 + $0x5f0] sm:$0xff]
        %v550 = vld [vmem:[#allocation2 + $0x5f8] sm:$0xff]
        %v551 = vld [vmem:[#allocation2 + $0x600] sm:$0xff]
        %v552 = vld [vmem:[#allocation2 + $0x608] sm:$0xff]
        %v553 = vld [vmem:[#allocation2 + $0x610] sm:$0xff]
        %v554 = vld [vmem:[#allocation2 + $0x618] sm:$0xff]
        %v555 = vld [vmem:[#allocation2 + $0x620] sm:$0xff]
        %v556 = vld [vmem:[#allocation2 + $0x628] sm:$0xff]
        %v557 = vld [vmem:[#allocation2 + $0x630] sm:$0xff]
        %v558 = vld [vmem:[#allocation2 + $0x638] sm:$0xff]
        %v559 = vld [vmem:[#allocation2 + $0x640] sm:$0xff]
        %v560 = vld [vmem:[#allocation2 + $0x648] sm:$0xff]
        %v561 = vld [vmem:[#allocation2 + $0x650] sm:$0xff]
        %v562 = vld [vmem:[#allocation2 + $0x658] sm:$0xff]
        %v563 = vld [vmem:[#allocation2 + $0x660] sm:$0xff]
        %v564 = vld [vmem:[#allocation2 + $0x668] sm:$0xff]
        %v565 = vld [vmem:[#allocation2 + $0x670] sm:$0xff]
        %v566 = vld [vmem:[#allocation2 + $0x678] sm:$0xff]
        %v567 = vld [vmem:[#allocation2 + $0x680] sm:$0xff]
        %v568 = vld [vmem:[#allocation2 + $0x688] sm:$0xff]
        %v569 = vld [vmem:[#allocation2 + $0x690] sm:$0xff]
        %v570 = vld [vmem:[#allocation2 + $0x698] sm:$0xff]
        %v571 = vld [vmem:[#allocation2 + $0x6a0] sm:$0xff]
        %v572 = vld [vmem:[#allocation2 + $0x6a8] sm:$0xff]
        %v573 = vld [vmem:[#allocation2 + $0x6b0] sm:$0xff]
        %v574 = vld [vmem:[#allocation2 + $0x6b8] sm:$0xff]
        %v575 = vld [vmem:[#allocation2 + $0x6c0] sm:$0xff]
        %v576 = vld [vmem:[#allocation2 + $0x6c8] sm:$0xff]
        %v577 = vld [vmem:[#allocation2 + $0x6d0] sm:$0xff]
        %v578 = vld [vmem:[#allocation2 + $0x6d8] sm:$0xff]
        %v579 = vld [vmem:[#allocation2 + $0x6e0] sm:$0xff]
        %v580 = vld [vmem:[#allocation2 + $0x6e8] sm:$0xff]
        %v581 = vld [vmem:[#allocation2 + $0x6f0] sm:$0xff]
        %v582 = vld [vmem:[#allocation2 + $0x6f8] sm:$0xff]
        %v583 = vld [vmem:[#allocation2 + $0x700] sm:$0xff]
        %v584 = vld [vmem:[#allocation2 + $0x708] sm:$0xff]
        %v585 = vld [vmem:[#allocation2 + $0x710] sm:$0xff]
        %v586 = vld [vmem:[#allocation2 + $0x718] sm:$0xff]
        %v587 = vld [vmem:[#allocation2 + $0x720] sm:$0xff]
        %v588 = vld [vmem:[#allocation2 + $0x728] sm:$0xff]
        %v589 = vld [vmem:[#allocation2 + $0x730] sm:$0xff]
        %v590 = vld [vmem:[#allocation2 + $0x738] sm:$0xff]
        %v591 = vld [vmem:[#allocation2 + $0x740] sm:$0xff]
        %v592 = vld [vmem:[#allocation2 + $0x748] sm:$0xff]
        %v593 = vld [vmem:[#allocation2 + $0x750] sm:$0xff]
        %v594 = vld [vmem:[#allocation2 + $0x758] sm:$0xff]
        %v595 = vld [vmem:[#allocation2 + $0x760] sm:$0xff]
        %v596 = vld [vmem:[#allocation2 + $0x768] sm:$0xff]
        %v597 = vld [vmem:[#allocation2 + $0x770] sm:$0xff]
        %v598 = vld [vmem:[#allocation2 + $0x778] sm:$0xff]
        %v599 = vld [vmem:[#allocation2 + $0x780] sm:$0xff]
        %v600 = vld [vmem:[#allocation2 + $0x788] sm:$0xff]
        %v601 = vld [vmem:[#allocation2 + $0x790] sm:$0xff]
        %v602 = vld [vmem:[#allocation2 + $0x798] sm:$0xff]
        %v603 = vld [vmem:[#allocation2 + $0x7a0] sm:$0xff]
        %v604 = vld [vmem:[#allocation2 + $0x7a8] sm:$0xff]
        %v605 = vld [vmem:[#allocation2 + $0x7b0] sm:$0xff]
        %v606 = vld [vmem:[#allocation2 + $0x7b8] sm:$0xff]
        %v607 = vld [vmem:[#allocation2 + $0x7c0] sm:$0xff]
        %v608 = vld [vmem:[#allocation2 + $0x7c8] sm:$0xff]
        %v609 = vld [vmem:[#allocation2 + $0x7d0] sm:$0xff]
        %v610 = vld [vmem:[#allocation2 + $0x7d8] sm:$0xff]
        %v611 = vld [vmem:[#allocation2 + $0x7e0] sm:$0xff]
        %v612 = vld [vmem:[#allocation2 + $0x7e8] sm:$0xff]
        %v613 = vld [vmem:[#allocation2 + $0x7f0] sm:$0xff]
        %v614 = vld [vmem:[#allocation2 + $0x7f8] sm:$0xff]
        %v615 = vld [vmem:[#allocation2 + $0x800] sm:$0xff]
        %v616 = vld [vmem:[#allocation2 + $0x808] sm:$0xff]
        %v617 = vld [vmem:[#allocation2 + $0x810] sm:$0xff]
        %v618 = vld [vmem:[#allocation2 + $0x818] sm:$0xff]
        %v619 = vld [vmem:[#allocation2 + $0x820] sm:$0xff]
        %v620 = vld [vmem:[#allocation2 + $0x828] sm:$0xff]
        %v621 = vld [vmem:[#allocation2 + $0x830] sm:$0xff]
        %v622 = vld [vmem:[#allocation2 + $0x838] sm:$0xff]
        %v623 = vld [vmem:[#allocation2 + $0x840] sm:$0xff]
        %v624 = vld [vmem:[#allocation2 + $0x848] sm:$0xff]
        %v625 = vld [vmem:[#allocation2 + $0x850] sm:$0xff]
        %v626 = vld [vmem:[#allocation2 + $0x858] sm:$0xff]
        %v627 = vld [vmem:[#allocation2 + $0x860] sm:$0xff]
        %v628 = vld [vmem:[#allocation2 + $0x868] sm:$0xff]
        %v629 = vld [vmem:[#allocation2 + $0x870] sm:$0xff]
        %v630 = vld [vmem:[#allocation2 + $0x878] sm:$0xff]
        %v631 = vld [vmem:[#allocation2 + $0x880] sm:$0xff]
        %v632 = vld [vmem:[#allocation2 + $0x888] sm:$0xff]
        %v633 = vld [vmem:[#allocation2 + $0x890] sm:$0xff]
        %v634 = vld [vmem:[#allocation2 + $0x898] sm:$0xff]
        %v635 = vld [vmem:[#allocation2 + $0x8a0] sm:$0xff]
        %v636 = vld [vmem:[#allocation2 + $0x8a8] sm:$0xff]
        %v637 = vld [vmem:[#allocation2 + $0x8b0] sm:$0xff]
        %v638 = vld [vmem:[#allocation2 + $0x8b8] sm:$0xff]
        %v639 = vld [vmem:[#allocation2 + $0x8c0] sm:$0xff]
        %v640 = vld [vmem:[#allocation2 + $0x8c8] sm:$0xff]
        %v641 = vld [vmem:[#allocation2 + $0x8d0] sm:$0xff]
        %v642 = vld [vmem:[#allocation2 + $0x8d8] sm:$0xff]
        %v643 = vld [vmem:[#allocation2 + $0x8e0] sm:$0xff]
        %v644 = vld [vmem:[#allocation2 + $0x8e8] sm:$0xff]
        %v645 = vld [vmem:[#allocation2 + $0x8f0] sm:$0xff]
        %v646 = vld [vmem:[#allocation2 + $0x8f8] sm:$0xff]
        %v647 = vld [vmem:[#allocation2 + $0x900] sm:$0xff]
        %v648 = vld [vmem:[#allocation2 + $0x908] sm:$0xff]
        %v649 = vld [vmem:[#allocation2 + $0x910] sm:$0xff]
        %v650 = vld [vmem:[#allocation2 + $0x918] sm:$0xff]
        %v651 = vld [vmem:[#allocation2 + $0x920] sm:$0xff]
        %v652 = vld [vmem:[#allocation2 + $0x928] sm:$0xff]
        %v653 = vld [vmem:[#allocation2 + $0x930] sm:$0xff]
        %v654 = vld [vmem:[#allocation2 + $0x938] sm:$0xff]
        %v655 = vld [vmem:[#allocation2 + $0x940] sm:$0xff]
        %v656 = vld [vmem:[#allocation2 + $0x948] sm:$0xff]
        %v657 = vld [vmem:[#allocation2 + $0x950] sm:$0xff]
        %v658 = vld [vmem:[#allocation2 + $0x958] sm:$0xff]
        %v659 = vld [vmem:[#allocation2 + $0x960] sm:$0xff]
        %v660 = vld [vmem:[#allocation2 + $0x968] sm:$0xff]
        %v661 = vld [vmem:[#allocation2 + $0x970] sm:$0xff]
        %v662 = vld [vmem:[#allocation2 + $0x978] sm:$0xff]
        %v663 = vld [vmem:[#allocation2 + $0x980] sm:$0xff]
        %v664 = vld [vmem:[#allocation2 + $0x988] sm:$0xff]
        %v665 = vld [vmem:[#allocation2 + $0x990] sm:$0xff]
        %v666 = vld [vmem:[#allocation2 + $0x998] sm:$0xff]
        %v667 = vld [vmem:[#allocation2 + $0x9a0] sm:$0xff]
        %v668 = vld [vmem:[#allocation2 + $0x9a8] sm:$0xff]
        %v669 = vld [vmem:[#allocation2 + $0x9b0] sm:$0xff]
        %v670 = vld [vmem:[#allocation2 + $0x9b8] sm:$0xff]
        %v671 = vld [vmem:[#allocation2 + $0x9c0] sm:$0xff]
        %v672 = vld [vmem:[#allocation2 + $0x9c8] sm:$0xff]
        %v673 = vld [vmem:[#allocation2 + $0x9d0] sm:$0xff]
        %v674 = vld [vmem:[#allocation2 + $0x9d8] sm:$0xff]
        %v675 = vld [vmem:[#allocation2 + $0x9e0] sm:$0xff]
        %v676 = vld [vmem:[#allocation2 + $0x9e8] sm:$0xff]
        %v677 = vld [vmem:[#allocation2 + $0x9f0] sm:$0xff]
        %v678 = vld [vmem:[#allocation2 + $0x9f8] sm:$0xff]
        %v679 = vld [vmem:[#allocation2 + $0xa00] sm:$0xff]
        %v680 = vld [vmem:[#allocation2 + $0xa08] sm:$0xff]
        %v681 = vld [vmem:[#allocation2 + $0xa10] sm:$0xff]
        %v682 = vld [vmem:[#allocation2 + $0xa18] sm:$0xff]
        %v683 = vld [vmem:[#allocation2 + $0xa20] sm:$0xff]
        %v684 = vld [vmem:[#allocation2 + $0xa28] sm:$0xff]
        %v685 = vld [vmem:[#allocation2 + $0xa30] sm:$0xff]
        %v686 = vld [vmem:[#allocation2 + $0xa38] sm:$0xff]
        %v687 = vld [vmem:[#allocation2 + $0xa40] sm:$0xff]
        %v688 = vld [vmem:[#allocation2 + $0xa48] sm:$0xff]
        %v689 = vld [vmem:[#allocation2 + $0xa50] sm:$0xff]
        %v690 = vld [vmem:[#allocation2 + $0xa58] sm:$0xff]
        %v691 = vld [vmem:[#allocation2 + $0xa60] sm:$0xff]
        %v692 = vld [vmem:[#allocation2 + $0xa68] sm:$0xff]
        %v693 = vld [vmem:[#allocation2 + $0xa70] sm:$0xff]
        %v694 = vld [vmem:[#allocation2 + $0xa78] sm:$0xff]
        %v695 = vld [vmem:[#allocation2 + $0xa80] sm:$0xff]
        %v696 = vld [vmem:[#allocation2 + $0xa88] sm:$0xff]
        %v697 = vld [vmem:[#allocation2 + $0xa90] sm:$0xff]
        %v698 = vld [vmem:[#allocation2 + $0xa98] sm:$0xff]
        %v699 = vld [vmem:[#allocation2 + $0xaa0] sm:$0xff]
        %v700 = vld [vmem:[#allocation2 + $0xaa8] sm:$0xff]
        %v701 = vld [vmem:[#allocation2 + $0xab0] sm:$0xff]
        %v702 = vld [vmem:[#allocation2 + $0xab8] sm:$0xff]
        %v703 = vld [vmem:[#allocation2 + $0xac0] sm:$0xff]
        %v704 = vld [vmem:[#allocation2 + $0xac8] sm:$0xff]
        %v705 = vld [vmem:[#allocation2 + $0xad0] sm:$0xff]
        %v706 = vld [vmem:[#allocation2 + $0xad8] sm:$0xff]
        %v707 = vld [vmem:[#allocation2 + $0xae0] sm:$0xff]
        %v708 = vld [vmem:[#allocation2 + $0xae8] sm:$0xff]
        %v709 = vld [vmem:[#allocation2 + $0xaf0] sm:$0xff]
        %v710 = vld [vmem:[#allocation2 + $0xaf8] sm:$0xff]
        %v711 = vld [vmem:[#allocation2 + $0xb00] sm:$0xff]
        %v712 = vld [vmem:[#allocation2 + $0xb08] sm:$0xff]
        %v713 = vld [vmem:[#allocation2 + $0xb10] sm:$0xff]
        %v714 = vld [vmem:[#allocation2 + $0xb18] sm:$0xff]
        %v715 = vld [vmem:[#allocation2 + $0xb20] sm:$0xff]
        %v716 = vld [vmem:[#allocation2 + $0xb28] sm:$0xff]
        %v717 = vld [vmem:[#allocation2 + $0xb30] sm:$0xff]
        %v718 = vld [vmem:[#allocation2 + $0xb38] sm:$0xff]
        %v719 = vld [vmem:[#allocation2 + $0xb40] sm:$0xff]
        %v720 = vld [vmem:[#allocation2 + $0xb48] sm:$0xff]
        %v721 = vld [vmem:[#allocation2 + $0xb50] sm:$0xff]
        %v722 = vld [vmem:[#allocation2 + $0xb58] sm:$0xff]
        %v723 = vld [vmem:[#allocation2 + $0xb60] sm:$0xff]
        %v724 = vld [vmem:[#allocation2 + $0xb68] sm:$0xff]
        %v725 = vld [vmem:[#allocation2 + $0xb70] sm:$0xff]
        %v726 = vld [vmem:[#allocation2 + $0xb78] sm:$0xff]
        %v727 = vld [vmem:[#allocation2 + $0xb80] sm:$0xff]
        %v728 = vld [vmem:[#allocation2 + $0xb88] sm:$0xff]
        %v729 = vld [vmem:[#allocation2 + $0xb90] sm:$0xff]
        %v730 = vld [vmem:[#allocation2 + $0xb98] sm:$0xff]
        %v731 = vld [vmem:[#allocation2 + $0xba0] sm:$0xff]
        %v732 = vld [vmem:[#allocation2 + $0xba8] sm:$0xff]
        %v733 = vld [vmem:[#allocation2 + $0xbb0] sm:$0xff]
        %v734 = vld [vmem:[#allocation2 + $0xbb8] sm:$0xff]
        %v735 = vld [vmem:[#allocation2 + $0xbc0] sm:$0xff]
        %v736 = vld [vmem:[#allocation2 + $0xbc8] sm:$0xff]
        %v737 = vld [vmem:[#allocation2 + $0xbd0] sm:$0xff]
        %v738 = vld [vmem:[#allocation2 + $0xbd8] sm:$0xff]
        %v739 = vld [vmem:[#allocation2 + $0xbe0] sm:$0xff]
        %v740 = vld [vmem:[#allocation2 + $0xbe8] sm:$0xff]
        %v741 = vld [vmem:[#allocation2 + $0xbf0] sm:$0xff]
        %v742 = vld [vmem:[#allocation2 + $0xbf8] sm:$0xff]
        %v743 = vld [vmem:[#allocation2 + $0xc00] sm:$0xff]
        %v744 = vld [vmem:[#allocation2 + $0xc08] sm:$0xff]
        %v745 = vld [vmem:[#allocation2 + $0xc10] sm:$0xff]
        %v746 = vld [vmem:[#allocation2 + $0xc18] sm:$0xff]
        %v747 = vld [vmem:[#allocation2 + $0xc20] sm:$0xff]
        %v748 = vld [vmem:[#allocation2 + $0xc28] sm:$0xff]
        %v749 = vld [vmem:[#allocation2 + $0xc30] sm:$0xff]
        %v750 = vld [vmem:[#allocation2 + $0xc38] sm:$0xff]
        %v751 = vld [vmem:[#allocation2 + $0xc40] sm:$0xff]
        %v752 = vld [vmem:[#allocation2 + $0xc48] sm:$0xff]
        %v753 = vld [vmem:[#allocation2 + $0xc50] sm:$0xff]
        %v754 = vld [vmem:[#allocation2 + $0xc58] sm:$0xff]
        %v755 = vld [vmem:[#allocation2 + $0xc60] sm:$0xff]
        %v756 = vld [vmem:[#allocation2 + $0xc68] sm:$0xff]
        %v757 = vld [vmem:[#allocation2 + $0xc70] sm:$0xff]
        %v758 = vld [vmem:[#allocation2 + $0xc78] sm:$0xff]
        %v759 = vld [vmem:[#allocation2 + $0xc80] sm:$0xff]
        %v760 = vld [vmem:[#allocation2 + $0xc88] sm:$0xff]
        %v761 = vld [vmem:[#allocation2 + $0xc90] sm:$0xff]
        %v762 = vld [vmem:[#allocation2 + $0xc98] sm:$0xff]
        %v763 = vld [vmem:[#allocation2 + $0xca0] sm:$0xff]
        %v764 = vld [vmem:[#allocation2 + $0xca8] sm:$0xff]
        %v765 = vld [vmem:[#allocation2 + $0xcb0] sm:$0xff]
        %v766 = vld [vmem:[#allocation2 + $0xcb8] sm:$0xff]
        %v767 = vld [vmem:[#allocation2 + $0xcc0] sm:$0xff]
        %v768 = vld [vmem:[#allocation2 + $0xcc8] sm:$0xff]
        %v769 = vld [vmem:[#allocation2 + $0xcd0] sm:$0xff]
        %v770 = vld [vmem:[#allocation2 + $0xcd8] sm:$0xff]
        %v771 = vld [vmem:[#allocation2 + $0xce0] sm:$0xff]
        %v772 = vld [vmem:[#allocation2 + $0xce8] sm:$0xff]
        %v773 = vld [vmem:[#allocation2 + $0xcf0] sm:$0xff]
        %v774 = vld [vmem:[#allocation2 + $0xcf8] sm:$0xff]
        %v775 = vld [vmem:[#allocation2 + $0xd00] sm:$0xff]
        %v776 = vld [vmem:[#allocation2 + $0xd08] sm:$0xff]
        %v777 = vld [vmem:[#allocation2 + $0xd10] sm:$0xff]
        %v778 = vld [vmem:[#allocation2 + $0xd18] sm:$0xff]
        %v779 = vld [vmem:[#allocation2 + $0xd20] sm:$0xff]
        %v780 = vld [vmem:[#allocation2 + $0xd28] sm:$0xff]
        %v781 = vld [vmem:[#allocation2 + $0xd30] sm:$0xff]
        %v782 = vld [vmem:[#allocation2 + $0xd38] sm:$0xff]
        %v783 = vld [vmem:[#allocation2 + $0xd40] sm:$0xff]
        %v784 = vld [vmem:[#allocation2 + $0xd48] sm:$0xff]
        %v785 = vld [vmem:[#allocation2 + $0xd50] sm:$0xff]
        %v786 = vld [vmem:[#allocation2 + $0xd58] sm:$0xff]
        %v787 = vld [vmem:[#allocation2 + $0xd60] sm:$0xff]
        %v788 = vld [vmem:[#allocation2 + $0xd68] sm:$0xff]
        %v789 = vld [vmem:[#allocation2 + $0xd70] sm:$0xff]
        %v790 = vld [vmem:[#allocation2 + $0xd78] sm:$0xff]
        %v791 = vld [vmem:[#allocation2 + $0xd80] sm:$0xff]
        %v792 = vld [vmem:[#allocation2 + $0xd88] sm:$0xff]
        %v793 = vld [vmem:[#allocation2 + $0xd90] sm:$0xff]
        %v794 = vld [vmem:[#allocation2 + $0xd98] sm:$0xff]
        %v795 = vld [vmem:[#allocation2 + $0xda0] sm:$0xff]
        %v796 = vld [vmem:[#allocation2 + $0xda8] sm:$0xff]
        %v797 = vld [vmem:[#allocation2 + $0xdb0] sm:$0xff]
        %v798 = vld [vmem:[#allocation2 + $0xdb8] sm:$0xff]
        %v799 = vld [vmem:[#allocation2 + $0xdc0] sm:$0xff]
        %v800 = vld [vmem:[#allocation2 + $0xdc8] sm:$0xff]
        %v801 = vld [vmem:[#allocation2 + $0xdd0] sm:$0xff]
        %v802 = vld [vmem:[#allocation2 + $0xdd8] sm:$0xff]
        %v803 = vld [vmem:[#allocation2 + $0xde0] sm:$0xff]
        %v804 = vld [vmem:[#allocation2 + $0xde8] sm:$0xff]
        %v805 = vld [vmem:[#allocation2 + $0xdf0] sm:$0xff]
        %v806 = vld [vmem:[#allocation2 + $0xdf8] sm:$0xff]
        %v807 = vld [vmem:[#allocation2 + $0xe00] sm:$0xff]
        %v808 = vld [vmem:[#allocation2 + $0xe08] sm:$0xff]
        %v809 = vld [vmem:[#allocation2 + $0xe10] sm:$0xff]
        %v810 = vld [vmem:[#allocation2 + $0xe18] sm:$0xff]
        %v811 = vld [vmem:[#allocation2 + $0xe20] sm:$0xff]
        %v812 = vld [vmem:[#allocation2 + $0xe28] sm:$0xff]
        %v813 = vld [vmem:[#allocation2 + $0xe30] sm:$0xff]
        %v814 = vld [vmem:[#allocation2 + $0xe38] sm:$0xff]
        %v815 = vld [vmem:[#allocation2 + $0xe40] sm:$0xff]
        %v816 = vld [vmem:[#allocation2 + $0xe48] sm:$0xff]
        %v817 = vld [vmem:[#allocation2 + $0xe50] sm:$0xff]
        %v818 = vld [vmem:[#allocation2 + $0xe58] sm:$0xff]
        %v819 = vld [vmem:[#allocation2 + $0xe60] sm:$0xff]
        %v820 = vld [vmem:[#allocation2 + $0xe68] sm:$0xff]
        %v821 = vld [vmem:[#allocation2 + $0xe70] sm:$0xff]
        %v822 = vld [vmem:[#allocation2 + $0xe78] sm:$0xff]
        %v823 = vld [vmem:[#allocation2 + $0xe80] sm:$0xff]
        %v824 = vld [vmem:[#allocation2 + $0xe88] sm:$0xff]
        %v825 = vld [vmem:[#allocation2 + $0xe90] sm:$0xff]
        %v826 = vld [vmem:[#allocation2 + $0xe98] sm:$0xff]
        %v827 = vld [vmem:[#allocation2 + $0xea0] sm:$0xff]
        %v828 = vld [vmem:[#allocation2 + $0xea8] sm:$0xff]
        %v829 = vld [vmem:[#allocation2 + $0xeb0] sm:$0xff]
        %v830 = vld [vmem:[#allocation2 + $0xeb8] sm:$0xff]
        %v831 = vld [vmem:[#allocation2 + $0xec0] sm:$0xff]
        %v832 = vld [vmem:[#allocation2 + $0xec8] sm:$0xff]
        %v833 = vld [vmem:[#allocation2 + $0xed0] sm:$0xff]
        %v834 = vld [vmem:[#allocation2 + $0xed8] sm:$0xff]
        %v835 = vld [vmem:[#allocation2 + $0xee0] sm:$0xff]
        %v836 = vld [vmem:[#allocation2 + $0xee8] sm:$0xff]
        %v837 = vld [vmem:[#allocation2 + $0xef0] sm:$0xff]
        %v838 = vld [vmem:[#allocation2 + $0xef8] sm:$0xff]
        %v839 = vld [vmem:[#allocation2 + $0xf00] sm:$0xff]
        %v840 = vld [vmem:[#allocation2 + $0xf08] sm:$0xff]
        %v841 = vld [vmem:[#allocation2 + $0xf10] sm:$0xff]
        %v842 = vld [vmem:[#allocation2 + $0xf18] sm:$0xff]
        %v843 = vld [vmem:[#allocation2 + $0xf20] sm:$0xff]
        %v844 = vld [vmem:[#allocation2 + $0xf28] sm:$0xff]
        %v845 = vld [vmem:[#allocation2 + $0xf30] sm:$0xff]
        %v846 = vld [vmem:[#allocation2 + $0xf38] sm:$0xff]
        %v847 = vld [vmem:[#allocation2 + $0xf40] sm:$0xff]
        %v848 = vld [vmem:[#allocation2 + $0xf48] sm:$0xff]
        %v849 = vld [vmem:[#allocation2 + $0xf50] sm:$0xff]
        %v850 = vld [vmem:[#allocation2 + $0xf58] sm:$0xff]
        %v851 = vld [vmem:[#allocation2 + $0xf60] sm:$0xff]
        %v852 = vld [vmem:[#allocation2 + $0xf68] sm:$0xff]
        %v853 = vld [vmem:[#allocation2 + $0xf70] sm:$0xff]
        %v854 = vld [vmem:[#allocation2 + $0xf78] sm:$0xff]
        %v855 = vld [vmem:[#allocation2 + $0xf80] sm:$0xff]
        %v856 = vld [vmem:[#allocation2 + $0xf88] sm:$0xff]
        %v857 = vld [vmem:[#allocation2 + $0xf90] sm:$0xff]
        %v858 = vld [vmem:[#allocation2 + $0xf98] sm:$0xff]
        %v859 = vld [vmem:[#allocation2 + $0xfa0] sm:$0xff]
        %v860 = vld [vmem:[#allocation2 + $0xfa8] sm:$0xff]
        %v861 = vld [vmem:[#allocation2 + $0xfb0] sm:$0xff]
        %v862 = vld [vmem:[#allocation2 + $0xfb8] sm:$0xff]
        %v863 = vld [vmem:[#allocation2 + $0xfc0] sm:$0xff]
        %v864 = vld [vmem:[#allocation2 + $0xfc8] sm:$0xff]
        %v865 = vld [vmem:[#allocation2 + $0xfd0] sm:$0xff]
        %v866 = vld [vmem:[#allocation2 + $0xfd8] sm:$0xff]
        %v867 = vld [vmem:[#allocation2 + $0xfe0] sm:$0xff]
        %v868 = vld [vmem:[#allocation2 + $0xfe8] sm:$0xff]
        %v869 = vld [vmem:[#allocation2 + $0xff0] sm:$0xff]
        %v870 = vld [vmem:[#allocation2 + $0xff8] sm:$0xff]
        %v871 = vld [vmem:[#allocation2 + $0x1000] sm:$0xff]
        %v872 = vld [vmem:[#allocation2 + $0x1008] sm:$0xff]
        %v873 = vld [vmem:[#allocation2 + $0x1010] sm:$0xff]
        %v874 = vld [vmem:[#allocation2 + $0x1018] sm:$0xff]
        %v875 = vld [vmem:[#allocation2 + $0x1020] sm:$0xff]
        %v876 = vld [vmem:[#allocation2 + $0x1028] sm:$0xff]
        %v877 = vld [vmem:[#allocation2 + $0x1030] sm:$0xff]
        %v878 = vld [vmem:[#allocation2 + $0x1038] sm:$0xff]
        %v879 = vld [vmem:[#allocation2 + $0x1040] sm:$0xff]
        %v880 = vld [vmem:[#allocation2 + $0x1048] sm:$0xff]
        %v881 = vld [vmem:[#allocation2 + $0x1050] sm:$0xff]
        %v882 = vld [vmem:[#allocation2 + $0x1058] sm:$0xff]
        %v883 = vld [vmem:[#allocation2 + $0x1060] sm:$0xff]
        %v884 = vld [vmem:[#allocation2 + $0x1068] sm:$0xff]
        %v885 = vld [vmem:[#allocation2 + $0x1070] sm:$0xff]
        %v886 = vld [vmem:[#allocation2 + $0x1078] sm:$0xff]
        %v887 = vld [vmem:[#allocation2 + $0x1080] sm:$0xff]
        %v888 = vld [vmem:[#allocation2 + $0x1088] sm:$0xff]
        %v889 = vld [vmem:[#allocation2 + $0x1090] sm:$0xff]
        %v890 = vld [vmem:[#allocation2 + $0x1098] sm:$0xff]
        %v891 = vld [vmem:[#allocation2 + $0x10a0] sm:$0xff]
        %v892 = vld [vmem:[#allocation2 + $0x10a8] sm:$0xff]
        %v893 = vld [vmem:[#allocation2 + $0x10b0] sm:$0xff]
        %v894 = vld [vmem:[#allocation2 + $0x10b8] sm:$0xff]
        %v895 = vld [vmem:[#allocation2 + $0x10c0] sm:$0xff]
        %v896 = vld [vmem:[#allocation2 + $0x10c8] sm:$0xff]
        %v897 = vld [vmem:[#allocation2 + $0x10d0] sm:$0xff]
        %v898 = vld [vmem:[#allocation2 + $0x10d8] sm:$0xff]
        %v899 = vld [vmem:[#allocation2 + $0x10e0] sm:$0xff]
        %v900 = vld [vmem:[#allocation2 + $0x10e8] sm:$0xff]
        %v901 = vld [vmem:[#allocation2 + $0x10f0] sm:$0xff]
        %v902 = vld [vmem:[#allocation2 + $0x10f8] sm:$0xff]
        %v903 = vld [vmem:[#allocation2 + $0x1100] sm:$0xff]
        %v904 = vld [vmem:[#allocation2 + $0x1108] sm:$0xff]
        %v905 = vld [vmem:[#allocation2 + $0x1110] sm:$0xff]
        %v906 = vld [vmem:[#allocation2 + $0x1118] sm:$0xff]
        %v907 = vld [vmem:[#allocation2 + $0x1120] sm:$0xff]
        %v908 = vld [vmem:[#allocation2 + $0x1128] sm:$0xff]
        %v909 = vld [vmem:[#allocation2 + $0x1130] sm:$0xff]
        %v910 = vld [vmem:[#allocation2 + $0x1138] sm:$0xff]
        %v911 = vld [vmem:[#allocation2 + $0x1140] sm:$0xff]
        %v912 = vld [vmem:[#allocation2 + $0x1148] sm:$0xff]
        %v913 = vld [vmem:[#allocation2 + $0x1150] sm:$0xff]
        %v914 = vld [vmem:[#allocation2 + $0x1158] sm:$0xff]
        %v915 = vld [vmem:[#allocation2 + $0x1160] sm:$0xff]
        %v916 = vld [vmem:[#allocation2 + $0x1168] sm:$0xff]
        %v917 = vld [vmem:[#allocation2 + $0x1170] sm:$0xff]
        %v918 = vld [vmem:[#allocation2 + $0x1178] sm:$0xff]
        %v919 = vld [vmem:[#allocation2 + $0x1180] sm:$0xff]
        %v920 = vld [vmem:[#allocation2 + $0x1188] sm:$0xff]
        %v921 = vld [vmem:[#allocation2 + $0x1190] sm:$0xff]
        %v922 = vld [vmem:[#allocation2 + $0x1198] sm:$0xff]
        %v923 = vld [vmem:[#allocation2 + $0x11a0] sm:$0xff]
        %v924 = vld [vmem:[#allocation2 + $0x11a8] sm:$0xff]
        %v925 = vld [vmem:[#allocation2 + $0x11b0] sm:$0xff]
        %v926 = vld [vmem:[#allocation2 + $0x11b8] sm:$0xff]
        %v927 = vld [vmem:[#allocation2 + $0x11c0] sm:$0xff]
        %v928 = vld [vmem:[#allocation2 + $0x11c8] sm:$0xff]
        %v929 = vld [vmem:[#allocation2 + $0x11d0] sm:$0xff]
        %v930 = vld [vmem:[#allocation2 + $0x11d8] sm:$0xff]
        %v931 = vld [vmem:[#allocation2 + $0x11e0] sm:$0xff]
        %v932 = vld [vmem:[#allocation2 + $0x11e8] sm:$0xff]
        %v933 = vld [vmem:[#allocation2 + $0x11f0] sm:$0xff]
        %v934 = vld [vmem:[#allocation2 + $0x11f8] sm:$0xff]
        %v935 = vld [vmem:[#allocation2 + $0x1200] sm:$0xff]
        %v936 = vld [vmem:[#allocation2 + $0x1208] sm:$0xff]
        %v937 = vld [vmem:[#allocation2 + $0x1210] sm:$0xff]
        %v938 = vld [vmem:[#allocation2 + $0x1218] sm:$0xff]
        %v939 = vld [vmem:[#allocation2 + $0x1220] sm:$0xff]
        %v940 = vld [vmem:[#allocation2 + $0x1228] sm:$0xff]
        %v941 = vld [vmem:[#allocation2 + $0x1230] sm:$0xff]
        %v942 = vld [vmem:[#allocation2 + $0x1238] sm:$0xff]
        %v943 = vld [vmem:[#allocation2 + $0x1240] sm:$0xff]
        %v944 = vld [vmem:[#allocation2 + $0x1248] sm:$0xff]
        %v945 = vld [vmem:[#allocation2 + $0x1250] sm:$0xff]
        %v946 = vld [vmem:[#allocation2 + $0x1258] sm:$0xff]
        %v947 = vld [vmem:[#allocation2 + $0x1260] sm:$0xff]
        %v948 = vld [vmem:[#allocation2 + $0x1268] sm:$0xff]
        %v949 = vld [vmem:[#allocation2 + $0x1270] sm:$0xff]
        %v950 = vld [vmem:[#allocation2 + $0x1278] sm:$0xff]
        %v951 = vld [vmem:[#allocation2 + $0x1280] sm:$0xff]
        %v952 = vld [vmem:[#allocation2 + $0x1288] sm:$0xff]
        %v953 = vld [vmem:[#allocation2 + $0x1290] sm:$0xff]
        %v954 = vld [vmem:[#allocation2 + $0x1298] sm:$0xff]
        %v955 = vld [vmem:[#allocation2 + $0x12a0] sm:$0xff]
        %v956 = vld [vmem:[#allocation2 + $0x12a8] sm:$0xff]
        %v957 = vld [vmem:[#allocation2 + $0x12b0] sm:$0xff]
        %v958 = vld [vmem:[#allocation2 + $0x12b8] sm:$0xff]
        %v959 = vld [vmem:[#allocation2 + $0x12c0] sm:$0xff]
        %v960 = vld [vmem:[#allocation2 + $0x12c8] sm:$0xff]
        %v961 = vld [vmem:[#allocation2 + $0x12d0] sm:$0xff]
        %v962 = vld [vmem:[#allocation2 + $0x12d8] sm:$0xff]
        %v963 = vld [vmem:[#allocation2 + $0x12e0] sm:$0xff]
        %v964 = vld [vmem:[#allocation2 + $0x12e8] sm:$0xff]
        %v965 = vld [vmem:[#allocation2 + $0x12f0] sm:$0xff]
        %v966 = vld [vmem:[#allocation2 + $0x12f8] sm:$0xff]
        %v967 = vld [vmem:[#allocation2 + $0x1300] sm:$0xff]
        %v968 = vld [vmem:[#allocation2 + $0x1308] sm:$0xff]
        %v969 = vld [vmem:[#allocation2 + $0x1310] sm:$0xff]
        %v970 = vld [vmem:[#allocation2 + $0x1318] sm:$0xff]
        %v971 = vld [vmem:[#allocation2 + $0x1320] sm:$0xff]
        %v972 = vld [vmem:[#allocation2 + $0x1328] sm:$0xff]
        %v973 = vld [vmem:[#allocation2 + $0x1330] sm:$0xff]
        %v974 = vld [vmem:[#allocation2 + $0x1338] sm:$0xff]
        %v975 = vld [vmem:[#allocation2 + $0x1340] sm:$0xff]
        %v976 = vld [vmem:[#allocation2 + $0x1348] sm:$0xff]
        %v977 = vld [vmem:[#allocation2 + $0x1350] sm:$0xff]
        %v978 = vld [vmem:[#allocation2 + $0x1358] sm:$0xff]
        %v979 = vld [vmem:[#allocation2 + $0x1360] sm:$0xff]
        %v980 = vld [vmem:[#allocation2 + $0x1368] sm:$0xff]
        %v981 = vld [vmem:[#allocation2 + $0x1370] sm:$0xff]
        %v982 = vld [vmem:[#allocation2 + $0x1378] sm:$0xff]
        %v983 = vld [vmem:[#allocation2 + $0x1380] sm:$0xff]
        %v984 = vld [vmem:[#allocation2 + $0x1388] sm:$0xff]
        %v985 = vld [vmem:[#allocation2 + $0x1390] sm:$0xff]
        %v986 = vld [vmem:[#allocation2 + $0x1398] sm:$0xff]
        %v987 = vld [vmem:[#allocation2 + $0x13a0] sm:$0xff]
        %v988 = vld [vmem:[#allocation2 + $0x13a8] sm:$0xff]
        %v989 = vld [vmem:[#allocation2 + $0x13b0] sm:$0xff]
        %v990 = vld [vmem:[#allocation2 + $0x13b8] sm:$0xff]
        %v991 = vld [vmem:[#allocation2 + $0x13c0] sm:$0xff]
        %v992 = vld [vmem:[#allocation2 + $0x13c8] sm:$0xff]
        %v993 = vld [vmem:[#allocation2 + $0x13d0] sm:$0xff]
        %v994 = vld [vmem:[#allocation2 + $0x13d8] sm:$0xff]
        %v995 = vld [vmem:[#allocation2 + $0x13e0] sm:$0xff]
        %v996 = vld [vmem:[#allocation2 + $0x13e8] sm:$0xff]
        %v997 = vld [vmem:[#allocation2 + $0x13f0] sm:$0xff]
        %v998 = vld [vmem:[#allocation2 + $0x13f8] sm:$0xff]
        %v999 = vld [vmem:[#allocation2 + $0x1400] sm:$0xff]
        %v1000 = vld [vmem:[#allocation2 + $0x1408] sm:$0xff]
        %v1001 = vld [vmem:[#allocation2 + $0x1410] sm:$0xff]
        %v1002 = vld [vmem:[#allocation2 + $0x1418] sm:$0xff]
        %v1003 = vld [vmem:[#allocation2 + $0x1420] sm:$0xff]
        %v1004 = vld [vmem:[#allocation2 + $0x1428] sm:$0xff]
        %v1005 = vld [vmem:[#allocation2 + $0x1430] sm:$0xff]
        %v1006 = vld [vmem:[#allocation2 + $0x1438] sm:$0xff]
        %v1007 = vld [vmem:[#allocation2 + $0x1440] sm:$0xff]
        %v1008 = vld [vmem:[#allocation2 + $0x1448] sm:$0xff]
        %v1009 = vld [vmem:[#allocation2 + $0x1450] sm:$0xff]
        %v1010 = vld [vmem:[#allocation2 + $0x1458] sm:$0xff]
        %v1011 = vld [vmem:[#allocation2 + $0x1460] sm:$0xff]
        %v1012 = vld [vmem:[#allocation2 + $0x1468] sm:$0xff]
        %v1013 = vld [vmem:[#allocation2 + $0x1470] sm:$0xff]
        %v1014 = vld [vmem:[#allocation2 + $0x1478] sm:$0xff]
        %v1015 = vld [vmem:[#allocation2 + $0x1480] sm:$0xff]
        %v1016 = vld [vmem:[#allocation2 + $0x1488] sm:$0xff]
        %v1017 = vld [vmem:[#allocation2 + $0x1490] sm:$0xff]
        %v1018 = vld [vmem:[#allocation2 + $0x1498] sm:$0xff]
        %v1019 = vld [vmem:[#allocation2 + $0x14a0] sm:$0xff]
        %v1020 = vld [vmem:[#allocation2 + $0x14a8] sm:$0xff]
        %v1021 = vld [vmem:[#allocation2 + $0x14b0] sm:$0xff]
        %v1022 = vld [vmem:[#allocation2 + $0x14b8] sm:$0xff]
        %v1023 = vld [vmem:[#allocation2 + $0x14c0] sm:$0xff]
        %v1024 = vld [vmem:[#allocation2 + $0x14c8] sm:$0xff]
        %v1025 = vld [vmem:[#allocation2 + $0x14d0] sm:$0xff]
        %v1026 = vld [vmem:[#allocation2 + $0x14d8] sm:$0xff]
        %v1027 = vld [vmem:[#allocation2 + $0x14e0] sm:$0xff]
        %v1028 = vld [vmem:[#allocation2 + $0x14e8] sm:$0xff]
        %v1029 = vld [vmem:[#allocation2 + $0x14f0] sm:$0xff]
        %v1030 = vld [vmem:[#allocation2 + $0x14f8] sm:$0xff]
        %v1031 = vld [vmem:[#allocation2 + $0x1500] sm:$0xff]
        %v1032 = vld [vmem:[#allocation2 + $0x1508] sm:$0xff]
        %v1033 = vld [vmem:[#allocation2 + $0x1510] sm:$0xff]
        %v1034 = vld [vmem:[#allocation2 + $0x1518] sm:$0xff]
        %v1035 = vld [vmem:[#allocation2 + $0x1520] sm:$0xff]
        %v1036 = vld [vmem:[#allocation2 + $0x1528] sm:$0xff]
        %v1037 = vld [vmem:[#allocation2 + $0x1530] sm:$0xff]
        %v1038 = vld [vmem:[#allocation2 + $0x1538] sm:$0xff]
        %v1039 = vld [vmem:[#allocation2 + $0x1540] sm:$0xff]
        %v1040 = vld [vmem:[#allocation2 + $0x1548] sm:$0xff]
        %v1041 = vld [vmem:[#allocation2 + $0x1550] sm:$0xff]
        %v1042 = vld [vmem:[#allocation2 + $0x1558] sm:$0xff]
        %v1043 = vld [vmem:[#allocation2 + $0x1560] sm:$0xff]
        %v1044 = vld [vmem:[#allocation2 + $0x1568] sm:$0xff]
        %v1045 = vld [vmem:[#allocation2 + $0x1570] sm:$0xff]
        %v1046 = vld [vmem:[#allocation2 + $0x1578] sm:$0xff]
        %v1047 = vld [vmem:[#allocation2 + $0x1580] sm:$0xff]
        %v1048 = vld [vmem:[#allocation2 + $0x1588] sm:$0xff]
        %v1049 = vld [vmem:[#allocation2 + $0x1590] sm:$0xff]
        %v1050 = vld [vmem:[#allocation2 + $0x1598] sm:$0xff]
        %v1051 = vld [vmem:[#allocation2 + $0x15a0] sm:$0xff]
        %v1052 = vld [vmem:[#allocation2 + $0x15a8] sm:$0xff]
        %v1053 = vld [vmem:[#allocation2 + $0x15b0] sm:$0xff]
        %v1054 = vld [vmem:[#allocation2 + $0x15b8] sm:$0xff]
        %v1055 = vld [vmem:[#allocation2 + $0x15c0] sm:$0xff]
        %v1056 = vld [vmem:[#allocation2 + $0x15c8] sm:$0xff]
        %v1057 = vld [vmem:[#allocation2 + $0x15d0] sm:$0xff]
        %v1058 = vld [vmem:[#allocation2 + $0x15d8] sm:$0xff]
        %v1059 = vld [vmem:[#allocation2 + $0x15e0] sm:$0xff]
        %v1060 = vld [vmem:[#allocation2 + $0x15e8] sm:$0xff]
        %v1061 = vld [vmem:[#allocation2 + $0x15f0] sm:$0xff]
        %v1062 = vld [vmem:[#allocation2 + $0x15f8] sm:$0xff]
        %v1063 = vld [vmem:[#allocation2 + $0x1600] sm:$0xff]
        %v1064 = vld [vmem:[#allocation2 + $0x1608] sm:$0xff]
        %v1065 = vld [vmem:[#allocation2 + $0x1610] sm:$0xff]
        %v1066 = vld [vmem:[#allocation2 + $0x1618] sm:$0xff]
        %v1067 = vld [vmem:[#allocation2 + $0x1620] sm:$0xff]
        %v1068 = vld [vmem:[#allocation2 + $0x1628] sm:$0xff]
        %v1069 = vld [vmem:[#allocation2 + $0x1630] sm:$0xff]
        %v1070 = vld [vmem:[#allocation2 + $0x1638] sm:$0xff]
        %v1071 = vld [vmem:[#allocation2 + $0x1640] sm:$0xff]
        %v1072 = vld [vmem:[#allocation2 + $0x1648] sm:$0xff]
        %v1073 = vld [vmem:[#allocation2 + $0x1650] sm:$0xff]
        %v1074 = vld [vmem:[#allocation2 + $0x1658] sm:$0xff]
        %v1075 = vld [vmem:[#allocation2 + $0x1660] sm:$0xff]
        %v1076 = vld [vmem:[#allocation2 + $0x1668] sm:$0xff]
        %v1077 = vld [vmem:[#allocation2 + $0x1670] sm:$0xff]
        %v1078 = vld [vmem:[#allocation2 + $0x1678] sm:$0xff]
        %v1079 = vld [vmem:[#allocation2 + $0x1680] sm:$0xff]
        %v1080 = vld [vmem:[#allocation2 + $0x1688] sm:$0xff]
        %v1081 = vld [vmem:[#allocation2 + $0x1690] sm:$0xff]
        %v1082 = vld [vmem:[#allocation2 + $0x1698] sm:$0xff]
        %v1083 = vld [vmem:[#allocation2 + $0x16a0] sm:$0xff]
        %v1084 = vld [vmem:[#allocation2 + $0x16a8] sm:$0xff]
        %v1085 = vld [vmem:[#allocation2 + $0x16b0] sm:$0xff]
        %v1086 = vld [vmem:[#allocation2 + $0x16b8] sm:$0xff]
        %v1087 = vld [vmem:[#allocation2 + $0x16c0] sm:$0xff]
        %v1088 = vld [vmem:[#allocation2 + $0x16c8] sm:$0xff]
        %v1089 = vld [vmem:[#allocation2 + $0x16d0] sm:$0xff]
        %v1090 = vld [vmem:[#allocation2 + $0x16d8] sm:$0xff]
        %v1091 = vld [vmem:[#allocation2 + $0x16e0] sm:$0xff]
        %v1092 = vld [vmem:[#allocation2 + $0x16e8] sm:$0xff]
        %v1093 = vld [vmem:[#allocation2 + $0x16f0] sm:$0xff]
        %v1094 = vld [vmem:[#allocation2 + $0x16f8] sm:$0xff]
        %v1095 = vld [vmem:[#allocation2 + $0x1700] sm:$0xff]
        %v1096 = vld [vmem:[#allocation2 + $0x1708] sm:$0xff]
        %v1097 = vld [vmem:[#allocation2 + $0x1710] sm:$0xff]
        %v1098 = vld [vmem:[#allocation2 + $0x1718] sm:$0xff]
        %v1099 = vld [vmem:[#allocation2 + $0x1720] sm:$0xff]
        %v1100 = vld [vmem:[#allocation2 + $0x1728] sm:$0xff]
        %v1101 = vld [vmem:[#allocation2 + $0x1730] sm:$0xff]
        %v1102 = vld [vmem:[#allocation2 + $0x1738] sm:$0xff]
        %v1103 = vld [vmem:[#allocation2 + $0x1740] sm:$0xff]
        %v1104 = vld [vmem:[#allocation2 + $0x1748] sm:$0xff]
        %v1105 = vld [vmem:[#allocation2 + $0x1750] sm:$0xff]
        %v1106 = vld [vmem:[#allocation2 + $0x1758] sm:$0xff]
        %v1107 = vld [vmem:[#allocation2 + $0x1760] sm:$0xff]
        %v1108 = vld [vmem:[#allocation2 + $0x1768] sm:$0xff]
        %v1109 = vld [vmem:[#allocation2 + $0x1770] sm:$0xff]
        %v1110 = vld [vmem:[#allocation2 + $0x1778] sm:$0xff]
        %v1111 = vld [vmem:[#allocation2 + $0x1780] sm:$0xff]
        %v1112 = vld [vmem:[#allocation2 + $0x1788] sm:$0xff]
        %v1113 = vld [vmem:[#allocation2 + $0x1790] sm:$0xff]
        %v1114 = vld [vmem:[#allocation2 + $0x1798] sm:$0xff]
        %v1115 = vld [vmem:[#allocation2 + $0x17a0] sm:$0xff]
        %v1116 = vld [vmem:[#allocation2 + $0x17a8] sm:$0xff]
        %v1117 = vld [vmem:[#allocation2 + $0x17b0] sm:$0xff]
        %v1118 = vld [vmem:[#allocation2 + $0x17b8] sm:$0xff]
        %v1119 = vld [vmem:[#allocation2 + $0x17c0] sm:$0xff]
        %v1120 = vld [vmem:[#allocation2 + $0x17c8] sm:$0xff]
        %v1121 = vld [vmem:[#allocation2 + $0x17d0] sm:$0xff]
        %v1122 = vld [vmem:[#allocation2 + $0x17d8] sm:$0xff]
        %v1123 = vld [vmem:[#allocation2 + $0x17e0] sm:$0xff]
        %v1124 = vld [vmem:[#allocation2 + $0x17e8] sm:$0xff]
        %v1125 = vld [vmem:[#allocation2 + $0x17f0] sm:$0xff]
        %v1126 = vld [vmem:[#allocation2 + $0x17f8] sm:$0xff]
        %v1127 = vld [vmem:[#allocation2 + $0x1800] sm:$0xff]
        %v1128 = vld [vmem:[#allocation2 + $0x1808] sm:$0xff]
        %v1129 = vld [vmem:[#allocation2 + $0x1810] sm:$0xff]
        %v1130 = vld [vmem:[#allocation2 + $0x1818] sm:$0xff]
        %v1131 = vld [vmem:[#allocation2 + $0x1820] sm:$0xff]
        %v1132 = vld [vmem:[#allocation2 + $0x1828] sm:$0xff]
        %v1133 = vld [vmem:[#allocation2 + $0x1830] sm:$0xff]
        %v1134 = vld [vmem:[#allocation2 + $0x1838] sm:$0xff]
        %v1135 = vld [vmem:[#allocation2 + $0x1840] sm:$0xff]
        %v1136 = vld [vmem:[#allocation2 + $0x1848] sm:$0xff]
        %v1137 = vld [vmem:[#allocation2 + $0x1850] sm:$0xff]
        %v1138 = vld [vmem:[#allocation2 + $0x1858] sm:$0xff]
        %v1139 = vld [vmem:[#allocation2 + $0x1860] sm:$0xff]
        %v1140 = vld [vmem:[#allocation2 + $0x1868] sm:$0xff]
        %v1141 = vld [vmem:[#allocation2 + $0x1870] sm:$0xff]
        %v1142 = vld [vmem:[#allocation2 + $0x1878] sm:$0xff]
        %v1143 = vld [vmem:[#allocation2 + $0x1880] sm:$0xff]
        %v1144 = vld [vmem:[#allocation2 + $0x1888] sm:$0xff]
        %v1145 = vld [vmem:[#allocation2 + $0x1890] sm:$0xff]
        %v1146 = vld [vmem:[#allocation2 + $0x1898] sm:$0xff]
        %v1147 = vld [vmem:[#allocation2 + $0x18a0] sm:$0xff]
        %v1148 = vld [vmem:[#allocation2 + $0x18a8] sm:$0xff]
        %v1149 = vld [vmem:[#allocation2 + $0x18b0] sm:$0xff]
        %v1150 = vld [vmem:[#allocation2 + $0x18b8] sm:$0xff]
        %v1151 = vld [vmem:[#allocation2 + $0x18c0] sm:$0xff]
        %v1152 = vld [vmem:[#allocation2 + $0x18c8] sm:$0xff]
        %v1153 = vld [vmem:[#allocation2 + $0x18d0] sm:$0xff]
        %v1154 = vld [vmem:[#allocation2 + $0x18d8] sm:$0xff]
        %v1155 = vld [vmem:[#allocation2 + $0x18e0] sm:$0xff]
        %v1156 = vld [vmem:[#allocation2 + $0x18e8] sm:$0xff]
        %v1157 = vld [vmem:[#allocation2 + $0x18f0] sm:$0xff]
        %v1158 = vld [vmem:[#allocation2 + $0x18f8] sm:$0xff]
        %v1159 = vld [vmem:[#allocation2 + $0x1900] sm:$0xff]
        %v1160 = vld [vmem:[#allocation2 + $0x1908] sm:$0xff]
        %v1161 = vld [vmem:[#allocation2 + $0x1910] sm:$0xff]
        %v1162 = vld [vmem:[#allocation2 + $0x1918] sm:$0xff]
        %v1163 = vld [vmem:[#allocation2 + $0x1920] sm:$0xff]
        %v1164 = vld [vmem:[#allocation2 + $0x1928] sm:$0xff]
        %v1165 = vld [vmem:[#allocation2 + $0x1930] sm:$0xff]
        %v1166 = vld [vmem:[#allocation2 + $0x1938] sm:$0xff]
        %v1167 = vld [vmem:[#allocation2 + $0x1940] sm:$0xff]
        %v1168 = vld [vmem:[#allocation2 + $0x1948] sm:$0xff]
        %v1169 = vld [vmem:[#allocation2 + $0x1950] sm:$0xff]
        %v1170 = vld [vmem:[#allocation2 + $0x1958] sm:$0xff]
        %v1171 = vld [vmem:[#allocation2 + $0x1960] sm:$0xff]
        %v1172 = vld [vmem:[#allocation2 + $0x1968] sm:$0xff]
        %v1173 = vld [vmem:[#allocation2 + $0x1970] sm:$0xff]
        %v1174 = vld [vmem:[#allocation2 + $0x1978] sm:$0xff]
        %v1175 = vld [vmem:[#allocation2 + $0x1980] sm:$0xff]
        %v1176 = vld [vmem:[#allocation2 + $0x1988] sm:$0xff]
        %v1177 = vld [vmem:[#allocation2 + $0x1990] sm:$0xff]
        %v1178 = vld [vmem:[#allocation2 + $0x1998] sm:$0xff]
        %v1179 = vld [vmem:[#allocation2 + $0x19a0] sm:$0xff]
        %v1180 = vld [vmem:[#allocation2 + $0x19a8] sm:$0xff]
        %v1181 = vld [vmem:[#allocation2 + $0x19b0] sm:$0xff]
        %v1182 = vld [vmem:[#allocation2 + $0x19b8] sm:$0xff]
        %v1183 = vld [vmem:[#allocation2 + $0x19c0] sm:$0xff]
        %v1184 = vld [vmem:[#allocation2 + $0x19c8] sm:$0xff]
        %v1185 = vld [vmem:[#allocation2 + $0x19d0] sm:$0xff]
        %v1186 = vld [vmem:[#allocation2 + $0x19d8] sm:$0xff]
        %v1187 = vld [vmem:[#allocation2 + $0x19e0] sm:$0xff]
        %v1188 = vld [vmem:[#allocation2 + $0x19e8] sm:$0xff]
        %v1189 = vld [vmem:[#allocation2 + $0x19f0] sm:$0xff]
        %v1190 = vld [vmem:[#allocation2 + $0x19f8] sm:$0xff]
        %v1191 = vld [vmem:[#allocation2 + $0x1a00] sm:$0xff]
        %v1192 = vld [vmem:[#allocation2 + $0x1a08] sm:$0xff]
        %v1193 = vld [vmem:[#allocation2 + $0x1a10] sm:$0xff]
        %v1194 = vld [vmem:[#allocation2 + $0x1a18] sm:$0xff]
        %v1195 = vld [vmem:[#allocation2 + $0x1a20] sm:$0xff]
        %v1196 = vld [vmem:[#allocation2 + $0x1a28] sm:$0xff]
        %v1197 = vld [vmem:[#allocation2 + $0x1a30] sm:$0xff]
        %v1198 = vld [vmem:[#allocation2 + $0x1a38] sm:$0xff]
        %v1199 = vld [vmem:[#allocation2 + $0x1a40] sm:$0xff]
        %v1200 = vld [vmem:[#allocation2 + $0x1a48] sm:$0xff]
        %v1201 = vld [vmem:[#allocation2 + $0x1a50] sm:$0xff]
        %v1202 = vld [vmem:[#allocation2 + $0x1a58] sm:$0xff]
        %v1203 = vld [vmem:[#allocation2 + $0x1a60] sm:$0xff]
        %v1204 = vld [vmem:[#allocation2 + $0x1a68] sm:$0xff]
        %v1205 = vld [vmem:[#allocation2 + $0x1a70] sm:$0xff]
        %v1206 = vld [vmem:[#allocation2 + $0x1a78] sm:$0xff]
        %v1207 = vld [vmem:[#allocation2 + $0x1a80] sm:$0xff]
        %v1208 = vld [vmem:[#allocation2 + $0x1a88] sm:$0xff]
        %v1209 = vld [vmem:[#allocation2 + $0x1a90] sm:$0xff]
        %v1210 = vld [vmem:[#allocation2 + $0x1a98] sm:$0xff]
        %v1211 = vld [vmem:[#allocation2 + $0x1aa0] sm:$0xff]
        %v1212 = vld [vmem:[#allocation2 + $0x1aa8] sm:$0xff]
        %v1213 = vld [vmem:[#allocation2 + $0x1ab0] sm:$0xff]
        %v1214 = vld [vmem:[#allocation2 + $0x1ab8] sm:$0xff]
        %v1215 = vld [vmem:[#allocation2 + $0x1ac0] sm:$0xff]
        %v1216 = vld [vmem:[#allocation2 + $0x1ac8] sm:$0xff]
        %v1217 = vld [vmem:[#allocation2 + $0x1ad0] sm:$0xff]
        %v1218 = vld [vmem:[#allocation2 + $0x1ad8] sm:$0xff]
        %v1219 = vld [vmem:[#allocation2 + $0x1ae0] sm:$0xff]
        %v1220 = vld [vmem:[#allocation2 + $0x1ae8] sm:$0xff]
        %v1221 = vld [vmem:[#allocation2 + $0x1af0] sm:$0xff]
        %v1222 = vld [vmem:[#allocation2 + $0x1af8] sm:$0xff]
        %v1223 = vld [vmem:[#allocation2 + $0x1b00] sm:$0xff]
        %v1224 = vld [vmem:[#allocation2 + $0x1b08] sm:$0xff]
        %v1225 = vld [vmem:[#allocation2 + $0x1b10] sm:$0xff]
        %v1226 = vld [vmem:[#allocation2 + $0x1b18] sm:$0xff]
        %v1227 = vld [vmem:[#allocation2 + $0x1b20] sm:$0xff]
        %v1228 = vld [vmem:[#allocation2 + $0x1b28] sm:$0xff]
        %v1229 = vld [vmem:[#allocation2 + $0x1b30] sm:$0xff]
        %v1230 = vld [vmem:[#allocation2 + $0x1b38] sm:$0xff]
        %v1231 = vld [vmem:[#allocation2 + $0x1b40] sm:$0xff]
        %v1232 = vld [vmem:[#allocation2 + $0x1b48] sm:$0xff]
        %v1233 = vld [vmem:[#allocation2 + $0x1b50] sm:$0xff]
        %v1234 = vld [vmem:[#allocation2 + $0x1b58] sm:$0xff]
        %v1235 = vld [vmem:[#allocation2 + $0x1b60] sm:$0xff]
        %v1236 = vld [vmem:[#allocation2 + $0x1b68] sm:$0xff]
        %v1237 = vld [vmem:[#allocation2 + $0x1b70] sm:$0xff]
        %v1238 = vld [vmem:[#allocation2 + $0x1b78] sm:$0xff]
        %v1239 = vld [vmem:[#allocation2 + $0x1b80] sm:$0xff]
        %v1240 = vld [vmem:[#allocation2 + $0x1b88] sm:$0xff]
        %v1241 = vld [vmem:[#allocation2 + $0x1b90] sm:$0xff]
        %v1242 = vld [vmem:[#allocation2 + $0x1b98] sm:$0xff]
        %v1243 = vld [vmem:[#allocation2 + $0x1ba0] sm:$0xff]
        %v1244 = vld [vmem:[#allocation2 + $0x1ba8] sm:$0xff]
        %v1245 = vld [vmem:[#allocation2 + $0x1bb0] sm:$0xff]
        %v1246 = vld [vmem:[#allocation2 + $0x1bb8] sm:$0xff]
        %v1247 = vld [vmem:[#allocation2 + $0x1bc0] sm:$0xff]
        %v1248 = vld [vmem:[#allocation2 + $0x1bc8] sm:$0xff]
        %v1249 = vld [vmem:[#allocation2 + $0x1bd0] sm:$0xff]
        %v1250 = vld [vmem:[#allocation2 + $0x1bd8] sm:$0xff]
        %v1251 = vld [vmem:[#allocation2 + $0x1be0] sm:$0xff]
        %v1252 = vld [vmem:[#allocation2 + $0x1be8] sm:$0xff]
        %v1253 = vld [vmem:[#allocation2 + $0x1bf0] sm:$0xff]
        %v1254 = vld [vmem:[#allocation2 + $0x1bf8] sm:$0xff]
        %v1255 = vld [vmem:[#allocation2 + $0x1c00] sm:$0xff]
        %v1256 = vld [vmem:[#allocation2 + $0x1c08] sm:$0xff]
        %v1257 = vld [vmem:[#allocation2 + $0x1c10] sm:$0xff]
        %v1258 = vld [vmem:[#allocation2 + $0x1c18] sm:$0xff]
        %v1259 = vld [vmem:[#allocation2 + $0x1c20] sm:$0xff]
        %v1260 = vld [vmem:[#allocation2 + $0x1c28] sm:$0xff]
        %v1261 = vld [vmem:[#allocation2 + $0x1c30] sm:$0xff]
        %v1262 = vld [vmem:[#allocation2 + $0x1c38] sm:$0xff]
        %v1263 = vld [vmem:[#allocation2 + $0x1c40] sm:$0xff]
        %v1264 = vld [vmem:[#allocation2 + $0x1c48] sm:$0xff]
        %v1265 = vld [vmem:[#allocation2 + $0x1c50] sm:$0xff]
        %v1266 = vld [vmem:[#allocation2 + $0x1c58] sm:$0xff]
        %v1267 = vld [vmem:[#allocation2 + $0x1c60] sm:$0xff]
        %v1268 = vld [vmem:[#allocation2 + $0x1c68] sm:$0xff]
        %v1269 = vld [vmem:[#allocation2 + $0x1c70] sm:$0xff]
        %v1270 = vld [vmem:[#allocation2 + $0x1c78] sm:$0xff]
        %v1271 = vld [vmem:[#allocation2 + $0x1c80] sm:$0xff]
        %v1272 = vld [vmem:[#allocation2 + $0x1c88] sm:$0xff]
        %v1273 = vld [vmem:[#allocation2 + $0x1c90] sm:$0xff]
        %v1274 = vld [vmem:[#allocation2 + $0x1c98] sm:$0xff]
        %v1275 = vld [vmem:[#allocation2 + $0x1ca0] sm:$0xff]
        %v1276 = vld [vmem:[#allocation2 + $0x1ca8] sm:$0xff]
        %v1277 = vld [vmem:[#allocation2 + $0x1cb0] sm:$0xff]
        %v1278 = vld [vmem:[#allocation2 + $0x1cb8] sm:$0xff]
        %v1279 = vld [vmem:[#allocation2 + $0x1cc0] sm:$0xff]
        %v1280 = vld [vmem:[#allocation2 + $0x1cc8] sm:$0xff]
        %v1281 = vld [vmem:[#allocation2 + $0x1cd0] sm:$0xff]
        %v1282 = vld [vmem:[#allocation2 + $0x1cd8] sm:$0xff]
        %v1283 = vld [vmem:[#allocation2 + $0x1ce0] sm:$0xff]
        %v1284 = vld [vmem:[#allocation2 + $0x1ce8] sm:$0xff]
        %v1285 = vld [vmem:[#allocation2 + $0x1cf0] sm:$0xff]
        %v1286 = vld [vmem:[#allocation2 + $0x1cf8] sm:$0xff]
        %v1287 = vld [vmem:[#allocation2 + $0x1d00] sm:$0xff]
        %v1288 = vld [vmem:[#allocation2 + $0x1d08] sm:$0xff]
        %v1289 = vld [vmem:[#allocation2 + $0x1d10] sm:$0xff]
        %v1290 = vld [vmem:[#allocation2 + $0x1d18] sm:$0xff]
        %v1291 = vld [vmem:[#allocation2 + $0x1d20] sm:$0xff]
        %v1292 = vld [vmem:[#allocation2 + $0x1d28] sm:$0xff]
        %v1293 = vld [vmem:[#allocation2 + $0x1d30] sm:$0xff]
        %v1294 = vld [vmem:[#allocation2 + $0x1d38] sm:$0xff]
        %v1295 = vld [vmem:[#allocation2 + $0x1d40] sm:$0xff]
        %v1296 = vld [vmem:[#allocation2 + $0x1d48] sm:$0xff]
        %v1297 = vld [vmem:[#allocation2 + $0x1d50] sm:$0xff]
        %v1298 = vld [vmem:[#allocation2 + $0x1d58] sm:$0xff]
        %v1299 = vld [vmem:[#allocation2 + $0x1d60] sm:$0xff]
        %v1300 = vld [vmem:[#allocation2 + $0x1d68] sm:$0xff]
        %v1301 = vld [vmem:[#allocation2 + $0x1d70] sm:$0xff]
        %v1302 = vld [vmem:[#allocation2 + $0x1d78] sm:$0xff]
        %v1303 = vld [vmem:[#allocation2 + $0x1d80] sm:$0xff]
        %v1304 = vld [vmem:[#allocation2 + $0x1d88] sm:$0xff]
        %v1305 = vld [vmem:[#allocation2 + $0x1d90] sm:$0xff]
        %v1306 = vld [vmem:[#allocation2 + $0x1d98] sm:$0xff]
        %v1307 = vld [vmem:[#allocation2 + $0x1da0] sm:$0xff]
        %v1308 = vld [vmem:[#allocation2 + $0x1da8] sm:$0xff]
        %v1309 = vld [vmem:[#allocation2 + $0x1db0] sm:$0xff]
        %v1310 = vld [vmem:[#allocation2 + $0x1db8] sm:$0xff]
        %v1311 = vld [vmem:[#allocation2 + $0x1dc0] sm:$0xff]
        %v1312 = vld [vmem:[#allocation2 + $0x1dc8] sm:$0xff]
        %v1313 = vld [vmem:[#allocation2 + $0x1dd0] sm:$0xff]
        %v1314 = vld [vmem:[#allocation2 + $0x1dd8] sm:$0xff]
        %v1315 = vld [vmem:[#allocation2 + $0x1de0] sm:$0xff]
        %v1316 = vld [vmem:[#allocation2 + $0x1de8] sm:$0xff]
        %v1317 = vld [vmem:[#allocation2 + $0x1df0] sm:$0xff]
        %v1318 = vld [vmem:[#allocation2 + $0x1df8] sm:$0xff]
        %v1319 = vld [vmem:[#allocation2 + $0x1e00] sm:$0xff]
        %v1320 = vld [vmem:[#allocation2 + $0x1e08] sm:$0xff]
        %v1321 = vld [vmem:[#allocation2 + $0x1e10] sm:$0xff]
        %v1322 = vld [vmem:[#allocation2 + $0x1e18] sm:$0xff]
        %v1323 = vld [vmem:[#allocation2 + $0x1e20] sm:$0xff]
        %v1324 = vld [vmem:[#allocation2 + $0x1e28] sm:$0xff]
        %v1325 = vld [vmem:[#allocation2 + $0x1e30] sm:$0xff]
        %v1326 = vld [vmem:[#allocation2 + $0x1e38] sm:$0xff]
        %v1327 = vld [vmem:[#allocation2 + $0x1e40] sm:$0xff]
        %v1328 = vld [vmem:[#allocation2 + $0x1e48] sm:$0xff]
        %v1329 = vld [vmem:[#allocation2 + $0x1e50] sm:$0xff]
        %v1330 = vld [vmem:[#allocation2 + $0x1e58] sm:$0xff]
        %v1331 = vld [vmem:[#allocation2 + $0x1e60] sm:$0xff]
        %v1332 = vld [vmem:[#allocation2 + $0x1e68] sm:$0xff]
        %v1333 = vld [vmem:[#allocation2 + $0x1e70] sm:$0xff]
        %v1334 = vld [vmem:[#allocation2 + $0x1e78] sm:$0xff]
        %v1335 = vld [vmem:[#allocation2 + $0x1e80] sm:$0xff]
        %v1336 = vld [vmem:[#allocation2 + $0x1e88] sm:$0xff]
        %v1337 = vld [vmem:[#allocation2 + $0x1e90] sm:$0xff]
        %v1338 = vld [vmem:[#allocation2 + $0x1e98] sm:$0xff]
        %v1339 = vld [vmem:[#allocation2 + $0x1ea0] sm:$0xff]
        %v1340 = vld [vmem:[#allocation2 + $0x1ea8] sm:$0xff]
        %v1341 = vld [vmem:[#allocation2 + $0x1eb0] sm:$0xff]
        %v1342 = vld [vmem:[#allocation2 + $0x1eb8] sm:$0xff]
        %v1343 = vld [vmem:[#allocation2 + $0x1ec0] sm:$0xff]
        %v1344 = vld [vmem:[#allocation2 + $0x1ec8] sm:$0xff]
        %v1345 = vld [vmem:[#allocation2 + $0x1ed0] sm:$0xff]
        %v1346 = vld [vmem:[#allocation2 + $0x1ed8] sm:$0xff]
        %v1347 = vld [vmem:[#allocation2 + $0x1ee0] sm:$0xff]
        %v1348 = vld [vmem:[#allocation2 + $0x1ee8] sm:$0xff]
        %v1349 = vld [vmem:[#allocation2 + $0x1ef0] sm:$0xff]
        %v1350 = vld [vmem:[#allocation2 + $0x1ef8] sm:$0xff]
        %v1351 = vld [vmem:[#allocation2 + $0x1f00] sm:$0xff]
        %v1352 = vld [vmem:[#allocation2 + $0x1f08] sm:$0xff]
        %v1353 = vld [vmem:[#allocation2 + $0x1f10] sm:$0xff]
        %v1354 = vld [vmem:[#allocation2 + $0x1f18] sm:$0xff]
        %v1355 = vld [vmem:[#allocation2 + $0x1f20] sm:$0xff]
        %v1356 = vld [vmem:[#allocation2 + $0x1f28] sm:$0xff]
        %v1357 = vld [vmem:[#allocation2 + $0x1f30] sm:$0xff]
        %v1358 = vld [vmem:[#allocation2 + $0x1f38] sm:$0xff]
        %v1359 = vld [vmem:[#allocation2 + $0x1f40] sm:$0xff]
        %v1360 = vld [vmem:[#allocation2 + $0x1f48] sm:$0xff]
        %v1361 = vld [vmem:[#allocation2 + $0x1f50] sm:$0xff]
        %v1362 = vld [vmem:[#allocation2 + $0x1f58] sm:$0xff]
        %v1363 = vld [vmem:[#allocation2 + $0x1f60] sm:$0xff]
        %v1364 = vld [vmem:[#allocation2 + $0x1f68] sm:$0xff]
        %v1365 = vld [vmem:[#allocation2 + $0x1f70] sm:$0xff]
        %v1366 = vld [vmem:[#allocation2 + $0x1f78] sm:$0xff]
        %v1367 = vld [vmem:[#allocation2 + $0x1f80] sm:$0xff]
        %v1368 = vld [vmem:[#allocation2 + $0x1f88] sm:$0xff]
        %v1369 = vld [vmem:[#allocation2 + $0x1f90] sm:$0xff]
        %v1370 = vld [vmem:[#allocation2 + $0x1f98] sm:$0xff]
        %v1371 = vld [vmem:[#allocation2 + $0x1fa0] sm:$0xff]
        %v1372 = vld [vmem:[#allocation2 + $0x1fa8] sm:$0xff]
        %v1373 = vld [vmem:[#allocation2 + $0x1fb0] sm:$0xff]
        %v1374 = vld [vmem:[#allocation2 + $0x1fb8] sm:$0xff]
        %v1375 = vld [vmem:[#allocation2 + $0x1fc0] sm:$0xff]
        %v1376 = vld [vmem:[#allocation2 + $0x1fc8] sm:$0xff]
        %v1377 = vld [vmem:[#allocation2 + $0x1fd0] sm:$0xff]
        %v1378 = vld [vmem:[#allocation2 + $0x1fd8] sm:$0xff]
        %v1379 = vld [vmem:[#allocation2 + $0x1fe0] sm:$0xff]
        %v1380 = vld [vmem:[#allocation2 + $0x1fe8] sm:$0xff]
        %v1381 = vld [vmem:[#allocation2 + $0x1ff0] sm:$0xff]
        %v1382 = vld [vmem:[#allocation2 + $0x1ff8] sm:$0xff]
        %v1383 = vld [vmem:[#allocation2 + $0x2000] sm:$0xff]
        %v1384 = vld [vmem:[#allocation2 + $0x2008] sm:$0xff]
        %v1385 = vld [vmem:[#allocation2 + $0x2010] sm:$0xff]
        %v1386 = vld [vmem:[#allocation2 + $0x2018] sm:$0xff]
        %v1387 = vld [vmem:[#allocation2 + $0x2020] sm:$0xff]
        %v1388 = vld [vmem:[#allocation2 + $0x2028] sm:$0xff]
        %v1389 = vld [vmem:[#allocation2 + $0x2030] sm:$0xff]
        %v1390 = vld [vmem:[#allocation2 + $0x2038] sm:$0xff]
        %v1391 = vld [vmem:[#allocation2 + $0x2040] sm:$0xff]
        %v1392 = vld [vmem:[#allocation2 + $0x2048] sm:$0xff]
        %v1393 = vld [vmem:[#allocation2 + $0x2050] sm:$0xff]
        %v1394 = vld [vmem:[#allocation2 + $0x2058] sm:$0xff]
        %v1395 = vld [vmem:[#allocation2 + $0x2060] sm:$0xff]
        %v1396 = vld [vmem:[#allocation2 + $0x2068] sm:$0xff]
        %v1397 = vld [vmem:[#allocation2 + $0x2070] sm:$0xff]
        %v1398 = vld [vmem:[#allocation2 + $0x2078] sm:$0xff]
        %v1399 = vld [vmem:[#allocation2 + $0x2080] sm:$0xff]
        %v1400 = vld [vmem:[#allocation2 + $0x2088] sm:$0xff]
        %v1401 = vld [vmem:[#allocation2 + $0x2090] sm:$0xff]
        %v1402 = vld [vmem:[#allocation2 + $0x2098] sm:$0xff]
        %v1403 = vld [vmem:[#allocation2 + $0x20a0] sm:$0xff]
        %v1404 = vld [vmem:[#allocation2 + $0x20a8] sm:$0xff]
        %v1405 = vld [vmem:[#allocation2 + $0x20b0] sm:$0xff]
        %v1406 = vld [vmem:[#allocation2 + $0x20b8] sm:$0xff]
        %v1407 = vld [vmem:[#allocation2 + $0x20c0] sm:$0xff]
        %v1408 = vld [vmem:[#allocation2 + $0x20c8] sm:$0xff]
        %v1409 = vld [vmem:[#allocation2 + $0x20d0] sm:$0xff]
        %v1410 = vld [vmem:[#allocation2 + $0x20d8] sm:$0xff]
        %v1411 = vld [vmem:[#allocation2 + $0x20e0] sm:$0xff]
        %v1412 = vld [vmem:[#allocation2 + $0x20e8] sm:$0xff]
        %v1413 = vld [vmem:[#allocation2 + $0x20f0] sm:$0xff]
        %v1414 = vld [vmem:[#allocation2 + $0x20f8] sm:$0xff]
        %v1415 = vld [vmem:[#allocation2 + $0x2100] sm:$0xff]
        %v1416 = vld [vmem:[#allocation2 + $0x2108] sm:$0xff]
        %v1417 = vld [vmem:[#allocation2 + $0x2110] sm:$0xff]
        %v1418 = vld [vmem:[#allocation2 + $0x2118] sm:$0xff]
        %v1419 = vld [vmem:[#allocation2 + $0x2120] sm:$0xff]
        %v1420 = vld [vmem:[#allocation2 + $0x2128] sm:$0xff]
        %v1421 = vld [vmem:[#allocation2 + $0x2130] sm:$0xff]
        %v1422 = vld [vmem:[#allocation2 + $0x2138] sm:$0xff]
        %v1423 = vld [vmem:[#allocation2 + $0x2140] sm:$0xff]
        %v1424 = vld [vmem:[#allocation2 + $0x2148] sm:$0xff]
        %v1425 = vld [vmem:[#allocation2 + $0x2150] sm:$0xff]
        %v1426 = vld [vmem:[#allocation2 + $0x2158] sm:$0xff]
        %v1427 = vld [vmem:[#allocation2 + $0x2160] sm:$0xff]
        %v1428 = vld [vmem:[#allocation2 + $0x2168] sm:$0xff]
        %v1429 = vld [vmem:[#allocation2 + $0x2170] sm:$0xff]
        %v1430 = vld [vmem:[#allocation2 + $0x2178] sm:$0xff]
        %v1431 = vld [vmem:[#allocation2 + $0x2180] sm:$0xff]
        %v1432 = vld [vmem:[#allocation2 + $0x2188] sm:$0xff]
        %v1433 = vld [vmem:[#allocation2 + $0x2190] sm:$0xff]
        %v1434 = vld [vmem:[#allocation2 + $0x2198] sm:$0xff]
        %v1435 = vld [vmem:[#allocation2 + $0x21a0] sm:$0xff]
        %v1436 = vld [vmem:[#allocation2 + $0x21a8] sm:$0xff]
        %v1437 = vld [vmem:[#allocation2 + $0x21b0] sm:$0xff]
        %v1438 = vld [vmem:[#allocation2 + $0x21b8] sm:$0xff]
        %v1439 = vld [vmem:[#allocation2 + $0x21c0] sm:$0xff]
        %v1440 = vld [vmem:[#allocation2 + $0x21c8] sm:$0xff]
        %v1441 = vld [vmem:[#allocation2 + $0x21d0] sm:$0xff]
        %v1442 = vld [vmem:[#allocation2 + $0x21d8] sm:$0xff]
        %v1443 = vld [vmem:[#allocation2 + $0x21e0] sm:$0xff]
        %v1444 = vld [vmem:[#allocation2 + $0x21e8] sm:$0xff]
        %v1445 = vld [vmem:[#allocation2 + $0x21f0] sm:$0xff]
        %v1446 = vld [vmem:[#allocation2 + $0x21f8] sm:$0xff]
        %v1447 = vld [vmem:[#allocation2 + $0x2200] sm:$0xff]
        %v1448 = vld [vmem:[#allocation2 + $0x2208] sm:$0xff]
        %v1449 = vld [vmem:[#allocation2 + $0x2210] sm:$0xff]
        %v1450 = vld [vmem:[#allocation2 + $0x2218] sm:$0xff]
        %v1451 = vld [vmem:[#allocation2 + $0x2220] sm:$0xff]
        %v1452 = vld [vmem:[#allocation2 + $0x2228] sm:$0xff]
        %v1453 = vld [vmem:[#allocation2 + $0x2230] sm:$0xff]
        %v1454 = vld [vmem:[#allocation2 + $0x2238] sm:$0xff]
        %v1455 = vld [vmem:[#allocation2 + $0x2240] sm:$0xff]
        %v1456 = vld [vmem:[#allocation2 + $0x2248] sm:$0xff]
        %v1457 = vld [vmem:[#allocation2 + $0x2250] sm:$0xff]
        %v1458 = vld [vmem:[#allocation2 + $0x2258] sm:$0xff]
        %v1459 = vld [vmem:[#allocation2 + $0x2260] sm:$0xff]
        %v1460 = vld [vmem:[#allocation2 + $0x2268] sm:$0xff]
        %v1461 = vld [vmem:[#allocation2 + $0x2270] sm:$0xff]
        %v1462 = vld [vmem:[#allocation2 + $0x2278] sm:$0xff]
        %v1463 = vld [vmem:[#allocation2 + $0x2280] sm:$0xff]
        %v1464 = vld [vmem:[#allocation2 + $0x2288] sm:$0xff]
        %v1465 = vld [vmem:[#allocation2 + $0x2290] sm:$0xff]
        %v1466 = vld [vmem:[#allocation2 + $0x2298] sm:$0xff]
        %v1467 = vld [vmem:[#allocation2 + $0x22a0] sm:$0xff]
        %v1468 = vld [vmem:[#allocation2 + $0x22a8] sm:$0xff]
        %v1469 = vld [vmem:[#allocation2 + $0x22b0] sm:$0xff]
        %v1470 = vld [vmem:[#allocation2 + $0x22b8] sm:$0xff]
        %v1471 = vld [vmem:[#allocation2 + $0x22c0] sm:$0xff]
        %v1472 = vld [vmem:[#allocation2 + $0x22c8] sm:$0xff]
        %v1473 = vld [vmem:[#allocation2 + $0x22d0] sm:$0xff]
        %v1474 = vld [vmem:[#allocation2 + $0x22d8] sm:$0xff]
        %v1475 = vld [vmem:[#allocation2 + $0x22e0] sm:$0xff]
        %v1476 = vld [vmem:[#allocation2 + $0x22e8] sm:$0xff]
        %v1477 = vld [vmem:[#allocation2 + $0x22f0] sm:$0xff]
        %v1478 = vld [vmem:[#allocation2 + $0x22f8] sm:$0xff]
        %v1479 = vld [vmem:[#allocation4] sm:$0xff]
        %v1480 = vld [vmem:[#allocation4 + $0x8] sm:$0xff]
        %v1481 = vld [vmem:[#allocation4 + $0x10] sm:$0xff]
        %v1482 = vld [vmem:[#allocation4 + $0x18] sm:$0xf]
        %v1487 = vlaneseq
        %v1488 = vshrl.u32 %v1487, 7
        %v1489 = vsub.s32 0, %v1488
        %v1490 = vrot.slane %v1479, %v1489
        %v1491 = vlaneseq
        %v1492 = vshrl.u32 %v1491, 7
        %v1493 = vsub.s32 1, %v1492
        %v1494 = vrot.slane %v1479, %v1493
        %v1495 = vlaneseq
        %v1496 = vshrl.u32 %v1495, 7
        %v1497 = vsub.s32 2, %v1496
        %v1498 = vrot.slane %v1479, %v1497
        %v1499 = vlaneseq
        %v1500 = vshrl.u32 %v1499, 7
        %v1501 = vsub.s32 3, %v1500
        %v1502 = vrot.slane %v1479, %v1501
        %v1503 = vlaneseq
        %v1504 = vshrl.u32 %v1503, 7
        %v1505 = vsub.s32 4, %v1504
        %v1506 = vrot.slane %v1479, %v1505
        %v1507 = vlaneseq
        %v1508 = vshrl.u32 %v1507, 7
        %v1509 = vsub.s32 5, %v1508
        %v1510 = vrot.slane %v1479, %v1509
        %v1511 = vlaneseq
        %v1512 = vshrl.u32 %v1511, 7
        %v1513 = vsub.s32 6, %v1512
        %v1514 = vrot.slane %v1479, %v1513
        %v1515 = vlaneseq
        %v1516 = vshrl.u32 %v1515, 7
        %v1517 = vsub.s32 7, %v1516
        %v1518 = vrot.slane %v1479, %v1517
        %v1519 = vlaneseq
        %v1520 = vshrl.u32 %v1519, 7
        %v1521 = vsub.s32 0, %v1520
        %v1522 = vrot.slane %v1480, %v1521
        %v1523 = vlaneseq
        %v1524 = vshrl.u32 %v1523, 7
        %v1525 = vsub.s32 1, %v1524
        %v1526 = vrot.slane %v1480, %v1525
        %v1527 = vlaneseq
        %v1528 = vshrl.u32 %v1527, 7
        %v1529 = vsub.s32 2, %v1528
        %v1530 = vrot.slane %v1480, %v1529
        %v1531 = vlaneseq
        %v1532 = vshrl.u32 %v1531, 7
        %v1533 = vsub.s32 3, %v1532
        %v1534 = vrot.slane %v1480, %v1533
        %v1535 = vlaneseq
        %v1536 = vshrl.u32 %v1535, 7
        %v1537 = vsub.s32 4, %v1536
        %v1538 = vrot.slane %v1480, %v1537
        %v1539 = vlaneseq
        %v1540 = vshrl.u32 %v1539, 7
        %v1541 = vsub.s32 5, %v1540
        %v1542 = vrot.slane %v1480, %v1541
        %v1543 = vlaneseq
        %v1544 = vshrl.u32 %v1543, 7
        %v1545 = vsub.s32 6, %v1544
        %v1546 = vrot.slane %v1480, %v1545
        %v1547 = vlaneseq
        %v1548 = vshrl.u32 %v1547, 7
        %v1549 = vsub.s32 7, %v1548
        %v1550 = vrot.slane %v1480, %v1549
        %v1551 = vlaneseq
        %v1552 = vshrl.u32 %v1551, 7
        %v1553 = vsub.s32 0, %v1552
        %v1554 = vrot.slane %v1481, %v1553
        %v1555 = vlaneseq
        %v1556 = vshrl.u32 %v1555, 7
        %v1557 = vsub.s32 1, %v1556
        %v1558 = vrot.slane %v1481, %v1557
        %v1559 = vlaneseq
        %v1560 = vshrl.u32 %v1559, 7
        %v1561 = vsub.s32 2, %v1560
        %v1562 = vrot.slane %v1481, %v1561
        %v1563 = vlaneseq
        %v1564 = vshrl.u32 %v1563, 7
        %v1565 = vsub.s32 3, %v1564
        %v1566 = vrot.slane %v1481, %v1565
        %v1567 = vlaneseq
        %v1568 = vshrl.u32 %v1567, 7
        %v1569 = vsub.s32 4, %v1568
        %v1570 = vrot.slane %v1481, %v1569
        %v1571 = vlaneseq
        %v1572 = vshrl.u32 %v1571, 7
        %v1573 = vsub.s32 5, %v1572
        %v1574 = vrot.slane %v1481, %v1573
        %v1575 = vlaneseq
        %v1576 = vshrl.u32 %v1575, 7
        %v1577 = vsub.s32 6, %v1576
        %v1578 = vrot.slane %v1481, %v1577
        %v1579 = vlaneseq
        %v1580 = vshrl.u32 %v1579, 7
        %v1581 = vsub.s32 7, %v1580
        %v1582 = vrot.slane %v1481, %v1581
        %v1583 = vlaneseq
        %v1584 = vshrl.u32 %v1583, 7
        %v1585 = vsub.s32 0, %v1584
        %v1586 = vrot.slane %v1482, %v1585
        %v1587 = vlaneseq
        %v1588 = vshrl.u32 %v1587, 7
        %v1589 = vsub.s32 1, %v1588
        %v1590 = vrot.slane %v1482, %v1589
        %v1591 = vlaneseq
        %v1592 = vshrl.u32 %v1591, 7
        %v1593 = vsub.s32 2, %v1592
        %v1594 = vrot.slane %v1482, %v1593
        %v1595 = vlaneseq
        %v1596 = vshrl.u32 %v1595, 7
        %v1597 = vsub.s32 3, %v1596
        %v1598 = vrot.slane %v1482, %v1597
        %v1633 = vunpack.c.l.b16 %v353
        %v1634 = vunpack.c.h.b16 %v353
        %v1635 = vunpack.c.l.b16 %v354
        %v1636 = vunpack.c.h.b16 %v354
        %v1637 = vunpack.c.l.b16 %v355
        %v1638 = vunpack.c.l.b16 %v356
        %v1639 = vunpack.c.h.b16 %v356
        %v1640 = vunpack.c.l.b16 %v357
        %v1641 = vunpack.c.h.b16 %v357
        %v1642 = vunpack.c.l.b16 %v358
        %v1643 = vpack.c.b16 %v1638, %v1633
        %v1644 = vpack.c.b16 %v1639, %v1634
        %v1645 = vpack.c.b16 %v1640, %v1635
        %v1646 = vpack.c.b16 %v1641, %v1636
        %v1647 = vpack.c.b16 %v1642, %v1637
        %v2773 = vunpack.c.l.b16 %v359
        %v2774 = vunpack.c.h.b16 %v359
        %v2775 = vunpack.c.l.b16 %v360
        %v2776 = vunpack.c.h.b16 %v360
        %v2777 = vunpack.c.l.b16 %v361
        %v2778 = vunpack.c.h.b16 %v361
        %v2779 = vunpack.c.l.b16 %v362
        %v2780 = vunpack.c.h.b16 %v362
        %v2781 = vunpack.c.l.b16 %v363
        %v2782 = vunpack.c.h.b16 %v363
        %v2783 = vunpack.c.l.b16 %v364
        %v2784 = vunpack.c.h.b16 %v364
        %v2785 = vunpack.c.l.b16 %v365
        %v2786 = vunpack.c.h.b16 %v365
        %v2787 = vunpack.c.l.b16 %v366
        %v2788 = vunpack.c.h.b16 %v366
        %v2789 = vunpack.c.l.b16 %v367
        %v2790 = vunpack.c.h.b16 %v367
        %v2791 = vunpack.c.l.b16 %v368
        %v2792 = vunpack.c.h.b16 %v368
        %v2793 = vunpack.c.l.b16 %v369
        %v2794 = vunpack.c.h.b16 %v369
        %v2795 = vunpack.c.l.b16 %v370
        %v2796 = vunpack.c.h.b16 %v370
        %v2797 = vunpack.c.l.b16 %v371
        %v2798 = vunpack.c.h.b16 %v371
        %v2799 = vunpack.c.l.b16 %v372
        %v2800 = vunpack.c.h.b16 %v372
        %v2801 = vunpack.c.l.b16 %v373
        %v2802 = vunpack.c.h.b16 %v373
        %v2803 = vunpack.c.l.b16 %v374
        %v2804 = vunpack.c.h.b16 %v374
        %v2805 = vunpack.c.l.b16 %v375
        %v2806 = vunpack.c.h.b16 %v375
        %v2807 = vunpack.c.l.b16 %v376
        %v2808 = vunpack.c.h.b16 %v376
        %v2809 = vunpack.c.l.b16 %v377
        %v2810 = vunpack.c.h.b16 %v377
        %v2811 = vunpack.c.l.b16 %v378
        %v2812 = vunpack.c.h.b16 %v378
        %v2813 = vunpack.c.l.b16 %v379
        %v2814 = vunpack.c.h.b16 %v379
        %v2815 = vunpack.c.l.b16 %v380
        %v2816 = vunpack.c.h.b16 %v380
        %v2817 = vunpack.c.l.b16 %v381
        %v2818 = vunpack.c.h.b16 %v381
        %v2819 = vunpack.c.l.b16 %v382
        %v2820 = vunpack.c.h.b16 %v382
        %v2821 = vunpack.c.l.b16 %v383
        %v2822 = vunpack.c.h.b16 %v383
        %v2823 = vunpack.c.l.b16 %v384
        %v2824 = vunpack.c.h.b16 %v384
        %v2825 = vunpack.c.l.b16 %v385
        %v2826 = vunpack.c.h.b16 %v385
        %v2827 = vunpack.c.l.b16 %v386
        %v2828 = vunpack.c.h.b16 %v386
        %v2829 = vunpack.c.l.b16 %v387
        %v2830 = vunpack.c.h.b16 %v387
        %v2831 = vunpack.c.l.b16 %v388
        %v2832 = vunpack.c.h.b16 %v388
        %v2833 = vunpack.c.l.b16 %v389
        %v2834 = vunpack.c.h.b16 %v389
        %v2835 = vunpack.c.l.b16 %v390
        %v2836 = vunpack.c.h.b16 %v390
        %v2837 = vunpack.c.l.b16 %v391
        %v2838 = vunpack.c.h.b16 %v391
        %v2839 = vunpack.c.l.b16 %v392
        %v2840 = vunpack.c.h.b16 %v392
        %v2841 = vunpack.c.l.b16 %v393
        %v2842 = vunpack.c.h.b16 %v393
        %v2843 = vunpack.c.l.b16 %v394
        %v2844 = vunpack.c.h.b16 %v394
        %v2845 = vunpack.c.l.b16 %v395
        %v2846 = vunpack.c.h.b16 %v395
        %v2847 = vunpack.c.l.b16 %v396
        %v2848 = vunpack.c.h.b16 %v396
        %v2849 = vunpack.c.l.b16 %v397
        %v2850 = vunpack.c.h.b16 %v397
        %v2851 = vunpack.c.l.b16 %v398
        %v2852 = vunpack.c.h.b16 %v398
        %v2853 = vunpack.c.l.b16 %v399
        %v2854 = vunpack.c.h.b16 %v399
        %v2855 = vunpack.c.l.b16 %v400
        %v2856 = vunpack.c.h.b16 %v400
        %v2857 = vunpack.c.l.b16 %v401
        %v2858 = vunpack.c.h.b16 %v401
        %v2859 = vunpack.c.l.b16 %v402
        %v2860 = vunpack.c.h.b16 %v402
        %v2861 = vunpack.c.l.b16 %v403
        %v2862 = vunpack.c.h.b16 %v403
        %v2863 = vunpack.c.l.b16 %v404
        %v2864 = vunpack.c.h.b16 %v404
        %v2865 = vunpack.c.l.b16 %v405
        %v2866 = vunpack.c.h.b16 %v405
        %v2867 = vunpack.c.l.b16 %v406
        %v2868 = vunpack.c.h.b16 %v406
        %v2869 = vunpack.c.l.b16 %v407
        %v2870 = vunpack.c.h.b16 %v407
        %v2871 = vunpack.c.l.b16 %v408
        %v2872 = vunpack.c.h.b16 %v408
        %v2873 = vunpack.c.l.b16 %v409
        %v2874 = vunpack.c.h.b16 %v409
        %v2875 = vunpack.c.l.b16 %v410
        %v2876 = vunpack.c.h.b16 %v410
        %v2877 = vunpack.c.l.b16 %v411
        %v2878 = vunpack.c.h.b16 %v411
        %v2879 = vunpack.c.l.b16 %v412
        %v2880 = vunpack.c.h.b16 %v412
        %v2881 = vunpack.c.l.b16 %v413
        %v2882 = vunpack.c.h.b16 %v413
        %v2883 = vunpack.c.l.b16 %v414
        %v2884 = vunpack.c.h.b16 %v414
        %v2885 = vunpack.c.l.b16 %v415
        %v2886 = vunpack.c.h.b16 %v415
        %v2887 = vunpack.c.l.b16 %v416
        %v2888 = vunpack.c.h.b16 %v416
        %v2889 = vunpack.c.l.b16 %v417
        %v2890 = vunpack.c.h.b16 %v417
        %v2891 = vunpack.c.l.b16 %v418
        %v2892 = vunpack.c.h.b16 %v418
        %v2893 = vunpack.c.l.b16 %v419
        %v2894 = vunpack.c.h.b16 %v419
        %v2895 = vunpack.c.l.b16 %v420
        %v2896 = vunpack.c.h.b16 %v420
        %v2897 = vunpack.c.l.b16 %v421
        %v2898 = vunpack.c.h.b16 %v421
        %v2899 = vunpack.c.l.b16 %v422
        %v2900 = vunpack.c.h.b16 %v422
        %v2901 = vunpack.c.l.b16 %v423
        %v2902 = vunpack.c.h.b16 %v423
        %v2903 = vunpack.c.l.b16 %v424
        %v2904 = vunpack.c.h.b16 %v424
        %v2905 = vunpack.c.l.b16 %v425
        %v2906 = vunpack.c.h.b16 %v425
        %v2907 = vunpack.c.l.b16 %v426
        %v2908 = vunpack.c.h.b16 %v426
        %v2909 = vunpack.c.l.b16 %v427
        %v2910 = vunpack.c.h.b16 %v427
        %v2911 = vunpack.c.l.b16 %v428
        %v2912 = vunpack.c.h.b16 %v428
        %v2913 = vunpack.c.l.b16 %v429
        %v2914 = vunpack.c.h.b16 %v429
        %v2915 = vunpack.c.l.b16 %v430
        %v2916 = vunpack.c.h.b16 %v430
        %v2917 = vunpack.c.l.b16 %v431
        %v2918 = vunpack.c.h.b16 %v431
        %v2919 = vunpack.c.l.b16 %v432
        %v2920 = vunpack.c.h.b16 %v432
        %v2921 = vunpack.c.l.b16 %v433
        %v2922 = vunpack.c.h.b16 %v433
        %v2923 = vunpack.c.l.b16 %v434
        %v2924 = vunpack.c.h.b16 %v434
        %v2925 = vunpack.c.l.b16 %v435
        %v2926 = vunpack.c.h.b16 %v435
        %v2927 = vunpack.c.l.b16 %v436
        %v2928 = vunpack.c.h.b16 %v436
        %v2929 = vunpack.c.l.b16 %v437
        %v2930 = vunpack.c.h.b16 %v437
        %v2931 = vunpack.c.l.b16 %v438
        %v2932 = vunpack.c.h.b16 %v438
        %v2933 = vunpack.c.l.b16 %v439
        %v2934 = vunpack.c.h.b16 %v439
        %v2935 = vunpack.c.l.b16 %v440
        %v2936 = vunpack.c.h.b16 %v440
        %v2937 = vunpack.c.l.b16 %v441
        %v2938 = vunpack.c.h.b16 %v441
        %v2939 = vunpack.c.l.b16 %v442
        %v2940 = vunpack.c.h.b16 %v442
        %v2941 = vunpack.c.l.b16 %v443
        %v2942 = vunpack.c.h.b16 %v443
        %v2943 = vunpack.c.l.b16 %v444
        %v2944 = vunpack.c.h.b16 %v444
        %v2945 = vunpack.c.l.b16 %v445
        %v2946 = vunpack.c.h.b16 %v445
        %v2947 = vunpack.c.l.b16 %v446
        %v2948 = vunpack.c.h.b16 %v446
        %v2949 = vunpack.c.l.b16 %v447
        %v2950 = vunpack.c.h.b16 %v447
        %v2951 = vunpack.c.l.b16 %v448
        %v2952 = vunpack.c.h.b16 %v448
        %v2953 = vunpack.c.l.b16 %v449
        %v2954 = vunpack.c.h.b16 %v449
        %v2955 = vunpack.c.l.b16 %v450
        %v2956 = vunpack.c.h.b16 %v450
        %v2957 = vunpack.c.l.b16 %v451
        %v2958 = vunpack.c.h.b16 %v451
        %v2959 = vunpack.c.l.b16 %v452
        %v2960 = vunpack.c.h.b16 %v452
        %v2961 = vunpack.c.l.b16 %v453
        %v2962 = vunpack.c.h.b16 %v453
        %v2963 = vunpack.c.l.b16 %v454
        %v2964 = vunpack.c.h.b16 %v454
        %v2965 = vunpack.c.l.b16 %v455
        %v2966 = vunpack.c.h.b16 %v455
        %v2967 = vunpack.c.l.b16 %v456
        %v2968 = vunpack.c.h.b16 %v456
        %v2969 = vunpack.c.l.b16 %v457
        %v2970 = vunpack.c.h.b16 %v457
        %v2971 = vunpack.c.l.b16 %v458
        %v2972 = vunpack.c.h.b16 %v458
        %v2973 = vunpack.c.l.b16 %v459
        %v2974 = vunpack.c.h.b16 %v459
        %v2975 = vunpack.c.l.b16 %v460
        %v2976 = vunpack.c.h.b16 %v460
        %v2977 = vunpack.c.l.b16 %v461
        %v2978 = vunpack.c.h.b16 %v461
        %v2979 = vunpack.c.l.b16 %v462
        %v2980 = vunpack.c.h.b16 %v462
        %v2981 = vunpack.c.l.b16 %v463
        %v2982 = vunpack.c.h.b16 %v463
        %v2983 = vunpack.c.l.b16 %v464
        %v2984 = vunpack.c.h.b16 %v464
        %v2985 = vunpack.c.l.b16 %v465
        %v2986 = vunpack.c.h.b16 %v465
        %v2987 = vunpack.c.l.b16 %v466
        %v2988 = vunpack.c.h.b16 %v466
        %v2989 = vunpack.c.l.b16 %v467
        %v2990 = vunpack.c.h.b16 %v467
        %v2991 = vunpack.c.l.b16 %v468
        %v2992 = vunpack.c.h.b16 %v468
        %v2993 = vunpack.c.l.b16 %v469
        %v2994 = vunpack.c.h.b16 %v469
        %v2995 = vunpack.c.l.b16 %v470
        %v2996 = vunpack.c.h.b16 %v470
        %v2997 = vunpack.c.l.b16 %v471
        %v2998 = vunpack.c.h.b16 %v471
        %v2999 = vunpack.c.l.b16 %v472
        %v3000 = vunpack.c.h.b16 %v472
        %v3001 = vunpack.c.l.b16 %v473
        %v3002 = vunpack.c.h.b16 %v473
        %v3003 = vunpack.c.l.b16 %v474
        %v3004 = vunpack.c.h.b16 %v474
        %v3005 = vunpack.c.l.b16 %v475
        %v3006 = vunpack.c.h.b16 %v475
        %v3007 = vunpack.c.l.b16 %v476
        %v3008 = vunpack.c.h.b16 %v476
        %v3009 = vunpack.c.l.b16 %v477
        %v3010 = vunpack.c.h.b16 %v477
        %v3011 = vunpack.c.l.b16 %v478
        %v3012 = vunpack.c.h.b16 %v478
        %v3013 = vunpack.c.l.b16 %v479
        %v3014 = vunpack.c.h.b16 %v479
        %v3015 = vunpack.c.l.b16 %v480
        %v3016 = vunpack.c.h.b16 %v480
        %v3017 = vunpack.c.l.b16 %v481
        %v3018 = vunpack.c.h.b16 %v481
        %v3019 = vunpack.c.l.b16 %v482
        %v3020 = vunpack.c.h.b16 %v482
        %v3021 = vunpack.c.l.b16 %v483
        %v3022 = vunpack.c.h.b16 %v483
        %v3023 = vunpack.c.l.b16 %v484
        %v3024 = vunpack.c.h.b16 %v484
        %v3025 = vunpack.c.l.b16 %v485
        %v3026 = vunpack.c.h.b16 %v485
        %v3027 = vunpack.c.l.b16 %v486
        %v3028 = vunpack.c.h.b16 %v486
        %v3029 = vunpack.c.l.b16 %v487
        %v3030 = vunpack.c.h.b16 %v487
        %v3031 = vunpack.c.l.b16 %v488
        %v3032 = vunpack.c.h.b16 %v488
        %v3033 = vunpack.c.l.b16 %v489
        %v3034 = vunpack.c.h.b16 %v489
        %v3035 = vunpack.c.l.b16 %v490
        %v3036 = vunpack.c.h.b16 %v490
        %v3037 = vunpack.c.l.b16 %v491
        %v3038 = vunpack.c.h.b16 %v491
        %v3039 = vunpack.c.l.b16 %v492
        %v3040 = vunpack.c.h.b16 %v492
        %v3041 = vunpack.c.l.b16 %v493
        %v3042 = vunpack.c.h.b16 %v493
        %v3043 = vunpack.c.l.b16 %v494
        %v3044 = vunpack.c.h.b16 %v494
        %v3045 = vunpack.c.l.b16 %v495
        %v3046 = vunpack.c.h.b16 %v495
        %v3047 = vunpack.c.l.b16 %v496
        %v3048 = vunpack.c.h.b16 %v496
        %v3049 = vunpack.c.l.b16 %v497
        %v3050 = vunpack.c.h.b16 %v497
        %v3051 = vunpack.c.l.b16 %v498
        %v3052 = vunpack.c.h.b16 %v498
        %v3053 = vunpack.c.l.b16 %v499
        %v3054 = vunpack.c.h.b16 %v499
        %v3055 = vunpack.c.l.b16 %v500
        %v3056 = vunpack.c.h.b16 %v500
        %v3057 = vunpack.c.l.b16 %v501
        %v3058 = vunpack.c.h.b16 %v501
        %v3059 = vunpack.c.l.b16 %v502
        %v3060 = vunpack.c.h.b16 %v502
        %v3061 = vunpack.c.l.b16 %v503
        %v3062 = vunpack.c.h.b16 %v503
        %v3063 = vunpack.c.l.b16 %v504
        %v3064 = vunpack.c.h.b16 %v504
        %v3065 = vunpack.c.l.b16 %v505
        %v3066 = vunpack.c.h.b16 %v505
        %v3067 = vunpack.c.l.b16 %v506
        %v3068 = vunpack.c.h.b16 %v506
        %v3069 = vunpack.c.l.b16 %v507
        %v3070 = vunpack.c.h.b16 %v507
        %v3071 = vunpack.c.l.b16 %v508
        %v3072 = vunpack.c.h.b16 %v508
        %v3073 = vunpack.c.l.b16 %v509
        %v3074 = vunpack.c.h.b16 %v509
        %v3075 = vunpack.c.l.b16 %v510
        %v3076 = vunpack.c.h.b16 %v510
        %v3077 = vunpack.c.l.b16 %v511
        %v3078 = vunpack.c.h.b16 %v511
        %v3079 = vunpack.c.l.b16 %v512
        %v3080 = vunpack.c.h.b16 %v512
        %v3081 = vunpack.c.l.b16 %v513
        %v3082 = vunpack.c.h.b16 %v513
        %v3083 = vunpack.c.l.b16 %v514
        %v3084 = vunpack.c.h.b16 %v514
        %v3085 = vunpack.c.l.b16 %v515
        %v3086 = vunpack.c.h.b16 %v515
        %v3087 = vunpack.c.l.b16 %v516
        %v3088 = vunpack.c.h.b16 %v516
        %v3089 = vunpack.c.l.b16 %v517
        %v3090 = vunpack.c.h.b16 %v517
        %v3091 = vunpack.c.l.b16 %v518
        %v3092 = vunpack.c.h.b16 %v518
        %v3093 = vunpack.c.l.b16 %v519
        %v3094 = vunpack.c.h.b16 %v519
        %v3095 = vunpack.c.l.b16 %v520
        %v3096 = vunpack.c.h.b16 %v520
        %v3097 = vunpack.c.l.b16 %v521
        %v3098 = vunpack.c.h.b16 %v521
        %v3099 = vunpack.c.l.b16 %v522
        %v3100 = vunpack.c.h.b16 %v522
        %v3101 = vunpack.c.l.b16 %v523
        %v3102 = vunpack.c.h.b16 %v523
        %v3103 = vunpack.c.l.b16 %v524
        %v3104 = vunpack.c.h.b16 %v524
        %v3105 = vunpack.c.l.b16 %v525
        %v3106 = vunpack.c.h.b16 %v525
        %v3107 = vunpack.c.l.b16 %v526
        %v3108 = vunpack.c.h.b16 %v526
        %v3109 = vunpack.c.l.b16 %v527
        %v3110 = vunpack.c.h.b16 %v527
        %v3111 = vunpack.c.l.b16 %v528
        %v3112 = vunpack.c.h.b16 %v528
        %v3113 = vunpack.c.l.b16 %v529
        %v3114 = vunpack.c.h.b16 %v529
        %v3115 = vunpack.c.l.b16 %v530
        %v3116 = vunpack.c.h.b16 %v530
        %v3117 = vunpack.c.l.b16 %v531
        %v3118 = vunpack.c.h.b16 %v531
        %v3119 = vunpack.c.l.b16 %v532
        %v3120 = vunpack.c.h.b16 %v532
        %v3121 = vunpack.c.l.b16 %v533
        %v3122 = vunpack.c.h.b16 %v533
        %v3123 = vunpack.c.l.b16 %v534
        %v3124 = vunpack.c.h.b16 %v534
        %v3125 = vunpack.c.l.b16 %v535
        %v3126 = vunpack.c.h.b16 %v535
        %v3127 = vunpack.c.l.b16 %v536
        %v3128 = vunpack.c.h.b16 %v536
        %v3129 = vunpack.c.l.b16 %v537
        %v3130 = vunpack.c.h.b16 %v537
        %v3131 = vunpack.c.l.b16 %v538
        %v3132 = vunpack.c.h.b16 %v538
        %v3133 = vunpack.c.l.b16 %v539
        %v3134 = vunpack.c.h.b16 %v539
        %v3135 = vunpack.c.l.b16 %v540
        %v3136 = vunpack.c.h.b16 %v540
        %v3137 = vunpack.c.l.b16 %v541
        %v3138 = vunpack.c.h.b16 %v541
        %v3139 = vunpack.c.l.b16 %v542
        %v3140 = vunpack.c.h.b16 %v542
        %v3141 = vunpack.c.l.b16 %v543
        %v3142 = vunpack.c.h.b16 %v543
        %v3143 = vunpack.c.l.b16 %v544
        %v3144 = vunpack.c.h.b16 %v544
        %v3145 = vunpack.c.l.b16 %v545
        %v3146 = vunpack.c.h.b16 %v545
        %v3147 = vunpack.c.l.b16 %v546
        %v3148 = vunpack.c.h.b16 %v546
        %v3149 = vunpack.c.l.b16 %v547
        %v3150 = vunpack.c.h.b16 %v547
        %v3151 = vunpack.c.l.b16 %v548
        %v3152 = vunpack.c.h.b16 %v548
        %v3153 = vunpack.c.l.b16 %v549
        %v3154 = vunpack.c.h.b16 %v549
        %v3155 = vunpack.c.l.b16 %v550
        %v3156 = vunpack.c.h.b16 %v550
        %v3157 = vunpack.c.l.b16 %v551
        %v3158 = vunpack.c.h.b16 %v551
        %v3159 = vunpack.c.l.b16 %v552
        %v3160 = vunpack.c.h.b16 %v552
        %v3161 = vunpack.c.l.b16 %v553
        %v3162 = vunpack.c.h.b16 %v553
        %v3163 = vunpack.c.l.b16 %v554
        %v3164 = vunpack.c.h.b16 %v554
        %v3165 = vunpack.c.l.b16 %v555
        %v3166 = vunpack.c.h.b16 %v555
        %v3167 = vunpack.c.l.b16 %v556
        %v3168 = vunpack.c.h.b16 %v556
        %v3169 = vunpack.c.l.b16 %v557
        %v3170 = vunpack.c.h.b16 %v557
        %v3171 = vunpack.c.l.b16 %v558
        %v3172 = vunpack.c.h.b16 %v558
        %v3173 = vunpack.c.l.b16 %v559
        %v3174 = vunpack.c.h.b16 %v559
        %v3175 = vunpack.c.l.b16 %v560
        %v3176 = vunpack.c.h.b16 %v560
        %v3177 = vunpack.c.l.b16 %v561
        %v3178 = vunpack.c.h.b16 %v561
        %v3179 = vunpack.c.l.b16 %v562
        %v3180 = vunpack.c.h.b16 %v562
        %v3181 = vunpack.c.l.b16 %v563
        %v3182 = vunpack.c.h.b16 %v563
        %v3183 = vunpack.c.l.b16 %v564
        %v3184 = vunpack.c.h.b16 %v564
        %v3185 = vunpack.c.l.b16 %v565
        %v3186 = vunpack.c.h.b16 %v565
        %v3187 = vunpack.c.l.b16 %v566
        %v3188 = vunpack.c.h.b16 %v566
        %v3189 = vunpack.c.l.b16 %v567
        %v3190 = vunpack.c.h.b16 %v567
        %v3191 = vunpack.c.l.b16 %v568
        %v3192 = vunpack.c.h.b16 %v568
        %v3193 = vunpack.c.l.b16 %v569
        %v3194 = vunpack.c.h.b16 %v569
        %v3195 = vunpack.c.l.b16 %v570
        %v3196 = vunpack.c.h.b16 %v570
        %v3197 = vunpack.c.l.b16 %v571
        %v3198 = vunpack.c.h.b16 %v571
        %v3199 = vunpack.c.l.b16 %v572
        %v3200 = vunpack.c.h.b16 %v572
        %v3201 = vunpack.c.l.b16 %v573
        %v3202 = vunpack.c.h.b16 %v573
        %v3203 = vunpack.c.l.b16 %v574
        %v3204 = vunpack.c.h.b16 %v574
        %v3205 = vunpack.c.l.b16 %v575
        %v3206 = vunpack.c.h.b16 %v575
        %v3207 = vunpack.c.l.b16 %v576
        %v3208 = vunpack.c.h.b16 %v576
        %v3209 = vunpack.c.l.b16 %v577
        %v3210 = vunpack.c.h.b16 %v577
        %v3211 = vunpack.c.l.b16 %v578
        %v3212 = vunpack.c.h.b16 %v578
        %v3213 = vunpack.c.l.b16 %v579
        %v3214 = vunpack.c.h.b16 %v579
        %v3215 = vunpack.c.l.b16 %v580
        %v3216 = vunpack.c.h.b16 %v580
        %v3217 = vunpack.c.l.b16 %v581
        %v3218 = vunpack.c.h.b16 %v581
        %v3219 = vunpack.c.l.b16 %v582
        %v3220 = vunpack.c.h.b16 %v582
        %v3221 = vunpack.c.l.b16 %v583
        %v3222 = vunpack.c.h.b16 %v583
        %v3223 = vunpack.c.l.b16 %v584
        %v3224 = vunpack.c.h.b16 %v584
        %v3225 = vunpack.c.l.b16 %v585
        %v3226 = vunpack.c.h.b16 %v585
        %v3227 = vunpack.c.l.b16 %v586
        %v3228 = vunpack.c.h.b16 %v586
        %v3229 = vunpack.c.l.b16 %v587
        %v3230 = vunpack.c.h.b16 %v587
        %v3231 = vunpack.c.l.b16 %v588
        %v3232 = vunpack.c.h.b16 %v588
        %v3233 = vunpack.c.l.b16 %v589
        %v3234 = vunpack.c.h.b16 %v589
        %v3235 = vunpack.c.l.b16 %v590
        %v3236 = vunpack.c.h.b16 %v590
        %v3237 = vunpack.c.l.b16 %v591
        %v3238 = vunpack.c.h.b16 %v591
        %v3239 = vunpack.c.l.b16 %v592
        %v3240 = vunpack.c.h.b16 %v592
        %v3241 = vunpack.c.l.b16 %v593
        %v3242 = vunpack.c.h.b16 %v593
        %v3243 = vunpack.c.l.b16 %v594
        %v3244 = vunpack.c.h.b16 %v594
        %v3245 = vunpack.c.l.b16 %v595
        %v3246 = vunpack.c.h.b16 %v595
        %v3247 = vunpack.c.l.b16 %v596
        %v3248 = vunpack.c.h.b16 %v596
        %v3249 = vunpack.c.l.b16 %v597
        %v3250 = vunpack.c.h.b16 %v597
        %v3251 = vunpack.c.l.b16 %v598
        %v3252 = vunpack.c.h.b16 %v598
        %v3253 = vunpack.c.l.b16 %v599
        %v3254 = vunpack.c.h.b16 %v599
        %v3255 = vunpack.c.l.b16 %v600
        %v3256 = vunpack.c.h.b16 %v600
        %v3257 = vunpack.c.l.b16 %v601
        %v3258 = vunpack.c.h.b16 %v601
        %v3259 = vunpack.c.l.b16 %v602
        %v3260 = vunpack.c.h.b16 %v602
        %v3261 = vunpack.c.l.b16 %v603
        %v3262 = vunpack.c.h.b16 %v603
        %v3263 = vunpack.c.l.b16 %v604
        %v3264 = vunpack.c.h.b16 %v604
        %v3265 = vunpack.c.l.b16 %v605
        %v3266 = vunpack.c.h.b16 %v605
        %v3267 = vunpack.c.l.b16 %v606
        %v3268 = vunpack.c.h.b16 %v606
        %v3269 = vunpack.c.l.b16 %v607
        %v3270 = vunpack.c.h.b16 %v607
        %v3271 = vunpack.c.l.b16 %v608
        %v3272 = vunpack.c.h.b16 %v608
        %v3273 = vunpack.c.l.b16 %v609
        %v3274 = vunpack.c.h.b16 %v609
        %v3275 = vunpack.c.l.b16 %v610
        %v3276 = vunpack.c.h.b16 %v610
        %v3277 = vunpack.c.l.b16 %v611
        %v3278 = vunpack.c.h.b16 %v611
        %v3279 = vunpack.c.l.b16 %v612
        %v3280 = vunpack.c.h.b16 %v612
        %v3281 = vunpack.c.l.b16 %v613
        %v3282 = vunpack.c.h.b16 %v613
        %v3283 = vunpack.c.l.b16 %v614
        %v3284 = vunpack.c.h.b16 %v614
        %v3285 = vunpack.c.l.b16 %v615
        %v3286 = vunpack.c.h.b16 %v615
        %v3287 = vunpack.c.l.b16 %v616
        %v3288 = vunpack.c.h.b16 %v616
        %v3289 = vunpack.c.l.b16 %v617
        %v3290 = vunpack.c.h.b16 %v617
        %v3291 = vunpack.c.l.b16 %v618
        %v3292 = vunpack.c.h.b16 %v618
        %v3293 = vunpack.c.l.b16 %v619
        %v3294 = vunpack.c.h.b16 %v619
        %v3295 = vunpack.c.l.b16 %v620
        %v3296 = vunpack.c.h.b16 %v620
        %v3297 = vunpack.c.l.b16 %v621
        %v3298 = vunpack.c.h.b16 %v621
        %v3299 = vunpack.c.l.b16 %v622
        %v3300 = vunpack.c.h.b16 %v622
        %v3301 = vunpack.c.l.b16 %v623
        %v3302 = vunpack.c.h.b16 %v623
        %v3303 = vunpack.c.l.b16 %v624
        %v3304 = vunpack.c.h.b16 %v624
        %v3305 = vunpack.c.l.b16 %v625
        %v3306 = vunpack.c.h.b16 %v625
        %v3307 = vunpack.c.l.b16 %v626
        %v3308 = vunpack.c.h.b16 %v626
        %v3309 = vunpack.c.l.b16 %v627
        %v3310 = vunpack.c.h.b16 %v627
        %v3311 = vunpack.c.l.b16 %v628
        %v3312 = vunpack.c.h.b16 %v628
        %v3313 = vunpack.c.l.b16 %v629
        %v3314 = vunpack.c.h.b16 %v629
        %v3315 = vunpack.c.l.b16 %v630
        %v3316 = vunpack.c.h.b16 %v630
        %v3317 = vunpack.c.l.b16 %v631
        %v3318 = vunpack.c.h.b16 %v631
        %v3319 = vunpack.c.l.b16 %v632
        %v3320 = vunpack.c.h.b16 %v632
        %v3321 = vunpack.c.l.b16 %v633
        %v3322 = vunpack.c.h.b16 %v633
        %v3323 = vunpack.c.l.b16 %v634
        %v3324 = vunpack.c.h.b16 %v634
        %v3325 = vunpack.c.l.b16 %v635
        %v3326 = vunpack.c.h.b16 %v635
        %v3327 = vunpack.c.l.b16 %v636
        %v3328 = vunpack.c.h.b16 %v636
        %v3329 = vunpack.c.l.b16 %v637
        %v3330 = vunpack.c.h.b16 %v637
        %v3331 = vunpack.c.l.b16 %v638
        %v3332 = vunpack.c.h.b16 %v638
        %v3333 = vunpack.c.l.b16 %v639
        %v3334 = vunpack.c.h.b16 %v639
        %v3335 = vunpack.c.l.b16 %v640
        %v3336 = vunpack.c.h.b16 %v640
        %v3337 = vunpack.c.l.b16 %v641
        %v3338 = vunpack.c.h.b16 %v641
        %v3339 = vunpack.c.l.b16 %v642
        %v3340 = vunpack.c.h.b16 %v642
        %v3341 = vunpack.c.l.b16 %v643
        %v3342 = vunpack.c.h.b16 %v643
        %v3343 = vunpack.c.l.b16 %v644
        %v3344 = vunpack.c.h.b16 %v644
        %v3345 = vunpack.c.l.b16 %v645
        %v3346 = vunpack.c.h.b16 %v645
        %v3347 = vunpack.c.l.b16 %v646
        %v3348 = vunpack.c.h.b16 %v646
        %v3349 = vunpack.c.l.b16 %v647
        %v3350 = vunpack.c.h.b16 %v647
        %v3351 = vunpack.c.l.b16 %v648
        %v3352 = vunpack.c.h.b16 %v648
        %v3353 = vunpack.c.l.b16 %v649
        %v3354 = vunpack.c.h.b16 %v649
        %v3355 = vunpack.c.l.b16 %v650
        %v3356 = vunpack.c.h.b16 %v650
        %v3357 = vunpack.c.l.b16 %v651
        %v3358 = vunpack.c.h.b16 %v651
        %v3359 = vunpack.c.l.b16 %v652
        %v3360 = vunpack.c.h.b16 %v652
        %v3361 = vunpack.c.l.b16 %v653
        %v3362 = vunpack.c.h.b16 %v653
        %v3363 = vunpack.c.l.b16 %v654
        %v3364 = vunpack.c.h.b16 %v654
        %v3365 = vunpack.c.l.b16 %v655
        %v3366 = vunpack.c.h.b16 %v655
        %v3367 = vunpack.c.l.b16 %v656
        %v3368 = vunpack.c.h.b16 %v656
        %v3369 = vunpack.c.l.b16 %v657
        %v3370 = vunpack.c.h.b16 %v657
        %v3371 = vunpack.c.l.b16 %v658
        %v3372 = vunpack.c.h.b16 %v658
        %v3373 = vunpack.c.l.b16 %v659
        %v3374 = vunpack.c.h.b16 %v659
        %v3375 = vunpack.c.l.b16 %v660
        %v3376 = vunpack.c.h.b16 %v660
        %v3377 = vunpack.c.l.b16 %v661
        %v3378 = vunpack.c.h.b16 %v661
        %v3379 = vunpack.c.l.b16 %v662
        %v3380 = vunpack.c.h.b16 %v662
        %v3381 = vunpack.c.l.b16 %v663
        %v3382 = vunpack.c.h.b16 %v663
        %v3383 = vunpack.c.l.b16 %v664
        %v3384 = vunpack.c.h.b16 %v664
        %v3385 = vunpack.c.l.b16 %v665
        %v3386 = vunpack.c.h.b16 %v665
        %v3387 = vunpack.c.l.b16 %v666
        %v3388 = vunpack.c.h.b16 %v666
        %v3389 = vunpack.c.l.b16 %v667
        %v3390 = vunpack.c.h.b16 %v667
        %v3391 = vunpack.c.l.b16 %v668
        %v3392 = vunpack.c.h.b16 %v668
        %v3393 = vunpack.c.l.b16 %v669
        %v3394 = vunpack.c.h.b16 %v669
        %v3395 = vunpack.c.l.b16 %v670
        %v3396 = vunpack.c.h.b16 %v670
        %v3397 = vunpack.c.l.b16 %v671
        %v3398 = vunpack.c.h.b16 %v671
        %v3399 = vunpack.c.l.b16 %v672
        %v3400 = vunpack.c.h.b16 %v672
        %v3401 = vunpack.c.l.b16 %v673
        %v3402 = vunpack.c.h.b16 %v673
        %v3403 = vunpack.c.l.b16 %v674
        %v3404 = vunpack.c.h.b16 %v674
        %v3405 = vunpack.c.l.b16 %v675
        %v3406 = vunpack.c.h.b16 %v675
        %v3407 = vunpack.c.l.b16 %v676
        %v3408 = vunpack.c.h.b16 %v676
        %v3409 = vunpack.c.l.b16 %v677
        %v3410 = vunpack.c.h.b16 %v677
        %v3411 = vunpack.c.l.b16 %v678
        %v3412 = vunpack.c.h.b16 %v678
        %v3413 = vunpack.c.l.b16 %v679
        %v3414 = vunpack.c.h.b16 %v679
        %v3415 = vunpack.c.l.b16 %v680
        %v3416 = vunpack.c.h.b16 %v680
        %v3417 = vunpack.c.l.b16 %v681
        %v3418 = vunpack.c.h.b16 %v681
        %v3419 = vunpack.c.l.b16 %v682
        %v3420 = vunpack.c.h.b16 %v682
        %v3421 = vunpack.c.l.b16 %v683
        %v3422 = vunpack.c.h.b16 %v683
        %v3423 = vunpack.c.l.b16 %v684
        %v3424 = vunpack.c.h.b16 %v684
        %v3425 = vunpack.c.l.b16 %v685
        %v3426 = vunpack.c.h.b16 %v685
        %v3427 = vunpack.c.l.b16 %v686
        %v3428 = vunpack.c.h.b16 %v686
        %v3429 = vunpack.c.l.b16 %v687
        %v3430 = vunpack.c.h.b16 %v687
        %v3431 = vunpack.c.l.b16 %v688
        %v3432 = vunpack.c.h.b16 %v688
        %v3433 = vunpack.c.l.b16 %v689
        %v3434 = vunpack.c.h.b16 %v689
        %v3435 = vunpack.c.l.b16 %v690
        %v3436 = vunpack.c.h.b16 %v690
        %v3437 = vunpack.c.l.b16 %v691
        %v3438 = vunpack.c.h.b16 %v691
        %v3439 = vunpack.c.l.b16 %v692
        %v3440 = vunpack.c.h.b16 %v692
        %v3441 = vunpack.c.l.b16 %v693
        %v3442 = vunpack.c.h.b16 %v693
        %v3443 = vunpack.c.l.b16 %v694
        %v3444 = vunpack.c.h.b16 %v694
        %v3445 = vunpack.c.l.b16 %v695
        %v3446 = vunpack.c.h.b16 %v695
        %v3447 = vunpack.c.l.b16 %v696
        %v3448 = vunpack.c.h.b16 %v696
        %v3449 = vunpack.c.l.b16 %v697
        %v3450 = vunpack.c.h.b16 %v697
        %v3451 = vunpack.c.l.b16 %v698
        %v3452 = vunpack.c.h.b16 %v698
        %v3453 = vunpack.c.l.b16 %v699
        %v3454 = vunpack.c.h.b16 %v699
        %v3455 = vunpack.c.l.b16 %v700
        %v3456 = vunpack.c.h.b16 %v700
        %v3457 = vunpack.c.l.b16 %v701
        %v3458 = vunpack.c.h.b16 %v701
        %v3459 = vunpack.c.l.b16 %v702
        %v3460 = vunpack.c.h.b16 %v702
        %v3461 = vunpack.c.l.b16 %v703
        %v3462 = vunpack.c.h.b16 %v703
        %v3463 = vunpack.c.l.b16 %v704
        %v3464 = vunpack.c.h.b16 %v704
        %v3465 = vunpack.c.l.b16 %v705
        %v3466 = vunpack.c.h.b16 %v705
        %v3467 = vunpack.c.l.b16 %v706
        %v3468 = vunpack.c.h.b16 %v706
        %v3469 = vunpack.c.l.b16 %v707
        %v3470 = vunpack.c.h.b16 %v707
        %v3471 = vunpack.c.l.b16 %v708
        %v3472 = vunpack.c.h.b16 %v708
        %v3473 = vunpack.c.l.b16 %v709
        %v3474 = vunpack.c.h.b16 %v709
        %v3475 = vunpack.c.l.b16 %v710
        %v3476 = vunpack.c.h.b16 %v710
        %v3477 = vunpack.c.l.b16 %v711
        %v3478 = vunpack.c.h.b16 %v711
        %v3479 = vunpack.c.l.b16 %v712
        %v3480 = vunpack.c.h.b16 %v712
        %v3481 = vunpack.c.l.b16 %v713
        %v3482 = vunpack.c.h.b16 %v713
        %v3483 = vunpack.c.l.b16 %v714
        %v3484 = vunpack.c.h.b16 %v714
        %v3485 = vunpack.c.l.b16 %v715
        %v3486 = vunpack.c.h.b16 %v715
        %v3487 = vunpack.c.l.b16 %v716
        %v3488 = vunpack.c.h.b16 %v716
        %v3489 = vunpack.c.l.b16 %v717
        %v3490 = vunpack.c.h.b16 %v717
        %v3491 = vunpack.c.l.b16 %v718
        %v3492 = vunpack.c.h.b16 %v718
        %v3493 = vunpack.c.l.b16 %v719
        %v3494 = vunpack.c.h.b16 %v719
        %v3495 = vunpack.c.l.b16 %v720
        %v3496 = vunpack.c.h.b16 %v720
        %v3497 = vunpack.c.l.b16 %v721
        %v3498 = vunpack.c.h.b16 %v721
        %v3499 = vunpack.c.l.b16 %v722
        %v3500 = vunpack.c.h.b16 %v722
        %v3501 = vunpack.c.l.b16 %v723
        %v3502 = vunpack.c.h.b16 %v723
        %v3503 = vunpack.c.l.b16 %v724
        %v3504 = vunpack.c.h.b16 %v724
        %v3505 = vunpack.c.l.b16 %v725
        %v3506 = vunpack.c.h.b16 %v725
        %v3507 = vunpack.c.l.b16 %v726
        %v3508 = vunpack.c.h.b16 %v726
        %v3509 = vunpack.c.l.b16 %v727
        %v3510 = vunpack.c.h.b16 %v727
        %v3511 = vunpack.c.l.b16 %v728
        %v3512 = vunpack.c.h.b16 %v728
        %v3513 = vunpack.c.l.b16 %v729
        %v3514 = vunpack.c.h.b16 %v729
        %v3515 = vunpack.c.l.b16 %v730
        %v3516 = vunpack.c.h.b16 %v730
        %v3517 = vunpack.c.l.b16 %v731
        %v3518 = vunpack.c.h.b16 %v731
        %v3519 = vunpack.c.l.b16 %v732
        %v3520 = vunpack.c.h.b16 %v732
        %v3521 = vunpack.c.l.b16 %v733
        %v3522 = vunpack.c.h.b16 %v733
        %v3523 = vunpack.c.l.b16 %v734
        %v3524 = vunpack.c.h.b16 %v734
        %v3525 = vunpack.c.l.b16 %v735
        %v3526 = vunpack.c.h.b16 %v735
        %v3527 = vunpack.c.l.b16 %v736
        %v3528 = vunpack.c.h.b16 %v736
        %v3529 = vunpack.c.l.b16 %v737
        %v3530 = vunpack.c.h.b16 %v737
        %v3531 = vunpack.c.l.b16 %v738
        %v3532 = vunpack.c.h.b16 %v738
        %v3533 = vunpack.c.l.b16 %v739
        %v3534 = vunpack.c.h.b16 %v739
        %v3535 = vunpack.c.l.b16 %v740
        %v3536 = vunpack.c.h.b16 %v740
        %v3537 = vunpack.c.l.b16 %v741
        %v3538 = vunpack.c.h.b16 %v741
        %v3539 = vunpack.c.l.b16 %v742
        %v3540 = vunpack.c.h.b16 %v742
        %v3541 = vunpack.c.l.b16 %v743
        %v3542 = vunpack.c.h.b16 %v743
        %v3543 = vunpack.c.l.b16 %v744
        %v3544 = vunpack.c.h.b16 %v744
        %v3545 = vunpack.c.l.b16 %v745
        %v3546 = vunpack.c.h.b16 %v745
        %v3547 = vunpack.c.l.b16 %v746
        %v3548 = vunpack.c.h.b16 %v746
        %v3549 = vunpack.c.l.b16 %v747
        %v3550 = vunpack.c.h.b16 %v747
        %v3551 = vunpack.c.l.b16 %v748
        %v3552 = vunpack.c.h.b16 %v748
        %v3553 = vunpack.c.l.b16 %v749
        %v3554 = vunpack.c.h.b16 %v749
        %v3555 = vunpack.c.l.b16 %v750
        %v3556 = vunpack.c.h.b16 %v750
        %v3557 = vunpack.c.l.b16 %v751
        %v3558 = vunpack.c.h.b16 %v751
        %v3559 = vunpack.c.l.b16 %v752
        %v3560 = vunpack.c.h.b16 %v752
        %v3561 = vunpack.c.l.b16 %v753
        %v3562 = vunpack.c.h.b16 %v753
        %v3563 = vunpack.c.l.b16 %v754
        %v3564 = vunpack.c.h.b16 %v754
        %v3565 = vunpack.c.l.b16 %v755
        %v3566 = vunpack.c.h.b16 %v755
        %v3567 = vunpack.c.l.b16 %v756
        %v3568 = vunpack.c.h.b16 %v756
        %v3569 = vunpack.c.l.b16 %v757
        %v3570 = vunpack.c.h.b16 %v757
        %v3571 = vunpack.c.l.b16 %v758
        %v3572 = vunpack.c.h.b16 %v758
        %v3573 = vunpack.c.l.b16 %v759
        %v3574 = vunpack.c.h.b16 %v759
        %v3575 = vunpack.c.l.b16 %v760
        %v3576 = vunpack.c.h.b16 %v760
        %v3577 = vunpack.c.l.b16 %v761
        %v3578 = vunpack.c.h.b16 %v761
        %v3579 = vunpack.c.l.b16 %v762
        %v3580 = vunpack.c.h.b16 %v762
        %v3581 = vunpack.c.l.b16 %v763
        %v3582 = vunpack.c.h.b16 %v763
        %v3583 = vunpack.c.l.b16 %v764
        %v3584 = vunpack.c.h.b16 %v764
        %v3585 = vunpack.c.l.b16 %v765
        %v3586 = vunpack.c.h.b16 %v765
        %v3587 = vunpack.c.l.b16 %v766
        %v3588 = vunpack.c.h.b16 %v766
        %v3589 = vunpack.c.l.b16 %v767
        %v3590 = vunpack.c.h.b16 %v767
        %v3591 = vunpack.c.l.b16 %v768
        %v3592 = vunpack.c.h.b16 %v768
        %v3593 = vunpack.c.l.b16 %v769
        %v3594 = vunpack.c.h.b16 %v769
        %v3595 = vunpack.c.l.b16 %v770
        %v3596 = vunpack.c.h.b16 %v770
        %v3597 = vunpack.c.l.b16 %v771
        %v3598 = vunpack.c.h.b16 %v771
        %v3599 = vunpack.c.l.b16 %v772
        %v3600 = vunpack.c.h.b16 %v772
        %v3601 = vunpack.c.l.b16 %v773
        %v3602 = vunpack.c.h.b16 %v773
        %v3603 = vunpack.c.l.b16 %v774
        %v3604 = vunpack.c.h.b16 %v774
        %v3605 = vunpack.c.l.b16 %v775
        %v3606 = vunpack.c.h.b16 %v775
        %v3607 = vunpack.c.l.b16 %v776
        %v3608 = vunpack.c.h.b16 %v776
        %v3609 = vunpack.c.l.b16 %v777
        %v3610 = vunpack.c.h.b16 %v777
        %v3611 = vunpack.c.l.b16 %v778
        %v3612 = vunpack.c.h.b16 %v778
        %v3613 = vunpack.c.l.b16 %v779
        %v3614 = vunpack.c.h.b16 %v779
        %v3615 = vunpack.c.l.b16 %v780
        %v3616 = vunpack.c.h.b16 %v780
        %v3617 = vunpack.c.l.b16 %v781
        %v3618 = vunpack.c.h.b16 %v781
        %v3619 = vunpack.c.l.b16 %v782
        %v3620 = vunpack.c.h.b16 %v782
        %v3621 = vunpack.c.l.b16 %v783
        %v3622 = vunpack.c.h.b16 %v783
        %v3623 = vunpack.c.l.b16 %v784
        %v3624 = vunpack.c.h.b16 %v784
        %v3625 = vunpack.c.l.b16 %v785
        %v3626 = vunpack.c.h.b16 %v785
        %v3627 = vunpack.c.l.b16 %v786
        %v3628 = vunpack.c.h.b16 %v786
        %v3629 = vunpack.c.l.b16 %v787
        %v3630 = vunpack.c.h.b16 %v787
        %v3631 = vunpack.c.l.b16 %v788
        %v3632 = vunpack.c.h.b16 %v788
        %v3633 = vunpack.c.l.b16 %v789
        %v3634 = vunpack.c.h.b16 %v789
        %v3635 = vunpack.c.l.b16 %v790
        %v3636 = vunpack.c.h.b16 %v790
        %v3637 = vunpack.c.l.b16 %v791
        %v3638 = vunpack.c.h.b16 %v791
        %v3639 = vunpack.c.l.b16 %v792
        %v3640 = vunpack.c.h.b16 %v792
        %v3641 = vunpack.c.l.b16 %v793
        %v3642 = vunpack.c.h.b16 %v793
        %v3643 = vunpack.c.l.b16 %v794
        %v3644 = vunpack.c.h.b16 %v794
        %v3645 = vunpack.c.l.b16 %v795
        %v3646 = vunpack.c.h.b16 %v795
        %v3647 = vunpack.c.l.b16 %v796
        %v3648 = vunpack.c.h.b16 %v796
        %v3649 = vunpack.c.l.b16 %v797
        %v3650 = vunpack.c.h.b16 %v797
        %v3651 = vunpack.c.l.b16 %v798
        %v3652 = vunpack.c.h.b16 %v798
        %v3653 = vunpack.c.l.b16 %v799
        %v3654 = vunpack.c.h.b16 %v799
        %v3655 = vunpack.c.l.b16 %v800
        %v3656 = vunpack.c.h.b16 %v800
        %v3657 = vunpack.c.l.b16 %v801
        %v3658 = vunpack.c.h.b16 %v801
        %v3659 = vunpack.c.l.b16 %v802
        %v3660 = vunpack.c.h.b16 %v802
        %v3661 = vunpack.c.l.b16 %v803
        %v3662 = vunpack.c.h.b16 %v803
        %v3663 = vunpack.c.l.b16 %v804
        %v3664 = vunpack.c.h.b16 %v804
        %v3665 = vunpack.c.l.b16 %v805
        %v3666 = vunpack.c.h.b16 %v805
        %v3667 = vunpack.c.l.b16 %v806
        %v3668 = vunpack.c.h.b16 %v806
        %v3669 = vunpack.c.l.b16 %v807
        %v3670 = vunpack.c.h.b16 %v807
        %v3671 = vunpack.c.l.b16 %v808
        %v3672 = vunpack.c.h.b16 %v808
        %v3673 = vunpack.c.l.b16 %v809
        %v3674 = vunpack.c.h.b16 %v809
        %v3675 = vunpack.c.l.b16 %v810
        %v3676 = vunpack.c.h.b16 %v810
        %v3677 = vunpack.c.l.b16 %v811
        %v3678 = vunpack.c.h.b16 %v811
        %v3679 = vunpack.c.l.b16 %v812
        %v3680 = vunpack.c.h.b16 %v812
        %v3681 = vunpack.c.l.b16 %v813
        %v3682 = vunpack.c.h.b16 %v813
        %v3683 = vunpack.c.l.b16 %v814
        %v3684 = vunpack.c.h.b16 %v814
        %v3685 = vunpack.c.l.b16 %v815
        %v3686 = vunpack.c.h.b16 %v815
        %v3687 = vunpack.c.l.b16 %v816
        %v3688 = vunpack.c.h.b16 %v816
        %v3689 = vunpack.c.l.b16 %v817
        %v3690 = vunpack.c.h.b16 %v817
        %v3691 = vunpack.c.l.b16 %v818
        %v3692 = vunpack.c.h.b16 %v818
        %v3693 = vunpack.c.l.b16 %v819
        %v3694 = vunpack.c.h.b16 %v819
        %v3695 = vunpack.c.l.b16 %v820
        %v3696 = vunpack.c.h.b16 %v820
        %v3697 = vunpack.c.l.b16 %v821
        %v3698 = vunpack.c.h.b16 %v821
        %v3699 = vunpack.c.l.b16 %v822
        %v3700 = vunpack.c.h.b16 %v822
        %v3701 = vunpack.c.l.b16 %v823
        %v3702 = vunpack.c.h.b16 %v823
        %v3703 = vunpack.c.l.b16 %v824
        %v3704 = vunpack.c.h.b16 %v824
        %v3705 = vunpack.c.l.b16 %v825
        %v3706 = vunpack.c.h.b16 %v825
        %v3707 = vunpack.c.l.b16 %v826
        %v3708 = vunpack.c.h.b16 %v826
        %v3709 = vunpack.c.l.b16 %v827
        %v3710 = vunpack.c.h.b16 %v827
        %v3711 = vunpack.c.l.b16 %v828
        %v3712 = vunpack.c.h.b16 %v828
        %v3713 = vunpack.c.l.b16 %v829
        %v3714 = vunpack.c.h.b16 %v829
        %v3715 = vunpack.c.l.b16 %v830
        %v3716 = vunpack.c.h.b16 %v830
        %v3717 = vunpack.c.l.b16 %v831
        %v3718 = vunpack.c.h.b16 %v831
        %v3719 = vunpack.c.l.b16 %v832
        %v3720 = vunpack.c.h.b16 %v832
        %v3721 = vunpack.c.l.b16 %v833
        %v3722 = vunpack.c.h.b16 %v833
        %v3723 = vunpack.c.l.b16 %v834
        %v3724 = vunpack.c.h.b16 %v834
        %v3725 = vunpack.c.l.b16 %v835
        %v3726 = vunpack.c.h.b16 %v835
        %v3727 = vunpack.c.l.b16 %v836
        %v3728 = vunpack.c.h.b16 %v836
        %v3729 = vunpack.c.l.b16 %v837
        %v3730 = vunpack.c.h.b16 %v837
        %v3731 = vunpack.c.l.b16 %v838
        %v3732 = vunpack.c.h.b16 %v838
        %v3733 = vunpack.c.l.b16 %v839
        %v3734 = vunpack.c.h.b16 %v839
        %v3735 = vunpack.c.l.b16 %v840
        %v3736 = vunpack.c.h.b16 %v840
        %v3737 = vunpack.c.l.b16 %v841
        %v3738 = vunpack.c.h.b16 %v841
        %v3739 = vunpack.c.l.b16 %v842
        %v3740 = vunpack.c.h.b16 %v842
        %v3741 = vunpack.c.l.b16 %v843
        %v3742 = vunpack.c.h.b16 %v843
        %v3743 = vunpack.c.l.b16 %v844
        %v3744 = vunpack.c.h.b16 %v844
        %v3745 = vunpack.c.l.b16 %v845
        %v3746 = vunpack.c.h.b16 %v845
        %v3747 = vunpack.c.l.b16 %v846
        %v3748 = vunpack.c.h.b16 %v846
        %v3749 = vunpack.c.l.b16 %v847
        %v3750 = vunpack.c.h.b16 %v847
        %v3751 = vunpack.c.l.b16 %v848
        %v3752 = vunpack.c.h.b16 %v848
        %v3753 = vunpack.c.l.b16 %v849
        %v3754 = vunpack.c.h.b16 %v849
        %v3755 = vunpack.c.l.b16 %v850
        %v3756 = vunpack.c.h.b16 %v850
        %v3757 = vunpack.c.l.b16 %v851
        %v3758 = vunpack.c.h.b16 %v851
        %v3759 = vunpack.c.l.b16 %v852
        %v3760 = vunpack.c.h.b16 %v852
        %v3761 = vunpack.c.l.b16 %v853
        %v3762 = vunpack.c.h.b16 %v853
        %v3763 = vunpack.c.l.b16 %v854
        %v3764 = vunpack.c.h.b16 %v854
        %v3765 = vunpack.c.l.b16 %v855
        %v3766 = vunpack.c.h.b16 %v855
        %v3767 = vunpack.c.l.b16 %v856
        %v3768 = vunpack.c.h.b16 %v856
        %v3769 = vunpack.c.l.b16 %v857
        %v3770 = vunpack.c.h.b16 %v857
        %v3771 = vunpack.c.l.b16 %v858
        %v3772 = vunpack.c.h.b16 %v858
        %v3773 = vunpack.c.l.b16 %v859
        %v3774 = vunpack.c.h.b16 %v859
        %v3775 = vunpack.c.l.b16 %v860
        %v3776 = vunpack.c.h.b16 %v860
        %v3777 = vunpack.c.l.b16 %v861
        %v3778 = vunpack.c.h.b16 %v861
        %v3779 = vunpack.c.l.b16 %v862
        %v3780 = vunpack.c.h.b16 %v862
        %v3781 = vunpack.c.l.b16 %v863
        %v3782 = vunpack.c.h.b16 %v863
        %v3783 = vunpack.c.l.b16 %v864
        %v3784 = vunpack.c.h.b16 %v864
        %v3785 = vunpack.c.l.b16 %v865
        %v3786 = vunpack.c.h.b16 %v865
        %v3787 = vunpack.c.l.b16 %v866
        %v3788 = vunpack.c.h.b16 %v866
        %v3789 = vunpack.c.l.b16 %v867
        %v3790 = vunpack.c.h.b16 %v867
        %v3791 = vunpack.c.l.b16 %v868
        %v3792 = vunpack.c.h.b16 %v868
        %v3793 = vunpack.c.l.b16 %v869
        %v3794 = vunpack.c.h.b16 %v869
        %v3795 = vunpack.c.l.b16 %v870
        %v3796 = vunpack.c.h.b16 %v870
        %v3797 = vunpack.c.l.b16 %v871
        %v3798 = vunpack.c.h.b16 %v871
        %v3799 = vunpack.c.l.b16 %v872
        %v3800 = vunpack.c.h.b16 %v872
        %v3801 = vunpack.c.l.b16 %v873
        %v3802 = vunpack.c.h.b16 %v873
        %v3803 = vunpack.c.l.b16 %v874
        %v3804 = vunpack.c.h.b16 %v874
        %v3805 = vunpack.c.l.b16 %v875
        %v3806 = vunpack.c.h.b16 %v875
        %v3807 = vunpack.c.l.b16 %v876
        %v3808 = vunpack.c.h.b16 %v876
        %v3809 = vunpack.c.l.b16 %v877
        %v3810 = vunpack.c.h.b16 %v877
        %v3811 = vunpack.c.l.b16 %v878
        %v3812 = vunpack.c.h.b16 %v878
        %v3813 = vunpack.c.l.b16 %v879
        %v3814 = vunpack.c.h.b16 %v879
        %v3815 = vunpack.c.l.b16 %v880
        %v3816 = vunpack.c.h.b16 %v880
        %v3817 = vunpack.c.l.b16 %v881
        %v3818 = vunpack.c.h.b16 %v881
        %v3819 = vunpack.c.l.b16 %v882
        %v3820 = vunpack.c.h.b16 %v882
        %v3821 = vunpack.c.l.b16 %v883
        %v3822 = vunpack.c.h.b16 %v883
        %v3823 = vunpack.c.l.b16 %v884
        %v3824 = vunpack.c.h.b16 %v884
        %v3825 = vunpack.c.l.b16 %v885
        %v3826 = vunpack.c.h.b16 %v885
        %v3827 = vunpack.c.l.b16 %v886
        %v3828 = vunpack.c.h.b16 %v886
        %v3829 = vunpack.c.l.b16 %v887
        %v3830 = vunpack.c.h.b16 %v887
        %v3831 = vunpack.c.l.b16 %v888
        %v3832 = vunpack.c.h.b16 %v888
        %v3833 = vunpack.c.l.b16 %v889
        %v3834 = vunpack.c.h.b16 %v889
        %v3835 = vunpack.c.l.b16 %v890
        %v3836 = vunpack.c.h.b16 %v890
        %v3837 = vunpack.c.l.b16 %v891
        %v3838 = vunpack.c.h.b16 %v891
        %v3839 = vunpack.c.l.b16 %v892
        %v3840 = vunpack.c.h.b16 %v892
        %v3841 = vunpack.c.l.b16 %v893
        %v3842 = vunpack.c.h.b16 %v893
        %v3843 = vunpack.c.l.b16 %v894
        %v3844 = vunpack.c.h.b16 %v894
        %v3845 = vunpack.c.l.b16 %v895
        %v3846 = vunpack.c.h.b16 %v895
        %v3847 = vunpack.c.l.b16 %v896
        %v3848 = vunpack.c.h.b16 %v896
        %v3849 = vunpack.c.l.b16 %v897
        %v3850 = vunpack.c.h.b16 %v897
        %v3851 = vunpack.c.l.b16 %v898
        %v3852 = vunpack.c.h.b16 %v898
        %v3853 = vunpack.c.l.b16 %v899
        %v3854 = vunpack.c.h.b16 %v899
        %v3855 = vunpack.c.l.b16 %v900
        %v3856 = vunpack.c.h.b16 %v900
        %v3857 = vunpack.c.l.b16 %v901
        %v3858 = vunpack.c.h.b16 %v901
        %v3859 = vunpack.c.l.b16 %v902
        %v3860 = vunpack.c.h.b16 %v902
        %v3861 = vunpack.c.l.b16 %v903
        %v3862 = vunpack.c.h.b16 %v903
        %v3863 = vunpack.c.l.b16 %v904
        %v3864 = vunpack.c.h.b16 %v904
        %v3865 = vunpack.c.l.b16 %v905
        %v3866 = vunpack.c.h.b16 %v905
        %v3867 = vunpack.c.l.b16 %v906
        %v3868 = vunpack.c.h.b16 %v906
        %v3869 = vunpack.c.l.b16 %v907
        %v3870 = vunpack.c.h.b16 %v907
        %v3871 = vunpack.c.l.b16 %v908
        %v3872 = vunpack.c.h.b16 %v908
        %v3873 = vunpack.c.l.b16 %v909
        %v3874 = vunpack.c.h.b16 %v909
        %v3875 = vunpack.c.l.b16 %v910
        %v3876 = vunpack.c.h.b16 %v910
        %v3877 = vunpack.c.l.b16 %v911
        %v3878 = vunpack.c.h.b16 %v911
        %v3879 = vunpack.c.l.b16 %v912
        %v3880 = vunpack.c.h.b16 %v912
        %v3881 = vunpack.c.l.b16 %v913
        %v3882 = vunpack.c.h.b16 %v913
        %v3883 = vunpack.c.l.b16 %v914
        %v3884 = vunpack.c.h.b16 %v914
        %v3885 = vunpack.c.l.b16 %v915
        %v3886 = vunpack.c.h.b16 %v915
        %v3887 = vunpack.c.l.b16 %v916
        %v3888 = vunpack.c.h.b16 %v916
        %v3889 = vunpack.c.l.b16 %v917
        %v3890 = vunpack.c.h.b16 %v917
        %v3891 = vunpack.c.l.b16 %v918
        %v3892 = vunpack.c.h.b16 %v918
        %v3893 = vunpack.c.l.b16 %v919
        %v3894 = vunpack.c.h.b16 %v919
        %v3895 = vunpack.c.l.b16 %v920
        %v3896 = vunpack.c.h.b16 %v920
        %v3897 = vunpack.c.l.b16 %v921
        %v3898 = vunpack.c.h.b16 %v921
        %v3899 = vunpack.c.l.b16 %v922
        %v3900 = vunpack.c.h.b16 %v922
        %v3901 = vunpack.c.l.b16 %v923
        %v3902 = vunpack.c.h.b16 %v923
        %v3903 = vunpack.c.l.b16 %v924
        %v3904 = vunpack.c.h.b16 %v924
        %v3905 = vunpack.c.l.b16 %v925
        %v3906 = vunpack.c.h.b16 %v925
        %v3907 = vunpack.c.l.b16 %v926
        %v3908 = vunpack.c.h.b16 %v926
        %v3909 = vunpack.c.l.b16 %v927
        %v3910 = vunpack.c.h.b16 %v927
        %v3911 = vunpack.c.l.b16 %v928
        %v3912 = vunpack.c.h.b16 %v928
        %v3913 = vunpack.c.l.b16 %v929
        %v3914 = vunpack.c.h.b16 %v929
        %v3915 = vunpack.c.l.b16 %v930
        %v3916 = vunpack.c.h.b16 %v930
        %v3917 = vunpack.c.l.b16 %v931
        %v3918 = vunpack.c.h.b16 %v931
        %v3919 = vunpack.c.l.b16 %v932
        %v3920 = vunpack.c.h.b16 %v932
        %v3921 = vunpack.c.l.b16 %v933
        %v3922 = vunpack.c.h.b16 %v933
        %v3923 = vunpack.c.l.b16 %v934
        %v3924 = vunpack.c.h.b16 %v934
        %v3925 = vunpack.c.l.b16 %v935
        %v3926 = vunpack.c.h.b16 %v935
        %v3927 = vunpack.c.l.b16 %v936
        %v3928 = vunpack.c.h.b16 %v936
        %v3929 = vunpack.c.l.b16 %v937
        %v3930 = vunpack.c.h.b16 %v937
        %v3931 = vunpack.c.l.b16 %v938
        %v3932 = vunpack.c.h.b16 %v938
        %v3933 = vunpack.c.l.b16 %v939
        %v3934 = vunpack.c.h.b16 %v939
        %v3935 = vunpack.c.l.b16 %v940
        %v3936 = vunpack.c.h.b16 %v940
        %v3937 = vunpack.c.l.b16 %v941
        %v3938 = vunpack.c.h.b16 %v941
        %v3939 = vunpack.c.l.b16 %v942
        %v3940 = vunpack.c.h.b16 %v942
        %v3941 = vunpack.c.l.b16 %v943
        %v3942 = vunpack.c.h.b16 %v943
        %v3943 = vunpack.c.l.b16 %v944
        %v3944 = vunpack.c.h.b16 %v944
        %v3945 = vunpack.c.l.b16 %v945
        %v3946 = vunpack.c.h.b16 %v945
        %v3947 = vunpack.c.l.b16 %v946
        %v3948 = vunpack.c.h.b16 %v946
        %v3949 = vunpack.c.l.b16 %v947
        %v3950 = vunpack.c.h.b16 %v947
        %v3951 = vunpack.c.l.b16 %v948
        %v3952 = vunpack.c.h.b16 %v948
        %v3953 = vunpack.c.l.b16 %v949
        %v3954 = vunpack.c.h.b16 %v949
        %v3955 = vunpack.c.l.b16 %v950
        %v3956 = vunpack.c.h.b16 %v950
        %v3957 = vunpack.c.l.b16 %v951
        %v3958 = vunpack.c.h.b16 %v951
        %v3959 = vunpack.c.l.b16 %v952
        %v3960 = vunpack.c.h.b16 %v952
        %v3961 = vunpack.c.l.b16 %v953
        %v3962 = vunpack.c.h.b16 %v953
        %v3963 = vunpack.c.l.b16 %v954
        %v3964 = vunpack.c.h.b16 %v954
        %v3965 = vunpack.c.l.b16 %v955
        %v3966 = vunpack.c.h.b16 %v955
        %v3967 = vunpack.c.l.b16 %v956
        %v3968 = vunpack.c.h.b16 %v956
        %v3969 = vunpack.c.l.b16 %v957
        %v3970 = vunpack.c.h.b16 %v957
        %v3971 = vunpack.c.l.b16 %v958
        %v3972 = vunpack.c.h.b16 %v958
        %v3973 = vunpack.c.l.b16 %v959
        %v3974 = vunpack.c.h.b16 %v959
        %v3975 = vunpack.c.l.b16 %v960
        %v3976 = vunpack.c.h.b16 %v960
        %v3977 = vunpack.c.l.b16 %v961
        %v3978 = vunpack.c.h.b16 %v961
        %v3979 = vunpack.c.l.b16 %v962
        %v3980 = vunpack.c.h.b16 %v962
        %v3981 = vunpack.c.l.b16 %v963
        %v3982 = vunpack.c.h.b16 %v963
        %v3983 = vunpack.c.l.b16 %v964
        %v3984 = vunpack.c.h.b16 %v964
        %v3985 = vunpack.c.l.b16 %v965
        %v3986 = vunpack.c.h.b16 %v965
        %v3987 = vunpack.c.l.b16 %v966
        %v3988 = vunpack.c.h.b16 %v966
        %v3989 = vunpack.c.l.b16 %v967
        %v3990 = vunpack.c.h.b16 %v967
        %v3991 = vunpack.c.l.b16 %v968
        %v3992 = vunpack.c.h.b16 %v968
        %v3993 = vunpack.c.l.b16 %v969
        %v3994 = vunpack.c.h.b16 %v969
        %v3995 = vunpack.c.l.b16 %v970
        %v3996 = vunpack.c.h.b16 %v970
        %v3997 = vunpack.c.l.b16 %v971
        %v3998 = vunpack.c.h.b16 %v971
        %v3999 = vunpack.c.l.b16 %v972
        %v4000 = vunpack.c.h.b16 %v972
        %v4001 = vunpack.c.l.b16 %v973
        %v4002 = vunpack.c.h.b16 %v973
        %v4003 = vunpack.c.l.b16 %v974
        %v4004 = vunpack.c.h.b16 %v974
        %v4005 = vunpack.c.l.b16 %v975
        %v4006 = vunpack.c.h.b16 %v975
        %v4007 = vunpack.c.l.b16 %v976
        %v4008 = vunpack.c.h.b16 %v976
        %v4009 = vunpack.c.l.b16 %v977
        %v4010 = vunpack.c.h.b16 %v977
        %v4011 = vunpack.c.l.b16 %v978
        %v4012 = vunpack.c.h.b16 %v978
        %v4013 = vunpack.c.l.b16 %v979
        %v4014 = vunpack.c.h.b16 %v979
        %v4015 = vunpack.c.l.b16 %v980
        %v4016 = vunpack.c.h.b16 %v980
        %v4017 = vunpack.c.l.b16 %v981
        %v4018 = vunpack.c.h.b16 %v981
        %v4019 = vunpack.c.l.b16 %v982
        %v4020 = vunpack.c.h.b16 %v982
        %v4021 = vunpack.c.l.b16 %v983
        %v4022 = vunpack.c.h.b16 %v983
        %v4023 = vunpack.c.l.b16 %v984
        %v4024 = vunpack.c.h.b16 %v984
        %v4025 = vunpack.c.l.b16 %v985
        %v4026 = vunpack.c.h.b16 %v985
        %v4027 = vunpack.c.l.b16 %v986
        %v4028 = vunpack.c.h.b16 %v986
        %v4029 = vunpack.c.l.b16 %v987
        %v4030 = vunpack.c.h.b16 %v987
        %v4031 = vunpack.c.l.b16 %v988
        %v4032 = vunpack.c.h.b16 %v988
        %v4033 = vunpack.c.l.b16 %v989
        %v4034 = vunpack.c.h.b16 %v989
        %v4035 = vunpack.c.l.b16 %v990
        %v4036 = vunpack.c.h.b16 %v990
        %v4037 = vunpack.c.l.b16 %v991
        %v4038 = vunpack.c.h.b16 %v991
        %v4039 = vunpack.c.l.b16 %v992
        %v4040 = vunpack.c.h.b16 %v992
        %v4041 = vunpack.c.l.b16 %v993
        %v4042 = vunpack.c.h.b16 %v993
        %v4043 = vunpack.c.l.b16 %v994
        %v4044 = vunpack.c.h.b16 %v994
        %v4045 = vunpack.c.l.b16 %v995
        %v4046 = vunpack.c.h.b16 %v995
        %v4047 = vunpack.c.l.b16 %v996
        %v4048 = vunpack.c.h.b16 %v996
        %v4049 = vunpack.c.l.b16 %v997
        %v4050 = vunpack.c.h.b16 %v997
        %v4051 = vunpack.c.l.b16 %v998
        %v4052 = vunpack.c.h.b16 %v998
        %v4053 = vunpack.c.l.b16 %v999
        %v4054 = vunpack.c.h.b16 %v999
        %v4055 = vunpack.c.l.b16 %v1000
        %v4056 = vunpack.c.h.b16 %v1000
        %v4057 = vunpack.c.l.b16 %v1001
        %v4058 = vunpack.c.h.b16 %v1001
        %v4059 = vunpack.c.l.b16 %v1002
        %v4060 = vunpack.c.h.b16 %v1002
        %v4061 = vunpack.c.l.b16 %v1003
        %v4062 = vunpack.c.h.b16 %v1003
        %v4063 = vunpack.c.l.b16 %v1004
        %v4064 = vunpack.c.h.b16 %v1004
        %v4065 = vunpack.c.l.b16 %v1005
        %v4066 = vunpack.c.h.b16 %v1005
        %v4067 = vunpack.c.l.b16 %v1006
        %v4068 = vunpack.c.h.b16 %v1006
        %v4069 = vunpack.c.l.b16 %v1007
        %v4070 = vunpack.c.h.b16 %v1007
        %v4071 = vunpack.c.l.b16 %v1008
        %v4072 = vunpack.c.h.b16 %v1008
        %v4073 = vunpack.c.l.b16 %v1009
        %v4074 = vunpack.c.h.b16 %v1009
        %v4075 = vunpack.c.l.b16 %v1010
        %v4076 = vunpack.c.h.b16 %v1010
        %v4077 = vunpack.c.l.b16 %v1011
        %v4078 = vunpack.c.h.b16 %v1011
        %v4079 = vunpack.c.l.b16 %v1012
        %v4080 = vunpack.c.h.b16 %v1012
        %v4081 = vunpack.c.l.b16 %v1013
        %v4082 = vunpack.c.h.b16 %v1013
        %v4083 = vunpack.c.l.b16 %v1014
        %v4084 = vunpack.c.h.b16 %v1014
        %v4085 = vunpack.c.l.b16 %v1015
        %v4086 = vunpack.c.h.b16 %v1015
        %v4087 = vunpack.c.l.b16 %v1016
        %v4088 = vunpack.c.h.b16 %v1016
        %v4089 = vunpack.c.l.b16 %v1017
        %v4090 = vunpack.c.h.b16 %v1017
        %v4091 = vunpack.c.l.b16 %v1018
        %v4092 = vunpack.c.h.b16 %v1018
        %v4093 = vunpack.c.l.b16 %v1019
        %v4094 = vunpack.c.h.b16 %v1019
        %v4095 = vunpack.c.l.b16 %v1020
        %v4096 = vunpack.c.h.b16 %v1020
        %v4097 = vunpack.c.l.b16 %v1021
        %v4098 = vunpack.c.h.b16 %v1021
        %v4099 = vunpack.c.l.b16 %v1022
        %v4100 = vunpack.c.h.b16 %v1022
        %v4101 = vunpack.c.l.b16 %v1023
        %v4102 = vunpack.c.h.b16 %v1023
        %v4103 = vunpack.c.l.b16 %v1024
        %v4104 = vunpack.c.h.b16 %v1024
        %v4105 = vunpack.c.l.b16 %v1025
        %v4106 = vunpack.c.h.b16 %v1025
        %v4107 = vunpack.c.l.b16 %v1026
        %v4108 = vunpack.c.h.b16 %v1026
        %v4109 = vunpack.c.l.b16 %v1027
        %v4110 = vunpack.c.h.b16 %v1027
        %v4111 = vunpack.c.l.b16 %v1028
        %v4112 = vunpack.c.h.b16 %v1028
        %v4113 = vunpack.c.l.b16 %v1029
        %v4114 = vunpack.c.h.b16 %v1029
        %v4115 = vunpack.c.l.b16 %v1030
        %v4116 = vunpack.c.h.b16 %v1030
        %v4117 = vunpack.c.l.b16 %v1031
        %v4118 = vunpack.c.h.b16 %v1031
        %v4119 = vunpack.c.l.b16 %v1032
        %v4120 = vunpack.c.h.b16 %v1032
        %v4121 = vunpack.c.l.b16 %v1033
        %v4122 = vunpack.c.h.b16 %v1033
        %v4123 = vunpack.c.l.b16 %v1034
        %v4124 = vunpack.c.h.b16 %v1034
        %v4125 = vunpack.c.l.b16 %v1035
        %v4126 = vunpack.c.h.b16 %v1035
        %v4127 = vunpack.c.l.b16 %v1036
        %v4128 = vunpack.c.h.b16 %v1036
        %v4129 = vunpack.c.l.b16 %v1037
        %v4130 = vunpack.c.h.b16 %v1037
        %v4131 = vunpack.c.l.b16 %v1038
        %v4132 = vunpack.c.h.b16 %v1038
        %v4133 = vunpack.c.l.b16 %v1039
        %v4134 = vunpack.c.h.b16 %v1039
        %v4135 = vunpack.c.l.b16 %v1040
        %v4136 = vunpack.c.h.b16 %v1040
        %v4137 = vunpack.c.l.b16 %v1041
        %v4138 = vunpack.c.h.b16 %v1041
        %v4139 = vunpack.c.l.b16 %v1042
        %v4140 = vunpack.c.h.b16 %v1042
        %v4141 = vunpack.c.l.b16 %v1043
        %v4142 = vunpack.c.h.b16 %v1043
        %v4143 = vunpack.c.l.b16 %v1044
        %v4144 = vunpack.c.h.b16 %v1044
        %v4145 = vunpack.c.l.b16 %v1045
        %v4146 = vunpack.c.h.b16 %v1045
        %v4147 = vunpack.c.l.b16 %v1046
        %v4148 = vunpack.c.h.b16 %v1046
        %v4149 = vunpack.c.l.b16 %v1047
        %v4150 = vunpack.c.h.b16 %v1047
        %v4151 = vunpack.c.l.b16 %v1048
        %v4152 = vunpack.c.h.b16 %v1048
        %v4153 = vunpack.c.l.b16 %v1049
        %v4154 = vunpack.c.h.b16 %v1049
        %v4155 = vunpack.c.l.b16 %v1050
        %v4156 = vunpack.c.h.b16 %v1050
        %v4157 = vunpack.c.l.b16 %v1051
        %v4158 = vunpack.c.h.b16 %v1051
        %v4159 = vunpack.c.l.b16 %v1052
        %v4160 = vunpack.c.h.b16 %v1052
        %v4161 = vunpack.c.l.b16 %v1053
        %v4162 = vunpack.c.h.b16 %v1053
        %v4163 = vunpack.c.l.b16 %v1054
        %v4164 = vunpack.c.h.b16 %v1054
        %v4165 = vunpack.c.l.b16 %v1055
        %v4166 = vunpack.c.h.b16 %v1055
        %v4167 = vunpack.c.l.b16 %v1056
        %v4168 = vunpack.c.h.b16 %v1056
        %v4169 = vunpack.c.l.b16 %v1057
        %v4170 = vunpack.c.h.b16 %v1057
        %v4171 = vunpack.c.l.b16 %v1058
        %v4172 = vunpack.c.h.b16 %v1058
        %v4173 = vunpack.c.l.b16 %v1059
        %v4174 = vunpack.c.h.b16 %v1059
        %v4175 = vunpack.c.l.b16 %v1060
        %v4176 = vunpack.c.h.b16 %v1060
        %v4177 = vunpack.c.l.b16 %v1061
        %v4178 = vunpack.c.h.b16 %v1061
        %v4179 = vunpack.c.l.b16 %v1062
        %v4180 = vunpack.c.h.b16 %v1062
        %v4181 = vunpack.c.l.b16 %v1063
        %v4182 = vunpack.c.h.b16 %v1063
        %v4183 = vunpack.c.l.b16 %v1064
        %v4184 = vunpack.c.h.b16 %v1064
        %v4185 = vunpack.c.l.b16 %v1065
        %v4186 = vunpack.c.h.b16 %v1065
        %v4187 = vunpack.c.l.b16 %v1066
        %v4188 = vunpack.c.h.b16 %v1066
        %v4189 = vunpack.c.l.b16 %v1067
        %v4190 = vunpack.c.h.b16 %v1067
        %v4191 = vunpack.c.l.b16 %v1068
        %v4192 = vunpack.c.h.b16 %v1068
        %v4193 = vunpack.c.l.b16 %v1069
        %v4194 = vunpack.c.h.b16 %v1069
        %v4195 = vunpack.c.l.b16 %v1070
        %v4196 = vunpack.c.h.b16 %v1070
        %v4197 = vunpack.c.l.b16 %v1071
        %v4198 = vunpack.c.h.b16 %v1071
        %v4199 = vunpack.c.l.b16 %v1072
        %v4200 = vunpack.c.h.b16 %v1072
        %v4201 = vunpack.c.l.b16 %v1073
        %v4202 = vunpack.c.h.b16 %v1073
        %v4203 = vunpack.c.l.b16 %v1074
        %v4204 = vunpack.c.h.b16 %v1074
        %v4205 = vunpack.c.l.b16 %v1075
        %v4206 = vunpack.c.h.b16 %v1075
        %v4207 = vunpack.c.l.b16 %v1076
        %v4208 = vunpack.c.h.b16 %v1076
        %v4209 = vunpack.c.l.b16 %v1077
        %v4210 = vunpack.c.h.b16 %v1077
        %v4211 = vunpack.c.l.b16 %v1078
        %v4212 = vunpack.c.h.b16 %v1078
        %v4213 = vunpack.c.l.b16 %v1079
        %v4214 = vunpack.c.h.b16 %v1079
        %v4215 = vunpack.c.l.b16 %v1080
        %v4216 = vunpack.c.h.b16 %v1080
        %v4217 = vunpack.c.l.b16 %v1081
        %v4218 = vunpack.c.h.b16 %v1081
        %v4219 = vunpack.c.l.b16 %v1082
        %v4220 = vunpack.c.h.b16 %v1082
        %v4221 = vunpack.c.l.b16 %v1083
        %v4222 = vunpack.c.h.b16 %v1083
        %v4223 = vunpack.c.l.b16 %v1084
        %v4224 = vunpack.c.h.b16 %v1084
        %v4225 = vunpack.c.l.b16 %v1085
        %v4226 = vunpack.c.h.b16 %v1085
        %v4227 = vunpack.c.l.b16 %v1086
        %v4228 = vunpack.c.h.b16 %v1086
        %v4229 = vunpack.c.l.b16 %v1087
        %v4230 = vunpack.c.h.b16 %v1087
        %v4231 = vunpack.c.l.b16 %v1088
        %v4232 = vunpack.c.h.b16 %v1088
        %v4233 = vunpack.c.l.b16 %v1089
        %v4234 = vunpack.c.h.b16 %v1089
        %v4235 = vunpack.c.l.b16 %v1090
        %v4236 = vunpack.c.h.b16 %v1090
        %v4237 = vunpack.c.l.b16 %v1091
        %v4238 = vunpack.c.h.b16 %v1091
        %v4239 = vunpack.c.l.b16 %v1092
        %v4240 = vunpack.c.h.b16 %v1092
        %v4241 = vunpack.c.l.b16 %v1093
        %v4242 = vunpack.c.h.b16 %v1093
        %v4243 = vunpack.c.l.b16 %v1094
        %v4244 = vunpack.c.h.b16 %v1094
        %v4245 = vunpack.c.l.b16 %v1095
        %v4246 = vunpack.c.h.b16 %v1095
        %v4247 = vunpack.c.l.b16 %v1096
        %v4248 = vunpack.c.h.b16 %v1096
        %v4249 = vunpack.c.l.b16 %v1097
        %v4250 = vunpack.c.h.b16 %v1097
        %v4251 = vunpack.c.l.b16 %v1098
        %v4252 = vunpack.c.h.b16 %v1098
        %v4253 = vunpack.c.l.b16 %v1099
        %v4254 = vunpack.c.h.b16 %v1099
        %v4255 = vunpack.c.l.b16 %v1100
        %v4256 = vunpack.c.h.b16 %v1100
        %v4257 = vunpack.c.l.b16 %v1101
        %v4258 = vunpack.c.h.b16 %v1101
        %v4259 = vunpack.c.l.b16 %v1102
        %v4260 = vunpack.c.h.b16 %v1102
        %v4261 = vunpack.c.l.b16 %v1103
        %v4262 = vunpack.c.h.b16 %v1103
        %v4263 = vunpack.c.l.b16 %v1104
        %v4264 = vunpack.c.h.b16 %v1104
        %v4265 = vunpack.c.l.b16 %v1105
        %v4266 = vunpack.c.h.b16 %v1105
        %v4267 = vunpack.c.l.b16 %v1106
        %v4268 = vunpack.c.h.b16 %v1106
        %v4269 = vunpack.c.l.b16 %v1107
        %v4270 = vunpack.c.h.b16 %v1107
        %v4271 = vunpack.c.l.b16 %v1108
        %v4272 = vunpack.c.h.b16 %v1108
        %v4273 = vunpack.c.l.b16 %v1109
        %v4274 = vunpack.c.h.b16 %v1109
        %v4275 = vunpack.c.l.b16 %v1110
        %v4276 = vunpack.c.h.b16 %v1110
        %v4277 = vunpack.c.l.b16 %v1111
        %v4278 = vunpack.c.h.b16 %v1111
        %v4279 = vunpack.c.l.b16 %v1112
        %v4280 = vunpack.c.h.b16 %v1112
        %v4281 = vunpack.c.l.b16 %v1113
        %v4282 = vunpack.c.h.b16 %v1113
        %v4283 = vunpack.c.l.b16 %v1114
        %v4284 = vunpack.c.h.b16 %v1114
        %v4285 = vunpack.c.l.b16 %v1115
        %v4286 = vunpack.c.h.b16 %v1115
        %v4287 = vunpack.c.l.b16 %v1116
        %v4288 = vunpack.c.h.b16 %v1116
        %v4289 = vunpack.c.l.b16 %v1117
        %v4290 = vunpack.c.h.b16 %v1117
        %v4291 = vunpack.c.l.b16 %v1118
        %v4292 = vunpack.c.h.b16 %v1118
        %v4293 = vunpack.c.l.b16 %v1119
        %v4294 = vunpack.c.h.b16 %v1119
        %v4295 = vunpack.c.l.b16 %v1120
        %v4296 = vunpack.c.h.b16 %v1120
        %v4297 = vunpack.c.l.b16 %v1121
        %v4298 = vunpack.c.h.b16 %v1121
        %v4299 = vunpack.c.l.b16 %v1122
        %v4300 = vunpack.c.h.b16 %v1122
        %v4301 = vunpack.c.l.b16 %v1123
        %v4302 = vunpack.c.h.b16 %v1123
        %v4303 = vunpack.c.l.b16 %v1124
        %v4304 = vunpack.c.h.b16 %v1124
        %v4305 = vunpack.c.l.b16 %v1125
        %v4306 = vunpack.c.h.b16 %v1125
        %v4307 = vunpack.c.l.b16 %v1126
        %v4308 = vunpack.c.h.b16 %v1126
        %v4309 = vunpack.c.l.b16 %v1127
        %v4310 = vunpack.c.h.b16 %v1127
        %v4311 = vunpack.c.l.b16 %v1128
        %v4312 = vunpack.c.h.b16 %v1128
        %v4313 = vunpack.c.l.b16 %v1129
        %v4314 = vunpack.c.h.b16 %v1129
        %v4315 = vunpack.c.l.b16 %v1130
        %v4316 = vunpack.c.h.b16 %v1130
        %v4317 = vunpack.c.l.b16 %v1131
        %v4318 = vunpack.c.h.b16 %v1131
        %v4319 = vunpack.c.l.b16 %v1132
        %v4320 = vunpack.c.h.b16 %v1132
        %v4321 = vunpack.c.l.b16 %v1133
        %v4322 = vunpack.c.h.b16 %v1133
        %v4323 = vunpack.c.l.b16 %v1134
        %v4324 = vunpack.c.h.b16 %v1134
        %v4325 = vunpack.c.l.b16 %v1135
        %v4326 = vunpack.c.h.b16 %v1135
        %v4327 = vunpack.c.l.b16 %v1136
        %v4328 = vunpack.c.h.b16 %v1136
        %v4329 = vunpack.c.l.b16 %v1137
        %v4330 = vunpack.c.h.b16 %v1137
        %v4331 = vunpack.c.l.b16 %v1138
        %v4332 = vunpack.c.h.b16 %v1138
        %v4333 = vunpack.c.l.b16 %v1139
        %v4334 = vunpack.c.h.b16 %v1139
        %v4335 = vunpack.c.l.b16 %v1140
        %v4336 = vunpack.c.h.b16 %v1140
        %v4337 = vunpack.c.l.b16 %v1141
        %v4338 = vunpack.c.h.b16 %v1141
        %v4339 = vunpack.c.l.b16 %v1142
        %v4340 = vunpack.c.h.b16 %v1142
        %v4341 = vunpack.c.l.b16 %v1143
        %v4342 = vunpack.c.h.b16 %v1143
        %v4343 = vunpack.c.l.b16 %v1144
        %v4344 = vunpack.c.h.b16 %v1144
        %v4345 = vunpack.c.l.b16 %v1145
        %v4346 = vunpack.c.h.b16 %v1145
        %v4347 = vunpack.c.l.b16 %v1146
        %v4348 = vunpack.c.h.b16 %v1146
        %v4349 = vunpack.c.l.b16 %v1147
        %v4350 = vunpack.c.h.b16 %v1147
        %v4351 = vunpack.c.l.b16 %v1148
        %v4352 = vunpack.c.h.b16 %v1148
        %v4353 = vunpack.c.l.b16 %v1149
        %v4354 = vunpack.c.h.b16 %v1149
        %v4355 = vunpack.c.l.b16 %v1150
        %v4356 = vunpack.c.h.b16 %v1150
        %v4357 = vunpack.c.l.b16 %v1151
        %v4358 = vunpack.c.h.b16 %v1151
        %v4359 = vunpack.c.l.b16 %v1152
        %v4360 = vunpack.c.h.b16 %v1152
        %v4361 = vunpack.c.l.b16 %v1153
        %v4362 = vunpack.c.h.b16 %v1153
        %v4363 = vunpack.c.l.b16 %v1154
        %v4364 = vunpack.c.h.b16 %v1154
        %v4365 = vunpack.c.l.b16 %v1155
        %v4366 = vunpack.c.h.b16 %v1155
        %v4367 = vunpack.c.l.b16 %v1156
        %v4368 = vunpack.c.h.b16 %v1156
        %v4369 = vunpack.c.l.b16 %v1157
        %v4370 = vunpack.c.h.b16 %v1157
        %v4371 = vunpack.c.l.b16 %v1158
        %v4372 = vunpack.c.h.b16 %v1158
        %v4373 = vunpack.c.l.b16 %v1159
        %v4374 = vunpack.c.h.b16 %v1159
        %v4375 = vunpack.c.l.b16 %v1160
        %v4376 = vunpack.c.h.b16 %v1160
        %v4377 = vunpack.c.l.b16 %v1161
        %v4378 = vunpack.c.h.b16 %v1161
        %v4379 = vunpack.c.l.b16 %v1162
        %v4380 = vunpack.c.h.b16 %v1162
        %v4381 = vunpack.c.l.b16 %v1163
        %v4382 = vunpack.c.h.b16 %v1163
        %v4383 = vunpack.c.l.b16 %v1164
        %v4384 = vunpack.c.h.b16 %v1164
        %v4385 = vunpack.c.l.b16 %v1165
        %v4386 = vunpack.c.h.b16 %v1165
        %v4387 = vunpack.c.l.b16 %v1166
        %v4388 = vunpack.c.h.b16 %v1166
        %v4389 = vunpack.c.l.b16 %v1167
        %v4390 = vunpack.c.h.b16 %v1167
        %v4391 = vunpack.c.l.b16 %v1168
        %v4392 = vunpack.c.h.b16 %v1168
        %v4393 = vunpack.c.l.b16 %v1169
        %v4394 = vunpack.c.h.b16 %v1169
        %v4395 = vunpack.c.l.b16 %v1170
        %v4396 = vunpack.c.h.b16 %v1170
        %v4397 = vunpack.c.l.b16 %v1171
        %v4398 = vunpack.c.h.b16 %v1171
        %v4399 = vunpack.c.l.b16 %v1172
        %v4400 = vunpack.c.h.b16 %v1172
        %v4401 = vunpack.c.l.b16 %v1173
        %v4402 = vunpack.c.h.b16 %v1173
        %v4403 = vunpack.c.l.b16 %v1174
        %v4404 = vunpack.c.h.b16 %v1174
        %v4405 = vunpack.c.l.b16 %v1175
        %v4406 = vunpack.c.h.b16 %v1175
        %v4407 = vunpack.c.l.b16 %v1176
        %v4408 = vunpack.c.h.b16 %v1176
        %v4409 = vunpack.c.l.b16 %v1177
        %v4410 = vunpack.c.h.b16 %v1177
        %v4411 = vunpack.c.l.b16 %v1178
        %v4412 = vunpack.c.h.b16 %v1178
        %v4413 = vunpack.c.l.b16 %v1179
        %v4414 = vunpack.c.h.b16 %v1179
        %v4415 = vunpack.c.l.b16 %v1180
        %v4416 = vunpack.c.h.b16 %v1180
        %v4417 = vunpack.c.l.b16 %v1181
        %v4418 = vunpack.c.h.b16 %v1181
        %v4419 = vunpack.c.l.b16 %v1182
        %v4420 = vunpack.c.h.b16 %v1182
        %v4421 = vunpack.c.l.b16 %v1183
        %v4422 = vunpack.c.h.b16 %v1183
        %v4423 = vunpack.c.l.b16 %v1184
        %v4424 = vunpack.c.h.b16 %v1184
        %v4425 = vunpack.c.l.b16 %v1185
        %v4426 = vunpack.c.h.b16 %v1185
        %v4427 = vunpack.c.l.b16 %v1186
        %v4428 = vunpack.c.h.b16 %v1186
        %v4429 = vunpack.c.l.b16 %v1187
        %v4430 = vunpack.c.h.b16 %v1187
        %v4431 = vunpack.c.l.b16 %v1188
        %v4432 = vunpack.c.h.b16 %v1188
        %v4433 = vunpack.c.l.b16 %v1189
        %v4434 = vunpack.c.h.b16 %v1189
        %v4435 = vunpack.c.l.b16 %v1190
        %v4436 = vunpack.c.h.b16 %v1190
        %v4437 = vunpack.c.l.b16 %v1191
        %v4438 = vunpack.c.h.b16 %v1191
        %v4439 = vunpack.c.l.b16 %v1192
        %v4440 = vunpack.c.h.b16 %v1192
        %v4441 = vunpack.c.l.b16 %v1193
        %v4442 = vunpack.c.h.b16 %v1193
        %v4443 = vunpack.c.l.b16 %v1194
        %v4444 = vunpack.c.h.b16 %v1194
        %v4445 = vunpack.c.l.b16 %v1195
        %v4446 = vunpack.c.h.b16 %v1195
        %v4447 = vunpack.c.l.b16 %v1196
        %v4448 = vunpack.c.h.b16 %v1196
        %v4449 = vunpack.c.l.b16 %v1197
        %v4450 = vunpack.c.h.b16 %v1197
        %v4451 = vunpack.c.l.b16 %v1198
        %v4452 = vunpack.c.h.b16 %v1198
        %v4453 = vunpack.c.l.b16 %v1199
        %v4454 = vunpack.c.h.b16 %v1199
        %v4455 = vunpack.c.l.b16 %v1200
        %v4456 = vunpack.c.h.b16 %v1200
        %v4457 = vunpack.c.l.b16 %v1201
        %v4458 = vunpack.c.h.b16 %v1201
        %v4459 = vunpack.c.l.b16 %v1202
        %v4460 = vunpack.c.h.b16 %v1202
        %v4461 = vunpack.c.l.b16 %v1203
        %v4462 = vunpack.c.h.b16 %v1203
        %v4463 = vunpack.c.l.b16 %v1204
        %v4464 = vunpack.c.h.b16 %v1204
        %v4465 = vunpack.c.l.b16 %v1205
        %v4466 = vunpack.c.h.b16 %v1205
        %v4467 = vunpack.c.l.b16 %v1206
        %v4468 = vunpack.c.h.b16 %v1206
        %v4469 = vunpack.c.l.b16 %v1207
        %v4470 = vunpack.c.h.b16 %v1207
        %v4471 = vunpack.c.l.b16 %v1208
        %v4472 = vunpack.c.h.b16 %v1208
        %v4473 = vunpack.c.l.b16 %v1209
        %v4474 = vunpack.c.h.b16 %v1209
        %v4475 = vunpack.c.l.b16 %v1210
        %v4476 = vunpack.c.h.b16 %v1210
        %v4477 = vunpack.c.l.b16 %v1211
        %v4478 = vunpack.c.h.b16 %v1211
        %v4479 = vunpack.c.l.b16 %v1212
        %v4480 = vunpack.c.h.b16 %v1212
        %v4481 = vunpack.c.l.b16 %v1213
        %v4482 = vunpack.c.h.b16 %v1213
        %v4483 = vunpack.c.l.b16 %v1214
        %v4484 = vunpack.c.h.b16 %v1214
        %v4485 = vunpack.c.l.b16 %v1215
        %v4486 = vunpack.c.h.b16 %v1215
        %v4487 = vunpack.c.l.b16 %v1216
        %v4488 = vunpack.c.h.b16 %v1216
        %v4489 = vunpack.c.l.b16 %v1217
        %v4490 = vunpack.c.h.b16 %v1217
        %v4491 = vunpack.c.l.b16 %v1218
        %v4492 = vunpack.c.h.b16 %v1218
        %v4493 = vunpack.c.l.b16 %v1219
        %v4494 = vunpack.c.h.b16 %v1219
        %v4495 = vunpack.c.l.b16 %v1220
        %v4496 = vunpack.c.h.b16 %v1220
        %v4497 = vunpack.c.l.b16 %v1221
        %v4498 = vunpack.c.h.b16 %v1221
        %v4499 = vunpack.c.l.b16 %v1222
        %v4500 = vunpack.c.h.b16 %v1222
        %v4501 = vunpack.c.l.b16 %v1223
        %v4502 = vunpack.c.h.b16 %v1223
        %v4503 = vunpack.c.l.b16 %v1224
        %v4504 = vunpack.c.h.b16 %v1224
        %v4505 = vunpack.c.l.b16 %v1225
        %v4506 = vunpack.c.h.b16 %v1225
        %v4507 = vunpack.c.l.b16 %v1226
        %v4508 = vunpack.c.h.b16 %v1226
        %v4509 = vunpack.c.l.b16 %v1227
        %v4510 = vunpack.c.h.b16 %v1227
        %v4511 = vunpack.c.l.b16 %v1228
        %v4512 = vunpack.c.h.b16 %v1228
        %v4513 = vunpack.c.l.b16 %v1229
        %v4514 = vunpack.c.h.b16 %v1229
        %v4515 = vunpack.c.l.b16 %v1230
        %v4516 = vunpack.c.h.b16 %v1230
        %v4517 = vunpack.c.l.b16 %v1231
        %v4518 = vunpack.c.h.b16 %v1231
        %v4519 = vunpack.c.l.b16 %v1232
        %v4520 = vunpack.c.h.b16 %v1232
        %v4521 = vunpack.c.l.b16 %v1233
        %v4522 = vunpack.c.h.b16 %v1233
        %v4523 = vunpack.c.l.b16 %v1234
        %v4524 = vunpack.c.h.b16 %v1234
        %v4525 = vunpack.c.l.b16 %v1235
        %v4526 = vunpack.c.h.b16 %v1235
        %v4527 = vunpack.c.l.b16 %v1236
        %v4528 = vunpack.c.h.b16 %v1236
        %v4529 = vunpack.c.l.b16 %v1237
        %v4530 = vunpack.c.h.b16 %v1237
        %v4531 = vunpack.c.l.b16 %v1238
        %v4532 = vunpack.c.h.b16 %v1238
        %v4533 = vunpack.c.l.b16 %v1239
        %v4534 = vunpack.c.h.b16 %v1239
        %v4535 = vunpack.c.l.b16 %v1240
        %v4536 = vunpack.c.h.b16 %v1240
        %v4537 = vunpack.c.l.b16 %v1241
        %v4538 = vunpack.c.h.b16 %v1241
        %v4539 = vunpack.c.l.b16 %v1242
        %v4540 = vunpack.c.h.b16 %v1242
        %v4541 = vunpack.c.l.b16 %v1243
        %v4542 = vunpack.c.h.b16 %v1243
        %v4543 = vunpack.c.l.b16 %v1244
        %v4544 = vunpack.c.h.b16 %v1244
        %v4545 = vunpack.c.l.b16 %v1245
        %v4546 = vunpack.c.h.b16 %v1245
        %v4547 = vunpack.c.l.b16 %v1246
        %v4548 = vunpack.c.h.b16 %v1246
        %v4549 = vunpack.c.l.b16 %v1247
        %v4550 = vunpack.c.h.b16 %v1247
        %v4551 = vunpack.c.l.b16 %v1248
        %v4552 = vunpack.c.h.b16 %v1248
        %v4553 = vunpack.c.l.b16 %v1249
        %v4554 = vunpack.c.h.b16 %v1249
        %v4555 = vunpack.c.l.b16 %v1250
        %v4556 = vunpack.c.h.b16 %v1250
        %v4557 = vunpack.c.l.b16 %v1251
        %v4558 = vunpack.c.h.b16 %v1251
        %v4559 = vunpack.c.l.b16 %v1252
        %v4560 = vunpack.c.h.b16 %v1252
        %v4561 = vunpack.c.l.b16 %v1253
        %v4562 = vunpack.c.h.b16 %v1253
        %v4563 = vunpack.c.l.b16 %v1254
        %v4564 = vunpack.c.h.b16 %v1254
        %v4565 = vunpack.c.l.b16 %v1255
        %v4566 = vunpack.c.h.b16 %v1255
        %v4567 = vunpack.c.l.b16 %v1256
        %v4568 = vunpack.c.h.b16 %v1256
        %v4569 = vunpack.c.l.b16 %v1257
        %v4570 = vunpack.c.h.b16 %v1257
        %v4571 = vunpack.c.l.b16 %v1258
        %v4572 = vunpack.c.h.b16 %v1258
        %v4573 = vunpack.c.l.b16 %v1259
        %v4574 = vunpack.c.h.b16 %v1259
        %v4575 = vunpack.c.l.b16 %v1260
        %v4576 = vunpack.c.h.b16 %v1260
        %v4577 = vunpack.c.l.b16 %v1261
        %v4578 = vunpack.c.h.b16 %v1261
        %v4579 = vunpack.c.l.b16 %v1262
        %v4580 = vunpack.c.h.b16 %v1262
        %v4581 = vunpack.c.l.b16 %v1263
        %v4582 = vunpack.c.h.b16 %v1263
        %v4583 = vunpack.c.l.b16 %v1264
        %v4584 = vunpack.c.h.b16 %v1264
        %v4585 = vunpack.c.l.b16 %v1265
        %v4586 = vunpack.c.h.b16 %v1265
        %v4587 = vunpack.c.l.b16 %v1266
        %v4588 = vunpack.c.h.b16 %v1266
        %v4589 = vunpack.c.l.b16 %v1267
        %v4590 = vunpack.c.h.b16 %v1267
        %v4591 = vunpack.c.l.b16 %v1268
        %v4592 = vunpack.c.h.b16 %v1268
        %v4593 = vunpack.c.l.b16 %v1269
        %v4594 = vunpack.c.h.b16 %v1269
        %v4595 = vunpack.c.l.b16 %v1270
        %v4596 = vunpack.c.h.b16 %v1270
        %v4597 = vunpack.c.l.b16 %v1271
        %v4598 = vunpack.c.h.b16 %v1271
        %v4599 = vunpack.c.l.b16 %v1272
        %v4600 = vunpack.c.h.b16 %v1272
        %v4601 = vunpack.c.l.b16 %v1273
        %v4602 = vunpack.c.h.b16 %v1273
        %v4603 = vunpack.c.l.b16 %v1274
        %v4604 = vunpack.c.h.b16 %v1274
        %v4605 = vunpack.c.l.b16 %v1275
        %v4606 = vunpack.c.h.b16 %v1275
        %v4607 = vunpack.c.l.b16 %v1276
        %v4608 = vunpack.c.h.b16 %v1276
        %v4609 = vunpack.c.l.b16 %v1277
        %v4610 = vunpack.c.h.b16 %v1277
        %v4611 = vunpack.c.l.b16 %v1278
        %v4612 = vunpack.c.h.b16 %v1278
        %v4613 = vunpack.c.l.b16 %v1279
        %v4614 = vunpack.c.h.b16 %v1279
        %v4615 = vunpack.c.l.b16 %v1280
        %v4616 = vunpack.c.h.b16 %v1280
        %v4617 = vunpack.c.l.b16 %v1281
        %v4618 = vunpack.c.h.b16 %v1281
        %v4619 = vunpack.c.l.b16 %v1282
        %v4620 = vunpack.c.h.b16 %v1282
        %v4621 = vunpack.c.l.b16 %v1283
        %v4622 = vunpack.c.h.b16 %v1283
        %v4623 = vunpack.c.l.b16 %v1284
        %v4624 = vunpack.c.h.b16 %v1284
        %v4625 = vunpack.c.l.b16 %v1285
        %v4626 = vunpack.c.h.b16 %v1285
        %v4627 = vunpack.c.l.b16 %v1286
        %v4628 = vunpack.c.h.b16 %v1286
        %v4629 = vunpack.c.l.b16 %v1287
        %v4630 = vunpack.c.h.b16 %v1287
        %v4631 = vunpack.c.l.b16 %v1288
        %v4632 = vunpack.c.h.b16 %v1288
        %v4633 = vunpack.c.l.b16 %v1289
        %v4634 = vunpack.c.h.b16 %v1289
        %v4635 = vunpack.c.l.b16 %v1290
        %v4636 = vunpack.c.h.b16 %v1290
        %v4637 = vunpack.c.l.b16 %v1291
        %v4638 = vunpack.c.h.b16 %v1291
        %v4639 = vunpack.c.l.b16 %v1292
        %v4640 = vunpack.c.h.b16 %v1292
        %v4641 = vunpack.c.l.b16 %v1293
        %v4642 = vunpack.c.h.b16 %v1293
        %v4643 = vunpack.c.l.b16 %v1294
        %v4644 = vunpack.c.h.b16 %v1294
        %v4645 = vunpack.c.l.b16 %v1295
        %v4646 = vunpack.c.h.b16 %v1295
        %v4647 = vunpack.c.l.b16 %v1296
        %v4648 = vunpack.c.h.b16 %v1296
        %v4649 = vunpack.c.l.b16 %v1297
        %v4650 = vunpack.c.h.b16 %v1297
        %v4651 = vunpack.c.l.b16 %v1298
        %v4652 = vunpack.c.h.b16 %v1298
        %v4653 = vunpack.c.l.b16 %v1299
        %v4654 = vunpack.c.h.b16 %v1299
        %v4655 = vunpack.c.l.b16 %v1300
        %v4656 = vunpack.c.h.b16 %v1300
        %v4657 = vunpack.c.l.b16 %v1301
        %v4658 = vunpack.c.h.b16 %v1301
        %v4659 = vunpack.c.l.b16 %v1302
        %v4660 = vunpack.c.h.b16 %v1302
        %v4661 = vunpack.c.l.b16 %v1303
        %v4662 = vunpack.c.h.b16 %v1303
        %v4663 = vunpack.c.l.b16 %v1304
        %v4664 = vunpack.c.h.b16 %v1304
        %v4665 = vunpack.c.l.b16 %v1305
        %v4666 = vunpack.c.h.b16 %v1305
        %v4667 = vunpack.c.l.b16 %v1306
        %v4668 = vunpack.c.h.b16 %v1306
        %v4669 = vunpack.c.l.b16 %v1307
        %v4670 = vunpack.c.h.b16 %v1307
        %v4671 = vunpack.c.l.b16 %v1308
        %v4672 = vunpack.c.h.b16 %v1308
        %v4673 = vunpack.c.l.b16 %v1309
        %v4674 = vunpack.c.h.b16 %v1309
        %v4675 = vunpack.c.l.b16 %v1310
        %v4676 = vunpack.c.h.b16 %v1310
        %v4677 = vunpack.c.l.b16 %v1311
        %v4678 = vunpack.c.h.b16 %v1311
        %v4679 = vunpack.c.l.b16 %v1312
        %v4680 = vunpack.c.h.b16 %v1312
        %v4681 = vunpack.c.l.b16 %v1313
        %v4682 = vunpack.c.h.b16 %v1313
        %v4683 = vunpack.c.l.b16 %v1314
        %v4684 = vunpack.c.h.b16 %v1314
        %v4685 = vunpack.c.l.b16 %v1315
        %v4686 = vunpack.c.h.b16 %v1315
        %v4687 = vunpack.c.l.b16 %v1316
        %v4688 = vunpack.c.h.b16 %v1316
        %v4689 = vunpack.c.l.b16 %v1317
        %v4690 = vunpack.c.h.b16 %v1317
        %v4691 = vunpack.c.l.b16 %v1318
        %v4692 = vunpack.c.h.b16 %v1318
        %v4693 = vunpack.c.l.b16 %v1319
        %v4694 = vunpack.c.h.b16 %v1319
        %v4695 = vunpack.c.l.b16 %v1320
        %v4696 = vunpack.c.h.b16 %v1320
        %v4697 = vunpack.c.l.b16 %v1321
        %v4698 = vunpack.c.h.b16 %v1321
        %v4699 = vunpack.c.l.b16 %v1322
        %v4700 = vunpack.c.h.b16 %v1322
        %v4701 = vunpack.c.l.b16 %v1323
        %v4702 = vunpack.c.h.b16 %v1323
        %v4703 = vunpack.c.l.b16 %v1324
        %v4704 = vunpack.c.h.b16 %v1324
        %v4705 = vunpack.c.l.b16 %v1325
        %v4706 = vunpack.c.h.b16 %v1325
        %v4707 = vunpack.c.l.b16 %v1326
        %v4708 = vunpack.c.h.b16 %v1326
        %v4709 = vunpack.c.l.b16 %v1327
        %v4710 = vunpack.c.h.b16 %v1327
        %v4711 = vunpack.c.l.b16 %v1328
        %v4712 = vunpack.c.h.b16 %v1328
        %v4713 = vunpack.c.l.b16 %v1329
        %v4714 = vunpack.c.h.b16 %v1329
        %v4715 = vunpack.c.l.b16 %v1330
        %v4716 = vunpack.c.h.b16 %v1330
        %v4717 = vunpack.c.l.b16 %v1331
        %v4718 = vunpack.c.h.b16 %v1331
        %v4719 = vunpack.c.l.b16 %v1332
        %v4720 = vunpack.c.h.b16 %v1332
        %v4721 = vunpack.c.l.b16 %v1333
        %v4722 = vunpack.c.h.b16 %v1333
        %v4723 = vunpack.c.l.b16 %v1334
        %v4724 = vunpack.c.h.b16 %v1334
        %v4725 = vunpack.c.l.b16 %v1335
        %v4726 = vunpack.c.h.b16 %v1335
        %v4727 = vunpack.c.l.b16 %v1336
        %v4728 = vunpack.c.h.b16 %v1336
        %v4729 = vunpack.c.l.b16 %v1337
        %v4730 = vunpack.c.h.b16 %v1337
        %v4731 = vunpack.c.l.b16 %v1338
        %v4732 = vunpack.c.h.b16 %v1338
        %v4733 = vunpack.c.l.b16 %v1339
        %v4734 = vunpack.c.h.b16 %v1339
        %v4735 = vunpack.c.l.b16 %v1340
        %v4736 = vunpack.c.h.b16 %v1340
        %v4737 = vunpack.c.l.b16 %v1341
        %v4738 = vunpack.c.h.b16 %v1341
        %v4739 = vunpack.c.l.b16 %v1342
        %v4740 = vunpack.c.h.b16 %v1342
        %v4741 = vunpack.c.l.b16 %v1343
        %v4742 = vunpack.c.h.b16 %v1343
        %v4743 = vunpack.c.l.b16 %v1344
        %v4744 = vunpack.c.h.b16 %v1344
        %v4745 = vunpack.c.l.b16 %v1345
        %v4746 = vunpack.c.h.b16 %v1345
        %v4747 = vunpack.c.l.b16 %v1346
        %v4748 = vunpack.c.h.b16 %v1346
        %v4749 = vunpack.c.l.b16 %v1347
        %v4750 = vunpack.c.h.b16 %v1347
        %v4751 = vunpack.c.l.b16 %v1348
        %v4752 = vunpack.c.h.b16 %v1348
        %v4753 = vunpack.c.l.b16 %v1349
        %v4754 = vunpack.c.h.b16 %v1349
        %v4755 = vunpack.c.l.b16 %v1350
        %v4756 = vunpack.c.h.b16 %v1350
        %v4757 = vunpack.c.l.b16 %v1351
        %v4758 = vunpack.c.h.b16 %v1351
        %v4759 = vunpack.c.l.b16 %v1352
        %v4760 = vunpack.c.h.b16 %v1352
        %v4761 = vunpack.c.l.b16 %v1353
        %v4762 = vunpack.c.h.b16 %v1353
        %v4763 = vunpack.c.l.b16 %v1354
        %v4764 = vunpack.c.h.b16 %v1354
        %v4765 = vunpack.c.l.b16 %v1355
        %v4766 = vunpack.c.h.b16 %v1355
        %v4767 = vunpack.c.l.b16 %v1356
        %v4768 = vunpack.c.h.b16 %v1356
        %v4769 = vunpack.c.l.b16 %v1357
        %v4770 = vunpack.c.h.b16 %v1357
        %v4771 = vunpack.c.l.b16 %v1358
        %v4772 = vunpack.c.h.b16 %v1358
        %v4773 = vunpack.c.l.b16 %v1359
        %v4774 = vunpack.c.h.b16 %v1359
        %v4775 = vunpack.c.l.b16 %v1360
        %v4776 = vunpack.c.h.b16 %v1360
        %v4777 = vunpack.c.l.b16 %v1361
        %v4778 = vunpack.c.h.b16 %v1361
        %v4779 = vunpack.c.l.b16 %v1362
        %v4780 = vunpack.c.h.b16 %v1362
        %v4781 = vunpack.c.l.b16 %v1363
        %v4782 = vunpack.c.h.b16 %v1363
        %v4783 = vunpack.c.l.b16 %v1364
        %v4784 = vunpack.c.h.b16 %v1364
        %v4785 = vunpack.c.l.b16 %v1365
        %v4786 = vunpack.c.h.b16 %v1365
        %v4787 = vunpack.c.l.b16 %v1366
        %v4788 = vunpack.c.h.b16 %v1366
        %v4789 = vunpack.c.l.b16 %v1367
        %v4790 = vunpack.c.h.b16 %v1367
        %v4791 = vunpack.c.l.b16 %v1368
        %v4792 = vunpack.c.h.b16 %v1368
        %v4793 = vunpack.c.l.b16 %v1369
        %v4794 = vunpack.c.h.b16 %v1369
        %v4795 = vunpack.c.l.b16 %v1370
        %v4796 = vunpack.c.h.b16 %v1370
        %v4797 = vunpack.c.l.b16 %v1371
        %v4798 = vunpack.c.h.b16 %v1371
        %v4799 = vunpack.c.l.b16 %v1372
        %v4800 = vunpack.c.h.b16 %v1372
        %v4801 = vunpack.c.l.b16 %v1373
        %v4802 = vunpack.c.h.b16 %v1373
        %v4803 = vunpack.c.l.b16 %v1374
        %v4804 = vunpack.c.h.b16 %v1374
        %v4805 = vunpack.c.l.b16 %v1375
        %v4806 = vunpack.c.h.b16 %v1375
        %v4807 = vunpack.c.l.b16 %v1376
        %v4808 = vunpack.c.h.b16 %v1376
        %v4809 = vunpack.c.l.b16 %v1377
        %v4810 = vunpack.c.h.b16 %v1377
        %v4811 = vunpack.c.l.b16 %v1378
        %v4812 = vunpack.c.h.b16 %v1378
        %v4813 = vunpack.c.l.b16 %v1379
        %v4814 = vunpack.c.h.b16 %v1379
        %v4815 = vunpack.c.l.b16 %v1380
        %v4816 = vunpack.c.h.b16 %v1380
        %v4817 = vunpack.c.l.b16 %v1381
        %v4818 = vunpack.c.h.b16 %v1381
        %v4819 = vunpack.c.l.b16 %v1382
        %v4820 = vunpack.c.h.b16 %v1382
        %v4821 = vunpack.c.l.b16 %v1383
        %v4822 = vunpack.c.h.b16 %v1383
        %v4823 = vunpack.c.l.b16 %v1384
        %v4824 = vunpack.c.h.b16 %v1384
        %v4825 = vunpack.c.l.b16 %v1385
        %v4826 = vunpack.c.h.b16 %v1385
        %v4827 = vunpack.c.l.b16 %v1386
        %v4828 = vunpack.c.h.b16 %v1386
        %v4829 = vunpack.c.l.b16 %v1387
        %v4830 = vunpack.c.h.b16 %v1387
        %v4831 = vunpack.c.l.b16 %v1388
        %v4832 = vunpack.c.h.b16 %v1388
        %v4833 = vunpack.c.l.b16 %v1389
        %v4834 = vunpack.c.h.b16 %v1389
        %v4835 = vunpack.c.l.b16 %v1390
        %v4836 = vunpack.c.h.b16 %v1390
        %v4837 = vunpack.c.l.b16 %v1391
        %v4838 = vunpack.c.h.b16 %v1391
        %v4839 = vunpack.c.l.b16 %v1392
        %v4840 = vunpack.c.h.b16 %v1392
        %v4841 = vunpack.c.l.b16 %v1393
        %v4842 = vunpack.c.h.b16 %v1393
        %v4843 = vunpack.c.l.b16 %v1394
        %v4844 = vunpack.c.h.b16 %v1394
        %v4845 = vunpack.c.l.b16 %v1395
        %v4846 = vunpack.c.h.b16 %v1395
        %v4847 = vunpack.c.l.b16 %v1396
        %v4848 = vunpack.c.h.b16 %v1396
        %v4849 = vunpack.c.l.b16 %v1397
        %v4850 = vunpack.c.h.b16 %v1397
        %v4851 = vunpack.c.l.b16 %v1398
        %v4852 = vunpack.c.h.b16 %v1398
        %v4853 = vunpack.c.l.b16 %v1399
        %v4854 = vunpack.c.h.b16 %v1399
        %v4855 = vunpack.c.l.b16 %v1400
        %v4856 = vunpack.c.h.b16 %v1400
        %v4857 = vunpack.c.l.b16 %v1401
        %v4858 = vunpack.c.h.b16 %v1401
        %v4859 = vunpack.c.l.b16 %v1402
        %v4860 = vunpack.c.h.b16 %v1402
        %v4861 = vunpack.c.l.b16 %v1403
        %v4862 = vunpack.c.h.b16 %v1403
        %v4863 = vunpack.c.l.b16 %v1404
        %v4864 = vunpack.c.h.b16 %v1404
        %v4865 = vunpack.c.l.b16 %v1405
        %v4866 = vunpack.c.h.b16 %v1405
        %v4867 = vunpack.c.l.b16 %v1406
        %v4868 = vunpack.c.h.b16 %v1406
        %v4869 = vunpack.c.l.b16 %v1407
        %v4870 = vunpack.c.h.b16 %v1407
        %v4871 = vunpack.c.l.b16 %v1408
        %v4872 = vunpack.c.h.b16 %v1408
        %v4873 = vunpack.c.l.b16 %v1409
        %v4874 = vunpack.c.h.b16 %v1409
        %v4875 = vunpack.c.l.b16 %v1410
        %v4876 = vunpack.c.h.b16 %v1410
        %v4877 = vunpack.c.l.b16 %v1411
        %v4878 = vunpack.c.h.b16 %v1411
        %v4879 = vunpack.c.l.b16 %v1412
        %v4880 = vunpack.c.h.b16 %v1412
        %v4881 = vunpack.c.l.b16 %v1413
        %v4882 = vunpack.c.h.b16 %v1413
        %v4883 = vunpack.c.l.b16 %v1414
        %v4884 = vunpack.c.h.b16 %v1414
        %v4885 = vunpack.c.l.b16 %v1415
        %v4886 = vunpack.c.h.b16 %v1415
        %v4887 = vunpack.c.l.b16 %v1416
        %v4888 = vunpack.c.h.b16 %v1416
        %v4889 = vunpack.c.l.b16 %v1417
        %v4890 = vunpack.c.h.b16 %v1417
        %v4891 = vunpack.c.l.b16 %v1418
        %v4892 = vunpack.c.h.b16 %v1418
        %v4893 = vunpack.c.l.b16 %v1419
        %v4894 = vunpack.c.h.b16 %v1419
        %v4895 = vunpack.c.l.b16 %v1420
        %v4896 = vunpack.c.h.b16 %v1420
        %v4897 = vunpack.c.l.b16 %v1421
        %v4898 = vunpack.c.h.b16 %v1421
        %v4899 = vunpack.c.l.b16 %v1422
        %v4900 = vunpack.c.h.b16 %v1422
        %v4901 = vunpack.c.l.b16 %v1423
        %v4902 = vunpack.c.h.b16 %v1423
        %v4903 = vunpack.c.l.b16 %v1424
        %v4904 = vunpack.c.h.b16 %v1424
        %v4905 = vunpack.c.l.b16 %v1425
        %v4906 = vunpack.c.h.b16 %v1425
        %v4907 = vunpack.c.l.b16 %v1426
        %v4908 = vunpack.c.h.b16 %v1426
        %v4909 = vunpack.c.l.b16 %v1427
        %v4910 = vunpack.c.h.b16 %v1427
        %v4911 = vunpack.c.l.b16 %v1428
        %v4912 = vunpack.c.h.b16 %v1428
        %v4913 = vunpack.c.l.b16 %v1429
        %v4914 = vunpack.c.h.b16 %v1429
        %v4915 = vunpack.c.l.b16 %v1430
        %v4916 = vunpack.c.h.b16 %v1430
        %v4917 = vunpack.c.l.b16 %v1431
        %v4918 = vunpack.c.h.b16 %v1431
        %v4919 = vunpack.c.l.b16 %v1432
        %v4920 = vunpack.c.h.b16 %v1432
        %v4921 = vunpack.c.l.b16 %v1433
        %v4922 = vunpack.c.h.b16 %v1433
        %v4923 = vunpack.c.l.b16 %v1434
        %v4924 = vunpack.c.h.b16 %v1434
        %v4925 = vunpack.c.l.b16 %v1435
        %v4926 = vunpack.c.h.b16 %v1435
        %v4927 = vunpack.c.l.b16 %v1436
        %v4928 = vunpack.c.h.b16 %v1436
        %v4929 = vunpack.c.l.b16 %v1437
        %v4930 = vunpack.c.h.b16 %v1437
        %v4931 = vunpack.c.l.b16 %v1438
        %v4932 = vunpack.c.h.b16 %v1438
        %v4933 = vunpack.c.l.b16 %v1439
        %v4934 = vunpack.c.h.b16 %v1439
        %v4935 = vunpack.c.l.b16 %v1440
        %v4936 = vunpack.c.h.b16 %v1440
        %v4937 = vunpack.c.l.b16 %v1441
        %v4938 = vunpack.c.h.b16 %v1441
        %v4939 = vunpack.c.l.b16 %v1442
        %v4940 = vunpack.c.h.b16 %v1442
        %v4941 = vunpack.c.l.b16 %v1443
        %v4942 = vunpack.c.h.b16 %v1443
        %v4943 = vunpack.c.l.b16 %v1444
        %v4944 = vunpack.c.h.b16 %v1444
        %v4945 = vunpack.c.l.b16 %v1445
        %v4946 = vunpack.c.h.b16 %v1445
        %v4947 = vunpack.c.l.b16 %v1446
        %v4948 = vunpack.c.h.b16 %v1446
        %v4949 = vunpack.c.l.b16 %v1447
        %v4950 = vunpack.c.h.b16 %v1447
        %v4951 = vunpack.c.l.b16 %v1448
        %v4952 = vunpack.c.h.b16 %v1448
        %v4953 = vunpack.c.l.b16 %v1449
        %v4954 = vunpack.c.h.b16 %v1449
        %v4955 = vunpack.c.l.b16 %v1450
        %v4956 = vunpack.c.h.b16 %v1450
        %v4957 = vunpack.c.l.b16 %v1451
        %v4958 = vunpack.c.h.b16 %v1451
        %v4959 = vunpack.c.l.b16 %v1452
        %v4960 = vunpack.c.h.b16 %v1452
        %v4961 = vunpack.c.l.b16 %v1453
        %v4962 = vunpack.c.h.b16 %v1453
        %v4963 = vunpack.c.l.b16 %v1454
        %v4964 = vunpack.c.h.b16 %v1454
        %v4965 = vunpack.c.l.b16 %v1455
        %v4966 = vunpack.c.h.b16 %v1455
        %v4967 = vunpack.c.l.b16 %v1456
        %v4968 = vunpack.c.h.b16 %v1456
        %v4969 = vunpack.c.l.b16 %v1457
        %v4970 = vunpack.c.h.b16 %v1457
        %v4971 = vunpack.c.l.b16 %v1458
        %v4972 = vunpack.c.h.b16 %v1458
        %v4973 = vunpack.c.l.b16 %v1459
        %v4974 = vunpack.c.h.b16 %v1459
        %v4975 = vunpack.c.l.b16 %v1460
        %v4976 = vunpack.c.h.b16 %v1460
        %v4977 = vunpack.c.l.b16 %v1461
        %v4978 = vunpack.c.h.b16 %v1461
        %v4979 = vunpack.c.l.b16 %v1462
        %v4980 = vunpack.c.h.b16 %v1462
        %v4981 = vunpack.c.l.b16 %v1463
        %v4982 = vunpack.c.h.b16 %v1463
        %v4983 = vunpack.c.l.b16 %v1464
        %v4984 = vunpack.c.h.b16 %v1464
        %v4985 = vunpack.c.l.b16 %v1465
        %v4986 = vunpack.c.h.b16 %v1465
        %v4987 = vunpack.c.l.b16 %v1466
        %v4988 = vunpack.c.h.b16 %v1466
        %v4989 = vunpack.c.l.b16 %v1467
        %v4990 = vunpack.c.h.b16 %v1467
        %v4991 = vunpack.c.l.b16 %v1468
        %v4992 = vunpack.c.h.b16 %v1468
        %v4993 = vunpack.c.l.b16 %v1469
        %v4994 = vunpack.c.h.b16 %v1469
        %v4995 = vunpack.c.l.b16 %v1470
        %v4996 = vunpack.c.h.b16 %v1470
        %v4997 = vunpack.c.l.b16 %v1471
        %v4998 = vunpack.c.h.b16 %v1471
        %v4999 = vunpack.c.l.b16 %v1472
        %v5000 = vunpack.c.h.b16 %v1472
        %v5001 = vunpack.c.l.b16 %v1473
        %v5002 = vunpack.c.h.b16 %v1473
        %v5003 = vunpack.c.l.b16 %v1474
        %v5004 = vunpack.c.h.b16 %v1474
        %v5005 = vunpack.c.l.b16 %v1475
        %v5006 = vunpack.c.h.b16 %v1475
        %v5007 = vunpack.c.l.b16 %v1476
        %v5008 = vunpack.c.h.b16 %v1476
        %v5009 = vunpack.c.l.b16 %v1477
        %v5010 = vunpack.c.h.b16 %v1477
        %v5011 = vunpack.c.l.b16 %v1478
        %v5012 = vunpack.c.h.b16 %v1478
        %v5013 = vpack.c.b16 %v2801, %v2773
        %v5014 = vpack.c.b16 %v2802, %v2774
        %v5015 = vpack.c.b16 %v2803, %v2775
        %v5016 = vpack.c.b16 %v2804, %v2776
        %v5017 = vpack.c.b16 %v2805, %v2777
        %v5018 = vpack.c.b16 %v2806, %v2778
        %v5019 = vpack.c.b16 %v2807, %v2779
        %v5020 = vpack.c.b16 %v2808, %v2780
        %v5021 = vpack.c.b16 %v2809, %v2781
        %v5022 = vpack.c.b16 %v2810, %v2782
        %v5023 = vpack.c.b16 %v2811, %v2783
        %v5024 = vpack.c.b16 %v2812, %v2784
        %v5025 = vpack.c.b16 %v2813, %v2785
        %v5026 = vpack.c.b16 %v2814, %v2786
        %v5027 = vpack.c.b16 %v2815, %v2787
        %v5028 = vpack.c.b16 %v2816, %v2788
        %v5029 = vpack.c.b16 %v2817, %v2789
        %v5030 = vpack.c.b16 %v2818, %v2790
        %v5031 = vpack.c.b16 %v2819, %v2791
        %v5032 = vpack.c.b16 %v2820, %v2792
        %v5033 = vpack.c.b16 %v2821, %v2793
        %v5034 = vpack.c.b16 %v2822, %v2794
        %v5035 = vpack.c.b16 %v2823, %v2795
        %v5036 = vpack.c.b16 %v2824, %v2796
        %v5037 = vpack.c.b16 %v2825, %v2797
        %v5038 = vpack.c.b16 %v2826, %v2798
        %v5039 = vpack.c.b16 %v2827, %v2799
        %v5040 = vpack.c.b16 %v2828, %v2800
        %v5041 = vpack.c.b16 %v2857, %v2829
        %v5042 = vpack.c.b16 %v2858, %v2830
        %v5043 = vpack.c.b16 %v2859, %v2831
        %v5044 = vpack.c.b16 %v2860, %v2832
        %v5045 = vpack.c.b16 %v2861, %v2833
        %v5046 = vpack.c.b16 %v2862, %v2834
        %v5047 = vpack.c.b16 %v2863, %v2835
        %v5048 = vpack.c.b16 %v2864, %v2836
        %v5049 = vpack.c.b16 %v2865, %v2837
        %v5050 = vpack.c.b16 %v2866, %v2838
        %v5051 = vpack.c.b16 %v2867, %v2839
        %v5052 = vpack.c.b16 %v2868, %v2840
        %v5053 = vpack.c.b16 %v2869, %v2841
        %v5054 = vpack.c.b16 %v2870, %v2842
        %v5055 = vpack.c.b16 %v2871, %v2843
        %v5056 = vpack.c.b16 %v2872, %v2844
        %v5057 = vpack.c.b16 %v2873, %v2845
        %v5058 = vpack.c.b16 %v2874, %v2846
        %v5059 = vpack.c.b16 %v2875, %v2847
        %v5060 = vpack.c.b16 %v2876, %v2848
        %v5061 = vpack.c.b16 %v2877, %v2849
        %v5062 = vpack.c.b16 %v2878, %v2850
        %v5063 = vpack.c.b16 %v2879, %v2851
        %v5064 = vpack.c.b16 %v2880, %v2852
        %v5065 = vpack.c.b16 %v2881, %v2853
        %v5066 = vpack.c.b16 %v2882, %v2854
        %v5067 = vpack.c.b16 %v2883, %v2855
        %v5068 = vpack.c.b16 %v2884, %v2856
        %v5069 = vpack.c.b16 %v2913, %v2885
        %v5070 = vpack.c.b16 %v2914, %v2886
        %v5071 = vpack.c.b16 %v2915, %v2887
        %v5072 = vpack.c.b16 %v2916, %v2888
        %v5073 = vpack.c.b16 %v2917, %v2889
        %v5074 = vpack.c.b16 %v2918, %v2890
        %v5075 = vpack.c.b16 %v2919, %v2891
        %v5076 = vpack.c.b16 %v2920, %v2892
        %v5077 = vpack.c.b16 %v2921, %v2893
        %v5078 = vpack.c.b16 %v2922, %v2894
        %v5079 = vpack.c.b16 %v2923, %v2895
        %v5080 = vpack.c.b16 %v2924, %v2896
        %v5081 = vpack.c.b16 %v2925, %v2897
        %v5082 = vpack.c.b16 %v2926, %v2898
        %v5083 = vpack.c.b16 %v2927, %v2899
        %v5084 = vpack.c.b16 %v2928, %v2900
        %v5085 = vpack.c.b16 %v2929, %v2901
        %v5086 = vpack.c.b16 %v2930, %v2902
        %v5087 = vpack.c.b16 %v2931, %v2903
        %v5088 = vpack.c.b16 %v2932, %v2904
        %v5089 = vpack.c.b16 %v2933, %v2905
        %v5090 = vpack.c.b16 %v2934, %v2906
        %v5091 = vpack.c.b16 %v2935, %v2907
        %v5092 = vpack.c.b16 %v2936, %v2908
        %v5093 = vpack.c.b16 %v2937, %v2909
        %v5094 = vpack.c.b16 %v2938, %v2910
        %v5095 = vpack.c.b16 %v2939, %v2911
        %v5096 = vpack.c.b16 %v2940, %v2912
        %v5097 = vpack.c.b16 %v2969, %v2941
        %v5098 = vpack.c.b16 %v2970, %v2942
        %v5099 = vpack.c.b16 %v2971, %v2943
        %v5100 = vpack.c.b16 %v2972, %v2944
        %v5101 = vpack.c.b16 %v2973, %v2945
        %v5102 = vpack.c.b16 %v2974, %v2946
        %v5103 = vpack.c.b16 %v2975, %v2947
        %v5104 = vpack.c.b16 %v2976, %v2948
        %v5105 = vpack.c.b16 %v2977, %v2949
        %v5106 = vpack.c.b16 %v2978, %v2950
        %v5107 = vpack.c.b16 %v2979, %v2951
        %v5108 = vpack.c.b16 %v2980, %v2952
        %v5109 = vpack.c.b16 %v2981, %v2953
        %v5110 = vpack.c.b16 %v2982, %v2954
        %v5111 = vpack.c.b16 %v2983, %v2955
        %v5112 = vpack.c.b16 %v2984, %v2956
        %v5113 = vpack.c.b16 %v2985, %v2957
        %v5114 = vpack.c.b16 %v2986, %v2958
        %v5115 = vpack.c.b16 %v2987, %v2959
        %v5116 = vpack.c.b16 %v2988, %v2960
        %v5117 = vpack.c.b16 %v2989, %v2961
        %v5118 = vpack.c.b16 %v2990, %v2962
        %v5119 = vpack.c.b16 %v2991, %v2963
        %v5120 = vpack.c.b16 %v2992, %v2964
        %v5121 = vpack.c.b16 %v2993, %v2965
        %v5122 = vpack.c.b16 %v2994, %v2966
        %v5123 = vpack.c.b16 %v2995, %v2967
        %v5124 = vpack.c.b16 %v2996, %v2968
        %v5125 = vpack.c.b16 %v3025, %v2997
        %v5126 = vpack.c.b16 %v3026, %v2998
        %v5127 = vpack.c.b16 %v3027, %v2999
        %v5128 = vpack.c.b16 %v3028, %v3000
        %v5129 = vpack.c.b16 %v3029, %v3001
        %v5130 = vpack.c.b16 %v3030, %v3002
        %v5131 = vpack.c.b16 %v3031, %v3003
        %v5132 = vpack.c.b16 %v3032, %v3004
        %v5133 = vpack.c.b16 %v3033, %v3005
        %v5134 = vpack.c.b16 %v3034, %v3006
        %v5135 = vpack.c.b16 %v3035, %v3007
        %v5136 = vpack.c.b16 %v3036, %v3008
        %v5137 = vpack.c.b16 %v3037, %v3009
        %v5138 = vpack.c.b16 %v3038, %v3010
        %v5139 = vpack.c.b16 %v3039, %v3011
        %v5140 = vpack.c.b16 %v3040, %v3012
        %v5141 = vpack.c.b16 %v3041, %v3013
        %v5142 = vpack.c.b16 %v3042, %v3014
        %v5143 = vpack.c.b16 %v3043, %v3015
        %v5144 = vpack.c.b16 %v3044, %v3016
        %v5145 = vpack.c.b16 %v3045, %v3017
        %v5146 = vpack.c.b16 %v3046, %v3018
        %v5147 = vpack.c.b16 %v3047, %v3019
        %v5148 = vpack.c.b16 %v3048, %v3020
        %v5149 = vpack.c.b16 %v3049, %v3021
        %v5150 = vpack.c.b16 %v3050, %v3022
        %v5151 = vpack.c.b16 %v3051, %v3023
        %v5152 = vpack.c.b16 %v3052, %v3024
        %v5153 = vpack.c.b16 %v3081, %v3053
        %v5154 = vpack.c.b16 %v3082, %v3054
        %v5155 = vpack.c.b16 %v3083, %v3055
        %v5156 = vpack.c.b16 %v3084, %v3056
        %v5157 = vpack.c.b16 %v3085, %v3057
        %v5158 = vpack.c.b16 %v3086, %v3058
        %v5159 = vpack.c.b16 %v3087, %v3059
        %v5160 = vpack.c.b16 %v3088, %v3060
        %v5161 = vpack.c.b16 %v3089, %v3061
        %v5162 = vpack.c.b16 %v3090, %v3062
        %v5163 = vpack.c.b16 %v3091, %v3063
        %v5164 = vpack.c.b16 %v3092, %v3064
        %v5165 = vpack.c.b16 %v3093, %v3065
        %v5166 = vpack.c.b16 %v3094, %v3066
        %v5167 = vpack.c.b16 %v3095, %v3067
        %v5168 = vpack.c.b16 %v3096, %v3068
        %v5169 = vpack.c.b16 %v3097, %v3069
        %v5170 = vpack.c.b16 %v3098, %v3070
        %v5171 = vpack.c.b16 %v3099, %v3071
        %v5172 = vpack.c.b16 %v3100, %v3072
        %v5173 = vpack.c.b16 %v3101, %v3073
        %v5174 = vpack.c.b16 %v3102, %v3074
        %v5175 = vpack.c.b16 %v3103, %v3075
        %v5176 = vpack.c.b16 %v3104, %v3076
        %v5177 = vpack.c.b16 %v3105, %v3077
        %v5178 = vpack.c.b16 %v3106, %v3078
        %v5179 = vpack.c.b16 %v3107, %v3079
        %v5180 = vpack.c.b16 %v3108, %v3080
        %v5181 = vpack.c.b16 %v3137, %v3109
        %v5182 = vpack.c.b16 %v3138, %v3110
        %v5183 = vpack.c.b16 %v3139, %v3111
        %v5184 = vpack.c.b16 %v3140, %v3112
        %v5185 = vpack.c.b16 %v3141, %v3113
        %v5186 = vpack.c.b16 %v3142, %v3114
        %v5187 = vpack.c.b16 %v3143, %v3115
        %v5188 = vpack.c.b16 %v3144, %v3116
        %v5189 = vpack.c.b16 %v3145, %v3117
        %v5190 = vpack.c.b16 %v3146, %v3118
        %v5191 = vpack.c.b16 %v3147, %v3119
        %v5192 = vpack.c.b16 %v3148, %v3120
        %v5193 = vpack.c.b16 %v3149, %v3121
        %v5194 = vpack.c.b16 %v3150, %v3122
        %v5195 = vpack.c.b16 %v3151, %v3123
        %v5196 = vpack.c.b16 %v3152, %v3124
        %v5197 = vpack.c.b16 %v3153, %v3125
        %v5198 = vpack.c.b16 %v3154, %v3126
        %v5199 = vpack.c.b16 %v3155, %v3127
        %v5200 = vpack.c.b16 %v3156, %v3128
        %v5201 = vpack.c.b16 %v3157, %v3129
        %v5202 = vpack.c.b16 %v3158, %v3130
        %v5203 = vpack.c.b16 %v3159, %v3131
        %v5204 = vpack.c.b16 %v3160, %v3132
        %v5205 = vpack.c.b16 %v3161, %v3133
        %v5206 = vpack.c.b16 %v3162, %v3134
        %v5207 = vpack.c.b16 %v3163, %v3135
        %v5208 = vpack.c.b16 %v3164, %v3136
        %v5209 = vpack.c.b16 %v3193, %v3165
        %v5210 = vpack.c.b16 %v3194, %v3166
        %v5211 = vpack.c.b16 %v3195, %v3167
        %v5212 = vpack.c.b16 %v3196, %v3168
        %v5213 = vpack.c.b16 %v3197, %v3169
        %v5214 = vpack.c.b16 %v3198, %v3170
        %v5215 = vpack.c.b16 %v3199, %v3171
        %v5216 = vpack.c.b16 %v3200, %v3172
        %v5217 = vpack.c.b16 %v3201, %v3173
        %v5218 = vpack.c.b16 %v3202, %v3174
        %v5219 = vpack.c.b16 %v3203, %v3175
        %v5220 = vpack.c.b16 %v3204, %v3176
        %v5221 = vpack.c.b16 %v3205, %v3177
        %v5222 = vpack.c.b16 %v3206, %v3178
        %v5223 = vpack.c.b16 %v3207, %v3179
        %v5224 = vpack.c.b16 %v3208, %v3180
        %v5225 = vpack.c.b16 %v3209, %v3181
        %v5226 = vpack.c.b16 %v3210, %v3182
        %v5227 = vpack.c.b16 %v3211, %v3183
        %v5228 = vpack.c.b16 %v3212, %v3184
        %v5229 = vpack.c.b16 %v3213, %v3185
        %v5230 = vpack.c.b16 %v3214, %v3186
        %v5231 = vpack.c.b16 %v3215, %v3187
        %v5232 = vpack.c.b16 %v3216, %v3188
        %v5233 = vpack.c.b16 %v3217, %v3189
        %v5234 = vpack.c.b16 %v3218, %v3190
        %v5235 = vpack.c.b16 %v3219, %v3191
        %v5236 = vpack.c.b16 %v3220, %v3192
        %v5237 = vpack.c.b16 %v3249, %v3221
        %v5238 = vpack.c.b16 %v3250, %v3222
        %v5239 = vpack.c.b16 %v3251, %v3223
        %v5240 = vpack.c.b16 %v3252, %v3224
        %v5241 = vpack.c.b16 %v3253, %v3225
        %v5242 = vpack.c.b16 %v3254, %v3226
        %v5243 = vpack.c.b16 %v3255, %v3227
        %v5244 = vpack.c.b16 %v3256, %v3228
        %v5245 = vpack.c.b16 %v3257, %v3229
        %v5246 = vpack.c.b16 %v3258, %v3230
        %v5247 = vpack.c.b16 %v3259, %v3231
        %v5248 = vpack.c.b16 %v3260, %v3232
        %v5249 = vpack.c.b16 %v3261, %v3233
        %v5250 = vpack.c.b16 %v3262, %v3234
        %v5251 = vpack.c.b16 %v3263, %v3235
        %v5252 = vpack.c.b16 %v3264, %v3236
        %v5253 = vpack.c.b16 %v3265, %v3237
        %v5254 = vpack.c.b16 %v3266, %v3238
        %v5255 = vpack.c.b16 %v3267, %v3239
        %v5256 = vpack.c.b16 %v3268, %v3240
        %v5257 = vpack.c.b16 %v3269, %v3241
        %v5258 = vpack.c.b16 %v3270, %v3242
        %v5259 = vpack.c.b16 %v3271, %v3243
        %v5260 = vpack.c.b16 %v3272, %v3244
        %v5261 = vpack.c.b16 %v3273, %v3245
        %v5262 = vpack.c.b16 %v3274, %v3246
        %v5263 = vpack.c.b16 %v3275, %v3247
        %v5264 = vpack.c.b16 %v3276, %v3248
        %v5265 = vpack.c.b16 %v3305, %v3277
        %v5266 = vpack.c.b16 %v3306, %v3278
        %v5267 = vpack.c.b16 %v3307, %v3279
        %v5268 = vpack.c.b16 %v3308, %v3280
        %v5269 = vpack.c.b16 %v3309, %v3281
        %v5270 = vpack.c.b16 %v3310, %v3282
        %v5271 = vpack.c.b16 %v3311, %v3283
        %v5272 = vpack.c.b16 %v3312, %v3284
        %v5273 = vpack.c.b16 %v3313, %v3285
        %v5274 = vpack.c.b16 %v3314, %v3286
        %v5275 = vpack.c.b16 %v3315, %v3287
        %v5276 = vpack.c.b16 %v3316, %v3288
        %v5277 = vpack.c.b16 %v3317, %v3289
        %v5278 = vpack.c.b16 %v3318, %v3290
        %v5279 = vpack.c.b16 %v3319, %v3291
        %v5280 = vpack.c.b16 %v3320, %v3292
        %v5281 = vpack.c.b16 %v3321, %v3293
        %v5282 = vpack.c.b16 %v3322, %v3294
        %v5283 = vpack.c.b16 %v3323, %v3295
        %v5284 = vpack.c.b16 %v3324, %v3296
        %v5285 = vpack.c.b16 %v3325, %v3297
        %v5286 = vpack.c.b16 %v3326, %v3298
        %v5287 = vpack.c.b16 %v3327, %v3299
        %v5288 = vpack.c.b16 %v3328, %v3300
        %v5289 = vpack.c.b16 %v3329, %v3301
        %v5290 = vpack.c.b16 %v3330, %v3302
        %v5291 = vpack.c.b16 %v3331, %v3303
        %v5292 = vpack.c.b16 %v3332, %v3304
        %v5293 = vpack.c.b16 %v3361, %v3333
        %v5294 = vpack.c.b16 %v3362, %v3334
        %v5295 = vpack.c.b16 %v3363, %v3335
        %v5296 = vpack.c.b16 %v3364, %v3336
        %v5297 = vpack.c.b16 %v3365, %v3337
        %v5298 = vpack.c.b16 %v3366, %v3338
        %v5299 = vpack.c.b16 %v3367, %v3339
        %v5300 = vpack.c.b16 %v3368, %v3340
        %v5301 = vpack.c.b16 %v3369, %v3341
        %v5302 = vpack.c.b16 %v3370, %v3342
        %v5303 = vpack.c.b16 %v3371, %v3343
        %v5304 = vpack.c.b16 %v3372, %v3344
        %v5305 = vpack.c.b16 %v3373, %v3345
        %v5306 = vpack.c.b16 %v3374, %v3346
        %v5307 = vpack.c.b16 %v3375, %v3347
        %v5308 = vpack.c.b16 %v3376, %v3348
        %v5309 = vpack.c.b16 %v3377, %v3349
        %v5310 = vpack.c.b16 %v3378, %v3350
        %v5311 = vpack.c.b16 %v3379, %v3351
        %v5312 = vpack.c.b16 %v3380, %v3352
        %v5313 = vpack.c.b16 %v3381, %v3353
        %v5314 = vpack.c.b16 %v3382, %v3354
        %v5315 = vpack.c.b16 %v3383, %v3355
        %v5316 = vpack.c.b16 %v3384, %v3356
        %v5317 = vpack.c.b16 %v3385, %v3357
        %v5318 = vpack.c.b16 %v3386, %v3358
        %v5319 = vpack.c.b16 %v3387, %v3359
        %v5320 = vpack.c.b16 %v3388, %v3360
        %v5321 = vpack.c.b16 %v3417, %v3389
        %v5322 = vpack.c.b16 %v3418, %v3390
        %v5323 = vpack.c.b16 %v3419, %v3391
        %v5324 = vpack.c.b16 %v3420, %v3392
        %v5325 = vpack.c.b16 %v3421, %v3393
        %v5326 = vpack.c.b16 %v3422, %v3394
        %v5327 = vpack.c.b16 %v3423, %v3395
        %v5328 = vpack.c.b16 %v3424, %v3396
        %v5329 = vpack.c.b16 %v3425, %v3397
        %v5330 = vpack.c.b16 %v3426, %v3398
        %v5331 = vpack.c.b16 %v3427, %v3399
        %v5332 = vpack.c.b16 %v3428, %v3400
        %v5333 = vpack.c.b16 %v3429, %v3401
        %v5334 = vpack.c.b16 %v3430, %v3402
        %v5335 = vpack.c.b16 %v3431, %v3403
        %v5336 = vpack.c.b16 %v3432, %v3404
        %v5337 = vpack.c.b16 %v3433, %v3405
        %v5338 = vpack.c.b16 %v3434, %v3406
        %v5339 = vpack.c.b16 %v3435, %v3407
        %v5340 = vpack.c.b16 %v3436, %v3408
        %v5341 = vpack.c.b16 %v3437, %v3409
        %v5342 = vpack.c.b16 %v3438, %v3410
        %v5343 = vpack.c.b16 %v3439, %v3411
        %v5344 = vpack.c.b16 %v3440, %v3412
        %v5345 = vpack.c.b16 %v3441, %v3413
        %v5346 = vpack.c.b16 %v3442, %v3414
        %v5347 = vpack.c.b16 %v3443, %v3415
        %v5348 = vpack.c.b16 %v3444, %v3416
        %v5349 = vpack.c.b16 %v3473, %v3445
        %v5350 = vpack.c.b16 %v3474, %v3446
        %v5351 = vpack.c.b16 %v3475, %v3447
        %v5352 = vpack.c.b16 %v3476, %v3448
        %v5353 = vpack.c.b16 %v3477, %v3449
        %v5354 = vpack.c.b16 %v3478, %v3450
        %v5355 = vpack.c.b16 %v3479, %v3451
        %v5356 = vpack.c.b16 %v3480, %v3452
        %v5357 = vpack.c.b16 %v3481, %v3453
        %v5358 = vpack.c.b16 %v3482, %v3454
        %v5359 = vpack.c.b16 %v3483, %v3455
        %v5360 = vpack.c.b16 %v3484, %v3456
        %v5361 = vpack.c.b16 %v3485, %v3457
        %v5362 = vpack.c.b16 %v3486, %v3458
        %v5363 = vpack.c.b16 %v3487, %v3459
        %v5364 = vpack.c.b16 %v3488, %v3460
        %v5365 = vpack.c.b16 %v3489, %v3461
        %v5366 = vpack.c.b16 %v3490, %v3462
        %v5367 = vpack.c.b16 %v3491, %v3463
        %v5368 = vpack.c.b16 %v3492, %v3464
        %v5369 = vpack.c.b16 %v3493, %v3465
        %v5370 = vpack.c.b16 %v3494, %v3466
        %v5371 = vpack.c.b16 %v3495, %v3467
        %v5372 = vpack.c.b16 %v3496, %v3468
        %v5373 = vpack.c.b16 %v3497, %v3469
        %v5374 = vpack.c.b16 %v3498, %v3470
        %v5375 = vpack.c.b16 %v3499, %v3471
        %v5376 = vpack.c.b16 %v3500, %v3472
        %v5377 = vpack.c.b16 %v3529, %v3501
        %v5378 = vpack.c.b16 %v3530, %v3502
        %v5379 = vpack.c.b16 %v3531, %v3503
        %v5380 = vpack.c.b16 %v3532, %v3504
        %v5381 = vpack.c.b16 %v3533, %v3505
        %v5382 = vpack.c.b16 %v3534, %v3506
        %v5383 = vpack.c.b16 %v3535, %v3507
        %v5384 = vpack.c.b16 %v3536, %v3508
        %v5385 = vpack.c.b16 %v3537, %v3509
        %v5386 = vpack.c.b16 %v3538, %v3510
        %v5387 = vpack.c.b16 %v3539, %v3511
        %v5388 = vpack.c.b16 %v3540, %v3512
        %v5389 = vpack.c.b16 %v3541, %v3513
        %v5390 = vpack.c.b16 %v3542, %v3514
        %v5391 = vpack.c.b16 %v3543, %v3515
        %v5392 = vpack.c.b16 %v3544, %v3516
        %v5393 = vpack.c.b16 %v3545, %v3517
        %v5394 = vpack.c.b16 %v3546, %v3518
        %v5395 = vpack.c.b16 %v3547, %v3519
        %v5396 = vpack.c.b16 %v3548, %v3520
        %v5397 = vpack.c.b16 %v3549, %v3521
        %v5398 = vpack.c.b16 %v3550, %v3522
        %v5399 = vpack.c.b16 %v3551, %v3523
        %v5400 = vpack.c.b16 %v3552, %v3524
        %v5401 = vpack.c.b16 %v3553, %v3525
        %v5402 = vpack.c.b16 %v3554, %v3526
        %v5403 = vpack.c.b16 %v3555, %v3527
        %v5404 = vpack.c.b16 %v3556, %v3528
        %v5405 = vpack.c.b16 %v3585, %v3557
        %v5406 = vpack.c.b16 %v3586, %v3558
        %v5407 = vpack.c.b16 %v3587, %v3559
        %v5408 = vpack.c.b16 %v3588, %v3560
        %v5409 = vpack.c.b16 %v3589, %v3561
        %v5410 = vpack.c.b16 %v3590, %v3562
        %v5411 = vpack.c.b16 %v3591, %v3563
        %v5412 = vpack.c.b16 %v3592, %v3564
        %v5413 = vpack.c.b16 %v3593, %v3565
        %v5414 = vpack.c.b16 %v3594, %v3566
        %v5415 = vpack.c.b16 %v3595, %v3567
        %v5416 = vpack.c.b16 %v3596, %v3568
        %v5417 = vpack.c.b16 %v3597, %v3569
        %v5418 = vpack.c.b16 %v3598, %v3570
        %v5419 = vpack.c.b16 %v3599, %v3571
        %v5420 = vpack.c.b16 %v3600, %v3572
        %v5421 = vpack.c.b16 %v3601, %v3573
        %v5422 = vpack.c.b16 %v3602, %v3574
        %v5423 = vpack.c.b16 %v3603, %v3575
        %v5424 = vpack.c.b16 %v3604, %v3576
        %v5425 = vpack.c.b16 %v3605, %v3577
        %v5426 = vpack.c.b16 %v3606, %v3578
        %v5427 = vpack.c.b16 %v3607, %v3579
        %v5428 = vpack.c.b16 %v3608, %v3580
        %v5429 = vpack.c.b16 %v3609, %v3581
        %v5430 = vpack.c.b16 %v3610, %v3582
        %v5431 = vpack.c.b16 %v3611, %v3583
        %v5432 = vpack.c.b16 %v3612, %v3584
        %v5433 = vpack.c.b16 %v3641, %v3613
        %v5434 = vpack.c.b16 %v3642, %v3614
        %v5435 = vpack.c.b16 %v3643, %v3615
        %v5436 = vpack.c.b16 %v3644, %v3616
        %v5437 = vpack.c.b16 %v3645, %v3617
        %v5438 = vpack.c.b16 %v3646, %v3618
        %v5439 = vpack.c.b16 %v3647, %v3619
        %v5440 = vpack.c.b16 %v3648, %v3620
        %v5441 = vpack.c.b16 %v3649, %v3621
        %v5442 = vpack.c.b16 %v3650, %v3622
        %v5443 = vpack.c.b16 %v3651, %v3623
        %v5444 = vpack.c.b16 %v3652, %v3624
        %v5445 = vpack.c.b16 %v3653, %v3625
        %v5446 = vpack.c.b16 %v3654, %v3626
        %v5447 = vpack.c.b16 %v3655, %v3627
        %v5448 = vpack.c.b16 %v3656, %v3628
        %v5449 = vpack.c.b16 %v3657, %v3629
        %v5450 = vpack.c.b16 %v3658, %v3630
        %v5451 = vpack.c.b16 %v3659, %v3631
        %v5452 = vpack.c.b16 %v3660, %v3632
        %v5453 = vpack.c.b16 %v3661, %v3633
        %v5454 = vpack.c.b16 %v3662, %v3634
        %v5455 = vpack.c.b16 %v3663, %v3635
        %v5456 = vpack.c.b16 %v3664, %v3636
        %v5457 = vpack.c.b16 %v3665, %v3637
        %v5458 = vpack.c.b16 %v3666, %v3638
        %v5459 = vpack.c.b16 %v3667, %v3639
        %v5460 = vpack.c.b16 %v3668, %v3640
        %v5461 = vpack.c.b16 %v3697, %v3669
        %v5462 = vpack.c.b16 %v3698, %v3670
        %v5463 = vpack.c.b16 %v3699, %v3671
        %v5464 = vpack.c.b16 %v3700, %v3672
        %v5465 = vpack.c.b16 %v3701, %v3673
        %v5466 = vpack.c.b16 %v3702, %v3674
        %v5467 = vpack.c.b16 %v3703, %v3675
        %v5468 = vpack.c.b16 %v3704, %v3676
        %v5469 = vpack.c.b16 %v3705, %v3677
        %v5470 = vpack.c.b16 %v3706, %v3678
        %v5471 = vpack.c.b16 %v3707, %v3679
        %v5472 = vpack.c.b16 %v3708, %v3680
        %v5473 = vpack.c.b16 %v3709, %v3681
        %v5474 = vpack.c.b16 %v3710, %v3682
        %v5475 = vpack.c.b16 %v3711, %v3683
        %v5476 = vpack.c.b16 %v3712, %v3684
        %v5477 = vpack.c.b16 %v3713, %v3685
        %v5478 = vpack.c.b16 %v3714, %v3686
        %v5479 = vpack.c.b16 %v3715, %v3687
        %v5480 = vpack.c.b16 %v3716, %v3688
        %v5481 = vpack.c.b16 %v3717, %v3689
        %v5482 = vpack.c.b16 %v3718, %v3690
        %v5483 = vpack.c.b16 %v3719, %v3691
        %v5484 = vpack.c.b16 %v3720, %v3692
        %v5485 = vpack.c.b16 %v3721, %v3693
        %v5486 = vpack.c.b16 %v3722, %v3694
        %v5487 = vpack.c.b16 %v3723, %v3695
        %v5488 = vpack.c.b16 %v3724, %v3696
        %v5489 = vpack.c.b16 %v3753, %v3725
        %v5490 = vpack.c.b16 %v3754, %v3726
        %v5491 = vpack.c.b16 %v3755, %v3727
        %v5492 = vpack.c.b16 %v3756, %v3728
        %v5493 = vpack.c.b16 %v3757, %v3729
        %v5494 = vpack.c.b16 %v3758, %v3730
        %v5495 = vpack.c.b16 %v3759, %v3731
        %v5496 = vpack.c.b16 %v3760, %v3732
        %v5497 = vpack.c.b16 %v3761, %v3733
        %v5498 = vpack.c.b16 %v3762, %v3734
        %v5499 = vpack.c.b16 %v3763, %v3735
        %v5500 = vpack.c.b16 %v3764, %v3736
        %v5501 = vpack.c.b16 %v3765, %v3737
        %v5502 = vpack.c.b16 %v3766, %v3738
        %v5503 = vpack.c.b16 %v3767, %v3739
        %v5504 = vpack.c.b16 %v3768, %v3740
        %v5505 = vpack.c.b16 %v3769, %v3741
        %v5506 = vpack.c.b16 %v3770, %v3742
        %v5507 = vpack.c.b16 %v3771, %v3743
        %v5508 = vpack.c.b16 %v3772, %v3744
        %v5509 = vpack.c.b16 %v3773, %v3745
        %v5510 = vpack.c.b16 %v3774, %v3746
        %v5511 = vpack.c.b16 %v3775, %v3747
        %v5512 = vpack.c.b16 %v3776, %v3748
        %v5513 = vpack.c.b16 %v3777, %v3749
        %v5514 = vpack.c.b16 %v3778, %v3750
        %v5515 = vpack.c.b16 %v3779, %v3751
        %v5516 = vpack.c.b16 %v3780, %v3752
        %v5517 = vpack.c.b16 %v3809, %v3781
        %v5518 = vpack.c.b16 %v3810, %v3782
        %v5519 = vpack.c.b16 %v3811, %v3783
        %v5520 = vpack.c.b16 %v3812, %v3784
        %v5521 = vpack.c.b16 %v3813, %v3785
        %v5522 = vpack.c.b16 %v3814, %v3786
        %v5523 = vpack.c.b16 %v3815, %v3787
        %v5524 = vpack.c.b16 %v3816, %v3788
        %v5525 = vpack.c.b16 %v3817, %v3789
        %v5526 = vpack.c.b16 %v3818, %v3790
        %v5527 = vpack.c.b16 %v3819, %v3791
        %v5528 = vpack.c.b16 %v3820, %v3792
        %v5529 = vpack.c.b16 %v3821, %v3793
        %v5530 = vpack.c.b16 %v3822, %v3794
        %v5531 = vpack.c.b16 %v3823, %v3795
        %v5532 = vpack.c.b16 %v3824, %v3796
        %v5533 = vpack.c.b16 %v3825, %v3797
        %v5534 = vpack.c.b16 %v3826, %v3798
        %v5535 = vpack.c.b16 %v3827, %v3799
        %v5536 = vpack.c.b16 %v3828, %v3800
        %v5537 = vpack.c.b16 %v3829, %v3801
        %v5538 = vpack.c.b16 %v3830, %v3802
        %v5539 = vpack.c.b16 %v3831, %v3803
        %v5540 = vpack.c.b16 %v3832, %v3804
        %v5541 = vpack.c.b16 %v3833, %v3805
        %v5542 = vpack.c.b16 %v3834, %v3806
        %v5543 = vpack.c.b16 %v3835, %v3807
        %v5544 = vpack.c.b16 %v3836, %v3808
        %v5545 = vpack.c.b16 %v3865, %v3837
        %v5546 = vpack.c.b16 %v3866, %v3838
        %v5547 = vpack.c.b16 %v3867, %v3839
        %v5548 = vpack.c.b16 %v3868, %v3840
        %v5549 = vpack.c.b16 %v3869, %v3841
        %v5550 = vpack.c.b16 %v3870, %v3842
        %v5551 = vpack.c.b16 %v3871, %v3843
        %v5552 = vpack.c.b16 %v3872, %v3844
        %v5553 = vpack.c.b16 %v3873, %v3845
        %v5554 = vpack.c.b16 %v3874, %v3846
        %v5555 = vpack.c.b16 %v3875, %v3847
        %v5556 = vpack.c.b16 %v3876, %v3848
        %v5557 = vpack.c.b16 %v3877, %v3849
        %v5558 = vpack.c.b16 %v3878, %v3850
        %v5559 = vpack.c.b16 %v3879, %v3851
        %v5560 = vpack.c.b16 %v3880, %v3852
        %v5561 = vpack.c.b16 %v3881, %v3853
        %v5562 = vpack.c.b16 %v3882, %v3854
        %v5563 = vpack.c.b16 %v3883, %v3855
        %v5564 = vpack.c.b16 %v3884, %v3856
        %v5565 = vpack.c.b16 %v3885, %v3857
        %v5566 = vpack.c.b16 %v3886, %v3858
        %v5567 = vpack.c.b16 %v3887, %v3859
        %v5568 = vpack.c.b16 %v3888, %v3860
        %v5569 = vpack.c.b16 %v3889, %v3861
        %v5570 = vpack.c.b16 %v3890, %v3862
        %v5571 = vpack.c.b16 %v3891, %v3863
        %v5572 = vpack.c.b16 %v3892, %v3864
        %v5573 = vpack.c.b16 %v3921, %v3893
        %v5574 = vpack.c.b16 %v3922, %v3894
        %v5575 = vpack.c.b16 %v3923, %v3895
        %v5576 = vpack.c.b16 %v3924, %v3896
        %v5577 = vpack.c.b16 %v3925, %v3897
        %v5578 = vpack.c.b16 %v3926, %v3898
        %v5579 = vpack.c.b16 %v3927, %v3899
        %v5580 = vpack.c.b16 %v3928, %v3900
        %v5581 = vpack.c.b16 %v3929, %v3901
        %v5582 = vpack.c.b16 %v3930, %v3902
        %v5583 = vpack.c.b16 %v3931, %v3903
        %v5584 = vpack.c.b16 %v3932, %v3904
        %v5585 = vpack.c.b16 %v3933, %v3905
        %v5586 = vpack.c.b16 %v3934, %v3906
        %v5587 = vpack.c.b16 %v3935, %v3907
        %v5588 = vpack.c.b16 %v3936, %v3908
        %v5589 = vpack.c.b16 %v3937, %v3909
        %v5590 = vpack.c.b16 %v3938, %v3910
        %v5591 = vpack.c.b16 %v3939, %v3911
        %v5592 = vpack.c.b16 %v3940, %v3912
        %v5593 = vpack.c.b16 %v3941, %v3913
        %v5594 = vpack.c.b16 %v3942, %v3914
        %v5595 = vpack.c.b16 %v3943, %v3915
        %v5596 = vpack.c.b16 %v3944, %v3916
        %v5597 = vpack.c.b16 %v3945, %v3917
        %v5598 = vpack.c.b16 %v3946, %v3918
        %v5599 = vpack.c.b16 %v3947, %v3919
        %v5600 = vpack.c.b16 %v3948, %v3920
        %v5601 = vpack.c.b16 %v3977, %v3949
        %v5602 = vpack.c.b16 %v3978, %v3950
        %v5603 = vpack.c.b16 %v3979, %v3951
        %v5604 = vpack.c.b16 %v3980, %v3952
        %v5605 = vpack.c.b16 %v3981, %v3953
        %v5606 = vpack.c.b16 %v3982, %v3954
        %v5607 = vpack.c.b16 %v3983, %v3955
        %v5608 = vpack.c.b16 %v3984, %v3956
        %v5609 = vpack.c.b16 %v3985, %v3957
        %v5610 = vpack.c.b16 %v3986, %v3958
        %v5611 = vpack.c.b16 %v3987, %v3959
        %v5612 = vpack.c.b16 %v3988, %v3960
        %v5613 = vpack.c.b16 %v3989, %v3961
        %v5614 = vpack.c.b16 %v3990, %v3962
        %v5615 = vpack.c.b16 %v3991, %v3963
        %v5616 = vpack.c.b16 %v3992, %v3964
        %v5617 = vpack.c.b16 %v3993, %v3965
        %v5618 = vpack.c.b16 %v3994, %v3966
        %v5619 = vpack.c.b16 %v3995, %v3967
        %v5620 = vpack.c.b16 %v3996, %v3968
        %v5621 = vpack.c.b16 %v3997, %v3969
        %v5622 = vpack.c.b16 %v3998, %v3970
        %v5623 = vpack.c.b16 %v3999, %v3971
        %v5624 = vpack.c.b16 %v4000, %v3972
        %v5625 = vpack.c.b16 %v4001, %v3973
        %v5626 = vpack.c.b16 %v4002, %v3974
        %v5627 = vpack.c.b16 %v4003, %v3975
        %v5628 = vpack.c.b16 %v4004, %v3976
        %v5629 = vpack.c.b16 %v4033, %v4005
        %v5630 = vpack.c.b16 %v4034, %v4006
        %v5631 = vpack.c.b16 %v4035, %v4007
        %v5632 = vpack.c.b16 %v4036, %v4008
        %v5633 = vpack.c.b16 %v4037, %v4009
        %v5634 = vpack.c.b16 %v4038, %v4010
        %v5635 = vpack.c.b16 %v4039, %v4011
        %v5636 = vpack.c.b16 %v4040, %v4012
        %v5637 = vpack.c.b16 %v4041, %v4013
        %v5638 = vpack.c.b16 %v4042, %v4014
        %v5639 = vpack.c.b16 %v4043, %v4015
        %v5640 = vpack.c.b16 %v4044, %v4016
        %v5641 = vpack.c.b16 %v4045, %v4017
        %v5642 = vpack.c.b16 %v4046, %v4018
        %v5643 = vpack.c.b16 %v4047, %v4019
        %v5644 = vpack.c.b16 %v4048, %v4020
        %v5645 = vpack.c.b16 %v4049, %v4021
        %v5646 = vpack.c.b16 %v4050, %v4022
        %v5647 = vpack.c.b16 %v4051, %v4023
        %v5648 = vpack.c.b16 %v4052, %v4024
        %v5649 = vpack.c.b16 %v4053, %v4025
        %v5650 = vpack.c.b16 %v4054, %v4026
        %v5651 = vpack.c.b16 %v4055, %v4027
        %v5652 = vpack.c.b16 %v4056, %v4028
        %v5653 = vpack.c.b16 %v4057, %v4029
        %v5654 = vpack.c.b16 %v4058, %v4030
        %v5655 = vpack.c.b16 %v4059, %v4031
        %v5656 = vpack.c.b16 %v4060, %v4032
        %v5657 = vpack.c.b16 %v4089, %v4061
        %v5658 = vpack.c.b16 %v4090, %v4062
        %v5659 = vpack.c.b16 %v4091, %v4063
        %v5660 = vpack.c.b16 %v4092, %v4064
        %v5661 = vpack.c.b16 %v4093, %v4065
        %v5662 = vpack.c.b16 %v4094, %v4066
        %v5663 = vpack.c.b16 %v4095, %v4067
        %v5664 = vpack.c.b16 %v4096, %v4068
        %v5665 = vpack.c.b16 %v4097, %v4069
        %v5666 = vpack.c.b16 %v4098, %v4070
        %v5667 = vpack.c.b16 %v4099, %v4071
        %v5668 = vpack.c.b16 %v4100, %v4072
        %v5669 = vpack.c.b16 %v4101, %v4073
        %v5670 = vpack.c.b16 %v4102, %v4074
        %v5671 = vpack.c.b16 %v4103, %v4075
        %v5672 = vpack.c.b16 %v4104, %v4076
        %v5673 = vpack.c.b16 %v4105, %v4077
        %v5674 = vpack.c.b16 %v4106, %v4078
        %v5675 = vpack.c.b16 %v4107, %v4079
        %v5676 = vpack.c.b16 %v4108, %v4080
        %v5677 = vpack.c.b16 %v4109, %v4081
        %v5678 = vpack.c.b16 %v4110, %v4082
        %v5679 = vpack.c.b16 %v4111, %v4083
        %v5680 = vpack.c.b16 %v4112, %v4084
        %v5681 = vpack.c.b16 %v4113, %v4085
        %v5682 = vpack.c.b16 %v4114, %v4086
        %v5683 = vpack.c.b16 %v4115, %v4087
        %v5684 = vpack.c.b16 %v4116, %v4088
        %v5685 = vpack.c.b16 %v4145, %v4117
        %v5686 = vpack.c.b16 %v4146, %v4118
        %v5687 = vpack.c.b16 %v4147, %v4119
        %v5688 = vpack.c.b16 %v4148, %v4120
        %v5689 = vpack.c.b16 %v4149, %v4121
        %v5690 = vpack.c.b16 %v4150, %v4122
        %v5691 = vpack.c.b16 %v4151, %v4123
        %v5692 = vpack.c.b16 %v4152, %v4124
        %v5693 = vpack.c.b16 %v4153, %v4125
        %v5694 = vpack.c.b16 %v4154, %v4126
        %v5695 = vpack.c.b16 %v4155, %v4127
        %v5696 = vpack.c.b16 %v4156, %v4128
        %v5697 = vpack.c.b16 %v4157, %v4129
        %v5698 = vpack.c.b16 %v4158, %v4130
        %v5699 = vpack.c.b16 %v4159, %v4131
        %v5700 = vpack.c.b16 %v4160, %v4132
        %v5701 = vpack.c.b16 %v4161, %v4133
        %v5702 = vpack.c.b16 %v4162, %v4134
        %v5703 = vpack.c.b16 %v4163, %v4135
        %v5704 = vpack.c.b16 %v4164, %v4136
        %v5705 = vpack.c.b16 %v4165, %v4137
        %v5706 = vpack.c.b16 %v4166, %v4138
        %v5707 = vpack.c.b16 %v4167, %v4139
        %v5708 = vpack.c.b16 %v4168, %v4140
        %v5709 = vpack.c.b16 %v4169, %v4141
        %v5710 = vpack.c.b16 %v4170, %v4142
        %v5711 = vpack.c.b16 %v4171, %v4143
        %v5712 = vpack.c.b16 %v4172, %v4144
        %v5713 = vpack.c.b16 %v4201, %v4173
        %v5714 = vpack.c.b16 %v4202, %v4174
        %v5715 = vpack.c.b16 %v4203, %v4175
        %v5716 = vpack.c.b16 %v4204, %v4176
        %v5717 = vpack.c.b16 %v4205, %v4177
        %v5718 = vpack.c.b16 %v4206, %v4178
        %v5719 = vpack.c.b16 %v4207, %v4179
        %v5720 = vpack.c.b16 %v4208, %v4180
        %v5721 = vpack.c.b16 %v4209, %v4181
        %v5722 = vpack.c.b16 %v4210, %v4182
        %v5723 = vpack.c.b16 %v4211, %v4183
        %v5724 = vpack.c.b16 %v4212, %v4184
        %v5725 = vpack.c.b16 %v4213, %v4185
        %v5726 = vpack.c.b16 %v4214, %v4186
        %v5727 = vpack.c.b16 %v4215, %v4187
        %v5728 = vpack.c.b16 %v4216, %v4188
        %v5729 = vpack.c.b16 %v4217, %v4189
        %v5730 = vpack.c.b16 %v4218, %v4190
        %v5731 = vpack.c.b16 %v4219, %v4191
        %v5732 = vpack.c.b16 %v4220, %v4192
        %v5733 = vpack.c.b16 %v4221, %v4193
        %v5734 = vpack.c.b16 %v4222, %v4194
        %v5735 = vpack.c.b16 %v4223, %v4195
        %v5736 = vpack.c.b16 %v4224, %v4196
        %v5737 = vpack.c.b16 %v4225, %v4197
        %v5738 = vpack.c.b16 %v4226, %v4198
        %v5739 = vpack.c.b16 %v4227, %v4199
        %v5740 = vpack.c.b16 %v4228, %v4200
        %v5741 = vpack.c.b16 %v4257, %v4229
        %v5742 = vpack.c.b16 %v4258, %v4230
        %v5743 = vpack.c.b16 %v4259, %v4231
        %v5744 = vpack.c.b16 %v4260, %v4232
        %v5745 = vpack.c.b16 %v4261, %v4233
        %v5746 = vpack.c.b16 %v4262, %v4234
        %v5747 = vpack.c.b16 %v4263, %v4235
        %v5748 = vpack.c.b16 %v4264, %v4236
        %v5749 = vpack.c.b16 %v4265, %v4237
        %v5750 = vpack.c.b16 %v4266, %v4238
        %v5751 = vpack.c.b16 %v4267, %v4239
        %v5752 = vpack.c.b16 %v4268, %v4240
        %v5753 = vpack.c.b16 %v4269, %v4241
        %v5754 = vpack.c.b16 %v4270, %v4242
        %v5755 = vpack.c.b16 %v4271, %v4243
        %v5756 = vpack.c.b16 %v4272, %v4244
        %v5757 = vpack.c.b16 %v4273, %v4245
        %v5758 = vpack.c.b16 %v4274, %v4246
        %v5759 = vpack.c.b16 %v4275, %v4247
        %v5760 = vpack.c.b16 %v4276, %v4248
        %v5761 = vpack.c.b16 %v4277, %v4249
        %v5762 = vpack.c.b16 %v4278, %v4250
        %v5763 = vpack.c.b16 %v4279, %v4251
        %v5764 = vpack.c.b16 %v4280, %v4252
        %v5765 = vpack.c.b16 %v4281, %v4253
        %v5766 = vpack.c.b16 %v4282, %v4254
        %v5767 = vpack.c.b16 %v4283, %v4255
        %v5768 = vpack.c.b16 %v4284, %v4256
        %v5769 = vpack.c.b16 %v4313, %v4285
        %v5770 = vpack.c.b16 %v4314, %v4286
        %v5771 = vpack.c.b16 %v4315, %v4287
        %v5772 = vpack.c.b16 %v4316, %v4288
        %v5773 = vpack.c.b16 %v4317, %v4289
        %v5774 = vpack.c.b16 %v4318, %v4290
        %v5775 = vpack.c.b16 %v4319, %v4291
        %v5776 = vpack.c.b16 %v4320, %v4292
        %v5777 = vpack.c.b16 %v4321, %v4293
        %v5778 = vpack.c.b16 %v4322, %v4294
        %v5779 = vpack.c.b16 %v4323, %v4295
        %v5780 = vpack.c.b16 %v4324, %v4296
        %v5781 = vpack.c.b16 %v4325, %v4297
        %v5782 = vpack.c.b16 %v4326, %v4298
        %v5783 = vpack.c.b16 %v4327, %v4299
        %v5784 = vpack.c.b16 %v4328, %v4300
        %v5785 = vpack.c.b16 %v4329, %v4301
        %v5786 = vpack.c.b16 %v4330, %v4302
        %v5787 = vpack.c.b16 %v4331, %v4303
        %v5788 = vpack.c.b16 %v4332, %v4304
        %v5789 = vpack.c.b16 %v4333, %v4305
        %v5790 = vpack.c.b16 %v4334, %v4306
        %v5791 = vpack.c.b16 %v4335, %v4307
        %v5792 = vpack.c.b16 %v4336, %v4308
        %v5793 = vpack.c.b16 %v4337, %v4309
        %v5794 = vpack.c.b16 %v4338, %v4310
        %v5795 = vpack.c.b16 %v4339, %v4311
        %v5796 = vpack.c.b16 %v4340, %v4312
        %v5797 = vpack.c.b16 %v4369, %v4341
        %v5798 = vpack.c.b16 %v4370, %v4342
        %v5799 = vpack.c.b16 %v4371, %v4343
        %v5800 = vpack.c.b16 %v4372, %v4344
        %v5801 = vpack.c.b16 %v4373, %v4345
        %v5802 = vpack.c.b16 %v4374, %v4346
        %v5803 = vpack.c.b16 %v4375, %v4347
        %v5804 = vpack.c.b16 %v4376, %v4348
        %v5805 = vpack.c.b16 %v4377, %v4349
        %v5806 = vpack.c.b16 %v4378, %v4350
        %v5807 = vpack.c.b16 %v4379, %v4351
        %v5808 = vpack.c.b16 %v4380, %v4352
        %v5809 = vpack.c.b16 %v4381, %v4353
        %v5810 = vpack.c.b16 %v4382, %v4354
        %v5811 = vpack.c.b16 %v4383, %v4355
        %v5812 = vpack.c.b16 %v4384, %v4356
        %v5813 = vpack.c.b16 %v4385, %v4357
        %v5814 = vpack.c.b16 %v4386, %v4358
        %v5815 = vpack.c.b16 %v4387, %v4359
        %v5816 = vpack.c.b16 %v4388, %v4360
        %v5817 = vpack.c.b16 %v4389, %v4361
        %v5818 = vpack.c.b16 %v4390, %v4362
        %v5819 = vpack.c.b16 %v4391, %v4363
        %v5820 = vpack.c.b16 %v4392, %v4364
        %v5821 = vpack.c.b16 %v4393, %v4365
        %v5822 = vpack.c.b16 %v4394, %v4366
        %v5823 = vpack.c.b16 %v4395, %v4367
        %v5824 = vpack.c.b16 %v4396, %v4368
        %v5825 = vpack.c.b16 %v4425, %v4397
        %v5826 = vpack.c.b16 %v4426, %v4398
        %v5827 = vpack.c.b16 %v4427, %v4399
        %v5828 = vpack.c.b16 %v4428, %v4400
        %v5829 = vpack.c.b16 %v4429, %v4401
        %v5830 = vpack.c.b16 %v4430, %v4402
        %v5831 = vpack.c.b16 %v4431, %v4403
        %v5832 = vpack.c.b16 %v4432, %v4404
        %v5833 = vpack.c.b16 %v4433, %v4405
        %v5834 = vpack.c.b16 %v4434, %v4406
        %v5835 = vpack.c.b16 %v4435, %v4407
        %v5836 = vpack.c.b16 %v4436, %v4408
        %v5837 = vpack.c.b16 %v4437, %v4409
        %v5838 = vpack.c.b16 %v4438, %v4410
        %v5839 = vpack.c.b16 %v4439, %v4411
        %v5840 = vpack.c.b16 %v4440, %v4412
        %v5841 = vpack.c.b16 %v4441, %v4413
        %v5842 = vpack.c.b16 %v4442, %v4414
        %v5843 = vpack.c.b16 %v4443, %v4415
        %v5844 = vpack.c.b16 %v4444, %v4416
        %v5845 = vpack.c.b16 %v4445, %v4417
        %v5846 = vpack.c.b16 %v4446, %v4418
        %v5847 = vpack.c.b16 %v4447, %v4419
        %v5848 = vpack.c.b16 %v4448, %v4420
        %v5849 = vpack.c.b16 %v4449, %v4421
        %v5850 = vpack.c.b16 %v4450, %v4422
        %v5851 = vpack.c.b16 %v4451, %v4423
        %v5852 = vpack.c.b16 %v4452, %v4424
        %v5853 = vpack.c.b16 %v4481, %v4453
        %v5854 = vpack.c.b16 %v4482, %v4454
        %v5855 = vpack.c.b16 %v4483, %v4455
        %v5856 = vpack.c.b16 %v4484, %v4456
        %v5857 = vpack.c.b16 %v4485, %v4457
        %v5858 = vpack.c.b16 %v4486, %v4458
        %v5859 = vpack.c.b16 %v4487, %v4459
        %v5860 = vpack.c.b16 %v4488, %v4460
        %v5861 = vpack.c.b16 %v4489, %v4461
        %v5862 = vpack.c.b16 %v4490, %v4462
        %v5863 = vpack.c.b16 %v4491, %v4463
        %v5864 = vpack.c.b16 %v4492, %v4464
        %v5865 = vpack.c.b16 %v4493, %v4465
        %v5866 = vpack.c.b16 %v4494, %v4466
        %v5867 = vpack.c.b16 %v4495, %v4467
        %v5868 = vpack.c.b16 %v4496, %v4468
        %v5869 = vpack.c.b16 %v4497, %v4469
        %v5870 = vpack.c.b16 %v4498, %v4470
        %v5871 = vpack.c.b16 %v4499, %v4471
        %v5872 = vpack.c.b16 %v4500, %v4472
        %v5873 = vpack.c.b16 %v4501, %v4473
        %v5874 = vpack.c.b16 %v4502, %v4474
        %v5875 = vpack.c.b16 %v4503, %v4475
        %v5876 = vpack.c.b16 %v4504, %v4476
        %v5877 = vpack.c.b16 %v4505, %v4477
        %v5878 = vpack.c.b16 %v4506, %v4478
        %v5879 = vpack.c.b16 %v4507, %v4479
        %v5880 = vpack.c.b16 %v4508, %v4480
        %v5881 = vpack.c.b16 %v4537, %v4509
        %v5882 = vpack.c.b16 %v4538, %v4510
        %v5883 = vpack.c.b16 %v4539, %v4511
        %v5884 = vpack.c.b16 %v4540, %v4512
        %v5885 = vpack.c.b16 %v4541, %v4513
        %v5886 = vpack.c.b16 %v4542, %v4514
        %v5887 = vpack.c.b16 %v4543, %v4515
        %v5888 = vpack.c.b16 %v4544, %v4516
        %v5889 = vpack.c.b16 %v4545, %v4517
        %v5890 = vpack.c.b16 %v4546, %v4518
        %v5891 = vpack.c.b16 %v4547, %v4519
        %v5892 = vpack.c.b16 %v4548, %v4520
        %v5893 = vpack.c.b16 %v4549, %v4521
        %v5894 = vpack.c.b16 %v4550, %v4522
        %v5895 = vpack.c.b16 %v4551, %v4523
        %v5896 = vpack.c.b16 %v4552, %v4524
        %v5897 = vpack.c.b16 %v4553, %v4525
        %v5898 = vpack.c.b16 %v4554, %v4526
        %v5899 = vpack.c.b16 %v4555, %v4527
        %v5900 = vpack.c.b16 %v4556, %v4528
        %v5901 = vpack.c.b16 %v4557, %v4529
        %v5902 = vpack.c.b16 %v4558, %v4530
        %v5903 = vpack.c.b16 %v4559, %v4531
        %v5904 = vpack.c.b16 %v4560, %v4532
        %v5905 = vpack.c.b16 %v4561, %v4533
        %v5906 = vpack.c.b16 %v4562, %v4534
        %v5907 = vpack.c.b16 %v4563, %v4535
        %v5908 = vpack.c.b16 %v4564, %v4536
        %v5909 = vpack.c.b16 %v4593, %v4565
        %v5910 = vpack.c.b16 %v4594, %v4566
        %v5911 = vpack.c.b16 %v4595, %v4567
        %v5912 = vpack.c.b16 %v4596, %v4568
        %v5913 = vpack.c.b16 %v4597, %v4569
        %v5914 = vpack.c.b16 %v4598, %v4570
        %v5915 = vpack.c.b16 %v4599, %v4571
        %v5916 = vpack.c.b16 %v4600, %v4572
        %v5917 = vpack.c.b16 %v4601, %v4573
        %v5918 = vpack.c.b16 %v4602, %v4574
        %v5919 = vpack.c.b16 %v4603, %v4575
        %v5920 = vpack.c.b16 %v4604, %v4576
        %v5921 = vpack.c.b16 %v4605, %v4577
        %v5922 = vpack.c.b16 %v4606, %v4578
        %v5923 = vpack.c.b16 %v4607, %v4579
        %v5924 = vpack.c.b16 %v4608, %v4580
        %v5925 = vpack.c.b16 %v4609, %v4581
        %v5926 = vpack.c.b16 %v4610, %v4582
        %v5927 = vpack.c.b16 %v4611, %v4583
        %v5928 = vpack.c.b16 %v4612, %v4584
        %v5929 = vpack.c.b16 %v4613, %v4585
        %v5930 = vpack.c.b16 %v4614, %v4586
        %v5931 = vpack.c.b16 %v4615, %v4587
        %v5932 = vpack.c.b16 %v4616, %v4588
        %v5933 = vpack.c.b16 %v4617, %v4589
        %v5934 = vpack.c.b16 %v4618, %v4590
        %v5935 = vpack.c.b16 %v4619, %v4591
        %v5936 = vpack.c.b16 %v4620, %v4592
        %v5937 = vpack.c.b16 %v4649, %v4621
        %v5938 = vpack.c.b16 %v4650, %v4622
        %v5939 = vpack.c.b16 %v4651, %v4623
        %v5940 = vpack.c.b16 %v4652, %v4624
        %v5941 = vpack.c.b16 %v4653, %v4625
        %v5942 = vpack.c.b16 %v4654, %v4626
        %v5943 = vpack.c.b16 %v4655, %v4627
        %v5944 = vpack.c.b16 %v4656, %v4628
        %v5945 = vpack.c.b16 %v4657, %v4629
        %v5946 = vpack.c.b16 %v4658, %v4630
        %v5947 = vpack.c.b16 %v4659, %v4631
        %v5948 = vpack.c.b16 %v4660, %v4632
        %v5949 = vpack.c.b16 %v4661, %v4633
        %v5950 = vpack.c.b16 %v4662, %v4634
        %v5951 = vpack.c.b16 %v4663, %v4635
        %v5952 = vpack.c.b16 %v4664, %v4636
        %v5953 = vpack.c.b16 %v4665, %v4637
        %v5954 = vpack.c.b16 %v4666, %v4638
        %v5955 = vpack.c.b16 %v4667, %v4639
        %v5956 = vpack.c.b16 %v4668, %v4640
        %v5957 = vpack.c.b16 %v4669, %v4641
        %v5958 = vpack.c.b16 %v4670, %v4642
        %v5959 = vpack.c.b16 %v4671, %v4643
        %v5960 = vpack.c.b16 %v4672, %v4644
        %v5961 = vpack.c.b16 %v4673, %v4645
        %v5962 = vpack.c.b16 %v4674, %v4646
        %v5963 = vpack.c.b16 %v4675, %v4647
        %v5964 = vpack.c.b16 %v4676, %v4648
        %v5965 = vpack.c.b16 %v4705, %v4677
        %v5966 = vpack.c.b16 %v4706, %v4678
        %v5967 = vpack.c.b16 %v4707, %v4679
        %v5968 = vpack.c.b16 %v4708, %v4680
        %v5969 = vpack.c.b16 %v4709, %v4681
        %v5970 = vpack.c.b16 %v4710, %v4682
        %v5971 = vpack.c.b16 %v4711, %v4683
        %v5972 = vpack.c.b16 %v4712, %v4684
        %v5973 = vpack.c.b16 %v4713, %v4685
        %v5974 = vpack.c.b16 %v4714, %v4686
        %v5975 = vpack.c.b16 %v4715, %v4687
        %v5976 = vpack.c.b16 %v4716, %v4688
        %v5977 = vpack.c.b16 %v4717, %v4689
        %v5978 = vpack.c.b16 %v4718, %v4690
        %v5979 = vpack.c.b16 %v4719, %v4691
        %v5980 = vpack.c.b16 %v4720, %v4692
        %v5981 = vpack.c.b16 %v4721, %v4693
        %v5982 = vpack.c.b16 %v4722, %v4694
        %v5983 = vpack.c.b16 %v4723, %v4695
        %v5984 = vpack.c.b16 %v4724, %v4696
        %v5985 = vpack.c.b16 %v4725, %v4697
        %v5986 = vpack.c.b16 %v4726, %v4698
        %v5987 = vpack.c.b16 %v4727, %v4699
        %v5988 = vpack.c.b16 %v4728, %v4700
        %v5989 = vpack.c.b16 %v4729, %v4701
        %v5990 = vpack.c.b16 %v4730, %v4702
        %v5991 = vpack.c.b16 %v4731, %v4703
        %v5992 = vpack.c.b16 %v4732, %v4704
        %v5993 = vpack.c.b16 %v4761, %v4733
        %v5994 = vpack.c.b16 %v4762, %v4734
        %v5995 = vpack.c.b16 %v4763, %v4735
        %v5996 = vpack.c.b16 %v4764, %v4736
        %v5997 = vpack.c.b16 %v4765, %v4737
        %v5998 = vpack.c.b16 %v4766, %v4738
        %v5999 = vpack.c.b16 %v4767, %v4739
        %v6000 = vpack.c.b16 %v4768, %v4740
        %v6001 = vpack.c.b16 %v4769, %v4741
        %v6002 = vpack.c.b16 %v4770, %v4742
        %v6003 = vpack.c.b16 %v4771, %v4743
        %v6004 = vpack.c.b16 %v4772, %v4744
        %v6005 = vpack.c.b16 %v4773, %v4745
        %v6006 = vpack.c.b16 %v4774, %v4746
        %v6007 = vpack.c.b16 %v4775, %v4747
        %v6008 = vpack.c.b16 %v4776, %v4748
        %v6009 = vpack.c.b16 %v4777, %v4749
        %v6010 = vpack.c.b16 %v4778, %v4750
        %v6011 = vpack.c.b16 %v4779, %v4751
        %v6012 = vpack.c.b16 %v4780, %v4752
        %v6013 = vpack.c.b16 %v4781, %v4753
        %v6014 = vpack.c.b16 %v4782, %v4754
        %v6015 = vpack.c.b16 %v4783, %v4755
        %v6016 = vpack.c.b16 %v4784, %v4756
        %v6017 = vpack.c.b16 %v4785, %v4757
        %v6018 = vpack.c.b16 %v4786, %v4758
        %v6019 = vpack.c.b16 %v4787, %v4759
        %v6020 = vpack.c.b16 %v4788, %v4760
        %v6021 = vpack.c.b16 %v4817, %v4789
        %v6022 = vpack.c.b16 %v4818, %v4790
        %v6023 = vpack.c.b16 %v4819, %v4791
        %v6024 = vpack.c.b16 %v4820, %v4792
        %v6025 = vpack.c.b16 %v4821, %v4793
        %v6026 = vpack.c.b16 %v4822, %v4794
        %v6027 = vpack.c.b16 %v4823, %v4795
        %v6028 = vpack.c.b16 %v4824, %v4796
        %v6029 = vpack.c.b16 %v4825, %v4797
        %v6030 = vpack.c.b16 %v4826, %v4798
        %v6031 = vpack.c.b16 %v4827, %v4799
        %v6032 = vpack.c.b16 %v4828, %v4800
        %v6033 = vpack.c.b16 %v4829, %v4801
        %v6034 = vpack.c.b16 %v4830, %v4802
        %v6035 = vpack.c.b16 %v4831, %v4803
        %v6036 = vpack.c.b16 %v4832, %v4804
        %v6037 = vpack.c.b16 %v4833, %v4805
        %v6038 = vpack.c.b16 %v4834, %v4806
        %v6039 = vpack.c.b16 %v4835, %v4807
        %v6040 = vpack.c.b16 %v4836, %v4808
        %v6041 = vpack.c.b16 %v4837, %v4809
        %v6042 = vpack.c.b16 %v4838, %v4810
        %v6043 = vpack.c.b16 %v4839, %v4811
        %v6044 = vpack.c.b16 %v4840, %v4812
        %v6045 = vpack.c.b16 %v4841, %v4813
        %v6046 = vpack.c.b16 %v4842, %v4814
        %v6047 = vpack.c.b16 %v4843, %v4815
        %v6048 = vpack.c.b16 %v4844, %v4816
        %v6049 = vpack.c.b16 %v4873, %v4845
        %v6050 = vpack.c.b16 %v4874, %v4846
        %v6051 = vpack.c.b16 %v4875, %v4847
        %v6052 = vpack.c.b16 %v4876, %v4848
        %v6053 = vpack.c.b16 %v4877, %v4849
        %v6054 = vpack.c.b16 %v4878, %v4850
        %v6055 = vpack.c.b16 %v4879, %v4851
        %v6056 = vpack.c.b16 %v4880, %v4852
        %v6057 = vpack.c.b16 %v4881, %v4853
        %v6058 = vpack.c.b16 %v4882, %v4854
        %v6059 = vpack.c.b16 %v4883, %v4855
        %v6060 = vpack.c.b16 %v4884, %v4856
        %v6061 = vpack.c.b16 %v4885, %v4857
        %v6062 = vpack.c.b16 %v4886, %v4858
        %v6063 = vpack.c.b16 %v4887, %v4859
        %v6064 = vpack.c.b16 %v4888, %v4860
        %v6065 = vpack.c.b16 %v4889, %v4861
        %v6066 = vpack.c.b16 %v4890, %v4862
        %v6067 = vpack.c.b16 %v4891, %v4863
        %v6068 = vpack.c.b16 %v4892, %v4864
        %v6069 = vpack.c.b16 %v4893, %v4865
        %v6070 = vpack.c.b16 %v4894, %v4866
        %v6071 = vpack.c.b16 %v4895, %v4867
        %v6072 = vpack.c.b16 %v4896, %v4868
        %v6073 = vpack.c.b16 %v4897, %v4869
        %v6074 = vpack.c.b16 %v4898, %v4870
        %v6075 = vpack.c.b16 %v4899, %v4871
        %v6076 = vpack.c.b16 %v4900, %v4872
        %v6077 = vpack.c.b16 %v4929, %v4901
        %v6078 = vpack.c.b16 %v4930, %v4902
        %v6079 = vpack.c.b16 %v4931, %v4903
        %v6080 = vpack.c.b16 %v4932, %v4904
        %v6081 = vpack.c.b16 %v4933, %v4905
        %v6082 = vpack.c.b16 %v4934, %v4906
        %v6083 = vpack.c.b16 %v4935, %v4907
        %v6084 = vpack.c.b16 %v4936, %v4908
        %v6085 = vpack.c.b16 %v4937, %v4909
        %v6086 = vpack.c.b16 %v4938, %v4910
        %v6087 = vpack.c.b16 %v4939, %v4911
        %v6088 = vpack.c.b16 %v4940, %v4912
        %v6089 = vpack.c.b16 %v4941, %v4913
        %v6090 = vpack.c.b16 %v4942, %v4914
        %v6091 = vpack.c.b16 %v4943, %v4915
        %v6092 = vpack.c.b16 %v4944, %v4916
        %v6093 = vpack.c.b16 %v4945, %v4917
        %v6094 = vpack.c.b16 %v4946, %v4918
        %v6095 = vpack.c.b16 %v4947, %v4919
        %v6096 = vpack.c.b16 %v4948, %v4920
        %v6097 = vpack.c.b16 %v4949, %v4921
        %v6098 = vpack.c.b16 %v4950, %v4922
        %v6099 = vpack.c.b16 %v4951, %v4923
        %v6100 = vpack.c.b16 %v4952, %v4924
        %v6101 = vpack.c.b16 %v4953, %v4925
        %v6102 = vpack.c.b16 %v4954, %v4926
        %v6103 = vpack.c.b16 %v4955, %v4927
        %v6104 = vpack.c.b16 %v4956, %v4928
        %v6105 = vpack.c.b16 %v4985, %v4957
        %v6106 = vpack.c.b16 %v4986, %v4958
        %v6107 = vpack.c.b16 %v4987, %v4959
        %v6108 = vpack.c.b16 %v4988, %v4960
        %v6109 = vpack.c.b16 %v4989, %v4961
        %v6110 = vpack.c.b16 %v4990, %v4962
        %v6111 = vpack.c.b16 %v4991, %v4963
        %v6112 = vpack.c.b16 %v4992, %v4964
        %v6113 = vpack.c.b16 %v4993, %v4965
        %v6114 = vpack.c.b16 %v4994, %v4966
        %v6115 = vpack.c.b16 %v4995, %v4967
        %v6116 = vpack.c.b16 %v4996, %v4968
        %v6117 = vpack.c.b16 %v4997, %v4969
        %v6118 = vpack.c.b16 %v4998, %v4970
        %v6119 = vpack.c.b16 %v4999, %v4971
        %v6120 = vpack.c.b16 %v5000, %v4972
        %v6121 = vpack.c.b16 %v5001, %v4973
        %v6122 = vpack.c.b16 %v5002, %v4974
        %v6123 = vpack.c.b16 %v5003, %v4975
        %v6124 = vpack.c.b16 %v5004, %v4976
        %v6125 = vpack.c.b16 %v5005, %v4977
        %v6126 = vpack.c.b16 %v5006, %v4978
        %v6127 = vpack.c.b16 %v5007, %v4979
        %v6128 = vpack.c.b16 %v5008, %v4980
        %v6129 = vpack.c.b16 %v5009, %v4981
        %v6130 = vpack.c.b16 %v5010, %v4982
        %v6131 = vpack.c.b16 %v5011, %v4983
        %v6132 = vpack.c.b16 %v5012, %v4984
        %7253 = vmatprep.subr.bf16.mxu0 %v5014
        %7254 = vmatpush1.bf16.msra.mxu0 %v5013
        %7255 = vmatprep.subr.bf16.mxu0 %v5042
        %7256 = vmatpush1.bf16.msra.mxu0 %v5041
        %7257 = vmatprep.subr.bf16.mxu0 %v5070
        %7258 = vmatpush1.bf16.msra.mxu0 %v5069
        %7259 = vmatprep.subr.bf16.mxu0 %v5098
        %7260 = vmatpush1.bf16.msra.mxu0 %v5097
        %7261 = vmatprep.subr.bf16.mxu0 %v5126
        %7262 = vmatpush1.bf16.msra.mxu0 %v5125
        %7263 = vmatprep.subr.bf16.mxu0 %v5154
        %7264 = vmatpush1.bf16.msra.mxu0 %v5153
        %7265 = vmatprep.subr.bf16.mxu0 %v5182
        %7266 = vmatpush1.bf16.msra.mxu0 %v5181
        %7267 = vmatprep.subr.bf16.mxu0 %v5210
        %7268 = vmatpush1.bf16.msra.mxu0 %v5209
        %7269 = vmatprep.subr.bf16.mxu0 %v5238
        %7270 = vmatpush1.bf16.msra.mxu0 %v5237
        %7271 = vmatprep.subr.bf16.mxu0 %v5266
        %7272 = vmatpush1.bf16.msra.mxu0 %v5265
        %7273 = vmatprep.subr.bf16.mxu0 %v5294
        %7274 = vmatpush1.bf16.msra.mxu0 %v5293
        %7275 = vmatprep.subr.bf16.mxu0 %v5322
        %7276 = vmatpush1.bf16.msra.mxu0 %v5321
        %7277 = vmatprep.subr.bf16.mxu0 %v5350
        %7278 = vmatpush1.bf16.msra.mxu0 %v5349
        %7279 = vmatprep.subr.bf16.mxu0 %v5378
        %7280 = vmatpush1.bf16.msra.mxu0 %v5377
        %7281 = vmatprep.subr.bf16.mxu0 %v5406
        %7282 = vmatpush1.bf16.msra.mxu0 %v5405
        %7283 = vmatprep.subr.bf16.mxu0 %v5434
        %7284 = vmatpush1.bf16.msra.mxu0 %v5433
        %7285 = vmatprep.mubr.bf16.mxu0 %v1644
        %7286 = vmatmul.mubr.bf16.gmra.mrb[0].mxu0 %v1643
        %v7287 = vpop.f32.mrb[0].mxu0
        %v7288 = vadd.f32 %v1490, %v7287
        %v7289 = vpop.f32.mrb[0].mxu0
        %v7290 = vadd.f32 %v1494, %v7289
        %v7291 = vpop.f32.mrb[0].mxu0
        %v7292 = vadd.f32 %v1490, %v7291
        %v7293 = vpop.f32.mrb[0].mxu0
        %v7294 = vadd.f32 %v1494, %v7293
        %7295 = vdwg.mxu0
        %7296 = vmatprep.subr.bf16.mxu0 %v5462
        %7297 = vmatpush1.bf16.msra.mxu0 %v5461
        %7298 = vmatprep.subr.bf16.mxu0 %v5490
        %7299 = vmatpush1.bf16.msra.mxu0 %v5489
        %7300 = vmatprep.subr.bf16.mxu0 %v5518
        %7301 = vmatpush1.bf16.msra.mxu0 %v5517
        %7302 = vmatprep.subr.bf16.mxu0 %v5546
        %7303 = vmatpush1.bf16.msra.mxu0 %v5545
        %7304 = vmatprep.subr.bf16.mxu0 %v5574
        %7305 = vmatpush1.bf16.msra.mxu0 %v5573
        %7306 = vmatprep.subr.bf16.mxu0 %v5602
        %7307 = vmatpush1.bf16.msra.mxu0 %v5601
        %7308 = vmatprep.subr.bf16.mxu0 %v5630
        %7309 = vmatpush1.bf16.msra.mxu0 %v5629
        %7310 = vmatprep.subr.bf16.mxu0 %v5658
        %7311 = vmatpush1.bf16.msra.mxu0 %v5657
        %7312 = vmatprep.subr.bf16.mxu0 %v5686
        %7313 = vmatpush1.bf16.msra.mxu0 %v5685
        %7314 = vmatprep.subr.bf16.mxu0 %v5714
        %7315 = vmatpush1.bf16.msra.mxu0 %v5713
        %7316 = vmatprep.subr.bf16.mxu0 %v5742
        %7317 = vmatpush1.bf16.msra.mxu0 %v5741
        %7318 = vmatprep.subr.bf16.mxu0 %v5770
        %7319 = vmatpush1.bf16.msra.mxu0 %v5769
        %7320 = vmatprep.subr.bf16.mxu0 %v5798
        %7321 = vmatpush1.bf16.msra.mxu0 %v5797
        %7322 = vmatprep.subr.bf16.mxu0 %v5826
        %7323 = vmatpush1.bf16.msra.mxu0 %v5825
        %7324 = vmatprep.subr.bf16.mxu0 %v5854
        %7325 = vmatpush1.bf16.msra.mxu0 %v5853
        %7326 = vmatprep.subr.bf16.mxu0 %v5882
        %7327 = vmatpush1.bf16.msra.mxu0 %v5881
        %7328 = vmatprep.mubr.bf16.mxu0 %v1646
        %7329 = vmatmul.mubr.bf16.gmra.mrb[0].mxu0 %v1645
        %v7330 = vpop.f32.mrb[0].mxu0
        %v7331 = vadd.f32 %v7288, %v7330
        %v7332 = vpop.f32.mrb[0].mxu0
        %v7333 = vadd.f32 %v7290, %v7332
        %v7334 = vpop.f32.mrb[0].mxu0
        %v7335 = vadd.f32 %v7292, %v7334
        %v7336 = vpop.f32.mrb[0].mxu0
        %v7337 = vadd.f32 %v7294, %v7336
        %7338 = vdwg.mxu0
        %7339 = vmatprep.subr.bf16.mxu0 %v5910
        %7340 = vmatpush1.bf16.msra.mxu0 %v5909
        %7341 = vmatprep.subr.bf16.mxu0 %v5938
        %7342 = vmatpush1.bf16.msra.mxu0 %v5937
        %7343 = vmatprep.subr.bf16.mxu0 %v5966
        %7344 = vmatpush1.bf16.msra.mxu0 %v5965
        %7345 = vmatprep.subr.bf16.mxu0 %v5994
        %7346 = vmatpush1.bf16.msra.mxu0 %v5993
        %7347 = vmatprep.subr.bf16.mxu0 %v6022
        %7348 = vmatpush1.bf16.msra.mxu0 %v6021
        %7349 = vmatprep.subr.bf16.mxu0 %v6050
        %7350 = vmatpush1.bf16.msra.mxu0 %v6049
        %7351 = vmatprep.subr.bf16.mxu0 %v6078
        %7352 = vmatpush1.bf16.msra.mxu0 %v6077
        %7353 = vmatprep.subr.bf16.mxu0 %v6106
        %7354 = vmatpush1.bf16.msra.mxu0 %v6105
        %7355 = vmatprep.subr.bf16.mxu0 0
        %7356 = vmatpush1.bf16.msra.mxu0 0
        %7357 = vmatprep.subr.bf16.mxu0 0
        %7358 = vmatpush1.bf16.msra.mxu0 0
        %7359 = vmatprep.subr.bf16.mxu0 0
        %7360 = vmatpush1.bf16.msra.mxu0 0
        %7361 = vmatprep.subr.bf16.mxu0 0
        %7362 = vmatpush1.bf16.msra.mxu0 0
        %7363 = vmatprep.subr.bf16.mxu0 0
        %7364 = vmatpush1.bf16.msra.mxu0 0
        %7365 = vmatprep.subr.bf16.mxu0 0
        %7366 = vmatpush1.bf16.msra.mxu0 0
        %7367 = vmatprep.subr.bf16.mxu0 0
        %7368 = vmatpush1.bf16.msra.mxu0 0
        %7369 = vmatprep.subr.bf16.mxu0 0
        %7370 = vmatpush1.bf16.msra.mxu0 0
        %7371 = vmatprep.mubr.bf16.mxu0 0
        %7372 = vmatmul.mubr.bf16.gmra.mrb[0].mxu0 %v1647
        %v7373 = vpop.f32.mrb[0].mxu0
        %v7374 = vadd.f32 %v7331, %v7373
        %v7375 = vpop.f32.mrb[0].mxu0
        %v7376 = vadd.f32 %v7333, %v7375
        %v7377 = vpop.f32.mrb[0].mxu0
        %v7378 = vadd.f32 %v7335, %v7377
        %v7379 = vpop.f32.mrb[0].mxu0
        %v7380 = vadd.f32 %v7337, %v7379
        %7381 = vdwg.mxu0
        %7382 = vmatprep.subr.bf16.mxu0 %v5016
        %7383 = vmatpush1.bf16.msra.mxu0 %v5015
        %7384 = vmatprep.subr.bf16.mxu0 %v5044
        %7385 = vmatpush1.bf16.msra.mxu0 %v5043
        %7386 = vmatprep.subr.bf16.mxu0 %v5072
        %7387 = vmatpush1.bf16.msra.mxu0 %v5071
        %7388 = vmatprep.subr.bf16.mxu0 %v5100
        %7389 = vmatpush1.bf16.msra.mxu0 %v5099
        %7390 = vmatprep.subr.bf16.mxu0 %v5128
        %7391 = vmatpush1.bf16.msra.mxu0 %v5127
        %7392 = vmatprep.subr.bf16.mxu0 %v5156
        %7393 = vmatpush1.bf16.msra.mxu0 %v5155
        %7394 = vmatprep.subr.bf16.mxu0 %v5184
        %7395 = vmatpush1.bf16.msra.mxu0 %v5183
        %7396 = vmatprep.subr.bf16.mxu0 %v5212
        %7397 = vmatpush1.bf16.msra.mxu0 %v5211
        %7398 = vmatprep.subr.bf16.mxu0 %v5240
        %7399 = vmatpush1.bf16.msra.mxu0 %v5239
        %7400 = vmatprep.subr.bf16.mxu0 %v5268
        %7401 = vmatpush1.bf16.msra.mxu0 %v5267
        %7402 = vmatprep.subr.bf16.mxu0 %v5296
        %7403 = vmatpush1.bf16.msra.mxu0 %v5295
        %7404 = vmatprep.subr.bf16.mxu0 %v5324
        %7405 = vmatpush1.bf16.msra.mxu0 %v5323
        %7406 = vmatprep.subr.bf16.mxu0 %v5352
        %7407 = vmatpush1.bf16.msra.mxu0 %v5351
        %7408 = vmatprep.subr.bf16.mxu0 %v5380
        %7409 = vmatpush1.bf16.msra.mxu0 %v5379
        %7410 = vmatprep.subr.bf16.mxu0 %v5408
        %7411 = vmatpush1.bf16.msra.mxu0 %v5407
        %7412 = vmatprep.subr.bf16.mxu0 %v5436
        %7413 = vmatpush1.bf16.msra.mxu0 %v5435
        %7414 = vmatprep.mubr.bf16.mxu0 %v1644
        %7415 = vmatmul.mubr.bf16.gmra.mrb[0].mxu0 %v1643
        %v7416 = vpop.f32.mrb[0].mxu0
        %v7417 = vadd.f32 %v1498, %v7416
        %v7418 = vpop.f32.mrb[0].mxu0
        %v7419 = vadd.f32 %v1502, %v7418
        %v7420 = vpop.f32.mrb[0].mxu0
        %v7421 = vadd.f32 %v1498, %v7420
        %v7422 = vpop.f32.mrb[0].mxu0
        %v7423 = vadd.f32 %v1502, %v7422
        %7424 = vdwg.mxu0
        %7425 = vmatprep.subr.bf16.mxu0 %v5464
        %7426 = vmatpush1.bf16.msra.mxu0 %v5463
        %7427 = vmatprep.subr.bf16.mxu0 %v5492
        %7428 = vmatpush1.bf16.msra.mxu0 %v5491
        %7429 = vmatprep.subr.bf16.mxu0 %v5520
        %7430 = vmatpush1.bf16.msra.mxu0 %v5519
        %7431 = vmatprep.subr.bf16.mxu0 %v5548
        %7432 = vmatpush1.bf16.msra.mxu0 %v5547
        %7433 = vmatprep.subr.bf16.mxu0 %v5576
        %7434 = vmatpush1.bf16.msra.mxu0 %v5575
        %7435 = vmatprep.subr.bf16.mxu0 %v5604
        %7436 = vmatpush1.bf16.msra.mxu0 %v5603
        %7437 = vmatprep.subr.bf16.mxu0 %v5632
        %7438 = vmatpush1.bf16.msra.mxu0 %v5631
        %7439 = vmatprep.subr.bf16.mxu0 %v5660
        %7440 = vmatpush1.bf16.msra.mxu0 %v5659
        %7441 = vmatprep.subr.bf16.mxu0 %v5688
        %7442 = vmatpush1.bf16.msra.mxu0 %v5687
        %7443 = vmatprep.subr.bf16.mxu0 %v5716
        %7444 = vmatpush1.bf16.msra.mxu0 %v5715
        %7445 = vmatprep.subr.bf16.mxu0 %v5744
        %7446 = vmatpush1.bf16.msra.mxu0 %v5743
        %7447 = vmatprep.subr.bf16.mxu0 %v5772
        %7448 = vmatpush1.bf16.msra.mxu0 %v5771
        %7449 = vmatprep.subr.bf16.mxu0 %v5800
        %7450 = vmatpush1.bf16.msra.mxu0 %v5799
        %7451 = vmatprep.subr.bf16.mxu0 %v5828
        %7452 = vmatpush1.bf16.msra.mxu0 %v5827
        %7453 = vmatprep.subr.bf16.mxu0 %v5856
        %7454 = vmatpush1.bf16.msra.mxu0 %v5855
        %7455 = vmatprep.subr.bf16.mxu0 %v5884
        %7456 = vmatpush1.bf16.msra.mxu0 %v5883
        %7457 = vmatprep.mubr.bf16.mxu0 %v1646
        %7458 = vmatmul.mubr.bf16.gmra.mrb[0].mxu0 %v1645
        %v7459 = vpop.f32.mrb[0].mxu0
        %v7460 = vadd.f32 %v7417, %v7459
        %v7461 = vpop.f32.mrb[0].mxu0
        %v7462 = vadd.f32 %v7419, %v7461
        %v7463 = vpop.f32.mrb[0].mxu0
        %v7464 = vadd.f32 %v7421, %v7463
        %v7465 = vpop.f32.mrb[0].mxu0
        %v7466 = vadd.f32 %v7423, %v7465
        %7467 = vdwg.mxu0
        %7468 = vmatprep.subr.bf16.mxu0 %v5912
        %7469 = vmatpush1.bf16.msra.mxu0 %v5911
        %7470 = vmatprep.subr.bf16.mxu0 %v5940
        %7471 = vmatpush1.bf16.msra.mxu0 %v5939
        %7472 = vmatprep.subr.bf16.mxu0 %v5968
        %7473 = vmatpush1.bf16.msra.mxu0 %v5967
        %7474 = vmatprep.subr.bf16.mxu0 %v5996
        %7475 = vmatpush1.bf16.msra.mxu0 %v5995
        %7476 = vmatprep.subr.bf16.mxu0 %v6024
        %7477 = vmatpush1.bf16.msra.mxu0 %v6023
        %7478 = vmatprep.subr.bf16.mxu0 %v6052
        %7479 = vmatpush1.bf16.msra.mxu0 %v6051
        %7480 = vmatprep.subr.bf16.mxu0 %v6080
        %7481 = vmatpush1.bf16.msra.mxu0 %v6079
        %7482 = vmatprep.subr.bf16.mxu0 %v6108
        %7483 = vmatpush1.bf16.msra.mxu0 %v6107
        %7484 = vmatprep.subr.bf16.mxu0 0
        %7485 = vmatpush1.bf16.msra.mxu0 0
        %7486 = vmatprep.subr.bf16.mxu0 0
        %7487 = vmatpush1.bf16.msra.mxu0 0
        %7488 = vmatprep.subr.bf16.mxu0 0
        %7489 = vmatpush1.bf16.msra.mxu0 0
        %7490 = vmatprep.subr.bf16.mxu0 0
        %7491 = vmatpush1.bf16.msra.mxu0 0
        %7492 = vmatprep.subr.bf16.mxu0 0
        %7493 = vmatpush1.bf16.msra.mxu0 0
        %7494 = vmatprep.subr.bf16.mxu0 0
        %7495 = vmatpush1.bf16.msra.mxu0 0
        %7496 = vmatprep.subr.bf16.mxu0 0
        %7497 = vmatpush1.bf16.msra.mxu0 0
        %7498 = vmatprep.subr.bf16.mxu0 0
        %7499 = vmatpush1.bf16.msra.mxu0 0
        %7500 = vmatprep.mubr.bf16.mxu0 0
        %7501 = vmatmul.mubr.bf16.gmra.mrb[0].mxu0 %v1647
        %v7502 = vpop.f32.mrb[0].mxu0
        %v7503 = vadd.f32 %v7460, %v7502
        %v7504 = vpop.f32.mrb[0].mxu0
        %v7505 = vadd.f32 %v7462, %v7504
        %v7506 = vpop.f32.mrb[0].mxu0
        %v7507 = vadd.f32 %v7464, %v7506
        %v7508 = vpop.f32.mrb[0].mxu0
        %v7509 = vadd.f32 %v7466, %v7508
        %7510 = vdwg.mxu0
        %7511 = vmatprep.subr.bf16.mxu0 %v5018
        %7512 = vmatpush1.bf16.msra.mxu0 %v5017
        %7513 = vmatprep.subr.bf16.mxu0 %v5046
        %7514 = vmatpush1.bf16.msra.mxu0 %v5045
        %7515 = vmatprep.subr.bf16.mxu0 %v5074
        %7516 = vmatpush1.bf16.msra.mxu0 %v5073
        %7517 = vmatprep.subr.bf16.mxu0 %v5102
        %7518 = vmatpush1.bf16.msra.mxu0 %v5101
        %7519 = vmatprep.subr.bf16.mxu0 %v5130
        %7520 = vmatpush1.bf16.msra.mxu0 %v5129
        %7521 = vmatprep.subr.bf16.mxu0 %v5158
        %7522 = vmatpush1.bf16.msra.mxu0 %v5157
        %7523 = vmatprep.subr.bf16.mxu0 %v5186
        %7524 = vmatpush1.bf16.msra.mxu0 %v5185
        %7525 = vmatprep.subr.bf16.mxu0 %v5214
        %7526 = vmatpush1.bf16.msra.mxu0 %v5213
        %7527 = vmatprep.subr.bf16.mxu0 %v5242
        %7528 = vmatpush1.bf16.msra.mxu0 %v5241
        %7529 = vmatprep.subr.bf16.mxu0 %v5270
        %7530 = vmatpush1.bf16.msra.mxu0 %v5269
        %7531 = vmatprep.subr.bf16.mxu0 %v5298
        %7532 = vmatpush1.bf16.msra.mxu0 %v5297
        %7533 = vmatprep.subr.bf16.mxu0 %v5326
        %7534 = vmatpush1.bf16.msra.mxu0 %v5325
        %7535 = vmatprep.subr.bf16.mxu0 %v5354
        %7536 = vmatpush1.bf16.msra.mxu0 %v5353
        %7537 = vmatprep.subr.bf16.mxu0 %v5382
        %7538 = vmatpush1.bf16.msra.mxu0 %v5381
        %7539 = vmatprep.subr.bf16.mxu0 %v5410
        %7540 = vmatpush1.bf16.msra.mxu0 %v5409
        %7541 = vmatprep.subr.bf16.mxu0 %v5438
        %7542 = vmatpush1.bf16.msra.mxu0 %v5437
        %7543 = vmatprep.mubr.bf16.mxu0 %v1644
        %7544 = vmatmul.mubr.bf16.gmra.mrb[0].mxu0 %v1643
        %v7545 = vpop.f32.mrb[0].mxu0
        %v7546 = vadd.f32 %v1506, %v7545
        %v7547 = vpop.f32.mrb[0].mxu0
        %v7548 = vadd.f32 %v1510, %v7547
        %v7549 = vpop.f32.mrb[0].mxu0
        %v7550 = vadd.f32 %v1506, %v7549
        %v7551 = vpop.f32.mrb[0].mxu0
        %v7552 = vadd.f32 %v1510, %v7551
        %7553 = vdwg.mxu0
        %7554 = vmatprep.subr.bf16.mxu0 %v5466
        %7555 = vmatpush1.bf16.msra.mxu0 %v5465
        %7556 = vmatprep.subr.bf16.mxu0 %v5494
        %7557 = vmatpush1.bf16.msra.mxu0 %v5493
        %7558 = vmatprep.subr.bf16.mxu0 %v5522
        %7559 = vmatpush1.bf16.msra.mxu0 %v5521
        %7560 = vmatprep.subr.bf16.mxu0 %v5550
        %7561 = vmatpush1.bf16.msra.mxu0 %v5549
        %7562 = vmatprep.subr.bf16.mxu0 %v5578
        %7563 = vmatpush1.bf16.msra.mxu0 %v5577
        %7564 = vmatprep.subr.bf16.mxu0 %v5606
        %7565 = vmatpush1.bf16.msra.mxu0 %v5605
        %7566 = vmatprep.subr.bf16.mxu0 %v5634
        %7567 = vmatpush1.bf16.msra.mxu0 %v5633
        %7568 = vmatprep.subr.bf16.mxu0 %v5662
        %7569 = vmatpush1.bf16.msra.mxu0 %v5661
        %7570 = vmatprep.subr.bf16.mxu0 %v5690
        %7571 = vmatpush1.bf16.msra.mxu0 %v5689
        %7572 = vmatprep.subr.bf16.mxu0 %v5718
        %7573 = vmatpush1.bf16.msra.mxu0 %v5717
        %7574 = vmatprep.subr.bf16.mxu0 %v5746
        %7575 = vmatpush1.bf16.msra.mxu0 %v5745
        %7576 = vmatprep.subr.bf16.mxu0 %v5774
        %7577 = vmatpush1.bf16.msra.mxu0 %v5773
        %7578 = vmatprep.subr.bf16.mxu0 %v5802
        %7579 = vmatpush1.bf16.msra.mxu0 %v5801
        %7580 = vmatprep.subr.bf16.mxu0 %v5830
        %7581 = vmatpush1.bf16.msra.mxu0 %v5829
        %7582 = vmatprep.subr.bf16.mxu0 %v5858
        %7583 = vmatpush1.bf16.msra.mxu0 %v5857
        %7584 = vmatprep.subr.bf16.mxu0 %v5886
        %7585 = vmatpush1.bf16.msra.mxu0 %v5885
        %7586 = vmatprep.mubr.bf16.mxu0 %v1646
        %7587 = vmatmul.mubr.bf16.gmra.mrb[0].mxu0 %v1645
        %v7588 = vpop.f32.mrb[0].mxu0
        %v7589 = vadd.f32 %v7546, %v7588
        %v7590 = vpop.f32.mrb[0].mxu0
        %v7591 = vadd.f32 %v7548, %v7590
        %v7592 = vpop.f32.mrb[0].mxu0
        %v7593 = vadd.f32 %v7550, %v7592
        %v7594 = vpop.f32.mrb[0].mxu0
        %v7595 = vadd.f32 %v7552, %v7594
        %7596 = vdwg.mxu0
        %7597 = vmatprep.subr.bf16.mxu0 %v5914
        %7598 = vmatpush1.bf16.msra.mxu0 %v5913
        %7599 = vmatprep.subr.bf16.mxu0 %v5942
        %7600 = vmatpush1.bf16.msra.mxu0 %v5941
        %7601 = vmatprep.subr.bf16.mxu0 %v5970
        %7602 = vmatpush1.bf16.msra.mxu0 %v5969
        %7603 = vmatprep.subr.bf16.mxu0 %v5998
        %7604 = vmatpush1.bf16.msra.mxu0 %v5997
        %7605 = vmatprep.subr.bf16.mxu0 %v6026
        %7606 = vmatpush1.bf16.msra.mxu0 %v6025
        %7607 = vmatprep.subr.bf16.mxu0 %v6054
        %7608 = vmatpush1.bf16.msra.mxu0 %v6053
        %7609 = vmatprep.subr.bf16.mxu0 %v6082
        %7610 = vmatpush1.bf16.msra.mxu0 %v6081
        %7611 = vmatprep.subr.bf16.mxu0 %v6110
        %7612 = vmatpush1.bf16.msra.mxu0 %v6109
        %7613 = vmatprep.subr.bf16.mxu0 0
        %7614 = vmatpush1.bf16.msra.mxu0 0
        %7615 = vmatprep.subr.bf16.mxu0 0
        %7616 = vmatpush1.bf16.msra.mxu0 0
        %7617 = vmatprep.subr.bf16.mxu0 0
        %7618 = vmatpush1.bf16.msra.mxu0 0
        %7619 = vmatprep.subr.bf16.mxu0 0
        %7620 = vmatpush1.bf16.msra.mxu0 0
        %7621 = vmatprep.subr.bf16.mxu0 0
        %7622 = vmatpush1.bf16.msra.mxu0 0
        %7623 = vmatprep.subr.bf16.mxu0 0
        %7624 = vmatpush1.bf16.msra.mxu0 0
        %7625 = vmatprep.subr.bf16.mxu0 0
        %7626 = vmatpush1.bf16.msra.mxu0 0
        %7627 = vmatprep.subr.bf16.mxu0 0
        %7628 = vmatpush1.bf16.msra.mxu0 0
        %7629 = vmatprep.mubr.bf16.mxu0 0
        %7630 = vmatmul.mubr.bf16.gmra.mrb[0].mxu0 %v1647
        %v7631 = vpop.f32.mrb[0].mxu0
        %v7632 = vadd.f32 %v7589, %v7631
        %v7633 = vpop.f32.mrb[0].mxu0
        %v7634 = vadd.f32 %v7591, %v7633
        %v7635 = vpop.f32.mrb[0].mxu0
        %v7636 = vadd.f32 %v7593, %v7635
        %v7637 = vpop.f32.mrb[0].mxu0
        %v7638 = vadd.f32 %v7595, %v7637
        %7639 = vdwg.mxu0
        %7640 = vmatprep.subr.bf16.mxu0 %v5020
        %7641 = vmatpush1.bf16.msra.mxu0 %v5019
        %7642 = vmatprep.subr.bf16.mxu0 %v5048
        %7643 = vmatpush1.bf16.msra.mxu0 %v5047
        %7644 = vmatprep.subr.bf16.mxu0 %v5076
        %7645 = vmatpush1.bf16.msra.mxu0 %v5075
        %7646 = vmatprep.subr.bf16.mxu0 %v5104
        %7647 = vmatpush1.bf16.msra.mxu0 %v5103
        %7648 = vmatprep.subr.bf16.mxu0 %v5132
        %7649 = vmatpush1.bf16.msra.mxu0 %v5131
        %7650 = vmatprep.subr.bf16.mxu0 %v5160
        %7651 = vmatpush1.bf16.msra.mxu0 %v5159
        %7652 = vmatprep.subr.bf16.mxu0 %v5188
        %7653 = vmatpush1.bf16.msra.mxu0 %v5187
        %7654 = vmatprep.subr.bf16.mxu0 %v5216
        %7655 = vmatpush1.bf16.msra.mxu0 %v5215
        %7656 = vmatprep.subr.bf16.mxu0 %v5244
        %7657 = vmatpush1.bf16.msra.mxu0 %v5243
        %7658 = vmatprep.subr.bf16.mxu0 %v5272
        %7659 = vmatpush1.bf16.msra.mxu0 %v5271
        %7660 = vmatprep.subr.bf16.mxu0 %v5300
        %7661 = vmatpush1.bf16.msra.mxu0 %v5299
        %7662 = vmatprep.subr.bf16.mxu0 %v5328
        %7663 = vmatpush1.bf16.msra.mxu0 %v5327
        %7664 = vmatprep.subr.bf16.mxu0 %v5356
        %7665 = vmatpush1.bf16.msra.mxu0 %v5355
        %7666 = vmatprep.subr.bf16.mxu0 %v5384
        %7667 = vmatpush1.bf16.msra.mxu0 %v5383
        %7668 = vmatprep.subr.bf16.mxu0 %v5412
        %7669 = vmatpush1.bf16.msra.mxu0 %v5411
        %7670 = vmatprep.subr.bf16.mxu0 %v5440
        %7671 = vmatpush1.bf16.msra.mxu0 %v5439
        %7672 = vmatprep.mubr.bf16.mxu0 %v1644
        %7673 = vmatmul.mubr.bf16.gmra.mrb[0].mxu0 %v1643
        %v7674 = vpop.f32.mrb[0].mxu0
        %v7675 = vadd.f32 %v1514, %v7674
        %v7676 = vpop.f32.mrb[0].mxu0
        %v7677 = vadd.f32 %v1518, %v7676
        %v7678 = vpop.f32.mrb[0].mxu0
        %v7679 = vadd.f32 %v1514, %v7678
        %v7680 = vpop.f32.mrb[0].mxu0
        %v7681 = vadd.f32 %v1518, %v7680
        %7682 = vdwg.mxu0
        %7683 = vmatprep.subr.bf16.mxu0 %v5468
        %7684 = vmatpush1.bf16.msra.mxu0 %v5467
        %7685 = vmatprep.subr.bf16.mxu0 %v5496
        %7686 = vmatpush1.bf16.msra.mxu0 %v5495
        %7687 = vmatprep.subr.bf16.mxu0 %v5524
        %7688 = vmatpush1.bf16.msra.mxu0 %v5523
        %7689 = vmatprep.subr.bf16.mxu0 %v5552
        %7690 = vmatpush1.bf16.msra.mxu0 %v5551
        %7691 = vmatprep.subr.bf16.mxu0 %v5580
        %7692 = vmatpush1.bf16.msra.mxu0 %v5579
        %7693 = vmatprep.subr.bf16.mxu0 %v5608
        %7694 = vmatpush1.bf16.msra.mxu0 %v5607
        %7695 = vmatprep.subr.bf16.mxu0 %v5636
        %7696 = vmatpush1.bf16.msra.mxu0 %v5635
        %7697 = vmatprep.subr.bf16.mxu0 %v5664
        %7698 = vmatpush1.bf16.msra.mxu0 %v5663
        %7699 = vmatprep.subr.bf16.mxu0 %v5692
        %7700 = vmatpush1.bf16.msra.mxu0 %v5691
        %7701 = vmatprep.subr.bf16.mxu0 %v5720
        %7702 = vmatpush1.bf16.msra.mxu0 %v5719
        %7703 = vmatprep.subr.bf16.mxu0 %v5748
        %7704 = vmatpush1.bf16.msra.mxu0 %v5747
        %7705 = vmatprep.subr.bf16.mxu0 %v5776
        %7706 = vmatpush1.bf16.msra.mxu0 %v5775
        %7707 = vmatprep.subr.bf16.mxu0 %v5804
        %7708 = vmatpush1.bf16.msra.mxu0 %v5803
        %7709 = vmatprep.subr.bf16.mxu0 %v5832
        %7710 = vmatpush1.bf16.msra.mxu0 %v5831
        %7711 = vmatprep.subr.bf16.mxu0 %v5860
        %7712 = vmatpush1.bf16.msra.mxu0 %v5859
        %7713 = vmatprep.subr.bf16.mxu0 %v5888
        %7714 = vmatpush1.bf16.msra.mxu0 %v5887
        %7715 = vmatprep.mubr.bf16.mxu0 %v1646
        %7716 = vmatmul.mubr.bf16.gmra.mrb[0].mxu0 %v1645
        %v7717 = vpop.f32.mrb[0].mxu0
        %v7718 = vadd.f32 %v7675, %v7717
        %v7719 = vpop.f32.mrb[0].mxu0
        %v7720 = vadd.f32 %v7677, %v7719
        %v7721 = vpop.f32.mrb[0].mxu0
        %v7722 = vadd.f32 %v7679, %v7721
        %v7723 = vpop.f32.mrb[0].mxu0
        %v7724 = vadd.f32 %v7681, %v7723
        %7725 = vdwg.mxu0
        %7726 = vmatprep.subr.bf16.mxu0 %v5916
        %7727 = vmatpush1.bf16.msra.mxu0 %v5915
        %7728 = vmatprep.subr.bf16.mxu0 %v5944
        %7729 = vmatpush1.bf16.msra.mxu0 %v5943
        %7730 = vmatprep.subr.bf16.mxu0 %v5972
        %7731 = vmatpush1.bf16.msra.mxu0 %v5971
        %7732 = vmatprep.subr.bf16.mxu0 %v6000
        %7733 = vmatpush1.bf16.msra.mxu0 %v5999
        %7734 = vmatprep.subr.bf16.mxu0 %v6028
        %7735 = vmatpush1.bf16.msra.mxu0 %v6027
        %7736 = vmatprep.subr.bf16.mxu0 %v6056
        %7737 = vmatpush1.bf16.msra.mxu0 %v6055
        %7738 = vmatprep.subr.bf16.mxu0 %v6084
        %7739 = vmatpush1.bf16.msra.mxu0 %v6083
        %7740 = vmatprep.subr.bf16.mxu0 %v6112
        %7741 = vmatpush1.bf16.msra.mxu0 %v6111
        %7742 = vmatprep.subr.bf16.mxu0 0
        %7743 = vmatpush1.bf16.msra.mxu0 0
        %7744 = vmatprep.subr.bf16.mxu0 0
        %7745 = vmatpush1.bf16.msra.mxu0 0
        %7746 = vmatprep.subr.bf16.mxu0 0
        %7747 = vmatpush1.bf16.msra.mxu0 0
        %7748 = vmatprep.subr.bf16.mxu0 0
        %7749 = vmatpush1.bf16.msra.mxu0 0
        %7750 = vmatprep.subr.bf16.mxu0 0
        %7751 = vmatpush1.bf16.msra.mxu0 0
        %7752 = vmatprep.subr.bf16.mxu0 0
        %7753 = vmatpush1.bf16.msra.mxu0 0
        %7754 = vmatprep.subr.bf16.mxu0 0
        %7755 = vmatpush1.bf16.msra.mxu0 0
        %7756 = vmatprep.subr.bf16.mxu0 0
        %7757 = vmatpush1.bf16.msra.mxu0 0
        %7758 = vmatprep.mubr.bf16.mxu0 0
        %7759 = vmatmul.mubr.bf16.gmra.mrb[0].mxu0 %v1647
        %v7760 = vpop.f32.mrb[0].mxu0
        %v7761 = vadd.f32 %v7718, %v7760
        %v7762 = vpop.f32.mrb[0].mxu0
        %v7763 = vadd.f32 %v7720, %v7762
        %v7764 = vpop.f32.mrb[0].mxu0
        %v7765 = vadd.f32 %v7722, %v7764
        %v7766 = vpop.f32.mrb[0].mxu0
        %v7767 = vadd.f32 %v7724, %v7766
        %7768 = vdwg.mxu0
        %7769 = vmatprep.subr.bf16.mxu0 %v5022
        %7770 = vmatpush1.bf16.msra.mxu0 %v5021
        %7771 = vmatprep.subr.bf16.mxu0 %v5050
        %7772 = vmatpush1.bf16.msra.mxu0 %v5049
        %7773 = vmatprep.subr.bf16.mxu0 %v5078
        %7774 = vmatpush1.bf16.msra.mxu0 %v5077
        %7775 = vmatprep.subr.bf16.mxu0 %v5106
        %7776 = vmatpush1.bf16.msra.mxu0 %v5105
        %7777 = vmatprep.subr.bf16.mxu0 %v5134
        %7778 = vmatpush1.bf16.msra.mxu0 %v5133
        %7779 = vmatprep.subr.bf16.mxu0 %v5162
        %7780 = vmatpush1.bf16.msra.mxu0 %v5161
        %7781 = vmatprep.subr.bf16.mxu0 %v5190
        %7782 = vmatpush1.bf16.msra.mxu0 %v5189
        %7783 = vmatprep.subr.bf16.mxu0 %v5218
        %7784 = vmatpush1.bf16.msra.mxu0 %v5217
        %7785 = vmatprep.subr.bf16.mxu0 %v5246
        %7786 = vmatpush1.bf16.msra.mxu0 %v5245
        %7787 = vmatprep.subr.bf16.mxu0 %v5274
        %7788 = vmatpush1.bf16.msra.mxu0 %v5273
        %7789 = vmatprep.subr.bf16.mxu0 %v5302
        %7790 = vmatpush1.bf16.msra.mxu0 %v5301
        %7791 = vmatprep.subr.bf16.mxu0 %v5330
        %7792 = vmatpush1.bf16.msra.mxu0 %v5329
        %7793 = vmatprep.subr.bf16.mxu0 %v5358
        %7794 = vmatpush1.bf16.msra.mxu0 %v5357
        %7795 = vmatprep.subr.bf16.mxu0 %v5386
        %7796 = vmatpush1.bf16.msra.mxu0 %v5385
        %7797 = vmatprep.subr.bf16.mxu0 %v5414
        %7798 = vmatpush1.bf16.msra.mxu0 %v5413
        %7799 = vmatprep.subr.bf16.mxu0 %v5442
        %7800 = vmatpush1.bf16.msra.mxu0 %v5441
        %7801 = vmatprep.mubr.bf16.mxu0 %v1644
        %7802 = vmatmul.mubr.bf16.gmra.mrb[0].mxu0 %v1643
        %v7803 = vpop.f32.mrb[0].mxu0
        %v7804 = vadd.f32 %v1522, %v7803
        %v7805 = vpop.f32.mrb[0].mxu0
        %v7806 = vadd.f32 %v1526, %v7805
        %v7807 = vpop.f32.mrb[0].mxu0
        %v7808 = vadd.f32 %v1522, %v7807
        %v7809 = vpop.f32.mrb[0].mxu0
        %v7810 = vadd.f32 %v1526, %v7809
        %7811 = vdwg.mxu0
        %7812 = vmatprep.subr.bf16.mxu0 %v5470
        %7813 = vmatpush1.bf16.msra.mxu0 %v5469
        %7814 = vmatprep.subr.bf16.mxu0 %v5498
        %7815 = vmatpush1.bf16.msra.mxu0 %v5497
        %7816 = vmatprep.subr.bf16.mxu0 %v5526
        %7817 = vmatpush1.bf16.msra.mxu0 %v5525
        %7818 = vmatprep.subr.bf16.mxu0 %v5554
        %7819 = vmatpush1.bf16.msra.mxu0 %v5553
        %7820 = vmatprep.subr.bf16.mxu0 %v5582
        %7821 = vmatpush1.bf16.msra.mxu0 %v5581
        %7822 = vmatprep.subr.bf16.mxu0 %v5610
        %7823 = vmatpush1.bf16.msra.mxu0 %v5609
        %7824 = vmatprep.subr.bf16.mxu0 %v5638
        %7825 = vmatpush1.bf16.msra.mxu0 %v5637
        %7826 = vmatprep.subr.bf16.mxu0 %v5666
        %7827 = vmatpush1.bf16.msra.mxu0 %v5665
        %7828 = vmatprep.subr.bf16.mxu0 %v5694
        %7829 = vmatpush1.bf16.msra.mxu0 %v5693
        %7830 = vmatprep.subr.bf16.mxu0 %v5722
        %7831 = vmatpush1.bf16.msra.mxu0 %v5721
        %7832 = vmatprep.subr.bf16.mxu0 %v5750
        %7833 = vmatpush1.bf16.msra.mxu0 %v5749
        %7834 = vmatprep.subr.bf16.mxu0 %v5778
        %7835 = vmatpush1.bf16.msra.mxu0 %v5777
        %7836 = vmatprep.subr.bf16.mxu0 %v5806
        %7837 = vmatpush1.bf16.msra.mxu0 %v5805
        %7838 = vmatprep.subr.bf16.mxu0 %v5834
        %7839 = vmatpush1.bf16.msra.mxu0 %v5833
        %7840 = vmatprep.subr.bf16.mxu0 %v5862
        %7841 = vmatpush1.bf16.msra.mxu0 %v5861
        %7842 = vmatprep.subr.bf16.mxu0 %v5890
        %7843 = vmatpush1.bf16.msra.mxu0 %v5889
        %7844 = vmatprep.mubr.bf16.mxu0 %v1646
        %7845 = vmatmul.mubr.bf16.gmra.mrb[0].mxu0 %v1645
        %v7846 = vpop.f32.mrb[0].mxu0
        %v7847 = vadd.f32 %v7804, %v7846
        %v7848 = vpop.f32.mrb[0].mxu0
        %v7849 = vadd.f32 %v7806, %v7848
        %v7850 = vpop.f32.mrb[0].mxu0
        %v7851 = vadd.f32 %v7808, %v7850
        %v7852 = vpop.f32.mrb[0].mxu0
        %v7853 = vadd.f32 %v7810, %v7852
        %7854 = vdwg.mxu0
        %7855 = vmatprep.subr.bf16.mxu0 %v5918
        %7856 = vmatpush1.bf16.msra.mxu0 %v5917
        %7857 = vmatprep.subr.bf16.mxu0 %v5946
        %7858 = vmatpush1.bf16.msra.mxu0 %v5945
        %7859 = vmatprep.subr.bf16.mxu0 %v5974
        %7860 = vmatpush1.bf16.msra.mxu0 %v5973
        %7861 = vmatprep.subr.bf16.mxu0 %v6002
        %7862 = vmatpush1.bf16.msra.mxu0 %v6001
        %7863 = vmatprep.subr.bf16.mxu0 %v6030
        %7864 = vmatpush1.bf16.msra.mxu0 %v6029
        %7865 = vmatprep.subr.bf16.mxu0 %v6058
        %7866 = vmatpush1.bf16.msra.mxu0 %v6057
        %7867 = vmatprep.subr.bf16.mxu0 %v6086
        %7868 = vmatpush1.bf16.msra.mxu0 %v6085
        %7869 = vmatprep.subr.bf16.mxu0 %v6114
        %7870 = vmatpush1.bf16.msra.mxu0 %v6113
        %7871 = vmatprep.subr.bf16.mxu0 0
        %7872 = vmatpush1.bf16.msra.mxu0 0
        %7873 = vmatprep.subr.bf16.mxu0 0
        %7874 = vmatpush1.bf16.msra.mxu0 0
        %7875 = vmatprep.subr.bf16.mxu0 0
        %7876 = vmatpush1.bf16.msra.mxu0 0
        %7877 = vmatprep.subr.bf16.mxu0 0
        %7878 = vmatpush1.bf16.msra.mxu0 0
        %7879 = vmatprep.subr.bf16.mxu0 0
        %7880 = vmatpush1.bf16.msra.mxu0 0
        %7881 = vmatprep.subr.bf16.mxu0 0
        %7882 = vmatpush1.bf16.msra.mxu0 0
        %7883 = vmatprep.subr.bf16.mxu0 0
        %7884 = vmatpush1.bf16.msra.mxu0 0
        %7885 = vmatprep.subr.bf16.mxu0 0
        %7886 = vmatpush1.bf16.msra.mxu0 0
        %7887 = vmatprep.mubr.bf16.mxu0 0
        %7888 = vmatmul.mubr.bf16.gmra.mrb[0].mxu0 %v1647
        %v7889 = vpop.f32.mrb[0].mxu0
        %v7890 = vadd.f32 %v7847, %v7889
        %v7891 = vpop.f32.mrb[0].mxu0
        %v7892 = vadd.f32 %v7849, %v7891
        %v7893 = vpop.f32.mrb[0].mxu0
        %v7894 = vadd.f32 %v7851, %v7893
        %v7895 = vpop.f32.mrb[0].mxu0
        %v7896 = vadd.f32 %v7853, %v7895
        %7897 = vdwg.mxu0
        %7898 = vmatprep.subr.bf16.mxu0 %v5024
        %7899 = vmatpush1.bf16.msra.mxu0 %v5023
        %7900 = vmatprep.subr.bf16.mxu0 %v5052
        %7901 = vmatpush1.bf16.msra.mxu0 %v5051
        %7902 = vmatprep.subr.bf16.mxu0 %v5080
        %7903 = vmatpush1.bf16.msra.mxu0 %v5079
        %7904 = vmatprep.subr.bf16.mxu0 %v5108
        %7905 = vmatpush1.bf16.msra.mxu0 %v5107
        %7906 = vmatprep.subr.bf16.mxu0 %v5136
        %7907 = vmatpush1.bf16.msra.mxu0 %v5135
        %7908 = vmatprep.subr.bf16.mxu0 %v5164
        %7909 = vmatpush1.bf16.msra.mxu0 %v5163
        %7910 = vmatprep.subr.bf16.mxu0 %v5192
        %7911 = vmatpush1.bf16.msra.mxu0 %v5191
        %7912 = vmatprep.subr.bf16.mxu0 %v5220
        %7913 = vmatpush1.bf16.msra.mxu0 %v5219
        %7914 = vmatprep.subr.bf16.mxu0 %v5248
        %7915 = vmatpush1.bf16.msra.mxu0 %v5247
        %7916 = vmatprep.subr.bf16.mxu0 %v5276
        %7917 = vmatpush1.bf16.msra.mxu0 %v5275
        %7918 = vmatprep.subr.bf16.mxu0 %v5304
        %7919 = vmatpush1.bf16.msra.mxu0 %v5303
        %7920 = vmatprep.subr.bf16.mxu0 %v5332
        %7921 = vmatpush1.bf16.msra.mxu0 %v5331
        %7922 = vmatprep.subr.bf16.mxu0 %v5360
        %7923 = vmatpush1.bf16.msra.mxu0 %v5359
        %7924 = vmatprep.subr.bf16.mxu0 %v5388
        %7925 = vmatpush1.bf16.msra.mxu0 %v5387
        %7926 = vmatprep.subr.bf16.mxu0 %v5416
        %7927 = vmatpush1.bf16.msra.mxu0 %v5415
        %7928 = vmatprep.subr.bf16.mxu0 %v5444
        %7929 = vmatpush1.bf16.msra.mxu0 %v5443
        %7930 = vmatprep.mubr.bf16.mxu0 %v1644
        %7931 = vmatmul.mubr.bf16.gmra.mrb[0].mxu0 %v1643
        %v7932 = vpop.f32.mrb[0].mxu0
        %v7933 = vadd.f32 %v1530, %v7932
        %v7934 = vpop.f32.mrb[0].mxu0
        %v7935 = vadd.f32 %v1534, %v7934
        %v7936 = vpop.f32.mrb[0].mxu0
        %v7937 = vadd.f32 %v1530, %v7936
        %v7938 = vpop.f32.mrb[0].mxu0
        %v7939 = vadd.f32 %v1534, %v7938
        %7940 = vdwg.mxu0
        %7941 = vmatprep.subr.bf16.mxu0 %v5472
        %7942 = vmatpush1.bf16.msra.mxu0 %v5471
        %7943 = vmatprep.subr.bf16.mxu0 %v5500
        %7944 = vmatpush1.bf16.msra.mxu0 %v5499
        %7945 = vmatprep.subr.bf16.mxu0 %v5528
        %7946 = vmatpush1.bf16.msra.mxu0 %v5527
        %7947 = vmatprep.subr.bf16.mxu0 %v5556
        %7948 = vmatpush1.bf16.msra.mxu0 %v5555
        %7949 = vmatprep.subr.bf16.mxu0 %v5584
        %7950 = vmatpush1.bf16.msra.mxu0 %v5583
        %7951 = vmatprep.subr.bf16.mxu0 %v5612
        %7952 = vmatpush1.bf16.msra.mxu0 %v5611
        %7953 = vmatprep.subr.bf16.mxu0 %v5640
        %7954 = vmatpush1.bf16.msra.mxu0 %v5639
        %7955 = vmatprep.subr.bf16.mxu0 %v5668
        %7956 = vmatpush1.bf16.msra.mxu0 %v5667
        %7957 = vmatprep.subr.bf16.mxu0 %v5696
        %7958 = vmatpush1.bf16.msra.mxu0 %v5695
        %7959 = vmatprep.subr.bf16.mxu0 %v5724
        %7960 = vmatpush1.bf16.msra.mxu0 %v5723
        %7961 = vmatprep.subr.bf16.mxu0 %v5752
        %7962 = vmatpush1.bf16.msra.mxu0 %v5751
        %7963 = vmatprep.subr.bf16.mxu0 %v5780
        %7964 = vmatpush1.bf16.msra.mxu0 %v5779
        %7965 = vmatprep.subr.bf16.mxu0 %v5808
        %7966 = vmatpush1.bf16.msra.mxu0 %v5807
        %7967 = vmatprep.subr.bf16.mxu0 %v5836
        %7968 = vmatpush1.bf16.msra.mxu0 %v5835
        %7969 = vmatprep.subr.bf16.mxu0 %v5864
        %7970 = vmatpush1.bf16.msra.mxu0 %v5863
        %7971 = vmatprep.subr.bf16.mxu0 %v5892
        %7972 = vmatpush1.bf16.msra.mxu0 %v5891
        %7973 = vmatprep.mubr.bf16.mxu0 %v1646
        %7974 = vmatmul.mubr.bf16.gmra.mrb[0].mxu0 %v1645
        %v7975 = vpop.f32.mrb[0].mxu0
        %v7976 = vadd.f32 %v7933, %v7975
        %v7977 = vpop.f32.mrb[0].mxu0
        %v7978 = vadd.f32 %v7935, %v7977
        %v7979 = vpop.f32.mrb[0].mxu0
        %v7980 = vadd.f32 %v7937, %v7979
        %v7981 = vpop.f32.mrb[0].mxu0
        %v7982 = vadd.f32 %v7939, %v7981
        %7983 = vdwg.mxu0
        %7984 = vmatprep.subr.bf16.mxu0 %v5920
        %7985 = vmatpush1.bf16.msra.mxu0 %v5919
        %7986 = vmatprep.subr.bf16.mxu0 %v5948
        %7987 = vmatpush1.bf16.msra.mxu0 %v5947
        %7988 = vmatprep.subr.bf16.mxu0 %v5976
        %7989 = vmatpush1.bf16.msra.mxu0 %v5975
        %7990 = vmatprep.subr.bf16.mxu0 %v6004
        %7991 = vmatpush1.bf16.msra.mxu0 %v6003
        %7992 = vmatprep.subr.bf16.mxu0 %v6032
        %7993 = vmatpush1.bf16.msra.mxu0 %v6031
        %7994 = vmatprep.subr.bf16.mxu0 %v6060
        %7995 = vmatpush1.bf16.msra.mxu0 %v6059
        %7996 = vmatprep.subr.bf16.mxu0 %v6088
        %7997 = vmatpush1.bf16.msra.mxu0 %v6087
        %7998 = vmatprep.subr.bf16.mxu0 %v6116
        %7999 = vmatpush1.bf16.msra.mxu0 %v6115
        %8000 = vmatprep.subr.bf16.mxu0 0
        %8001 = vmatpush1.bf16.msra.mxu0 0
        %8002 = vmatprep.subr.bf16.mxu0 0
        %8003 = vmatpush1.bf16.msra.mxu0 0
        %8004 = vmatprep.subr.bf16.mxu0 0
        %8005 = vmatpush1.bf16.msra.mxu0 0
        %8006 = vmatprep.subr.bf16.mxu0 0
        %8007 = vmatpush1.bf16.msra.mxu0 0
        %8008 = vmatprep.subr.bf16.mxu0 0
        %8009 = vmatpush1.bf16.msra.mxu0 0
        %8010 = vmatprep.subr.bf16.mxu0 0
        %8011 = vmatpush1.bf16.msra.mxu0 0
        %8012 = vmatprep.subr.bf16.mxu0 0
        %8013 = vmatpush1.bf16.msra.mxu0 0
        %8014 = vmatprep.subr.bf16.mxu0 0
        %8015 = vmatpush1.bf16.msra.mxu0 0
        %8016 = vmatprep.mubr.bf16.mxu0 0
        %8017 = vmatmul.mubr.bf16.gmra.mrb[0].mxu0 %v1647
        %v8018 = vpop.f32.mrb[0].mxu0
        %v8019 = vadd.f32 %v7976, %v8018
        %v8020 = vpop.f32.mrb[0].mxu0
        %v8021 = vadd.f32 %v7978, %v8020
        %v8022 = vpop.f32.mrb[0].mxu0
        %v8023 = vadd.f32 %v7980, %v8022
        %v8024 = vpop.f32.mrb[0].mxu0
        %v8025 = vadd.f32 %v7982, %v8024
        %8026 = vdwg.mxu0
        %8027 = vmatprep.subr.bf16.mxu0 %v5026
        %8028 = vmatpush1.bf16.msra.mxu0 %v5025
        %8029 = vmatprep.subr.bf16.mxu0 %v5054
        %8030 = vmatpush1.bf16.msra.mxu0 %v5053
        %8031 = vmatprep.subr.bf16.mxu0 %v5082
        %8032 = vmatpush1.bf16.msra.mxu0 %v5081
        %8033 = vmatprep.subr.bf16.mxu0 %v5110
        %8034 = vmatpush1.bf16.msra.mxu0 %v5109
        %8035 = vmatprep.subr.bf16.mxu0 %v5138
        %8036 = vmatpush1.bf16.msra.mxu0 %v5137
        %8037 = vmatprep.subr.bf16.mxu0 %v5166
        %8038 = vmatpush1.bf16.msra.mxu0 %v5165
        %8039 = vmatprep.subr.bf16.mxu0 %v5194
        %8040 = vmatpush1.bf16.msra.mxu0 %v5193
        %8041 = vmatprep.subr.bf16.mxu0 %v5222
        %8042 = vmatpush1.bf16.msra.mxu0 %v5221
        %8043 = vmatprep.subr.bf16.mxu0 %v5250
        %8044 = vmatpush1.bf16.msra.mxu0 %v5249
        %8045 = vmatprep.subr.bf16.mxu0 %v5278
        %8046 = vmatpush1.bf16.msra.mxu0 %v5277
        %8047 = vmatprep.subr.bf16.mxu0 %v5306
        %8048 = vmatpush1.bf16.msra.mxu0 %v5305
        %8049 = vmatprep.subr.bf16.mxu0 %v5334
        %8050 = vmatpush1.bf16.msra.mxu0 %v5333
        %8051 = vmatprep.subr.bf16.mxu0 %v5362
        %8052 = vmatpush1.bf16.msra.mxu0 %v5361
        %8053 = vmatprep.subr.bf16.mxu0 %v5390
        %8054 = vmatpush1.bf16.msra.mxu0 %v5389
        %8055 = vmatprep.subr.bf16.mxu0 %v5418
        %8056 = vmatpush1.bf16.msra.mxu0 %v5417
        %8057 = vmatprep.subr.bf16.mxu0 %v5446
        %8058 = vmatpush1.bf16.msra.mxu0 %v5445
        %8059 = vmatprep.mubr.bf16.mxu0 %v1644
        %8060 = vmatmul.mubr.bf16.gmra.mrb[0].mxu0 %v1643
        %v8061 = vpop.f32.mrb[0].mxu0
        %v8062 = vadd.f32 %v1538, %v8061
        %v8063 = vpop.f32.mrb[0].mxu0
        %v8064 = vadd.f32 %v1542, %v8063
        %v8065 = vpop.f32.mrb[0].mxu0
        %v8066 = vadd.f32 %v1538, %v8065
        %v8067 = vpop.f32.mrb[0].mxu0
        %v8068 = vadd.f32 %v1542, %v8067
        %8069 = vdwg.mxu0
        %8070 = vmatprep.subr.bf16.mxu0 %v5474
        %8071 = vmatpush1.bf16.msra.mxu0 %v5473
        %8072 = vmatprep.subr.bf16.mxu0 %v5502
        %8073 = vmatpush1.bf16.msra.mxu0 %v5501
        %8074 = vmatprep.subr.bf16.mxu0 %v5530
        %8075 = vmatpush1.bf16.msra.mxu0 %v5529
        %8076 = vmatprep.subr.bf16.mxu0 %v5558
        %8077 = vmatpush1.bf16.msra.mxu0 %v5557
        %8078 = vmatprep.subr.bf16.mxu0 %v5586
        %8079 = vmatpush1.bf16.msra.mxu0 %v5585
        %8080 = vmatprep.subr.bf16.mxu0 %v5614
        %8081 = vmatpush1.bf16.msra.mxu0 %v5613
        %8082 = vmatprep.subr.bf16.mxu0 %v5642
        %8083 = vmatpush1.bf16.msra.mxu0 %v5641
        %8084 = vmatprep.subr.bf16.mxu0 %v5670
        %8085 = vmatpush1.bf16.msra.mxu0 %v5669
        %8086 = vmatprep.subr.bf16.mxu0 %v5698
        %8087 = vmatpush1.bf16.msra.mxu0 %v5697
        %8088 = vmatprep.subr.bf16.mxu0 %v5726
        %8089 = vmatpush1.bf16.msra.mxu0 %v5725
        %8090 = vmatprep.subr.bf16.mxu0 %v5754
        %8091 = vmatpush1.bf16.msra.mxu0 %v5753
        %8092 = vmatprep.subr.bf16.mxu0 %v5782
        %8093 = vmatpush1.bf16.msra.mxu0 %v5781
        %8094 = vmatprep.subr.bf16.mxu0 %v5810
        %8095 = vmatpush1.bf16.msra.mxu0 %v5809
        %8096 = vmatprep.subr.bf16.mxu0 %v5838
        %8097 = vmatpush1.bf16.msra.mxu0 %v5837
        %8098 = vmatprep.subr.bf16.mxu0 %v5866
        %8099 = vmatpush1.bf16.msra.mxu0 %v5865
        %8100 = vmatprep.subr.bf16.mxu0 %v5894
        %8101 = vmatpush1.bf16.msra.mxu0 %v5893
        %8102 = vmatprep.mubr.bf16.mxu0 %v1646
        %8103 = vmatmul.mubr.bf16.gmra.mrb[0].mxu0 %v1645
        %v8104 = vpop.f32.mrb[0].mxu0
        %v8105 = vadd.f32 %v8062, %v8104
        %v8106 = vpop.f32.mrb[0].mxu0
        %v8107 = vadd.f32 %v8064, %v8106
        %v8108 = vpop.f32.mrb[0].mxu0
        %v8109 = vadd.f32 %v8066, %v8108
        %v8110 = vpop.f32.mrb[0].mxu0
        %v8111 = vadd.f32 %v8068, %v8110
        %8112 = vdwg.mxu0
        %8113 = vmatprep.subr.bf16.mxu0 %v5922
        %8114 = vmatpush1.bf16.msra.mxu0 %v5921
        %8115 = vmatprep.subr.bf16.mxu0 %v5950
        %8116 = vmatpush1.bf16.msra.mxu0 %v5949
        %8117 = vmatprep.subr.bf16.mxu0 %v5978
        %8118 = vmatpush1.bf16.msra.mxu0 %v5977
        %8119 = vmatprep.subr.bf16.mxu0 %v6006
        %8120 = vmatpush1.bf16.msra.mxu0 %v6005
        %8121 = vmatprep.subr.bf16.mxu0 %v6034
        %8122 = vmatpush1.bf16.msra.mxu0 %v6033
        %8123 = vmatprep.subr.bf16.mxu0 %v6062
        %8124 = vmatpush1.bf16.msra.mxu0 %v6061
        %8125 = vmatprep.subr.bf16.mxu0 %v6090
        %8126 = vmatpush1.bf16.msra.mxu0 %v6089
        %8127 = vmatprep.subr.bf16.mxu0 %v6118
        %8128 = vmatpush1.bf16.msra.mxu0 %v6117
        %8129 = vmatprep.subr.bf16.mxu0 0
        %8130 = vmatpush1.bf16.msra.mxu0 0
        %8131 = vmatprep.subr.bf16.mxu0 0
        %8132 = vmatpush1.bf16.msra.mxu0 0
        %8133 = vmatprep.subr.bf16.mxu0 0
        %8134 = vmatpush1.bf16.msra.mxu0 0
        %8135 = vmatprep.subr.bf16.mxu0 0
        %8136 = vmatpush1.bf16.msra.mxu0 0
        %8137 = vmatprep.subr.bf16.mxu0 0
        %8138 = vmatpush1.bf16.msra.mxu0 0
        %8139 = vmatprep.subr.bf16.mxu0 0
        %8140 = vmatpush1.bf16.msra.mxu0 0
        %8141 = vmatprep.subr.bf16.mxu0 0
        %8142 = vmatpush1.bf16.msra.mxu0 0
        %8143 = vmatprep.subr.bf16.mxu0 0
        %8144 = vmatpush1.bf16.msra.mxu0 0
        %8145 = vmatprep.mubr.bf16.mxu0 0
        %8146 = vmatmul.mubr.bf16.gmra.mrb[0].mxu0 %v1647
        %v8147 = vpop.f32.mrb[0].mxu0
        %v8148 = vadd.f32 %v8105, %v8147
        %v8149 = vpop.f32.mrb[0].mxu0
        %v8150 = vadd.f32 %v8107, %v8149
        %v8151 = vpop.f32.mrb[0].mxu0
        %v8152 = vadd.f32 %v8109, %v8151
        %v8153 = vpop.f32.mrb[0].mxu0
        %v8154 = vadd.f32 %v8111, %v8153
        %8155 = vdwg.mxu0
        %8156 = vmatprep.subr.bf16.mxu0 %v5028
        %8157 = vmatpush1.bf16.msra.mxu0 %v5027
        %8158 = vmatprep.subr.bf16.mxu0 %v5056
        %8159 = vmatpush1.bf16.msra.mxu0 %v5055
        %8160 = vmatprep.subr.bf16.mxu0 %v5084
        %8161 = vmatpush1.bf16.msra.mxu0 %v5083
        %8162 = vmatprep.subr.bf16.mxu0 %v5112
        %8163 = vmatpush1.bf16.msra.mxu0 %v5111
        %8164 = vmatprep.subr.bf16.mxu0 %v5140
        %8165 = vmatpush1.bf16.msra.mxu0 %v5139
        %8166 = vmatprep.subr.bf16.mxu0 %v5168
        %8167 = vmatpush1.bf16.msra.mxu0 %v5167
        %8168 = vmatprep.subr.bf16.mxu0 %v5196
        %8169 = vmatpush1.bf16.msra.mxu0 %v5195
        %8170 = vmatprep.subr.bf16.mxu0 %v5224
        %8171 = vmatpush1.bf16.msra.mxu0 %v5223
        %8172 = vmatprep.subr.bf16.mxu0 %v5252
        %8173 = vmatpush1.bf16.msra.mxu0 %v5251
        %8174 = vmatprep.subr.bf16.mxu0 %v5280
        %8175 = vmatpush1.bf16.msra.mxu0 %v5279
        %8176 = vmatprep.subr.bf16.mxu0 %v5308
        %8177 = vmatpush1.bf16.msra.mxu0 %v5307
        %8178 = vmatprep.subr.bf16.mxu0 %v5336
        %8179 = vmatpush1.bf16.msra.mxu0 %v5335
        %8180 = vmatprep.subr.bf16.mxu0 %v5364
        %8181 = vmatpush1.bf16.msra.mxu0 %v5363
        %8182 = vmatprep.subr.bf16.mxu0 %v5392
        %8183 = vmatpush1.bf16.msra.mxu0 %v5391
        %8184 = vmatprep.subr.bf16.mxu0 %v5420
        %8185 = vmatpush1.bf16.msra.mxu0 %v5419
        %8186 = vmatprep.subr.bf16.mxu0 %v5448
        %8187 = vmatpush1.bf16.msra.mxu0 %v5447
        %8188 = vmatprep.mubr.bf16.mxu0 %v1644
        %8189 = vmatmul.mubr.bf16.gmra.mrb[0].mxu0 %v1643
        %v8190 = vpop.f32.mrb[0].mxu0
        %v8191 = vadd.f32 %v1546, %v8190
        %v8192 = vpop.f32.mrb[0].mxu0
        %v8193 = vadd.f32 %v1550, %v8192
        %v8194 = vpop.f32.mrb[0].mxu0
        %v8195 = vadd.f32 %v1546, %v8194
        %v8196 = vpop.f32.mrb[0].mxu0
        %v8197 = vadd.f32 %v1550, %v8196
        %8198 = vdwg.mxu0
        %8199 = vmatprep.subr.bf16.mxu0 %v5476
        %8200 = vmatpush1.bf16.msra.mxu0 %v5475
        %8201 = vmatprep.subr.bf16.mxu0 %v5504
        %8202 = vmatpush1.bf16.msra.mxu0 %v5503
        %8203 = vmatprep.subr.bf16.mxu0 %v5532
        %8204 = vmatpush1.bf16.msra.mxu0 %v5531
        %8205 = vmatprep.subr.bf16.mxu0 %v5560
        %8206 = vmatpush1.bf16.msra.mxu0 %v5559
        %8207 = vmatprep.subr.bf16.mxu0 %v5588
        %8208 = vmatpush1.bf16.msra.mxu0 %v5587
        %8209 = vmatprep.subr.bf16.mxu0 %v5616
        %8210 = vmatpush1.bf16.msra.mxu0 %v5615
        %8211 = vmatprep.subr.bf16.mxu0 %v5644
        %8212 = vmatpush1.bf16.msra.mxu0 %v5643
        %8213 = vmatprep.subr.bf16.mxu0 %v5672
        %8214 = vmatpush1.bf16.msra.mxu0 %v5671
        %8215 = vmatprep.subr.bf16.mxu0 %v5700
        %8216 = vmatpush1.bf16.msra.mxu0 %v5699
        %8217 = vmatprep.subr.bf16.mxu0 %v5728
        %8218 = vmatpush1.bf16.msra.mxu0 %v5727
        %8219 = vmatprep.subr.bf16.mxu0 %v5756
        %8220 = vmatpush1.bf16.msra.mxu0 %v5755
        %8221 = vmatprep.subr.bf16.mxu0 %v5784
        %8222 = vmatpush1.bf16.msra.mxu0 %v5783
        %8223 = vmatprep.subr.bf16.mxu0 %v5812
        %8224 = vmatpush1.bf16.msra.mxu0 %v5811
        %8225 = vmatprep.subr.bf16.mxu0 %v5840
        %8226 = vmatpush1.bf16.msra.mxu0 %v5839
        %8227 = vmatprep.subr.bf16.mxu0 %v5868
        %8228 = vmatpush1.bf16.msra.mxu0 %v5867
        %8229 = vmatprep.subr.bf16.mxu0 %v5896
        %8230 = vmatpush1.bf16.msra.mxu0 %v5895
        %8231 = vmatprep.mubr.bf16.mxu0 %v1646
        %8232 = vmatmul.mubr.bf16.gmra.mrb[0].mxu0 %v1645
        %v8233 = vpop.f32.mrb[0].mxu0
        %v8234 = vadd.f32 %v8191, %v8233
        %v8235 = vpop.f32.mrb[0].mxu0
        %v8236 = vadd.f32 %v8193, %v8235
        %v8237 = vpop.f32.mrb[0].mxu0
        %v8238 = vadd.f32 %v8195, %v8237
        %v8239 = vpop.f32.mrb[0].mxu0
        %v8240 = vadd.f32 %v8197, %v8239
        %8241 = vdwg.mxu0
        %8242 = vmatprep.subr.bf16.mxu0 %v5924
        %8243 = vmatpush1.bf16.msra.mxu0 %v5923
        %8244 = vmatprep.subr.bf16.mxu0 %v5952
        %8245 = vmatpush1.bf16.msra.mxu0 %v5951
        %8246 = vmatprep.subr.bf16.mxu0 %v5980
        %8247 = vmatpush1.bf16.msra.mxu0 %v5979
        %8248 = vmatprep.subr.bf16.mxu0 %v6008
        %8249 = vmatpush1.bf16.msra.mxu0 %v6007
        %8250 = vmatprep.subr.bf16.mxu0 %v6036
        %8251 = vmatpush1.bf16.msra.mxu0 %v6035
        %8252 = vmatprep.subr.bf16.mxu0 %v6064
        %8253 = vmatpush1.bf16.msra.mxu0 %v6063
        %8254 = vmatprep.subr.bf16.mxu0 %v6092
        %8255 = vmatpush1.bf16.msra.mxu0 %v6091
        %8256 = vmatprep.subr.bf16.mxu0 %v6120
        %8257 = vmatpush1.bf16.msra.mxu0 %v6119
        %8258 = vmatprep.subr.bf16.mxu0 0
        %8259 = vmatpush1.bf16.msra.mxu0 0
        %8260 = vmatprep.subr.bf16.mxu0 0
        %8261 = vmatpush1.bf16.msra.mxu0 0
        %8262 = vmatprep.subr.bf16.mxu0 0
        %8263 = vmatpush1.bf16.msra.mxu0 0
        %8264 = vmatprep.subr.bf16.mxu0 0
        %8265 = vmatpush1.bf16.msra.mxu0 0
        %8266 = vmatprep.subr.bf16.mxu0 0
        %8267 = vmatpush1.bf16.msra.mxu0 0
        %8268 = vmatprep.subr.bf16.mxu0 0
        %8269 = vmatpush1.bf16.msra.mxu0 0
        %8270 = vmatprep.subr.bf16.mxu0 0
        %8271 = vmatpush1.bf16.msra.mxu0 0
        %8272 = vmatprep.subr.bf16.mxu0 0
        %8273 = vmatpush1.bf16.msra.mxu0 0
        %8274 = vmatprep.mubr.bf16.mxu0 0
        %8275 = vmatmul.mubr.bf16.gmra.mrb[0].mxu0 %v1647
        %v8276 = vpop.f32.mrb[0].mxu0
        %v8277 = vadd.f32 %v8234, %v8276
        %v8278 = vpop.f32.mrb[0].mxu0
        %v8279 = vadd.f32 %v8236, %v8278
        %v8280 = vpop.f32.mrb[0].mxu0
        %v8281 = vadd.f32 %v8238, %v8280
        %v8282 = vpop.f32.mrb[0].mxu0
        %v8283 = vadd.f32 %v8240, %v8282
        %8284 = vdwg.mxu0
        %8285 = vmatprep.subr.bf16.mxu0 %v5030
        %8286 = vmatpush1.bf16.msra.mxu0 %v5029
        %8287 = vmatprep.subr.bf16.mxu0 %v5058
        %8288 = vmatpush1.bf16.msra.mxu0 %v5057
        %8289 = vmatprep.subr.bf16.mxu0 %v5086
        %8290 = vmatpush1.bf16.msra.mxu0 %v5085
        %8291 = vmatprep.subr.bf16.mxu0 %v5114
        %8292 = vmatpush1.bf16.msra.mxu0 %v5113
        %8293 = vmatprep.subr.bf16.mxu0 %v5142
        %8294 = vmatpush1.bf16.msra.mxu0 %v5141
        %8295 = vmatprep.subr.bf16.mxu0 %v5170
        %8296 = vmatpush1.bf16.msra.mxu0 %v5169
        %8297 = vmatprep.subr.bf16.mxu0 %v5198
        %8298 = vmatpush1.bf16.msra.mxu0 %v5197
        %8299 = vmatprep.subr.bf16.mxu0 %v5226
        %8300 = vmatpush1.bf16.msra.mxu0 %v5225
        %8301 = vmatprep.subr.bf16.mxu0 %v5254
        %8302 = vmatpush1.bf16.msra.mxu0 %v5253
        %8303 = vmatprep.subr.bf16.mxu0 %v5282
        %8304 = vmatpush1.bf16.msra.mxu0 %v5281
        %8305 = vmatprep.subr.bf16.mxu0 %v5310
        %8306 = vmatpush1.bf16.msra.mxu0 %v5309
        %8307 = vmatprep.subr.bf16.mxu0 %v5338
        %8308 = vmatpush1.bf16.msra.mxu0 %v5337
        %8309 = vmatprep.subr.bf16.mxu0 %v5366
        %8310 = vmatpush1.bf16.msra.mxu0 %v5365
        %8311 = vmatprep.subr.bf16.mxu0 %v5394
        %8312 = vmatpush1.bf16.msra.mxu0 %v5393
        %8313 = vmatprep.subr.bf16.mxu0 %v5422
        %8314 = vmatpush1.bf16.msra.mxu0 %v5421
        %8315 = vmatprep.subr.bf16.mxu0 %v5450
        %8316 = vmatpush1.bf16.msra.mxu0 %v5449
        %8317 = vmatprep.mubr.bf16.mxu0 %v1644
        %8318 = vmatmul.mubr.bf16.gmra.mrb[0].mxu0 %v1643
        %v8319 = vpop.f32.mrb[0].mxu0
        %v8320 = vadd.f32 %v1554, %v8319
        %v8321 = vpop.f32.mrb[0].mxu0
        %v8322 = vadd.f32 %v1558, %v8321
        %v8323 = vpop.f32.mrb[0].mxu0
        %v8324 = vadd.f32 %v1554, %v8323
        %v8325 = vpop.f32.mrb[0].mxu0
        %v8326 = vadd.f32 %v1558, %v8325
        %8327 = vdwg.mxu0
        %8328 = vmatprep.subr.bf16.mxu0 %v5478
        %8329 = vmatpush1.bf16.msra.mxu0 %v5477
        %8330 = vmatprep.subr.bf16.mxu0 %v5506
        %8331 = vmatpush1.bf16.msra.mxu0 %v5505
        %8332 = vmatprep.subr.bf16.mxu0 %v5534
        %8333 = vmatpush1.bf16.msra.mxu0 %v5533
        %8334 = vmatprep.subr.bf16.mxu0 %v5562
        %8335 = vmatpush1.bf16.msra.mxu0 %v5561
        %8336 = vmatprep.subr.bf16.mxu0 %v5590
        %8337 = vmatpush1.bf16.msra.mxu0 %v5589
        %8338 = vmatprep.subr.bf16.mxu0 %v5618
        %8339 = vmatpush1.bf16.msra.mxu0 %v5617
        %8340 = vmatprep.subr.bf16.mxu0 %v5646
        %8341 = vmatpush1.bf16.msra.mxu0 %v5645
        %8342 = vmatprep.subr.bf16.mxu0 %v5674
        %8343 = vmatpush1.bf16.msra.mxu0 %v5673
        %8344 = vmatprep.subr.bf16.mxu0 %v5702
        %8345 = vmatpush1.bf16.msra.mxu0 %v5701
        %8346 = vmatprep.subr.bf16.mxu0 %v5730
        %8347 = vmatpush1.bf16.msra.mxu0 %v5729
        %8348 = vmatprep.subr.bf16.mxu0 %v5758
        %8349 = vmatpush1.bf16.msra.mxu0 %v5757
        %8350 = vmatprep.subr.bf16.mxu0 %v5786
        %8351 = vmatpush1.bf16.msra.mxu0 %v5785
        %8352 = vmatprep.subr.bf16.mxu0 %v5814
        %8353 = vmatpush1.bf16.msra.mxu0 %v5813
        %8354 = vmatprep.subr.bf16.mxu0 %v5842
        %8355 = vmatpush1.bf16.msra.mxu0 %v5841
        %8356 = vmatprep.subr.bf16.mxu0 %v5870
        %8357 = vmatpush1.bf16.msra.mxu0 %v5869
        %8358 = vmatprep.subr.bf16.mxu0 %v5898
        %8359 = vmatpush1.bf16.msra.mxu0 %v5897
        %8360 = vmatprep.mubr.bf16.mxu0 %v1646
        %8361 = vmatmul.mubr.bf16.gmra.mrb[0].mxu0 %v1645
        %v8362 = vpop.f32.mrb[0].mxu0
        %v8363 = vadd.f32 %v8320, %v8362
        %v8364 = vpop.f32.mrb[0].mxu0
        %v8365 = vadd.f32 %v8322, %v8364
        %v8366 = vpop.f32.mrb[0].mxu0
        %v8367 = vadd.f32 %v8324, %v8366
        %v8368 = vpop.f32.mrb[0].mxu0
        %v8369 = vadd.f32 %v8326, %v8368
        %8370 = vdwg.mxu0
        %8371 = vmatprep.subr.bf16.mxu0 %v5926
        %8372 = vmatpush1.bf16.msra.mxu0 %v5925
        %8373 = vmatprep.subr.bf16.mxu0 %v5954
        %8374 = vmatpush1.bf16.msra.mxu0 %v5953
        %8375 = vmatprep.subr.bf16.mxu0 %v5982
        %8376 = vmatpush1.bf16.msra.mxu0 %v5981
        %8377 = vmatprep.subr.bf16.mxu0 %v6010
        %8378 = vmatpush1.bf16.msra.mxu0 %v6009
        %8379 = vmatprep.subr.bf16.mxu0 %v6038
        %8380 = vmatpush1.bf16.msra.mxu0 %v6037
        %8381 = vmatprep.subr.bf16.mxu0 %v6066
        %8382 = vmatpush1.bf16.msra.mxu0 %v6065
        %8383 = vmatprep.subr.bf16.mxu0 %v6094
        %8384 = vmatpush1.bf16.msra.mxu0 %v6093
        %8385 = vmatprep.subr.bf16.mxu0 %v6122
        %8386 = vmatpush1.bf16.msra.mxu0 %v6121
        %8387 = vmatprep.subr.bf16.mxu0 0
        %8388 = vmatpush1.bf16.msra.mxu0 0
        %8389 = vmatprep.subr.bf16.mxu0 0
        %8390 = vmatpush1.bf16.msra.mxu0 0
        %8391 = vmatprep.subr.bf16.mxu0 0
        %8392 = vmatpush1.bf16.msra.mxu0 0
        %8393 = vmatprep.subr.bf16.mxu0 0
        %8394 = vmatpush1.bf16.msra.mxu0 0
        %8395 = vmatprep.subr.bf16.mxu0 0
        %8396 = vmatpush1.bf16.msra.mxu0 0
        %8397 = vmatprep.subr.bf16.mxu0 0
        %8398 = vmatpush1.bf16.msra.mxu0 0
        %8399 = vmatprep.subr.bf16.mxu0 0
        %8400 = vmatpush1.bf16.msra.mxu0 0
        %8401 = vmatprep.subr.bf16.mxu0 0
        %8402 = vmatpush1.bf16.msra.mxu0 0
        %8403 = vmatprep.mubr.bf16.mxu0 0
        %8404 = vmatmul.mubr.bf16.gmra.mrb[0].mxu0 %v1647
        %v8405 = vpop.f32.mrb[0].mxu0
        %v8406 = vadd.f32 %v8363, %v8405
        %v8407 = vpop.f32.mrb[0].mxu0
        %v8408 = vadd.f32 %v8365, %v8407
        %v8409 = vpop.f32.mrb[0].mxu0
        %v8410 = vadd.f32 %v8367, %v8409
        %v8411 = vpop.f32.mrb[0].mxu0
        %v8412 = vadd.f32 %v8369, %v8411
        %8413 = vdwg.mxu0
        %8414 = vmatprep.subr.bf16.mxu0 %v5032
        %8415 = vmatpush1.bf16.msra.mxu0 %v5031
        %8416 = vmatprep.subr.bf16.mxu0 %v5060
        %8417 = vmatpush1.bf16.msra.mxu0 %v5059
        %8418 = vmatprep.subr.bf16.mxu0 %v5088
        %8419 = vmatpush1.bf16.msra.mxu0 %v5087
        %8420 = vmatprep.subr.bf16.mxu0 %v5116
        %8421 = vmatpush1.bf16.msra.mxu0 %v5115
        %8422 = vmatprep.subr.bf16.mxu0 %v5144
        %8423 = vmatpush1.bf16.msra.mxu0 %v5143
        %8424 = vmatprep.subr.bf16.mxu0 %v5172
        %8425 = vmatpush1.bf16.msra.mxu0 %v5171
        %8426 = vmatprep.subr.bf16.mxu0 %v5200
        %8427 = vmatpush1.bf16.msra.mxu0 %v5199
        %8428 = vmatprep.subr.bf16.mxu0 %v5228
        %8429 = vmatpush1.bf16.msra.mxu0 %v5227
        %8430 = vmatprep.subr.bf16.mxu0 %v5256
        %8431 = vmatpush1.bf16.msra.mxu0 %v5255
        %8432 = vmatprep.subr.bf16.mxu0 %v5284
        %8433 = vmatpush1.bf16.msra.mxu0 %v5283
        %8434 = vmatprep.subr.bf16.mxu0 %v5312
        %8435 = vmatpush1.bf16.msra.mxu0 %v5311
        %8436 = vmatprep.subr.bf16.mxu0 %v5340
        %8437 = vmatpush1.bf16.msra.mxu0 %v5339
        %8438 = vmatprep.subr.bf16.mxu0 %v5368
        %8439 = vmatpush1.bf16.msra.mxu0 %v5367
        %8440 = vmatprep.subr.bf16.mxu0 %v5396
        %8441 = vmatpush1.bf16.msra.mxu0 %v5395
        %8442 = vmatprep.subr.bf16.mxu0 %v5424
        %8443 = vmatpush1.bf16.msra.mxu0 %v5423
        %8444 = vmatprep.subr.bf16.mxu0 %v5452
        %8445 = vmatpush1.bf16.msra.mxu0 %v5451
        %8446 = vmatprep.mubr.bf16.mxu0 %v1644
        %8447 = vmatmul.mubr.bf16.gmra.mrb[0].mxu0 %v1643
        %v8448 = vpop.f32.mrb[0].mxu0
        %v8449 = vadd.f32 %v1562, %v8448
        %v8450 = vpop.f32.mrb[0].mxu0
        %v8451 = vadd.f32 %v1566, %v8450
        %v8452 = vpop.f32.mrb[0].mxu0
        %v8453 = vadd.f32 %v1562, %v8452
        %v8454 = vpop.f32.mrb[0].mxu0
        %v8455 = vadd.f32 %v1566, %v8454
        %8456 = vdwg.mxu0
        %8457 = vmatprep.subr.bf16.mxu0 %v5480
        %8458 = vmatpush1.bf16.msra.mxu0 %v5479
        %8459 = vmatprep.subr.bf16.mxu0 %v5508
        %8460 = vmatpush1.bf16.msra.mxu0 %v5507
        %8461 = vmatprep.subr.bf16.mxu0 %v5536
        %8462 = vmatpush1.bf16.msra.mxu0 %v5535
        %8463 = vmatprep.subr.bf16.mxu0 %v5564
        %8464 = vmatpush1.bf16.msra.mxu0 %v5563
        %8465 = vmatprep.subr.bf16.mxu0 %v5592
        %8466 = vmatpush1.bf16.msra.mxu0 %v5591
        %8467 = vmatprep.subr.bf16.mxu0 %v5620
        %8468 = vmatpush1.bf16.msra.mxu0 %v5619
        %8469 = vmatprep.subr.bf16.mxu0 %v5648
        %8470 = vmatpush1.bf16.msra.mxu0 %v5647
        %8471 = vmatprep.subr.bf16.mxu0 %v5676
        %8472 = vmatpush1.bf16.msra.mxu0 %v5675
        %8473 = vmatprep.subr.bf16.mxu0 %v5704
        %8474 = vmatpush1.bf16.msra.mxu0 %v5703
        %8475 = vmatprep.subr.bf16.mxu0 %v5732
        %8476 = vmatpush1.bf16.msra.mxu0 %v5731
        %8477 = vmatprep.subr.bf16.mxu0 %v5760
        %8478 = vmatpush1.bf16.msra.mxu0 %v5759
        %8479 = vmatprep.subr.bf16.mxu0 %v5788
        %8480 = vmatpush1.bf16.msra.mxu0 %v5787
        %8481 = vmatprep.subr.bf16.mxu0 %v5816
        %8482 = vmatpush1.bf16.msra.mxu0 %v5815
        %8483 = vmatprep.subr.bf16.mxu0 %v5844
        %8484 = vmatpush1.bf16.msra.mxu0 %v5843
        %8485 = vmatprep.subr.bf16.mxu0 %v5872
        %8486 = vmatpush1.bf16.msra.mxu0 %v5871
        %8487 = vmatprep.subr.bf16.mxu0 %v5900
        %8488 = vmatpush1.bf16.msra.mxu0 %v5899
        %8489 = vmatprep.mubr.bf16.mxu0 %v1646
        %8490 = vmatmul.mubr.bf16.gmra.mrb[0].mxu0 %v1645
        %v8491 = vpop.f32.mrb[0].mxu0
        %v8492 = vadd.f32 %v8449, %v8491
        %v8493 = vpop.f32.mrb[0].mxu0
        %v8494 = vadd.f32 %v8451, %v8493
        %v8495 = vpop.f32.mrb[0].mxu0
        %v8496 = vadd.f32 %v8453, %v8495
        %v8497 = vpop.f32.mrb[0].mxu0
        %v8498 = vadd.f32 %v8455, %v8497
        %8499 = vdwg.mxu0
        %8500 = vmatprep.subr.bf16.mxu0 %v5928
        %8501 = vmatpush1.bf16.msra.mxu0 %v5927
        %8502 = vmatprep.subr.bf16.mxu0 %v5956
        %8503 = vmatpush1.bf16.msra.mxu0 %v5955
        %8504 = vmatprep.subr.bf16.mxu0 %v5984
        %8505 = vmatpush1.bf16.msra.mxu0 %v5983
        %8506 = vmatprep.subr.bf16.mxu0 %v6012
        %8507 = vmatpush1.bf16.msra.mxu0 %v6011
        %8508 = vmatprep.subr.bf16.mxu0 %v6040
        %8509 = vmatpush1.bf16.msra.mxu0 %v6039
        %8510 = vmatprep.subr.bf16.mxu0 %v6068
        %8511 = vmatpush1.bf16.msra.mxu0 %v6067
        %8512 = vmatprep.subr.bf16.mxu0 %v6096
        %8513 = vmatpush1.bf16.msra.mxu0 %v6095
        %8514 = vmatprep.subr.bf16.mxu0 %v6124
        %8515 = vmatpush1.bf16.msra.mxu0 %v6123
        %8516 = vmatprep.subr.bf16.mxu0 0
        %8517 = vmatpush1.bf16.msra.mxu0 0
        %8518 = vmatprep.subr.bf16.mxu0 0
        %8519 = vmatpush1.bf16.msra.mxu0 0
        %8520 = vmatprep.subr.bf16.mxu0 0
        %8521 = vmatpush1.bf16.msra.mxu0 0
        %8522 = vmatprep.subr.bf16.mxu0 0
        %8523 = vmatpush1.bf16.msra.mxu0 0
        %8524 = vmatprep.subr.bf16.mxu0 0
        %8525 = vmatpush1.bf16.msra.mxu0 0
        %8526 = vmatprep.subr.bf16.mxu0 0
        %8527 = vmatpush1.bf16.msra.mxu0 0
        %8528 = vmatprep.subr.bf16.mxu0 0
        %8529 = vmatpush1.bf16.msra.mxu0 0
        %8530 = vmatprep.subr.bf16.mxu0 0
        %8531 = vmatpush1.bf16.msra.mxu0 0
        %8532 = vmatprep.mubr.bf16.mxu0 0
        %8533 = vmatmul.mubr.bf16.gmra.mrb[0].mxu0 %v1647
        %v8534 = vpop.f32.mrb[0].mxu0
        %v8535 = vadd.f32 %v8492, %v8534
        %v8536 = vpop.f32.mrb[0].mxu0
        %v8537 = vadd.f32 %v8494, %v8536
        %v8538 = vpop.f32.mrb[0].mxu0
        %v8539 = vadd.f32 %v8496, %v8538
        %v8540 = vpop.f32.mrb[0].mxu0
        %v8541 = vadd.f32 %v8498, %v8540
        %8542 = vdwg.mxu0
        %8543 = vmatprep.subr.bf16.mxu0 %v5034
        %8544 = vmatpush1.bf16.msra.mxu0 %v5033
        %8545 = vmatprep.subr.bf16.mxu0 %v5062
        %8546 = vmatpush1.bf16.msra.mxu0 %v5061
        %8547 = vmatprep.subr.bf16.mxu0 %v5090
        %8548 = vmatpush1.bf16.msra.mxu0 %v5089
        %8549 = vmatprep.subr.bf16.mxu0 %v5118
        %8550 = vmatpush1.bf16.msra.mxu0 %v5117
        %8551 = vmatprep.subr.bf16.mxu0 %v5146
        %8552 = vmatpush1.bf16.msra.mxu0 %v5145
        %8553 = vmatprep.subr.bf16.mxu0 %v5174
        %8554 = vmatpush1.bf16.msra.mxu0 %v5173
        %8555 = vmatprep.subr.bf16.mxu0 %v5202
        %8556 = vmatpush1.bf16.msra.mxu0 %v5201
        %8557 = vmatprep.subr.bf16.mxu0 %v5230
        %8558 = vmatpush1.bf16.msra.mxu0 %v5229
        %8559 = vmatprep.subr.bf16.mxu0 %v5258
        %8560 = vmatpush1.bf16.msra.mxu0 %v5257
        %8561 = vmatprep.subr.bf16.mxu0 %v5286
        %8562 = vmatpush1.bf16.msra.mxu0 %v5285
        %8563 = vmatprep.subr.bf16.mxu0 %v5314
        %8564 = vmatpush1.bf16.msra.mxu0 %v5313
        %8565 = vmatprep.subr.bf16.mxu0 %v5342
        %8566 = vmatpush1.bf16.msra.mxu0 %v5341
        %8567 = vmatprep.subr.bf16.mxu0 %v5370
        %8568 = vmatpush1.bf16.msra.mxu0 %v5369
        %8569 = vmatprep.subr.bf16.mxu0 %v5398
        %8570 = vmatpush1.bf16.msra.mxu0 %v5397
        %8571 = vmatprep.subr.bf16.mxu0 %v5426
        %8572 = vmatpush1.bf16.msra.mxu0 %v5425
        %8573 = vmatprep.subr.bf16.mxu0 %v5454
        %8574 = vmatpush1.bf16.msra.mxu0 %v5453
        %8575 = vmatprep.mubr.bf16.mxu0 %v1644
        %8576 = vmatmul.mubr.bf16.gmra.mrb[0].mxu0 %v1643
        %v8577 = vpop.f32.mrb[0].mxu0
        %v8578 = vadd.f32 %v1570, %v8577
        %v8579 = vpop.f32.mrb[0].mxu0
        %v8580 = vadd.f32 %v1574, %v8579
        %v8581 = vpop.f32.mrb[0].mxu0
        %v8582 = vadd.f32 %v1570, %v8581
        %v8583 = vpop.f32.mrb[0].mxu0
        %v8584 = vadd.f32 %v1574, %v8583
        %8585 = vdwg.mxu0
        %8586 = vmatprep.subr.bf16.mxu0 %v5482
        %8587 = vmatpush1.bf16.msra.mxu0 %v5481
        %8588 = vmatprep.subr.bf16.mxu0 %v5510
        %8589 = vmatpush1.bf16.msra.mxu0 %v5509
        %8590 = vmatprep.subr.bf16.mxu0 %v5538
        %8591 = vmatpush1.bf16.msra.mxu0 %v5537
        %8592 = vmatprep.subr.bf16.mxu0 %v5566
        %8593 = vmatpush1.bf16.msra.mxu0 %v5565
        %8594 = vmatprep.subr.bf16.mxu0 %v5594
        %8595 = vmatpush1.bf16.msra.mxu0 %v5593
        %8596 = vmatprep.subr.bf16.mxu0 %v5622
        %8597 = vmatpush1.bf16.msra.mxu0 %v5621
        %8598 = vmatprep.subr.bf16.mxu0 %v5650
        %8599 = vmatpush1.bf16.msra.mxu0 %v5649
        %8600 = vmatprep.subr.bf16.mxu0 %v5678
        %8601 = vmatpush1.bf16.msra.mxu0 %v5677
        %8602 = vmatprep.subr.bf16.mxu0 %v5706
        %8603 = vmatpush1.bf16.msra.mxu0 %v5705
        %8604 = vmatprep.subr.bf16.mxu0 %v5734
        %8605 = vmatpush1.bf16.msra.mxu0 %v5733
        %8606 = vmatprep.subr.bf16.mxu0 %v5762
        %8607 = vmatpush1.bf16.msra.mxu0 %v5761
        %8608 = vmatprep.subr.bf16.mxu0 %v5790
        %8609 = vmatpush1.bf16.msra.mxu0 %v5789
        %8610 = vmatprep.subr.bf16.mxu0 %v5818
        %8611 = vmatpush1.bf16.msra.mxu0 %v5817
        %8612 = vmatprep.subr.bf16.mxu0 %v5846
        %8613 = vmatpush1.bf16.msra.mxu0 %v5845
        %8614 = vmatprep.subr.bf16.mxu0 %v5874
        %8615 = vmatpush1.bf16.msra.mxu0 %v5873
        %8616 = vmatprep.subr.bf16.mxu0 %v5902
        %8617 = vmatpush1.bf16.msra.mxu0 %v5901
        %8618 = vmatprep.mubr.bf16.mxu0 %v1646
        %8619 = vmatmul.mubr.bf16.gmra.mrb[0].mxu0 %v1645
        %v8620 = vpop.f32.mrb[0].mxu0
        %v8621 = vadd.f32 %v8578, %v8620
        %v8622 = vpop.f32.mrb[0].mxu0
        %v8623 = vadd.f32 %v8580, %v8622
        %v8624 = vpop.f32.mrb[0].mxu0
        %v8625 = vadd.f32 %v8582, %v8624
        %v8626 = vpop.f32.mrb[0].mxu0
        %v8627 = vadd.f32 %v8584, %v8626
        %8628 = vdwg.mxu0
        %8629 = vmatprep.subr.bf16.mxu0 %v5930
        %8630 = vmatpush1.bf16.msra.mxu0 %v5929
        %8631 = vmatprep.subr.bf16.mxu0 %v5958
        %8632 = vmatpush1.bf16.msra.mxu0 %v5957
        %8633 = vmatprep.subr.bf16.mxu0 %v5986
        %8634 = vmatpush1.bf16.msra.mxu0 %v5985
        %8635 = vmatprep.subr.bf16.mxu0 %v6014
        %8636 = vmatpush1.bf16.msra.mxu0 %v6013
        %8637 = vmatprep.subr.bf16.mxu0 %v6042
        %8638 = vmatpush1.bf16.msra.mxu0 %v6041
        %8639 = vmatprep.subr.bf16.mxu0 %v6070
        %8640 = vmatpush1.bf16.msra.mxu0 %v6069
        %8641 = vmatprep.subr.bf16.mxu0 %v6098
        %8642 = vmatpush1.bf16.msra.mxu0 %v6097
        %8643 = vmatprep.subr.bf16.mxu0 %v6126
        %8644 = vmatpush1.bf16.msra.mxu0 %v6125
        %8645 = vmatprep.subr.bf16.mxu0 0
        %8646 = vmatpush1.bf16.msra.mxu0 0
        %8647 = vmatprep.subr.bf16.mxu0 0
        %8648 = vmatpush1.bf16.msra.mxu0 0
        %8649 = vmatprep.subr.bf16.mxu0 0
        %8650 = vmatpush1.bf16.msra.mxu0 0
        %8651 = vmatprep.subr.bf16.mxu0 0
        %8652 = vmatpush1.bf16.msra.mxu0 0
        %8653 = vmatprep.subr.bf16.mxu0 0
        %8654 = vmatpush1.bf16.msra.mxu0 0
        %8655 = vmatprep.subr.bf16.mxu0 0
        %8656 = vmatpush1.bf16.msra.mxu0 0
        %8657 = vmatprep.subr.bf16.mxu0 0
        %8658 = vmatpush1.bf16.msra.mxu0 0
        %8659 = vmatprep.subr.bf16.mxu0 0
        %8660 = vmatpush1.bf16.msra.mxu0 0
        %8661 = vmatprep.mubr.bf16.mxu0 0
        %8662 = vmatmul.mubr.bf16.gmra.mrb[0].mxu0 %v1647
        %v8663 = vpop.f32.mrb[0].mxu0
        %v8664 = vadd.f32 %v8621, %v8663
        %v8665 = vpop.f32.mrb[0].mxu0
        %v8666 = vadd.f32 %v8623, %v8665
        %v8667 = vpop.f32.mrb[0].mxu0
        %v8668 = vadd.f32 %v8625, %v8667
        %v8669 = vpop.f32.mrb[0].mxu0
        %v8670 = vadd.f32 %v8627, %v8669
        %8671 = vdwg.mxu0
        %8672 = vmatprep.subr.bf16.mxu0 %v5036
        %8673 = vmatpush1.bf16.msra.mxu0 %v5035
        %8674 = vmatprep.subr.bf16.mxu0 %v5064
        %8675 = vmatpush1.bf16.msra.mxu0 %v5063
        %8676 = vmatprep.subr.bf16.mxu0 %v5092
        %8677 = vmatpush1.bf16.msra.mxu0 %v5091
        %8678 = vmatprep.subr.bf16.mxu0 %v5120
        %8679 = vmatpush1.bf16.msra.mxu0 %v5119
        %8680 = vmatprep.subr.bf16.mxu0 %v5148
        %8681 = vmatpush1.bf16.msra.mxu0 %v5147
        %8682 = vmatprep.subr.bf16.mxu0 %v5176
        %8683 = vmatpush1.bf16.msra.mxu0 %v5175
        %8684 = vmatprep.subr.bf16.mxu0 %v5204
        %8685 = vmatpush1.bf16.msra.mxu0 %v5203
        %8686 = vmatprep.subr.bf16.mxu0 %v5232
        %8687 = vmatpush1.bf16.msra.mxu0 %v5231
        %8688 = vmatprep.subr.bf16.mxu0 %v5260
        %8689 = vmatpush1.bf16.msra.mxu0 %v5259
        %8690 = vmatprep.subr.bf16.mxu0 %v5288
        %8691 = vmatpush1.bf16.msra.mxu0 %v5287
        %8692 = vmatprep.subr.bf16.mxu0 %v5316
        %8693 = vmatpush1.bf16.msra.mxu0 %v5315
        %8694 = vmatprep.subr.bf16.mxu0 %v5344
        %8695 = vmatpush1.bf16.msra.mxu0 %v5343
        %8696 = vmatprep.subr.bf16.mxu0 %v5372
        %8697 = vmatpush1.bf16.msra.mxu0 %v5371
        %8698 = vmatprep.subr.bf16.mxu0 %v5400
        %8699 = vmatpush1.bf16.msra.mxu0 %v5399
        %8700 = vmatprep.subr.bf16.mxu0 %v5428
        %8701 = vmatpush1.bf16.msra.mxu0 %v5427
        %8702 = vmatprep.subr.bf16.mxu0 %v5456
        %8703 = vmatpush1.bf16.msra.mxu0 %v5455
        %8704 = vmatprep.mubr.bf16.mxu0 %v1644
        %8705 = vmatmul.mubr.bf16.gmra.mrb[0].mxu0 %v1643
        %v8706 = vpop.f32.mrb[0].mxu0
        %v8707 = vadd.f32 %v1578, %v8706
        %v8708 = vpop.f32.mrb[0].mxu0
        %v8709 = vadd.f32 %v1582, %v8708
        %v8710 = vpop.f32.mrb[0].mxu0
        %v8711 = vadd.f32 %v1578, %v8710
        %v8712 = vpop.f32.mrb[0].mxu0
        %v8713 = vadd.f32 %v1582, %v8712
        %8714 = vdwg.mxu0
        %8715 = vmatprep.subr.bf16.mxu0 %v5484
        %8716 = vmatpush1.bf16.msra.mxu0 %v5483
        %8717 = vmatprep.subr.bf16.mxu0 %v5512
        %8718 = vmatpush1.bf16.msra.mxu0 %v5511
        %8719 = vmatprep.subr.bf16.mxu0 %v5540
        %8720 = vmatpush1.bf16.msra.mxu0 %v5539
        %8721 = vmatprep.subr.bf16.mxu0 %v5568
        %8722 = vmatpush1.bf16.msra.mxu0 %v5567
        %8723 = vmatprep.subr.bf16.mxu0 %v5596
        %8724 = vmatpush1.bf16.msra.mxu0 %v5595
        %8725 = vmatprep.subr.bf16.mxu0 %v5624
        %8726 = vmatpush1.bf16.msra.mxu0 %v5623
        %8727 = vmatprep.subr.bf16.mxu0 %v5652
        %8728 = vmatpush1.bf16.msra.mxu0 %v5651
        %8729 = vmatprep.subr.bf16.mxu0 %v5680
        %8730 = vmatpush1.bf16.msra.mxu0 %v5679
        %8731 = vmatprep.subr.bf16.mxu0 %v5708
        %8732 = vmatpush1.bf16.msra.mxu0 %v5707
        %8733 = vmatprep.subr.bf16.mxu0 %v5736
        %8734 = vmatpush1.bf16.msra.mxu0 %v5735
        %8735 = vmatprep.subr.bf16.mxu0 %v5764
        %8736 = vmatpush1.bf16.msra.mxu0 %v5763
        %8737 = vmatprep.subr.bf16.mxu0 %v5792
        %8738 = vmatpush1.bf16.msra.mxu0 %v5791
        %8739 = vmatprep.subr.bf16.mxu0 %v5820
        %8740 = vmatpush1.bf16.msra.mxu0 %v5819
        %8741 = vmatprep.subr.bf16.mxu0 %v5848
        %8742 = vmatpush1.bf16.msra.mxu0 %v5847
        %8743 = vmatprep.subr.bf16.mxu0 %v5876
        %8744 = vmatpush1.bf16.msra.mxu0 %v5875
        %8745 = vmatprep.subr.bf16.mxu0 %v5904
        %8746 = vmatpush1.bf16.msra.mxu0 %v5903
        %8747 = vmatprep.mubr.bf16.mxu0 %v1646
        %8748 = vmatmul.mubr.bf16.gmra.mrb[0].mxu0 %v1645
        %v8749 = vpop.f32.mrb[0].mxu0
        %v8750 = vadd.f32 %v8707, %v8749
        %v8751 = vpop.f32.mrb[0].mxu0
        %v8752 = vadd.f32 %v8709, %v8751
        %v8753 = vpop.f32.mrb[0].mxu0
        %v8754 = vadd.f32 %v8711, %v8753
        %v8755 = vpop.f32.mrb[0].mxu0
        %v8756 = vadd.f32 %v8713, %v8755
        %8757 = vdwg.mxu0
        %8758 = vmatprep.subr.bf16.mxu0 %v5932
        %8759 = vmatpush1.bf16.msra.mxu0 %v5931
        %8760 = vmatprep.subr.bf16.mxu0 %v5960
        %8761 = vmatpush1.bf16.msra.mxu0 %v5959
        %8762 = vmatprep.subr.bf16.mxu0 %v5988
        %8763 = vmatpush1.bf16.msra.mxu0 %v5987
        %8764 = vmatprep.subr.bf16.mxu0 %v6016
        %8765 = vmatpush1.bf16.msra.mxu0 %v6015
        %8766 = vmatprep.subr.bf16.mxu0 %v6044
        %8767 = vmatpush1.bf16.msra.mxu0 %v6043
        %8768 = vmatprep.subr.bf16.mxu0 %v6072
        %8769 = vmatpush1.bf16.msra.mxu0 %v6071
        %8770 = vmatprep.subr.bf16.mxu0 %v6100
        %8771 = vmatpush1.bf16.msra.mxu0 %v6099
        %8772 = vmatprep.subr.bf16.mxu0 %v6128
        %8773 = vmatpush1.bf16.msra.mxu0 %v6127
        %8774 = vmatprep.subr.bf16.mxu0 0
        %8775 = vmatpush1.bf16.msra.mxu0 0
        %8776 = vmatprep.subr.bf16.mxu0 0
        %8777 = vmatpush1.bf16.msra.mxu0 0
        %8778 = vmatprep.subr.bf16.mxu0 0
        %8779 = vmatpush1.bf16.msra.mxu0 0
        %8780 = vmatprep.subr.bf16.mxu0 0
        %8781 = vmatpush1.bf16.msra.mxu0 0
        %8782 = vmatprep.subr.bf16.mxu0 0
        %8783 = vmatpush1.bf16.msra.mxu0 0
        %8784 = vmatprep.subr.bf16.mxu0 0
        %8785 = vmatpush1.bf16.msra.mxu0 0
        %8786 = vmatprep.subr.bf16.mxu0 0
        %8787 = vmatpush1.bf16.msra.mxu0 0
        %8788 = vmatprep.subr.bf16.mxu0 0
        %8789 = vmatpush1.bf16.msra.mxu0 0
        %8790 = vmatprep.mubr.bf16.mxu0 0
        %8791 = vmatmul.mubr.bf16.gmra.mrb[0].mxu0 %v1647
        %v8792 = vpop.f32.mrb[0].mxu0
        %v8793 = vadd.f32 %v8750, %v8792
        %v8794 = vpop.f32.mrb[0].mxu0
        %v8795 = vadd.f32 %v8752, %v8794
        %v8796 = vpop.f32.mrb[0].mxu0
        %v8797 = vadd.f32 %v8754, %v8796
        %v8798 = vpop.f32.mrb[0].mxu0
        %v8799 = vadd.f32 %v8756, %v8798
        %8800 = vdwg.mxu0
        %8801 = vmatprep.subr.bf16.mxu0 %v5038
        %8802 = vmatpush1.bf16.msra.mxu0 %v5037
        %8803 = vmatprep.subr.bf16.mxu0 %v5066
        %8804 = vmatpush1.bf16.msra.mxu0 %v5065
        %8805 = vmatprep.subr.bf16.mxu0 %v5094
        %8806 = vmatpush1.bf16.msra.mxu0 %v5093
        %8807 = vmatprep.subr.bf16.mxu0 %v5122
        %8808 = vmatpush1.bf16.msra.mxu0 %v5121
        %8809 = vmatprep.subr.bf16.mxu0 %v5150
        %8810 = vmatpush1.bf16.msra.mxu0 %v5149
        %8811 = vmatprep.subr.bf16.mxu0 %v5178
        %8812 = vmatpush1.bf16.msra.mxu0 %v5177
        %8813 = vmatprep.subr.bf16.mxu0 %v5206
        %8814 = vmatpush1.bf16.msra.mxu0 %v5205
        %8815 = vmatprep.subr.bf16.mxu0 %v5234
        %8816 = vmatpush1.bf16.msra.mxu0 %v5233
        %8817 = vmatprep.subr.bf16.mxu0 %v5262
        %8818 = vmatpush1.bf16.msra.mxu0 %v5261
        %8819 = vmatprep.subr.bf16.mxu0 %v5290
        %8820 = vmatpush1.bf16.msra.mxu0 %v5289
        %8821 = vmatprep.subr.bf16.mxu0 %v5318
        %8822 = vmatpush1.bf16.msra.mxu0 %v5317
        %8823 = vmatprep.subr.bf16.mxu0 %v5346
        %8824 = vmatpush1.bf16.msra.mxu0 %v5345
        %8825 = vmatprep.subr.bf16.mxu0 %v5374
        %8826 = vmatpush1.bf16.msra.mxu0 %v5373
        %8827 = vmatprep.subr.bf16.mxu0 %v5402
        %8828 = vmatpush1.bf16.msra.mxu0 %v5401
        %8829 = vmatprep.subr.bf16.mxu0 %v5430
        %8830 = vmatpush1.bf16.msra.mxu0 %v5429
        %8831 = vmatprep.subr.bf16.mxu0 %v5458
        %8832 = vmatpush1.bf16.msra.mxu0 %v5457
        %8833 = vmatprep.mubr.bf16.mxu0 %v1644
        %8834 = vmatmul.mubr.bf16.gmra.mrb[0].mxu0 %v1643
        %v8835 = vpop.f32.mrb[0].mxu0
        %v8836 = vadd.f32 %v1586, %v8835
        %v8837 = vpop.f32.mrb[0].mxu0
        %v8838 = vadd.f32 %v1590, %v8837
        %v8839 = vpop.f32.mrb[0].mxu0
        %v8840 = vadd.f32 %v1586, %v8839
        %v8841 = vpop.f32.mrb[0].mxu0
        %v8842 = vadd.f32 %v1590, %v8841
        %8843 = vdwg.mxu0
        %8844 = vmatprep.subr.bf16.mxu0 %v5486
        %8845 = vmatpush1.bf16.msra.mxu0 %v5485
        %8846 = vmatprep.subr.bf16.mxu0 %v5514
        %8847 = vmatpush1.bf16.msra.mxu0 %v5513
        %8848 = vmatprep.subr.bf16.mxu0 %v5542
        %8849 = vmatpush1.bf16.msra.mxu0 %v5541
        %8850 = vmatprep.subr.bf16.mxu0 %v5570
        %8851 = vmatpush1.bf16.msra.mxu0 %v5569
        %8852 = vmatprep.subr.bf16.mxu0 %v5598
        %8853 = vmatpush1.bf16.msra.mxu0 %v5597
        %8854 = vmatprep.subr.bf16.mxu0 %v5626
        %8855 = vmatpush1.bf16.msra.mxu0 %v5625
        %8856 = vmatprep.subr.bf16.mxu0 %v5654
        %8857 = vmatpush1.bf16.msra.mxu0 %v5653
        %8858 = vmatprep.subr.bf16.mxu0 %v5682
        %8859 = vmatpush1.bf16.msra.mxu0 %v5681
        %8860 = vmatprep.subr.bf16.mxu0 %v5710
        %8861 = vmatpush1.bf16.msra.mxu0 %v5709
        %8862 = vmatprep.subr.bf16.mxu0 %v5738
        %8863 = vmatpush1.bf16.msra.mxu0 %v5737
        %8864 = vmatprep.subr.bf16.mxu0 %v5766
        %8865 = vmatpush1.bf16.msra.mxu0 %v5765
        %8866 = vmatprep.subr.bf16.mxu0 %v5794
        %8867 = vmatpush1.bf16.msra.mxu0 %v5793
        %8868 = vmatprep.subr.bf16.mxu0 %v5822
        %8869 = vmatpush1.bf16.msra.mxu0 %v5821
        %8870 = vmatprep.subr.bf16.mxu0 %v5850
        %8871 = vmatpush1.bf16.msra.mxu0 %v5849
        %8872 = vmatprep.subr.bf16.mxu0 %v5878
        %8873 = vmatpush1.bf16.msra.mxu0 %v5877
        %8874 = vmatprep.subr.bf16.mxu0 %v5906
        %8875 = vmatpush1.bf16.msra.mxu0 %v5905
        %8876 = vmatprep.mubr.bf16.mxu0 %v1646
        %8877 = vmatmul.mubr.bf16.gmra.mrb[0].mxu0 %v1645
        %v8878 = vpop.f32.mrb[0].mxu0
        %v8879 = vadd.f32 %v8836, %v8878
        %v8880 = vpop.f32.mrb[0].mxu0
        %v8881 = vadd.f32 %v8838, %v8880
        %v8882 = vpop.f32.mrb[0].mxu0
        %v8883 = vadd.f32 %v8840, %v8882
        %v8884 = vpop.f32.mrb[0].mxu0
        %v8885 = vadd.f32 %v8842, %v8884
        %8886 = vdwg.mxu0
        %8887 = vmatprep.subr.bf16.mxu0 %v5934
        %8888 = vmatpush1.bf16.msra.mxu0 %v5933
        %8889 = vmatprep.subr.bf16.mxu0 %v5962
        %8890 = vmatpush1.bf16.msra.mxu0 %v5961
        %8891 = vmatprep.subr.bf16.mxu0 %v5990
        %8892 = vmatpush1.bf16.msra.mxu0 %v5989
        %8893 = vmatprep.subr.bf16.mxu0 %v6018
        %8894 = vmatpush1.bf16.msra.mxu0 %v6017
        %8895 = vmatprep.subr.bf16.mxu0 %v6046
        %8896 = vmatpush1.bf16.msra.mxu0 %v6045
        %8897 = vmatprep.subr.bf16.mxu0 %v6074
        %8898 = vmatpush1.bf16.msra.mxu0 %v6073
        %8899 = vmatprep.subr.bf16.mxu0 %v6102
        %8900 = vmatpush1.bf16.msra.mxu0 %v6101
        %8901 = vmatprep.subr.bf16.mxu0 %v6130
        %8902 = vmatpush1.bf16.msra.mxu0 %v6129
        %8903 = vmatprep.subr.bf16.mxu0 0
        %8904 = vmatpush1.bf16.msra.mxu0 0
        %8905 = vmatprep.subr.bf16.mxu0 0
        %8906 = vmatpush1.bf16.msra.mxu0 0
        %8907 = vmatprep.subr.bf16.mxu0 0
        %8908 = vmatpush1.bf16.msra.mxu0 0
        %8909 = vmatprep.subr.bf16.mxu0 0
        %8910 = vmatpush1.bf16.msra.mxu0 0
        %8911 = vmatprep.subr.bf16.mxu0 0
        %8912 = vmatpush1.bf16.msra.mxu0 0
        %8913 = vmatprep.subr.bf16.mxu0 0
        %8914 = vmatpush1.bf16.msra.mxu0 0
        %8915 = vmatprep.subr.bf16.mxu0 0
        %8916 = vmatpush1.bf16.msra.mxu0 0
        %8917 = vmatprep.subr.bf16.mxu0 0
        %8918 = vmatpush1.bf16.msra.mxu0 0
        %8919 = vmatprep.mubr.bf16.mxu0 0
        %8920 = vmatmul.mubr.bf16.gmra.mrb[0].mxu0 %v1647
        %v8921 = vpop.f32.mrb[0].mxu0
        %v8922 = vadd.f32 %v8879, %v8921
        %v8923 = vpop.f32.mrb[0].mxu0
        %v8924 = vadd.f32 %v8881, %v8923
        %v8925 = vpop.f32.mrb[0].mxu0
        %v8926 = vadd.f32 %v8883, %v8925
        %v8927 = vpop.f32.mrb[0].mxu0
        %v8928 = vadd.f32 %v8885, %v8927
        %8929 = vdwg.mxu0
        %8930 = vmatprep.subr.bf16.mxu0 %v5040
        %8931 = vmatpush1.bf16.msra.mxu0 %v5039
        %8932 = vmatprep.subr.bf16.mxu0 %v5068
        %8933 = vmatpush1.bf16.msra.mxu0 %v5067
        %8934 = vmatprep.subr.bf16.mxu0 %v5096
        %8935 = vmatpush1.bf16.msra.mxu0 %v5095
        %8936 = vmatprep.subr.bf16.mxu0 %v5124
        %8937 = vmatpush1.bf16.msra.mxu0 %v5123
        %8938 = vmatprep.subr.bf16.mxu0 %v5152
        %8939 = vmatpush1.bf16.msra.mxu0 %v5151
        %8940 = vmatprep.subr.bf16.mxu0 %v5180
        %8941 = vmatpush1.bf16.msra.mxu0 %v5179
        %8942 = vmatprep.subr.bf16.mxu0 %v5208
        %8943 = vmatpush1.bf16.msra.mxu0 %v5207
        %8944 = vmatprep.subr.bf16.mxu0 %v5236
        %8945 = vmatpush1.bf16.msra.mxu0 %v5235
        %8946 = vmatprep.subr.bf16.mxu0 %v5264
        %8947 = vmatpush1.bf16.msra.mxu0 %v5263
        %8948 = vmatprep.subr.bf16.mxu0 %v5292
        %8949 = vmatpush1.bf16.msra.mxu0 %v5291
        %8950 = vmatprep.subr.bf16.mxu0 %v5320
        %8951 = vmatpush1.bf16.msra.mxu0 %v5319
        %8952 = vmatprep.subr.bf16.mxu0 %v5348
        %8953 = vmatpush1.bf16.msra.mxu0 %v5347
        %8954 = vmatprep.subr.bf16.mxu0 %v5376
        %8955 = vmatpush1.bf16.msra.mxu0 %v5375
        %8956 = vmatprep.subr.bf16.mxu0 %v5404
        %8957 = vmatpush1.bf16.msra.mxu0 %v5403
        %8958 = vmatprep.subr.bf16.mxu0 %v5432
        %8959 = vmatpush1.bf16.msra.mxu0 %v5431
        %8960 = vmatprep.subr.bf16.mxu0 %v5460
        %8961 = vmatpush1.bf16.msra.mxu0 %v5459
        %8962 = vmatprep.mubr.bf16.mxu0 %v1644
        %8963 = vmatmul.mubr.bf16.gmra.mrb[0].mxu0 %v1643
        %v8964 = vpop.f32.mrb[0].mxu0
        %v8965 = vadd.f32 %v1594, %v8964
        %v8966 = vpop.f32.mrb[0].mxu0
        %v8967 = vadd.f32 %v1598, %v8966
        %v8968 = vpop.f32.mrb[0].mxu0
        %v8969 = vadd.f32 %v1594, %v8968
        %v8970 = vpop.f32.mrb[0].mxu0
        %v8971 = vadd.f32 %v1598, %v8970
        %8972 = vdwg.mxu0
        %8973 = vmatprep.subr.bf16.mxu0 %v5488
        %8974 = vmatpush1.bf16.msra.mxu0 %v5487
        %8975 = vmatprep.subr.bf16.mxu0 %v5516
        %8976 = vmatpush1.bf16.msra.mxu0 %v5515
        %8977 = vmatprep.subr.bf16.mxu0 %v5544
        %8978 = vmatpush1.bf16.msra.mxu0 %v5543
        %8979 = vmatprep.subr.bf16.mxu0 %v5572
        %8980 = vmatpush1.bf16.msra.mxu0 %v5571
        %8981 = vmatprep.subr.bf16.mxu0 %v5600
        %8982 = vmatpush1.bf16.msra.mxu0 %v5599
        %8983 = vmatprep.subr.bf16.mxu0 %v5628
        %8984 = vmatpush1.bf16.msra.mxu0 %v5627
        %8985 = vmatprep.subr.bf16.mxu0 %v5656
        %8986 = vmatpush1.bf16.msra.mxu0 %v5655
        %8987 = vmatprep.subr.bf16.mxu0 %v5684
        %8988 = vmatpush1.bf16.msra.mxu0 %v5683
        %8989 = vmatprep.subr.bf16.mxu0 %v5712
        %8990 = vmatpush1.bf16.msra.mxu0 %v5711
        %8991 = vmatprep.subr.bf16.mxu0 %v5740
        %8992 = vmatpush1.bf16.msra.mxu0 %v5739
        %8993 = vmatprep.subr.bf16.mxu0 %v5768
        %8994 = vmatpush1.bf16.msra.mxu0 %v5767
        %8995 = vmatprep.subr.bf16.mxu0 %v5796
        %8996 = vmatpush1.bf16.msra.mxu0 %v5795
        %8997 = vmatprep.subr.bf16.mxu0 %v5824
        %8998 = vmatpush1.bf16.msra.mxu0 %v5823
        %8999 = vmatprep.subr.bf16.mxu0 %v5852
        %9000 = vmatpush1.bf16.msra.mxu0 %v5851
        %9001 = vmatprep.subr.bf16.mxu0 %v5880
        %9002 = vmatpush1.bf16.msra.mxu0 %v5879
        %9003 = vmatprep.subr.bf16.mxu0 %v5908
        %9004 = vmatpush1.bf16.msra.mxu0 %v5907
        %9005 = vmatprep.mubr.bf16.mxu0 %v1646
        %9006 = vmatmul.mubr.bf16.gmra.mrb[0].mxu0 %v1645
        %v9007 = vpop.f32.mrb[0].mxu0
        %v9008 = vadd.f32 %v8965, %v9007
        %v9009 = vpop.f32.mrb[0].mxu0
        %v9010 = vadd.f32 %v8967, %v9009
        %v9011 = vpop.f32.mrb[0].mxu0
        %v9012 = vadd.f32 %v8969, %v9011
        %v9013 = vpop.f32.mrb[0].mxu0
        %v9014 = vadd.f32 %v8971, %v9013
        %9015 = vdwg.mxu0
        %9016 = vmatprep.subr.bf16.mxu0 %v5936
        %9017 = vmatpush1.bf16.msra.mxu0 %v5935
        %9018 = vmatprep.subr.bf16.mxu0 %v5964
        %9019 = vmatpush1.bf16.msra.mxu0 %v5963
        %9020 = vmatprep.subr.bf16.mxu0 %v5992
        %9021 = vmatpush1.bf16.msra.mxu0 %v5991
        %9022 = vmatprep.subr.bf16.mxu0 %v6020
        %9023 = vmatpush1.bf16.msra.mxu0 %v6019
        %9024 = vmatprep.subr.bf16.mxu0 %v6048
        %9025 = vmatpush1.bf16.msra.mxu0 %v6047
        %9026 = vmatprep.subr.bf16.mxu0 %v6076
        %9027 = vmatpush1.bf16.msra.mxu0 %v6075
        %9028 = vmatprep.subr.bf16.mxu0 %v6104
        %9029 = vmatpush1.bf16.msra.mxu0 %v6103
        %9030 = vmatprep.subr.bf16.mxu0 %v6132
        %9031 = vmatpush1.bf16.msra.mxu0 %v6131
        %9032 = vmatprep.subr.bf16.mxu0 0
        %9033 = vmatpush1.bf16.msra.mxu0 0
        %9034 = vmatprep.subr.bf16.mxu0 0
        %9035 = vmatpush1.bf16.msra.mxu0 0
        %9036 = vmatprep.subr.bf16.mxu0 0
        %9037 = vmatpush1.bf16.msra.mxu0 0
        %9038 = vmatprep.subr.bf16.mxu0 0
        %9039 = vmatpush1.bf16.msra.mxu0 0
        %9040 = vmatprep.subr.bf16.mxu0 0
        %9041 = vmatpush1.bf16.msra.mxu0 0
        %9042 = vmatprep.subr.bf16.mxu0 0
        %9043 = vmatpush1.bf16.msra.mxu0 0
        %9044 = vmatprep.subr.bf16.mxu0 0
        %9045 = vmatpush1.bf16.msra.mxu0 0
        %9046 = vmatprep.subr.bf16.mxu0 0
        %9047 = vmatpush1.bf16.msra.mxu0 0
        %9048 = vmatprep.mubr.bf16.mxu0 0
        %9049 = vmatmul.mubr.bf16.gmra.mrb[0].mxu0 %v1647
        %v9050 = vpop.f32.mrb[0].mxu0
        %v9051 = vadd.f32 %v9008, %v9050
        %v9052 = vpop.f32.mrb[0].mxu0
        %v9053 = vadd.f32 %v9010, %v9052
        %v9054 = vpop.f32.mrb[0].mxu0
        %v9055 = vadd.f32 %v9012, %v9054
        %v9056 = vpop.f32.mrb[0].mxu0
        %v9057 = vadd.f32 %v9014, %v9056
        %9058 = vdwg.mxu0
        %v9059 = vmax.f32 %v7374, 0.0
        %v9060 = vmax.f32 %v7376, 0.0
        %v9061 = vmax.f32 %v7503, 0.0
        %v9062 = vmax.f32 %v7505, 0.0
        %v9063 = vmax.f32 %v7632, 0.0
        %v9064 = vmax.f32 %v7634, 0.0
        %v9065 = vmax.f32 %v7761, 0.0
        %v9066 = vmax.f32 %v7763, 0.0
        %v9067 = vmax.f32 %v7890, 0.0
        %v9068 = vmax.f32 %v7892, 0.0
        %v9069 = vmax.f32 %v8019, 0.0
        %v9070 = vmax.f32 %v8021, 0.0
        %v9071 = vmax.f32 %v8148, 0.0
        %v9072 = vmax.f32 %v8150, 0.0
        %v9073 = vmax.f32 %v8277, 0.0
        %v9074 = vmax.f32 %v8279, 0.0
        %v9075 = vmax.f32 %v8406, 0.0
        %v9076 = vmax.f32 %v8408, 0.0
        %v9077 = vmax.f32 %v8535, 0.0
        %v9078 = vmax.f32 %v8537, 0.0
        %v9079 = vmax.f32 %v8664, 0.0
        %v9080 = vmax.f32 %v8666, 0.0
        %v9081 = vmax.f32 %v8793, 0.0
        %v9082 = vmax.f32 %v8795, 0.0
        %v9083 = vmax.f32 %v8922, 0.0
        %v9084 = vmax.f32 %v8924, 0.0
        %v9085 = vmax.f32 %v9051, 0.0
        %v9086 = vmax.f32 %v9053, 0.0
        %v9087 = vmax.f32 %v7378, 0.0
        %v9088 = vmax.f32 %v7380, 0.0
        %v9089 = vmax.f32 %v7507, 0.0
        %v9090 = vmax.f32 %v7509, 0.0
        %v9091 = vmax.f32 %v7636, 0.0
        %v9092 = vmax.f32 %v7638, 0.0
        %v9093 = vmax.f32 %v7765, 0.0
        %v9094 = vmax.f32 %v7767, 0.0
        %v9095 = vmax.f32 %v7894, 0.0
        %v9096 = vmax.f32 %v7896, 0.0
        %v9097 = vmax.f32 %v8023, 0.0
        %v9098 = vmax.f32 %v8025, 0.0
        %v9099 = vmax.f32 %v8152, 0.0
        %v9100 = vmax.f32 %v8154, 0.0
        %v9101 = vmax.f32 %v8281, 0.0
        %v9102 = vmax.f32 %v8283, 0.0
        %v9103 = vmax.f32 %v8410, 0.0
        %v9104 = vmax.f32 %v8412, 0.0
        %v9105 = vmax.f32 %v8539, 0.0
        %v9106 = vmax.f32 %v8541, 0.0
        %v9107 = vmax.f32 %v8668, 0.0
        %v9108 = vmax.f32 %v8670, 0.0
        %v9109 = vmax.f32 %v8797, 0.0
        %v9110 = vmax.f32 %v8799, 0.0
        %v9111 = vmax.f32 %v8926, 0.0
        %v9112 = vmax.f32 %v8928, 0.0
        %v9113 = vmax.f32 %v9055, 0.0
        %v9114 = vmax.f32 %v9057, 0.0
        %v9115 = vmax.f32 %v9059, %v9066
        %v9116 = vmax.f32 %v9060, %v9067
        %v9117 = vmax.f32 %v9061, %v9068
        %v9118 = vmax.f32 %v9062, %v9069
        %v9119 = vmax.f32 %v9063, %v9070
        %v9120 = vmax.f32 %v9064, %v9071
        %v9121 = vmax.f32 %v9065, %v9072
        %v9122 = vmax.f32 %v9087, %v9094
        %v9123 = vmax.f32 %v9088, %v9095
        %v9124 = vmax.f32 %v9089, %v9096
        %v9125 = vmax.f32 %v9090, %v9097
        %v9126 = vmax.f32 %v9091, %v9098
        %v9127 = vmax.f32 %v9092, %v9099
        %v9128 = vmax.f32 %v9093, %v9100
        %v9129 = vmax.f32 %v9073, %v9080
        %v9130 = vmax.f32 %v9074, %v9081
        %v9131 = vmax.f32 %v9075, %v9082
        %v9132 = vmax.f32 %v9076, %v9083
        %v9133 = vmax.f32 %v9077, %v9084
        %v9134 = vmax.f32 %v9078, %v9085
        %v9135 = vmax.f32 %v9079, %v9086
        %v9136 = vmax.f32 %v9101, %v9108
        %v9137 = vmax.f32 %v9102, %v9109
        %v9138 = vmax.f32 %v9103, %v9110
        %v9139 = vmax.f32 %v9104, %v9111
        %v9140 = vmax.f32 %v9105, %v9112
        %v9141 = vmax.f32 %v9106, %v9113
        %v9142 = vmax.f32 %v9107, %v9114
        %v9143 = vmax.f32 %v9115, %v9129
        %v9144 = vmax.f32 %v9116, %v9130
        %v9145 = vmax.f32 %v9117, %v9131
        %v9146 = vmax.f32 %v9118, %v9132
        %v9147 = vmax.f32 %v9119, %v9133
        %v9148 = vmax.f32 %v9120, %v9134
        %v9149 = vmax.f32 %v9121, %v9135
        %v9150 = vmax.f32 %v9122, %v9136
        %v9151 = vmax.f32 %v9123, %v9137
        %v9152 = vmax.f32 %v9124, %v9138
        %v9153 = vmax.f32 %v9125, %v9139
        %v9154 = vmax.f32 %v9126, %v9140
        %v9155 = vmax.f32 %v9127, %v9141
        %v9156 = vmax.f32 %v9128, %v9142
        %v9157 = vpack.c.bf16 %v9150, %v9143
        %v9158 = vpack.c.bf16 %v9151, %v9144
        %v9159 = vpack.c.bf16 %v9152, %v9145
        %v9160 = vpack.c.bf16 %v9153, %v9146
        %v9161 = vpack.c.bf16 %v9154, %v9147
        %v9162 = vpack.c.bf16 %v9155, %v9148
        %v9163 = vpack.c.bf16 %v9156, %v9149
        %v9164 = vld [vmem:[%s3] sm:$0xf]
        %v9165 = vld [vmem:[%s3 + $0x4] sm:$0xf]
        %v9166 = vld [vmem:[%s3 + $0x8] sm:$0xf]
        %v9167 = vld [vmem:[%s3 + $0xc] sm:$0xf]
        %v9168 = vld [vmem:[%s3 + $0x10] sm:$0xf]
        %v9169 = vld [vmem:[%s3 + $0x14] sm:$0xf]
        %v9170 = vld [vmem:[%s3 + $0x18] sm:$0xf]
        %v9171 = vld [vmem:[%s3 + $0x1c] sm:$0xf]
        %v9172 = vld [vmem:[%s3 + $0x20] sm:$0xf]
        %v9173 = vld [vmem:[%s3 + $0x24] sm:$0xf]
        %v9174 = vld [vmem:[%s3 + $0x28] sm:$0xf]
        %v9175 = vld [vmem:[%s3 + $0x2c] sm:$0xf]
        %v9176 = vld [vmem:[%s3 + $0x30] sm:$0xf]
        %v9177 = vld [vmem:[%s3 + $0x34] sm:$0xf]
        %v9178 = vld [vmem:[%s3 + $0x38] sm:$0xf]
        %v9179 = vld [vmem:[%s3 + $0x3c] sm:$0xf]
        %v9180 = vld [vmem:[%s3 + $0x40] sm:$0xf]
        %v9181 = vld [vmem:[%s3 + $0x44] sm:$0xf]
        %v9182 = vld [vmem:[%s3 + $0x48] sm:$0xf]
        %v9183 = vld [vmem:[%s3 + $0x4c] sm:$0xf]
        %v9184 = vld [vmem:[%s3 + $0x50] sm:$0xf]
        %v9185 = vld [vmem:[%s3 + $0x54] sm:$0xf]
        %v9186 = vld [vmem:[%s3 + $0x58] sm:$0xf]
        %v9187 = vld [vmem:[%s3 + $0x5c] sm:$0xf]
        %v9188 = vld [vmem:[%s3 + $0x60] sm:$0xf]
        %v9189 = vld [vmem:[%s3 + $0x64] sm:$0xf]
        %v9190 = vld [vmem:[%s3 + $0x68] sm:$0xf]
        %v9191 = vld [vmem:[%s3 + $0x6c] sm:$0xf]
        %v9192 = vld [vmem:[%s3 + $0x70] sm:$0xf]
        %v9193 = vld [vmem:[%s3 + $0x74] sm:$0xf]
        %v9194 = vld [vmem:[%s3 + $0x78] sm:$0xf]
        %v9195 = vld [vmem:[%s3 + $0x7c] sm:$0xf]
        %v9196 = vld [vmem:[%s3 + $0x80] sm:$0xf]
        %v9197 = vld [vmem:[%s3 + $0x84] sm:$0xf]
        %v9198 = vld [vmem:[%s3 + $0x88] sm:$0xf]
        %v9199 = vld [vmem:[%s3 + $0x8c] sm:$0xf]
        %v9200 = vld [vmem:[%s3 + $0x90] sm:$0xf]
        %v9201 = vld [vmem:[%s3 + $0x94] sm:$0xf]
        %v9202 = vld [vmem:[%s3 + $0x98] sm:$0xf]
        %v9203 = vld [vmem:[%s3 + $0x9c] sm:$0xf]
        %v9204 = vld [vmem:[%s3 + $0xa0] sm:$0xf]
        %v9205 = vld [vmem:[%s3 + $0xa4] sm:$0xf]
        %v9206 = vld [vmem:[%s3 + $0xa8] sm:$0xf]
        %v9207 = vld [vmem:[%s3 + $0xac] sm:$0xf]
        %v9208 = vld [vmem:[%s3 + $0xb0] sm:$0xf]
        %v9209 = vld [vmem:[%s3 + $0xb4] sm:$0xf]
        %v9210 = vld [vmem:[%s3 + $0xb8] sm:$0xf]
        %v9211 = vld [vmem:[%s3 + $0xbc] sm:$0xf]
        %v9212 = vld [vmem:[%s3 + $0xc0] sm:$0xf]
        %v9213 = vld [vmem:[%s3 + $0xc4] sm:$0xf]
        %v9214 = vld [vmem:[%s3 + $0xc8] sm:$0xf]
        %v9215 = vld [vmem:[%s3 + $0xcc] sm:$0xf]
        %v9216 = vld [vmem:[%s3 + $0xd0] sm:$0xf]
        %v9217 = vld [vmem:[%s3 + $0xd4] sm:$0xf]
        %v9218 = vld [vmem:[%s3 + $0xd8] sm:$0xf]
        %v9219 = vld [vmem:[%s3 + $0xdc] sm:$0xf]
        %v9220 = vld [vmem:[%s3 + $0xe0] sm:$0xf]
        %v9221 = vld [vmem:[%s3 + $0xe4] sm:$0xf]
        %v9222 = vld [vmem:[%s3 + $0xe8] sm:$0xf]
        %v9223 = vld [vmem:[%s3 + $0xec] sm:$0xf]
        %v9224 = vld [vmem:[%s3 + $0xf0] sm:$0xf]
        %v9225 = vld [vmem:[%s3 + $0xf4] sm:$0xf]
        %v9226 = vld [vmem:[%s3 + $0xf8] sm:$0xf]
        %v9227 = vld [vmem:[%s3 + $0xfc] sm:$0xf]
        %v9228 = vld [vmem:[%s3 + $0x100] sm:$0xf]
        %v9229 = vld [vmem:[%s3 + $0x104] sm:$0xf]
        %v9230 = vld [vmem:[%s3 + $0x108] sm:$0xf]
        %v9231 = vld [vmem:[%s3 + $0x10c] sm:$0xf]
        %v9232 = vld [vmem:[%s3 + $0x110] sm:$0xf]
        %v9233 = vld [vmem:[%s3 + $0x114] sm:$0xf]
        %v9234 = vld [vmem:[%s3 + $0x118] sm:$0xf]
        %v9235 = vld [vmem:[%s3 + $0x11c] sm:$0xf]
        %v9236 = vld [vmem:[%s3 + $0x120] sm:$0xf]
        %v9237 = vld [vmem:[%s3 + $0x124] sm:$0xf]
        %v9238 = vld [vmem:[%s3 + $0x128] sm:$0xf]
        %v9239 = vld [vmem:[%s3 + $0x12c] sm:$0xf]
        %v9240 = vld [vmem:[%s3 + $0x130] sm:$0xf]
        %v9241 = vld [vmem:[%s3 + $0x134] sm:$0xf]
        %v9242 = vld [vmem:[%s3 + $0x138] sm:$0xf]
        %v9243 = vld [vmem:[%s3 + $0x13c] sm:$0xf]
        %v9244 = vld [vmem:[%s3 + $0x140] sm:$0xf]
        %v9245 = vld [vmem:[%s3 + $0x144] sm:$0xf]
        %v9246 = vld [vmem:[%s3 + $0x148] sm:$0xf]
        %v9247 = vld [vmem:[%s3 + $0x14c] sm:$0xf]
        %v9248 = vld [vmem:[%s3 + $0x150] sm:$0xf]
        %v9249 = vld [vmem:[%s3 + $0x154] sm:$0xf]
        %v9250 = vld [vmem:[%s3 + $0x158] sm:$0xf]
        %v9251 = vld [vmem:[%s3 + $0x15c] sm:$0xf]
        %v9252 = vld [vmem:[%s3 + $0x160] sm:$0xf]
        %v9253 = vld [vmem:[%s3 + $0x164] sm:$0xf]
        %v9254 = vld [vmem:[%s3 + $0x168] sm:$0xf]
        %v9255 = vld [vmem:[%s3 + $0x16c] sm:$0xf]
        %v9256 = vld [vmem:[%s3 + $0x170] sm:$0xf]
        %v9257 = vld [vmem:[%s3 + $0x174] sm:$0xf]
        %v9258 = vld [vmem:[%s3 + $0x178] sm:$0xf]
        %v9259 = vld [vmem:[%s3 + $0x17c] sm:$0xf]
        %v9260 = vld [vmem:[%s3 + $0x180] sm:$0xf]
        %v9261 = vld [vmem:[%s3 + $0x184] sm:$0xf]
        %v9262 = vld [vmem:[%s3 + $0x188] sm:$0xf]
        %v9263 = vld [vmem:[%s3 + $0x18c] sm:$0xf]
        %v9264 = vld [vmem:[%s3 + $0x190] sm:$0xf]
        %v9265 = vld [vmem:[%s3 + $0x194] sm:$0xf]
        %v9266 = vld [vmem:[%s3 + $0x198] sm:$0xf]
        %v9267 = vld [vmem:[%s3 + $0x19c] sm:$0xf]
        %v9268 = vld [vmem:[%s3 + $0x1a0] sm:$0xf]
        %v9269 = vld [vmem:[%s3 + $0x1a4] sm:$0xf]
        %v9270 = vld [vmem:[%s3 + $0x1a8] sm:$0xf]
        %v9271 = vld [vmem:[%s3 + $0x1ac] sm:$0xf]
        %v9272 = vld [vmem:[%s3 + $0x1b0] sm:$0xf]
        %v9273 = vld [vmem:[%s3 + $0x1b4] sm:$0xf]
        %v9274 = vld [vmem:[%s3 + $0x1b8] sm:$0xf]
        %v9275 = vld [vmem:[%s3 + $0x1bc] sm:$0xf]
        %v9276 = vld [vmem:[#allocation6] sm:$0x1]
        %v9278 = vlaneseq
        %v9279 = vshrl.u32 %v9278, 7
        %v9280 = vsub.s32 0, %v9279
        %v9281 = vrot.slane %v9276, %v9280
        %v9395 = vunpack.c.l.b16 %v9164
        %v9396 = vunpack.c.l.b16 %v9165
        %v9397 = vunpack.c.l.b16 %v9166
        %v9398 = vunpack.c.l.b16 %v9167
        %v9399 = vunpack.c.l.b16 %v9168
        %v9400 = vunpack.c.l.b16 %v9169
        %v9401 = vunpack.c.l.b16 %v9170
        %v9402 = vunpack.c.l.b16 %v9171
        %v9403 = vunpack.c.l.b16 %v9172
        %v9404 = vunpack.c.l.b16 %v9173
        %v9405 = vunpack.c.l.b16 %v9174
        %v9406 = vunpack.c.l.b16 %v9175
        %v9407 = vunpack.c.l.b16 %v9176
        %v9408 = vunpack.c.l.b16 %v9177
        %v9409 = vunpack.c.l.b16 %v9178
        %v9410 = vunpack.c.l.b16 %v9179
        %v9411 = vunpack.c.l.b16 %v9180
        %v9412 = vunpack.c.l.b16 %v9181
        %v9413 = vunpack.c.l.b16 %v9182
        %v9414 = vunpack.c.l.b16 %v9183
        %v9415 = vunpack.c.l.b16 %v9184
        %v9416 = vunpack.c.l.b16 %v9185
        %v9417 = vunpack.c.l.b16 %v9186
        %v9418 = vunpack.c.l.b16 %v9187
        %v9419 = vunpack.c.l.b16 %v9188
        %v9420 = vunpack.c.l.b16 %v9189
        %v9421 = vunpack.c.l.b16 %v9190
        %v9422 = vunpack.c.l.b16 %v9191
        %v9423 = vunpack.c.l.b16 %v9192
        %v9424 = vunpack.c.l.b16 %v9193
        %v9425 = vunpack.c.l.b16 %v9194
        %v9426 = vunpack.c.l.b16 %v9195
        %v9427 = vunpack.c.l.b16 %v9196
        %v9428 = vunpack.c.l.b16 %v9197
        %v9429 = vunpack.c.l.b16 %v9198
        %v9430 = vunpack.c.l.b16 %v9199
        %v9431 = vunpack.c.l.b16 %v9200
        %v9432 = vunpack.c.l.b16 %v9201
        %v9433 = vunpack.c.l.b16 %v9202
        %v9434 = vunpack.c.l.b16 %v9203
        %v9435 = vunpack.c.l.b16 %v9204
        %v9436 = vunpack.c.l.b16 %v9205
        %v9437 = vunpack.c.l.b16 %v9206
        %v9438 = vunpack.c.l.b16 %v9207
        %v9439 = vunpack.c.l.b16 %v9208
        %v9440 = vunpack.c.l.b16 %v9209
        %v9441 = vunpack.c.l.b16 %v9210
        %v9442 = vunpack.c.l.b16 %v9211
        %v9443 = vunpack.c.l.b16 %v9212
        %v9444 = vunpack.c.l.b16 %v9213
        %v9445 = vunpack.c.l.b16 %v9214
        %v9446 = vunpack.c.l.b16 %v9215
        %v9447 = vunpack.c.l.b16 %v9216
        %v9448 = vunpack.c.l.b16 %v9217
        %v9449 = vunpack.c.l.b16 %v9218
        %v9450 = vunpack.c.l.b16 %v9219
        %v9451 = vunpack.c.l.b16 %v9220
        %v9452 = vunpack.c.l.b16 %v9221
        %v9453 = vunpack.c.l.b16 %v9222
        %v9454 = vunpack.c.l.b16 %v9223
        %v9455 = vunpack.c.l.b16 %v9224
        %v9456 = vunpack.c.l.b16 %v9225
        %v9457 = vunpack.c.l.b16 %v9226
        %v9458 = vunpack.c.l.b16 %v9227
        %v9459 = vunpack.c.l.b16 %v9228
        %v9460 = vunpack.c.l.b16 %v9229
        %v9461 = vunpack.c.l.b16 %v9230
        %v9462 = vunpack.c.l.b16 %v9231
        %v9463 = vunpack.c.l.b16 %v9232
        %v9464 = vunpack.c.l.b16 %v9233
        %v9465 = vunpack.c.l.b16 %v9234
        %v9466 = vunpack.c.l.b16 %v9235
        %v9467 = vunpack.c.l.b16 %v9236
        %v9468 = vunpack.c.l.b16 %v9237
        %v9469 = vunpack.c.l.b16 %v9238
        %v9470 = vunpack.c.l.b16 %v9239
        %v9471 = vunpack.c.l.b16 %v9240
        %v9472 = vunpack.c.l.b16 %v9241
        %v9473 = vunpack.c.l.b16 %v9242
        %v9474 = vunpack.c.l.b16 %v9243
        %v9475 = vunpack.c.l.b16 %v9244
        %v9476 = vunpack.c.l.b16 %v9245
        %v9477 = vunpack.c.l.b16 %v9246
        %v9478 = vunpack.c.l.b16 %v9247
        %v9479 = vunpack.c.l.b16 %v9248
        %v9480 = vunpack.c.l.b16 %v9249
        %v9481 = vunpack.c.l.b16 %v9250
        %v9482 = vunpack.c.l.b16 %v9251
        %v9483 = vunpack.c.l.b16 %v9252
        %v9484 = vunpack.c.l.b16 %v9253
        %v9485 = vunpack.c.l.b16 %v9254
        %v9486 = vunpack.c.l.b16 %v9255
        %v9487 = vunpack.c.l.b16 %v9256
        %v9488 = vunpack.c.l.b16 %v9257
        %v9489 = vunpack.c.l.b16 %v9258
        %v9490 = vunpack.c.l.b16 %v9259
        %v9491 = vunpack.c.l.b16 %v9260
        %v9492 = vunpack.c.l.b16 %v9261
        %v9493 = vunpack.c.l.b16 %v9262
        %v9494 = vunpack.c.l.b16 %v9263
        %v9495 = vunpack.c.l.b16 %v9264
        %v9496 = vunpack.c.l.b16 %v9265
        %v9497 = vunpack.c.l.b16 %v9266
        %v9498 = vunpack.c.l.b16 %v9267
        %v9499 = vunpack.c.l.b16 %v9268
        %v9500 = vunpack.c.l.b16 %v9269
        %v9501 = vunpack.c.l.b16 %v9270
        %v9502 = vunpack.c.l.b16 %v9271
        %v9503 = vunpack.c.l.b16 %v9272
        %v9504 = vunpack.c.l.b16 %v9273
        %v9505 = vunpack.c.l.b16 %v9274
        %v9506 = vunpack.c.l.b16 %v9275
        %v9507 = vpack.c.b16 %v9396, %v9395
        %v9508 = vpack.c.b16 %v9398, %v9397
        %v9509 = vpack.c.b16 %v9400, %v9399
        %v9510 = vpack.c.b16 %v9402, %v9401
        %v9511 = vpack.c.b16 %v9404, %v9403
        %v9512 = vpack.c.b16 %v9406, %v9405
        %v9513 = vpack.c.b16 %v9408, %v9407
        %v9514 = vpack.c.b16 %v9410, %v9409
        %v9515 = vpack.c.b16 %v9412, %v9411
        %v9516 = vpack.c.b16 %v9414, %v9413
        %v9517 = vpack.c.b16 %v9416, %v9415
        %v9518 = vpack.c.b16 %v9418, %v9417
        %v9519 = vpack.c.b16 %v9420, %v9419
        %v9520 = vpack.c.b16 %v9422, %v9421
        %v9521 = vpack.c.b16 %v9424, %v9423
        %v9522 = vpack.c.b16 %v9426, %v9425
        %v9523 = vpack.c.b16 %v9428, %v9427
        %v9524 = vpack.c.b16 %v9430, %v9429
        %v9525 = vpack.c.b16 %v9432, %v9431
        %v9526 = vpack.c.b16 %v9434, %v9433
        %v9527 = vpack.c.b16 %v9436, %v9435
        %v9528 = vpack.c.b16 %v9438, %v9437
        %v9529 = vpack.c.b16 %v9440, %v9439
        %v9530 = vpack.c.b16 %v9442, %v9441
        %v9531 = vpack.c.b16 %v9444, %v9443
        %v9532 = vpack.c.b16 %v9446, %v9445
        %v9533 = vpack.c.b16 %v9448, %v9447
        %v9534 = vpack.c.b16 %v9450, %v9449
        %v9535 = vpack.c.b16 %v9452, %v9451
        %v9536 = vpack.c.b16 %v9454, %v9453
        %v9537 = vpack.c.b16 %v9456, %v9455
        %v9538 = vpack.c.b16 %v9458, %v9457
        %v9539 = vpack.c.b16 %v9460, %v9459
        %v9540 = vpack.c.b16 %v9462, %v9461
        %v9541 = vpack.c.b16 %v9464, %v9463
        %v9542 = vpack.c.b16 %v9466, %v9465
        %v9543 = vpack.c.b16 %v9468, %v9467
        %v9544 = vpack.c.b16 %v9470, %v9469
        %v9545 = vpack.c.b16 %v9472, %v9471
        %v9546 = vpack.c.b16 %v9474, %v9473
        %v9547 = vpack.c.b16 %v9476, %v9475
        %v9548 = vpack.c.b16 %v9478, %v9477
        %v9549 = vpack.c.b16 %v9480, %v9479
        %v9550 = vpack.c.b16 %v9482, %v9481
        %v9551 = vpack.c.b16 %v9484, %v9483
        %v9552 = vpack.c.b16 %v9486, %v9485
        %v9553 = vpack.c.b16 %v9488, %v9487
        %v9554 = vpack.c.b16 %v9490, %v9489
        %v9555 = vpack.c.b16 %v9492, %v9491
        %v9556 = vpack.c.b16 %v9494, %v9493
        %v9557 = vpack.c.b16 %v9496, %v9495
        %v9558 = vpack.c.b16 %v9498, %v9497
        %v9559 = vpack.c.b16 %v9500, %v9499
        %v9560 = vpack.c.b16 %v9502, %v9501
        %v9561 = vpack.c.b16 %v9504, %v9503
        %v9562 = vpack.c.b16 %v9506, %v9505
        %9619 = vmatprep.subr.bf16.mxu0 0
        %9620 = vmatpush1.bf16.msra.mxu0 %v9507
        %9621 = vmatprep.subr.bf16.mxu0 0
        %9622 = vmatpush1.bf16.msra.mxu0 %v9508
        %9623 = vmatprep.subr.bf16.mxu0 0
        %9624 = vmatpush1.bf16.msra.mxu0 %v9509
        %9625 = vmatprep.subr.bf16.mxu0 0
        %9626 = vmatpush1.bf16.msra.mxu0 %v9510
        %9627 = vmatprep.subr.bf16.mxu0 0
        %9628 = vmatpush1.bf16.msra.mxu0 %v9511
        %9629 = vmatprep.subr.bf16.mxu0 0
        %9630 = vmatpush1.bf16.msra.mxu0 %v9512
        %9631 = vmatprep.subr.bf16.mxu0 0
        %9632 = vmatpush1.bf16.msra.mxu0 %v9513
        %9633 = vmatprep.subr.bf16.mxu0 0
        %9634 = vmatpush1.bf16.msra.mxu0 %v9514
        %9635 = vmatprep.subr.bf16.mxu0 0
        %9636 = vmatpush1.bf16.msra.mxu0 %v9515
        %9637 = vmatprep.subr.bf16.mxu0 0
        %9638 = vmatpush1.bf16.msra.mxu0 %v9516
        %9639 = vmatprep.subr.bf16.mxu0 0
        %9640 = vmatpush1.bf16.msra.mxu0 %v9517
        %9641 = vmatprep.subr.bf16.mxu0 0
        %9642 = vmatpush1.bf16.msra.mxu0 %v9518
        %9643 = vmatprep.subr.bf16.mxu0 0
        %9644 = vmatpush1.bf16.msra.mxu0 %v9519
        %9645 = vmatprep.subr.bf16.mxu0 0
        %9646 = vmatpush1.bf16.msra.mxu0 %v9520
        %9647 = vmatprep.subr.bf16.mxu0 0
        %9648 = vmatpush1.bf16.msra.mxu0 %v9521
        %9649 = vmatprep.subr.bf16.mxu0 0
        %9650 = vmatpush1.bf16.msra.mxu0 %v9522
        %9651 = vmatprep.mubr.bf16.mxu0 %v9158
        %9652 = vmatmul.mubr.bf16.gmra.mrb[0].mxu0 %v9157
        %v9653 = vpop.f32.mrb[0].mxu0
        %v9654 = vadd.f32 %v9281, %v9653
        %v9655 = vpop.f32.mrb[0].mxu0
        %v9656 = vpop.f32.mrb[0].mxu0
        %v9657 = vadd.f32 %v9281, %v9656
        %v9658 = vpop.f32.mrb[0].mxu0
        %9659 = vdwg.mxu0
        %9660 = vmatprep.subr.bf16.mxu0 0
        %9661 = vmatpush1.bf16.msra.mxu0 %v9523
        %9662 = vmatprep.subr.bf16.mxu0 0
        %9663 = vmatpush1.bf16.msra.mxu0 %v9524
        %9664 = vmatprep.subr.bf16.mxu0 0
        %9665 = vmatpush1.bf16.msra.mxu0 %v9525
        %9666 = vmatprep.subr.bf16.mxu0 0
        %9667 = vmatpush1.bf16.msra.mxu0 %v9526
        %9668 = vmatprep.subr.bf16.mxu0 0
        %9669 = vmatpush1.bf16.msra.mxu0 %v9527
        %9670 = vmatprep.subr.bf16.mxu0 0
        %9671 = vmatpush1.bf16.msra.mxu0 %v9528
        %9672 = vmatprep.subr.bf16.mxu0 0
        %9673 = vmatpush1.bf16.msra.mxu0 %v9529
        %9674 = vmatprep.subr.bf16.mxu0 0
        %9675 = vmatpush1.bf16.msra.mxu0 %v9530
        %9676 = vmatprep.subr.bf16.mxu0 0
        %9677 = vmatpush1.bf16.msra.mxu0 %v9531
        %9678 = vmatprep.subr.bf16.mxu0 0
        %9679 = vmatpush1.bf16.msra.mxu0 %v9532
        %9680 = vmatprep.subr.bf16.mxu0 0
        %9681 = vmatpush1.bf16.msra.mxu0 %v9533
        %9682 = vmatprep.subr.bf16.mxu0 0
        %9683 = vmatpush1.bf16.msra.mxu0 %v9534
        %9684 = vmatprep.subr.bf16.mxu0 0
        %9685 = vmatpush1.bf16.msra.mxu0 %v9535
        %9686 = vmatprep.subr.bf16.mxu0 0
        %9687 = vmatpush1.bf16.msra.mxu0 %v9536
        %9688 = vmatprep.subr.bf16.mxu0 0
        %9689 = vmatpush1.bf16.msra.mxu0 %v9537
        %9690 = vmatprep.subr.bf16.mxu0 0
        %9691 = vmatpush1.bf16.msra.mxu0 %v9538
        %9692 = vmatprep.mubr.bf16.mxu0 %v9160
        %9693 = vmatmul.mubr.bf16.gmra.mrb[0].mxu0 %v9159
        %v9694 = vpop.f32.mrb[0].mxu0
        %v9695 = vadd.f32 %v9654, %v9694
        %v9696 = vpop.f32.mrb[0].mxu0
        %v9697 = vpop.f32.mrb[0].mxu0
        %v9698 = vadd.f32 %v9657, %v9697
        %v9699 = vpop.f32.mrb[0].mxu0
        %9700 = vdwg.mxu0
        %9701 = vmatprep.subr.bf16.mxu0 0
        %9702 = vmatpush1.bf16.msra.mxu0 %v9539
        %9703 = vmatprep.subr.bf16.mxu0 0
        %9704 = vmatpush1.bf16.msra.mxu0 %v9540
        %9705 = vmatprep.subr.bf16.mxu0 0
        %9706 = vmatpush1.bf16.msra.mxu0 %v9541
        %9707 = vmatprep.subr.bf16.mxu0 0
        %9708 = vmatpush1.bf16.msra.mxu0 %v9542
        %9709 = vmatprep.subr.bf16.mxu0 0
        %9710 = vmatpush1.bf16.msra.mxu0 %v9543
        %9711 = vmatprep.subr.bf16.mxu0 0
        %9712 = vmatpush1.bf16.msra.mxu0 %v9544
        %9713 = vmatprep.subr.bf16.mxu0 0
        %9714 = vmatpush1.bf16.msra.mxu0 %v9545
        %9715 = vmatprep.subr.bf16.mxu0 0
        %9716 = vmatpush1.bf16.msra.mxu0 %v9546
        %9717 = vmatprep.subr.bf16.mxu0 0
        %9718 = vmatpush1.bf16.msra.mxu0 %v9547
        %9719 = vmatprep.subr.bf16.mxu0 0
        %9720 = vmatpush1.bf16.msra.mxu0 %v9548
        %9721 = vmatprep.subr.bf16.mxu0 0
        %9722 = vmatpush1.bf16.msra.mxu0 %v9549
        %9723 = vmatprep.subr.bf16.mxu0 0
        %9724 = vmatpush1.bf16.msra.mxu0 %v9550
        %9725 = vmatprep.subr.bf16.mxu0 0
        %9726 = vmatpush1.bf16.msra.mxu0 %v9551
        %9727 = vmatprep.subr.bf16.mxu0 0
        %9728 = vmatpush1.bf16.msra.mxu0 %v9552
        %9729 = vmatprep.subr.bf16.mxu0 0
        %9730 = vmatpush1.bf16.msra.mxu0 %v9553
        %9731 = vmatprep.subr.bf16.mxu0 0
        %9732 = vmatpush1.bf16.msra.mxu0 %v9554
        %9733 = vmatprep.mubr.bf16.mxu0 %v9162
        %9734 = vmatmul.mubr.bf16.gmra.mrb[0].mxu0 %v9161
        %v9735 = vpop.f32.mrb[0].mxu0
        %v9736 = vadd.f32 %v9695, %v9735
        %v9737 = vpop.f32.mrb[0].mxu0
        %v9738 = vpop.f32.mrb[0].mxu0
        %v9739 = vadd.f32 %v9698, %v9738
        %v9740 = vpop.f32.mrb[0].mxu0
        %9741 = vdwg.mxu0
        %9742 = vmatprep.subr.bf16.mxu0 0
        %9743 = vmatpush1.bf16.msra.mxu0 %v9555
        %9744 = vmatprep.subr.bf16.mxu0 0
        %9745 = vmatpush1.bf16.msra.mxu0 %v9556
        %9746 = vmatprep.subr.bf16.mxu0 0
        %9747 = vmatpush1.bf16.msra.mxu0 %v9557
        %9748 = vmatprep.subr.bf16.mxu0 0
        %9749 = vmatpush1.bf16.msra.mxu0 %v9558
        %9750 = vmatprep.subr.bf16.mxu0 0
        %9751 = vmatpush1.bf16.msra.mxu0 %v9559
        %9752 = vmatprep.subr.bf16.mxu0 0
        %9753 = vmatpush1.bf16.msra.mxu0 %v9560
        %9754 = vmatprep.subr.bf16.mxu0 0
        %9755 = vmatpush1.bf16.msra.mxu0 %v9561
        %9756 = vmatprep.subr.bf16.mxu0 0
        %9757 = vmatpush1.bf16.msra.mxu0 %v9562
        %9758 = vmatprep.subr.bf16.mxu0 0
        %9759 = vmatpush1.bf16.msra.mxu0 0
        %9760 = vmatprep.subr.bf16.mxu0 0
        %9761 = vmatpush1.bf16.msra.mxu0 0
        %9762 = vmatprep.subr.bf16.mxu0 0
        %9763 = vmatpush1.bf16.msra.mxu0 0
        %9764 = vmatprep.subr.bf16.mxu0 0
        %9765 = vmatpush1.bf16.msra.mxu0 0
        %9766 = vmatprep.subr.bf16.mxu0 0
        %9767 = vmatpush1.bf16.msra.mxu0 0
        %9768 = vmatprep.subr.bf16.mxu0 0
        %9769 = vmatpush1.bf16.msra.mxu0 0
        %9770 = vmatprep.subr.bf16.mxu0 0
        %9771 = vmatpush1.bf16.msra.mxu0 0
        %9772 = vmatprep.subr.bf16.mxu0 0
        %9773 = vmatpush1.bf16.msra.mxu0 0
        %9774 = vmatprep.mubr.bf16.mxu0 0
        %9775 = vmatmul.mubr.bf16.gmra.mrb[0].mxu0 %v9163
        %v9776 = vpop.f32.mrb[0].mxu0
        %v9777 = vadd.f32 %v9736, %v9776
        %v9778 = vpop.f32.mrb[0].mxu0
        %v9779 = vpop.f32.mrb[0].mxu0
        %v9780 = vadd.f32 %v9739, %v9779
        %v9781 = vpop.f32.mrb[0].mxu0
        %9782 = vdwg.mxu0
        %v9783 = vmax.f32 %v9777, 0.0
        %v9784 = vmax.f32 %v9780, 0.0
        %v9785 = vpack.c.bf16 %v9784, %v9783
        %v9786 = vld [vmem:[#allocation7] sm:$0xf]
        %v9787 = vld [vmem:[#allocation7 + $0x4] sm:$0xf]
        %v9788 = vld [vmem:[#allocation7 + $0x8] sm:$0xf]
        %v9789 = vld [vmem:[#allocation7 + $0xc] sm:$0xf]
        %v9790 = vld [vmem:[#allocation7 + $0x10] sm:$0xf]
        %v9791 = vld [vmem:[#allocation7 + $0x14] sm:$0xf]
        %v9792 = vld [vmem:[#allocation7 + $0x18] sm:$0xf]
        %v9793 = vld [vmem:[#allocation7 + $0x1c] sm:$0xf]
        %v9794 = vld [vmem:[#allocation9] sm:$0x1]
        %v9796 = vlaneseq
        %v9797 = vshrl.u32 %v9796, 7
        %v9798 = vsub.s32 0, %v9797
        %v9799 = vrot.slane %v9794, %v9798
        %v9809 = vunpack.c.l.b16 %v9786
        %v9810 = vunpack.c.l.b16 %v9787
        %v9811 = vunpack.c.l.b16 %v9788
        %v9812 = vunpack.c.l.b16 %v9789
        %v9813 = vunpack.c.l.b16 %v9790
        %v9814 = vunpack.c.l.b16 %v9791
        %v9815 = vunpack.c.l.b16 %v9792
        %v9816 = vunpack.c.l.b16 %v9793
        %v9817 = vpack.c.b16 %v9810, %v9809
        %v9818 = vpack.c.b16 %v9812, %v9811
        %v9819 = vpack.c.b16 %v9814, %v9813
        %v9820 = vpack.c.b16 %v9816, %v9815
        %vm9825 = vcmask 523264
        %v9827 = vsel %vm9825, %v9785, 0
        %9829 = vmatprep.subr.bf16.mxu0 0
        %9830 = vmatpush1.bf16.msra.mxu0 %v9817
        %9831 = vmatprep.subr.bf16.mxu0 0
        %9832 = vmatpush1.bf16.msra.mxu0 %v9818
        %9833 = vmatprep.subr.bf16.mxu0 0
        %9834 = vmatpush1.bf16.msra.mxu0 %v9819
        %9835 = vmatprep.subr.bf16.mxu0 0
        %9836 = vmatpush1.bf16.msra.mxu0 %v9820
        %9837 = vmatprep.subr.bf16.mxu0 0
        %9838 = vmatpush1.bf16.msra.mxu0 0
        %9839 = vmatprep.subr.bf16.mxu0 0
        %9840 = vmatpush1.bf16.msra.mxu0 0
        %9841 = vmatprep.subr.bf16.mxu0 0
        %9842 = vmatpush1.bf16.msra.mxu0 0
        %9843 = vmatprep.subr.bf16.mxu0 0
        %9844 = vmatpush1.bf16.msra.mxu0 0
        %9845 = vmatprep.subr.bf16.mxu0 0
        %9846 = vmatpush1.bf16.msra.mxu0 0
        %9847 = vmatprep.subr.bf16.mxu0 0
        %9848 = vmatpush1.bf16.msra.mxu0 0
        %9849 = vmatprep.subr.bf16.mxu0 0
        %9850 = vmatpush1.bf16.msra.mxu0 0
        %9851 = vmatprep.subr.bf16.mxu0 0
        %9852 = vmatpush1.bf16.msra.mxu0 0
        %9853 = vmatprep.subr.bf16.mxu0 0
        %9854 = vmatpush1.bf16.msra.mxu0 0
        %9855 = vmatprep.subr.bf16.mxu0 0
        %9856 = vmatpush1.bf16.msra.mxu0 0
        %9857 = vmatprep.subr.bf16.mxu0 0
        %9858 = vmatpush1.bf16.msra.mxu0 0
        %9859 = vmatprep.subr.bf16.mxu0 0
        %9860 = vmatpush1.bf16.msra.mxu0 0
        %9861 = vmatprep.mubr.bf16.mxu0 0
        %9862 = vmatmul.mubr.bf16.gmra.mrb[0].mxu0 %v9827
        %v9863 = vpop.f32.mrb[0].mxu0
        %v9864 = vadd.f32 %v9799, %v9863
        %v9865 = vpop.f32.mrb[0].mxu0
        %v9866 = vpop.f32.mrb[0].mxu0
        %v9867 = vadd.f32 %v9799, %v9866
        %v9868 = vpop.f32.mrb[0].mxu0
        %9869 = vdwg.mxu0
        %9870 = vst [vmem:[%s350] sm:$0xff] %v9864
        %9871 = vst [vmem:[%s350 + $0x8] sm:$0xff] %v9867
        %s9872 = smul.u32 2, %s21
        %p9873 = scmp.lt.s32.totalorder %s9872, 3
        %s9874 = scalar_select %p9873, %s9872, 3
        %s9875 = smul.addr %s9874, 8
        %s9876 = scalar_lea.vmem %s7, %s9875
        // Predicated region
        $region69: #{simple_cnn_forward.1} parent=47 // pred_check
          %p9877 = pneg %p191
        $region70: #{simple_cnn_forward.1} parent=47 // pred_check_branch
          %9879 = sbr.rel (%p9877) target = $region72
        $region71: #{simple_cnn_forward.1} parent=47 // pred_region
          %s9880 = smul.u32 2, %s21
        $region72: #{simple_cnn_forward.1} parent=47 // pred_fallthru
          _
      $region48: #{simple_cnn_forward.1} parent=5 // pred_fallthru
        _
      %p9881 = scmp.le.s32.totalorder 2, %s16
      // Predicated region
      $region73: #{simple_cnn_forward.1} parent=5 // pred_check
        %p9882 = pneg %p9881
      $region74: #{simple_cnn_forward.1} parent=5 // pred_check_branch
        %9884 = sbr.rel (%p9882) target = $region76
      $region75: #{simple_cnn_forward.1} parent=5 // pred_region
        %s9885 = ssub.s32 %s16, 2
        // Predicated region
        $region77: #{simple_cnn_forward.1} parent=75 // pred_check
          %p9886 = pneg %p197
        $region78: #{simple_cnn_forward.1} parent=75 // pred_check_branch
          %9888 = sbr.rel (%p9886) target = $region80
        $region79: #{simple_cnn_forward.1} parent=75 // pred_region
          %s9889 = smul.u32 2, %s22
          %p9890 = scmp.lt.s32.totalorder %s9889, 3
          %s9891 = scalar_select %p9890, %s9889, 3
          %s9892 = smul.addr %s9891, 8
          %s9893 = scalar_lea.vmem %s7, %s9892
        $region80: #{simple_cnn_forward.1} parent=75 // pred_fallthru
          _
      $region76: #{simple_cnn_forward.1} parent=5 // pred_fallthru
        _
    $region6: #{simple_cnn_forward.1} parent=1 // loop_footer
      %s20 = sadd.s32 1, %s16
    $region7: #{simple_cnn_forward.1} parent=1 // loop_footer_branch
      %15 = sbr.rel target = $region3
    $region8: #{simple_cnn_forward.1} parent=1 // loop_exit
      _
    %9894 = vsyncpa [#allocation3], 1
    %s9895 = scalar_lea.sflag [#allocation3], 1
    %9896 = vsyncpa %s9895, 1
    %9897 = vsyncpa [#allocation5], 1
    %9898 = vsyncpa [#allocation8], 1

</llo_original>
